<compile_context>
chip_gen: v7x
topology: tpu7x:2x2x1
jax: 0.10.0
libtpu: 0.0.40
codegen_flags: <defaults>
</compile_context>

<pallas_src>
import functools
import jax
import jax.numpy as jnp
from jax.experimental import pallas as pl
from jax.experimental.pallas import tpu as pltpu

D = 8
W = 256
IN_CH_PTS = 63
IN_CH_DIR = 27
SKIPS = (4,)

PTS_PAD = 128          # pts padded 63 -> 128 (lane aligned)
DIR_PAD = 128          # dir padded 27 -> 128 (lane aligned)
H = W + 128            # fused feature(256) + sigma(1, padded to 128) = 384
OUT_W = 128            # packed output slab: col 0 = sigma, cols 1:4 = rgb

# bias slab layout, f32 (1, 2688):
#   [b0..b7 : 8 x 256][b_feat | b_sigma pad : 384][b_views : 128][b_rgb pad : 128]
_B_HEAD = D * W             # 2048
_B_VIEW = _B_HEAD + H       # 2432
_B_RGB = _B_VIEW + W // 2   # 2560
_B_TOT = _B_RGB + OUT_W     # 2688


# ----------------------------------------------------------------------------
# Per-generation tuning tables.
# ----------------------------------------------------------------------------
_TB_CAP = {"v7x": 1024, "v6e": 2048, "v5e": 2048, "v5p": 2048, "other": 1024}
_VMEM_LIMIT = {"v7x": 48 << 20, "v6e": 64 << 20, "v5e": 64 << 20,
               "v5p": 64 << 20, "other": None}
_BF16_ACTS = {"v7x": True, "v6e": True, "v5e": False, "v5p": False, "other": False}


def _tpu_flavor():
    try:
        kind = jax.devices()[0].device_kind.lower()
    except Exception:
        return "other"
    if "v7" in kind:
        return "v7x"
    if "v6" in kind:
        return "v6e"
    if "v5p" in kind:
        return "v5p"
    if "v5" in kind:
        return "v5e"
    return "other"


def _round_up(x, m):
    return ((x + m - 1) // m) * m


def _choose_tb(B, flavor):
    cap = _TB_CAP[flavor]
    # >= 2 grid steps whenever B allows (megacore split on v7x, pipeline
    # overlap everywhere); tiles stay multiples of 256 for full MXU M-occupancy.
    return max(256, min(cap, _round_up(pl.cdiv(B, 2), 256)))


# ----------------------------------------------------------------------------
# Kernel
# ----------------------------------------------------------------------------
def _nerf_kernel(pts_ref, dir_ref, w_in_ref, w_sq_ref, w_head_ref, w_tail_ref,
                 bias_ref, out_ref, *, act_dtype):
    def mm(x, w):
        # bf16 x bf16 MXU matmul with f32 accumulation.  The astype is a no-op
        # when x is already bf16 (bf16 inputs / bf16 activations mode).
        return jnp.dot(x.astype(jnp.bfloat16), w,
                       preferred_element_type=jnp.float32)

    def act(v):
        # bias already added into v (f32); ReLU in f32, store at act_dtype
        # (bf16 on v6e/v7x, f32 on v5e).
        return jax.nn.relu(v).astype(act_dtype)

    pts = pts_ref[...]       # (tb, 128) bf16, cols 63: are zero
    dirs = dir_ref[...]      # (tb, 128) bf16, cols 27: are zero

    # layer 0: Linear(63 -> 256) + ReLU (zero-padded K)
    x = act(mm(pts, w_in_ref[0]) + bias_ref[:, 0:W])

    # layers 1..4: Linear(256 -> 256) + ReLU
    for j in range(4):
        lo = W * (j + 1)
        x = act(mm(x, w_sq_ref[j]) + bias_ref[:, lo:lo + W])

    # layer 5 with skip:  relu(cat([pts, x]) @ W5 + b5)
    #                   = relu(x @ W5_h + pts @ W5_pts + b5)   (no lane concat)
    x = act(mm(x, w_sq_ref[4]) + mm(pts, w_in_ref[1])
            + bias_ref[:, 5 * W:6 * W])

    # layers 6, 7
    for j in range(5, 7):
        lo = W * (j + 1)
        x = act(mm(x, w_sq_ref[j]) + bias_ref[:, lo:lo + W])

    # fused pts_feature (256 cols) + sigma head (col 256, cols 257:383 zero).
    fs = mm(x, w_head_ref[:, 0:H]) + bias_ref[:, _B_HEAD:_B_VIEW]   # (tb, 384) f32
    feat = fs[:, 0:W].astype(act_dtype)                             # (tb, 256)
    sigma_blk = jax.nn.relu(fs[:, W:H])          # (tb, 128) f32; sigma in col 0

    # view branch:  relu(cat([feat, dir]) @ Wv + bv)
    #             = relu(feat @ Wv_f + dir @ Wv_d + bv)             (no lane concat)
    views = act(mm(feat, w_head_ref[:, H:H + W // 2])
                + mm(dirs, w_tail_ref[:, 0:W // 2])
                + bias_ref[:, _B_VIEW:_B_RGB])                      # (tb, 128)

    # rgb head padded to 128 output lanes (rgb in cols 1:4) + Sigmoid.
    rgb_blk = jax.nn.sigmoid(mm(views, w_tail_ref[:, W // 2:W // 2 + OUT_W])
                             + bias_ref[:, _B_RGB:_B_TOT])          # (tb, 128) f32

    # pack: col 0 = sigma, cols 1:4 = rgb, rest don't-care -> one lane-dense store.
    lane = jax.lax.broadcasted_iota(jnp.int32, rgb_blk.shape, 1)
    out_ref[...] = jnp.where(lane == 0, sigma_blk, rgb_blk).astype(out_ref.dtype)


# ----------------------------------------------------------------------------
# Parameter init / packing
# ----------------------------------------------------------------------------
def init_params(key):
    """Deterministic PyTorch-style (uniform +-1/sqrt(fan_in)) init, weights as (in, out)."""
    params = []

    def linear(k, fan_in, fan_out):
        kw, kb = jax.random.split(k)
        bound = 1.0 / jnp.sqrt(jnp.float32(fan_in))
        w = jax.random.uniform(kw, (fan_in, fan_out), jnp.float32, -bound, bound)
        b = jax.random.uniform(kb, (1, fan_out), jnp.float32, -bound, bound)
        return [w, b]

    keys = jax.random.split(key, D + 4)
    for i in range(D):
        if i == 0:
            fan_in = IN_CH_PTS
        elif (i - 1) in SKIPS:
            fan_in = W + IN_CH_PTS
        else:
            fan_in = W
        params += linear(keys[i], fan_in, W)
    params += linear(keys[D], W, 1)                       # sigma_layer
    params += linear(keys[D + 1], W, W)                   # pts_feature_layer
    params += linear(keys[D + 2], W + IN_CH_DIR, W // 2)  # views_layers
    params += linear(keys[D + 3], W // 2, 3)              # rgb_layer
    return params


def pack_params(params, dtype=jnp.bfloat16):
    """Pack the 24 PyTorch-layout params into 5 fused, lane-aligned arrays.

    Returns (w_in, w_sq, w_head, w_tail, bias):
      w_in   (2, 128, 256) bf16 : [layer-0 weight, skip-layer pts weight] (63->128 rows)
      w_sq   (7, 256, 256) bf16 : layers 1..4, skip hidden part, layers 6, 7
      w_head (256, 512)    bf16 : [pts_feature (256) | sigma (1)+zeros | view-feat (128)]
      w_tail (128, 256)    bf16 : [view-dir (27->128 rows) | rgb padded to 128 cols]
      bias   (1, 2688)     f32  : all biases, see _B_* offsets
    """
    ws = list(params[0::2])
    bs = list(params[1::2])
    (w0, w1, w2, w3, w4, w5, w6, w7, w_sig, w_feat, w_v, w_rgb) = ws
    (b0, b1, b2, b3, b4, b5, b6, b7, b_sig, b_feat, b_v, b_rgb) = bs

    def pad_rows(w, rows):
        return jnp.pad(w, ((0, rows - w.shape[0]), (0, 0)))

    def pad_cols(w, cols):
        return jnp.pad(w, ((0, 0), (0, cols - w.shape[1])))

    # torch.cat([pts, x]): rows 0:63 of W5 multiply pts, rows 63:319 multiply x.
    w5_pts, w5_h = w5[:IN_CH_PTS], w5[IN_CH_PTS:]
    # torch.cat([feat, dir]): rows 0:256 of Wv multiply feat, rows 256:283 multiply dir.
    w_v_feat, w_v_dir = w_v[:W], w_v[W:]

    w_in = jnp.stack([pad_rows(w0, PTS_PAD),
                      pad_rows(w5_pts, PTS_PAD)]).astype(dtype)
    w_sq = jnp.stack([w1, w2, w3, w4, w5_h, w6, w7]).astype(dtype)
    w_head = jnp.concatenate(
        [w_feat, pad_cols(w_sig, 128), w_v_feat], axis=1).astype(dtype)
    w_rgb_pad = jnp.pad(w_rgb, ((0, 0), (1, OUT_W - 1 - w_rgb.shape[1])))
    w_tail = jnp.concatenate(
        [pad_rows(w_v_dir, DIR_PAD), w_rgb_pad], axis=1).astype(dtype)

    b_rgb_pad = jnp.pad(b_rgb, ((0, 0), (1, OUT_W - 1 - b_rgb.shape[1])))
    bias = jnp.concatenate(
        [b0, b1, b2, b3, b4, b5, b6, b7,
         b_feat, pad_cols(b_sig, 128), b_v, b_rgb_pad], axis=1).astype(jnp.float32)
    return w_in, w_sq, w_head, w_tail, bias


# ----------------------------------------------------------------------------
# Forward wrapper
# ----------------------------------------------------------------------------
@functools.partial(jax.jit, static_argnames=("tb", "bf16_acts", "vmem_limit_bytes"))
def _nerf_forward(pts, dirs, w_in, w_sq, w_head, w_tail, bias, *,
                  tb, bf16_acts, vmem_limit_bytes):
    B = pts.shape[0]
    n_blocks = pl.cdiv(B, tb)
    Bp = n_blocks * tb
    act_dtype = jnp.bfloat16 if bf16_acts else jnp.float32

    # Cast inputs to bf16 once (fused with the pad): halves per-step input DMA.
    pts_p = jnp.pad(pts.astype(jnp.bfloat16),
                    ((0, Bp - B), (0, PTS_PAD - IN_CH_PTS)))
    dir_p = jnp.pad(dirs.astype(jnp.bfloat16),
                    ((0, Bp - B), (0, DIR_PAD - IN_CH_DIR)))

    flops_per_row = (2 * PTS_PAD * W           # layer 0
                     + 7 * 2 * W * W           # layers 1-4, skip hidden, 6, 7
                     + 2 * PTS_PAD * W         # skip pts part
                     + 2 * W * H               # fused feature + sigma head
                     + 2 * W * (W // 2)        # view branch, feature part
                     + 2 * DIR_PAD * (W // 2)  # view branch, dir part
                     + 2 * (W // 2) * OUT_W)   # padded rgb head
    weight_bytes = sum(int(a.size) * a.dtype.itemsize
                       for a in (w_in, w_sq, w_head, w_tail, bias))
    cost = pl.CostEstimate(
        flops=int(Bp) * flops_per_row,
        transcendentals=int(Bp) * OUT_W,
        bytes_accessed=int(Bp) * ((PTS_PAD + DIR_PAD) * 2 + OUT_W * 4)
        + weight_bytes)

    # Grid-constant parameters: fetched once, single VMEM buffer (no double
    # buffering of constant inputs).
    def param_spec(shape, index_map):
        return pl.BlockSpec(shape, index_map, pipeline_mode=pl.Buffered(1))

    out = pl.pallas_call(
        functools.partial(_nerf_kernel, act_dtype=act_dtype),
        out_shape=jax.ShapeDtypeStruct((Bp, OUT_W), jnp.float32),
        grid_spec=pltpu.PrefetchScalarGridSpec(
            num_scalar_prefetch=0,
            grid=(n_blocks,),
            in_specs=[
                pl.BlockSpec((tb, PTS_PAD), lambda i: (i, 0)),
                pl.BlockSpec((tb, DIR_PAD), lambda i: (i, 0)),
                param_spec(w_in.shape, lambda i: (0, 0, 0)),
                param_spec(w_sq.shape, lambda i: (0, 0, 0)),
                param_spec(w_head.shape, lambda i: (0, 0)),
                param_spec(w_tail.shape, lambda i: (0, 0)),
                param_spec(bias.shape, lambda i: (0, 0)),
            ],
            out_specs=pl.BlockSpec((tb, OUT_W), lambda i: (i, 0)),
        ),
        compiler_params=pltpu.CompilerParams(
            dimension_semantics=("parallel",),
            vmem_limit_bytes=vmem_limit_bytes,
        ),
        cost_estimate=cost,
    )(pts_p, dir_p, w_in, w_sq, w_head, w_tail, bias)

    # TODO(synk): the PyTorch dir=None branch (sigma-only) is not exposed; the
    # kernel always computes both heads.
    return {"sigma": out[:B, 0:1], "rgb": out[:B, 1:4]}


def nerf_forward(pts, dirs, packed, *, tb=None, bf16_acts=None,
                 vmem_limit_bytes=None):
    """Full NeRF MLP in one Pallas kernel; the grid tiles only the batch dim.

    tb / activation-dtype / VMEM limit default per TPU generation:
      v5e/v6e : tb cap 2048, 64 MiB scoped VMEM; bf16 activations on v6e only.
      v7x     : tb cap 1024 (64 MiB physical VMEM), 48 MiB scoped, bf16 acts.
    """
    flavor = _tpu_flavor()
    if tb is None:
        tb = _choose_tb(pts.shape[0], flavor)
    if bf16_acts is None:
        bf16_acts = _BF16_ACTS[flavor]
    if vmem_limit_bytes is None:
        vmem_limit_bytes = _VMEM_LIMIT[flavor]
    w_in, w_sq, w_head, w_tail, bias = packed
    return _nerf_forward(pts, dirs, w_in, w_sq, w_head, w_tail, bias,
                         tb=int(tb), bf16_acts=bool(bf16_acts),
                         vmem_limit_bytes=vmem_limit_bytes)


# ----------------------------------------------------------------------------
# References
# ----------------------------------------------------------------------------
def nerf_ref(pts, dirs, params):
    """Pure-JAX f32 reference matching the PyTorch forward exactly."""
    def lin(x, w, b):
        return x @ w + b

    idx = 0
    x = pts
    for i in range(D):
        x = jax.nn.relu(lin(x, params[idx], params[idx + 1])); idx += 2
        if i in SKIPS:
            x = jnp.concatenate([pts, x], axis=-1)
    sigma = jax.nn.relu(lin(x, params[idx], params[idx + 1])); idx += 2
    feat = lin(x, params[idx], params[idx + 1]); idx += 2
    vf = jax.nn.relu(lin(jnp.concatenate([feat, dirs], -1),
                         params[idx], params[idx + 1])); idx += 2
    rgb = jax.nn.sigmoid(lin(vf, params[idx], params[idx + 1]))
    return {"sigma": sigma, "rgb": rgb}


def nerf_ref_bf16(pts, dirs, params):
    """Same forward but with bf16 matmul operands / f32 accumulation (kernel precision)."""
    def lin(x, w, b):
        return jnp.dot(x.astype(jnp.bfloat16), w.astype(jnp.bfloat16),
                       preferred_element_type=jnp.float32) + b

    idx = 0
    x = pts.astype(jnp.float32)
    for i in range(D):
        x = jax.nn.relu(lin(x, params[idx], params[idx + 1])); idx += 2
        if i in SKIPS:
            x = jnp.concatenate([pts, x], axis=-1)
    sigma = jax.nn.relu(lin(x, params[idx], params[idx + 1])); idx += 2
    feat = lin(x, params[idx], params[idx + 1]); idx += 2
    vf = jax.nn.relu(lin(jnp.concatenate([feat, dirs], -1),
                         params[idx], params[idx + 1])); idx += 2
    rgb = jax.nn.sigmoid(lin(vf, params[idx], params[idx + 1]))
    return {"sigma": sigma, "rgb": rgb}


if __name__ == "__main__":
    key = jax.random.PRNGKey(0)
    k_params, k_pts, k_dir = jax.random.split(key, 3)

    B = 1000  # small batch of ray samples; not a tile multiple (exercises padding)
    params = init_params(k_params)
    packed = pack_params(params)            # one-time bf16 cast + layout packing
    pts = jax.random.normal(k_pts, (B, IN_CH_PTS), jnp.float32)
    dirs = jax.random.normal(k_dir, (B, IN_CH_DIR), jnp.float32)

    # Auto-tuned tile / activation dtype / VMEM limit for the local TPU
    # generation (B=1000 -> tb=512, 2 grid steps -> both v7x TCs busy).
    out = nerf_forward(pts, dirs, packed)
    jax.block_until_ready(out)

    assert out["sigma"].shape == (B, 1) and out["rgb"].shape == (B, 3)

    # Match against a reference with the same bf16 matmul precision (tight) ...
    ref16 = nerf_ref_bf16(pts, dirs, params)
    assert jnp.allclose(out["sigma"], ref16["sigma"], atol=1e-2, rtol=1e-2)
    assert jnp.allclose(out["rgb"], ref16["rgb"], atol=1e-2, rtol=1e-2)

    # ... and against the exact f32 PyTorch-equivalent forward (bf16-level tolerance).
    ref32 = nerf_ref(pts, dirs, params)
    assert jnp.allclose(out["sigma"], ref32["sigma"], atol=5e-2, rtol=5e-2)
    assert jnp.allclose(out["rgb"], ref32["rgb"], atol=5e-2, rtol=5e-2)

    print("KERNEL_OK")
</pallas_src>

<mosaic_0001>
module attributes {stable_mosaic.version = 11 : i64} {
  func.func @_nerf_kernel(%arg0: i32, %arg1: memref<512x128xbf16, #tpu.memory_space<vmem>>, %arg2: memref<512x128xbf16, #tpu.memory_space<vmem>>, %arg3: memref<2x128x256xbf16, #tpu.memory_space<vmem>>, %arg4: memref<7x256x256xbf16, #tpu.memory_space<vmem>>, %arg5: memref<256x512xbf16, #tpu.memory_space<vmem>>, %arg6: memref<128x256xbf16, #tpu.memory_space<vmem>>, %arg7: memref<1x2688xf32, #tpu.memory_space<vmem>>, %arg8: memref<512x128xf32, #tpu.memory_space<vmem>>) attributes {dimension_semantics = [#tpu.dimension_semantics<parallel>], iteration_bounds = array<i64: 2>, scalar_prefetch = 0 : i64, scratch_operands = 0 : i64, tpu.core_type = #tpu.core_type<tc>, window_params = [{transform_indices = @transform_0, window_bounds = array<i64: 512, 128>}, {transform_indices = @transform_1, window_bounds = array<i64: 512, 128>}, {pipeline_mode = #tpu.pipeline_mode<synchronous>, transform_indices = @transform_2, window_bounds = array<i64: 2, 128, 256>}, {pipeline_mode = #tpu.pipeline_mode<synchronous>, transform_indices = @transform_3, window_bounds = array<i64: 7, 256, 256>}, {pipeline_mode = #tpu.pipeline_mode<synchronous>, transform_indices = @transform_4, window_bounds = array<i64: 256, 512>}, {pipeline_mode = #tpu.pipeline_mode<synchronous>, transform_indices = @transform_5, window_bounds = array<i64: 128, 256>}, {pipeline_mode = #tpu.pipeline_mode<synchronous>, transform_indices = @transform_6, window_bounds = array<i64: 1, 2688>}, {transform_indices = @transform_7, window_bounds = array<i64: 512, 128>}]} {
    %c0 = arith.constant 0 : index
    %c0_0 = arith.constant 0 : index
    %0 = vector.load %arg1[%c0, %c0_0] : memref<512x128xbf16, #tpu.memory_space<vmem>>, vector<512x128xbf16>
    %c0_1 = arith.constant 0 : index
    %c0_2 = arith.constant 0 : index
    %1 = vector.load %arg2[%c0_1, %c0_2] : memref<512x128xbf16, #tpu.memory_space<vmem>>, vector<512x128xbf16>
    %c0_3 = arith.constant 0 : index
    %c0_4 = arith.constant 0 : index
    %c0_5 = arith.constant 0 : index
    %2 = vector.load %arg3[%c0_3, %c0_4, %c0_5] : memref<2x128x256xbf16, #tpu.memory_space<vmem>>, vector<1x128x256xbf16>
    %3 = vector.shape_cast %2 : vector<1x128x256xbf16> to vector<128x256xbf16>
    %cst = arith.constant dense<0.000000e+00> : vector<512x256xf32>
    %4 = tpu.matmul %0, %3, %cst {dimension_numbers = #tpu.dot_dimension_numbers<[1], [0], [0], [1], [0, 0, 1, 1], [], []>} : vector<512x128xbf16>, vector<128x256xbf16>, vector<512x256xf32> -> vector<512x256xf32>
    %c0_6 = arith.constant 0 : index
    %c0_7 = arith.constant 0 : index
    %5 = vector.load %arg7[%c0_6, %c0_7] : memref<1x2688xf32, #tpu.memory_space<vmem>>, vector<1x256xf32>
    %6 = vector.broadcast %5 : vector<1x256xf32> to vector<512x256xf32>
    %7 = arith.addf %4, %6 : vector<512x256xf32>
    %cst_8 = arith.constant 0.000000e+00 : f32
    %8 = vector.broadcast %cst_8 : f32 to vector<512x256xf32>
    %9 = arith.maximumf %7, %8 : vector<512x256xf32>
    %c0_9 = arith.constant 0 : index
    %c0_10 = arith.constant 0 : index
    %c0_11 = arith.constant 0 : index
    %10 = vector.load %arg4[%c0_9, %c0_10, %c0_11] : memref<7x256x256xbf16, #tpu.memory_space<vmem>>, vector<1x256x256xbf16>
    %11 = vector.shape_cast %10 : vector<1x256x256xbf16> to vector<256x256xbf16>
    %12 = arith.truncf %9 : vector<512x256xf32> to vector<512x256xbf16>
    %cst_12 = arith.constant dense<0.000000e+00> : vector<512x256xf32>
    %13 = tpu.matmul %12, %11, %cst_12 {dimension_numbers = #tpu.dot_dimension_numbers<[1], [0], [0], [1], [0, 0, 1, 1], [], []>} : vector<512x256xbf16>, vector<256x256xbf16>, vector<512x256xf32> -> vector<512x256xf32>
    %c0_13 = arith.constant 0 : index
    %c256 = arith.constant 256 : index
    %14 = vector.load %arg7[%c0_13, %c256] : memref<1x2688xf32, #tpu.memory_space<vmem>>, vector<1x256xf32>
    %15 = vector.broadcast %14 : vector<1x256xf32> to vector<512x256xf32>
    %16 = arith.addf %13, %15 : vector<512x256xf32>
    %cst_14 = arith.constant 0.000000e+00 : f32
    %17 = vector.broadcast %cst_14 : f32 to vector<512x256xf32>
    %18 = arith.maximumf %16, %17 : vector<512x256xf32>
    %c1 = arith.constant 1 : index
    %c0_15 = arith.constant 0 : index
    %c0_16 = arith.constant 0 : index
    %19 = vector.load %arg4[%c1, %c0_15, %c0_16] : memref<7x256x256xbf16, #tpu.memory_space<vmem>>, vector<1x256x256xbf16>
    %20 = vector.shape_cast %19 : vector<1x256x256xbf16> to vector<256x256xbf16>
    %21 = arith.truncf %18 : vector<512x256xf32> to vector<512x256xbf16>
    %cst_17 = arith.constant dense<0.000000e+00> : vector<512x256xf32>
    %22 = tpu.matmul %21, %20, %cst_17 {dimension_numbers = #tpu.dot_dimension_numbers<[1], [0], [0], [1], [0, 0, 1, 1], [], []>} : vector<512x256xbf16>, vector<256x256xbf16>, vector<512x256xf32> -> vector<512x256xf32>
    %c0_18 = arith.constant 0 : index
    %c512 = arith.constant 512 : index
    %23 = vector.load %arg7[%c0_18, %c512] : memref<1x2688xf32, #tpu.memory_space<vmem>>, vector<1x256xf32>
    %24 = vector.broadcast %23 : vector<1x256xf32> to vector<512x256xf32>
    %25 = arith.addf %22, %24 : vector<512x256xf32>
    %cst_19 = arith.constant 0.000000e+00 : f32
    %26 = vector.broadcast %cst_19 : f32 to vector<512x256xf32>
    %27 = arith.maximumf %25, %26 : vector<512x256xf32>
    %c2 = arith.constant 2 : index
    %c0_20 = arith.constant 0 : index
    %c0_21 = arith.constant 0 : index
    %28 = vector.load %arg4[%c2, %c0_20, %c0_21] : memref<7x256x256xbf16, #tpu.memory_space<vmem>>, vector<1x256x256xbf16>
    %29 = vector.shape_cast %28 : vector<1x256x256xbf16> to vector<256x256xbf16>
    %30 = arith.truncf %27 : vector<512x256xf32> to vector<512x256xbf16>
    %cst_22 = arith.constant dense<0.000000e+00> : vector<512x256xf32>
    %31 = tpu.matmul %30, %29, %cst_22 {dimension_numbers = #tpu.dot_dimension_numbers<[1], [0], [0], [1], [0, 0, 1, 1], [], []>} : vector<512x256xbf16>, vector<256x256xbf16>, vector<512x256xf32> -> vector<512x256xf32>
    %c0_23 = arith.constant 0 : index
    %c768 = arith.constant 768 : index
    %32 = vector.load %arg7[%c0_23, %c768] : memref<1x2688xf32, #tpu.memory_space<vmem>>, vector<1x256xf32>
    %33 = vector.broadcast %32 : vector<1x256xf32> to vector<512x256xf32>
    %34 = arith.addf %31, %33 : vector<512x256xf32>
    %cst_24 = arith.constant 0.000000e+00 : f32
    %35 = vector.broadcast %cst_24 : f32 to vector<512x256xf32>
    %36 = arith.maximumf %34, %35 : vector<512x256xf32>
    %c3 = arith.constant 3 : index
    %c0_25 = arith.constant 0 : index
    %c0_26 = arith.constant 0 : index
    %37 = vector.load %arg4[%c3, %c0_25, %c0_26] : memref<7x256x256xbf16, #tpu.memory_space<vmem>>, vector<1x256x256xbf16>
    %38 = vector.shape_cast %37 : vector<1x256x256xbf16> to vector<256x256xbf16>
    %39 = arith.truncf %36 : vector<512x256xf32> to vector<512x256xbf16>
    %cst_27 = arith.constant dense<0.000000e+00> : vector<512x256xf32>
    %40 = tpu.matmul %39, %38, %cst_27 {dimension_numbers = #tpu.dot_dimension_numbers<[1], [0], [0], [1], [0, 0, 1, 1], [], []>} : vector<512x256xbf16>, vector<256x256xbf16>, vector<512x256xf32> -> vector<512x256xf32>
    %c0_28 = arith.constant 0 : index
    %c1024 = arith.constant 1024 : index
    %41 = vector.load %arg7[%c0_28, %c1024] : memref<1x2688xf32, #tpu.memory_space<vmem>>, vector<1x256xf32>
    %42 = vector.broadcast %41 : vector<1x256xf32> to vector<512x256xf32>
    %43 = arith.addf %40, %42 : vector<512x256xf32>
    %cst_29 = arith.constant 0.000000e+00 : f32
    %44 = vector.broadcast %cst_29 : f32 to vector<512x256xf32>
    %45 = arith.maximumf %43, %44 : vector<512x256xf32>
    %c4 = arith.constant 4 : index
    %c0_30 = arith.constant 0 : index
    %c0_31 = arith.constant 0 : index
    %46 = vector.load %arg4[%c4, %c0_30, %c0_31] : memref<7x256x256xbf16, #tpu.memory_space<vmem>>, vector<1x256x256xbf16>
    %47 = vector.shape_cast %46 : vector<1x256x256xbf16> to vector<256x256xbf16>
    %48 = arith.truncf %45 : vector<512x256xf32> to vector<512x256xbf16>
    %cst_32 = arith.constant dense<0.000000e+00> : vector<512x256xf32>
    %49 = tpu.matmul %48, %47, %cst_32 {dimension_numbers = #tpu.dot_dimension_numbers<[1], [0], [0], [1], [0, 0, 1, 1], [], []>} : vector<512x256xbf16>, vector<256x256xbf16>, vector<512x256xf32> -> vector<512x256xf32>
    %c1_33 = arith.constant 1 : index
    %c0_34 = arith.constant 0 : index
    %c0_35 = arith.constant 0 : index
    %50 = vector.load %arg3[%c1_33, %c0_34, %c0_35] : memref<2x128x256xbf16, #tpu.memory_space<vmem>>, vector<1x128x256xbf16>
    %51 = vector.shape_cast %50 : vector<1x128x256xbf16> to vector<128x256xbf16>
    %cst_36 = arith.constant dense<0.000000e+00> : vector<512x256xf32>
    %52 = tpu.matmul %0, %51, %cst_36 {dimension_numbers = #tpu.dot_dimension_numbers<[1], [0], [0], [1], [0, 0, 1, 1], [], []>} : vector<512x128xbf16>, vector<128x256xbf16>, vector<512x256xf32> -> vector<512x256xf32>
    %53 = arith.addf %49, %52 : vector<512x256xf32>
    %c0_37 = arith.constant 0 : index
    %c1280 = arith.constant 1280 : index
    %54 = vector.load %arg7[%c0_37, %c1280] : memref<1x2688xf32, #tpu.memory_space<vmem>>, vector<1x256xf32>
    %55 = vector.broadcast %54 : vector<1x256xf32> to vector<512x256xf32>
    %56 = arith.addf %53, %55 : vector<512x256xf32>
    %cst_38 = arith.constant 0.000000e+00 : f32
    %57 = vector.broadcast %cst_38 : f32 to vector<512x256xf32>
    %58 = arith.maximumf %56, %57 : vector<512x256xf32>
    %c5 = arith.constant 5 : index
    %c0_39 = arith.constant 0 : index
    %c0_40 = arith.constant 0 : index
    %59 = vector.load %arg4[%c5, %c0_39, %c0_40] : memref<7x256x256xbf16, #tpu.memory_space<vmem>>, vector<1x256x256xbf16>
    %60 = vector.shape_cast %59 : vector<1x256x256xbf16> to vector<256x256xbf16>
    %61 = arith.truncf %58 : vector<512x256xf32> to vector<512x256xbf16>
    %cst_41 = arith.constant dense<0.000000e+00> : vector<512x256xf32>
    %62 = tpu.matmul %61, %60, %cst_41 {dimension_numbers = #tpu.dot_dimension_numbers<[1], [0], [0], [1], [0, 0, 1, 1], [], []>} : vector<512x256xbf16>, vector<256x256xbf16>, vector<512x256xf32> -> vector<512x256xf32>
    %c0_42 = arith.constant 0 : index
    %c1536 = arith.constant 1536 : index
    %63 = vector.load %arg7[%c0_42, %c1536] : memref<1x2688xf32, #tpu.memory_space<vmem>>, vector<1x256xf32>
    %64 = vector.broadcast %63 : vector<1x256xf32> to vector<512x256xf32>
    %65 = arith.addf %62, %64 : vector<512x256xf32>
    %cst_43 = arith.constant 0.000000e+00 : f32
    %66 = vector.broadcast %cst_43 : f32 to vector<512x256xf32>
    %67 = arith.maximumf %65, %66 : vector<512x256xf32>
    %c6 = arith.constant 6 : index
    %c0_44 = arith.constant 0 : index
    %c0_45 = arith.constant 0 : index
    %68 = vector.load %arg4[%c6, %c0_44, %c0_45] : memref<7x256x256xbf16, #tpu.memory_space<vmem>>, vector<1x256x256xbf16>
    %69 = vector.shape_cast %68 : vector<1x256x256xbf16> to vector<256x256xbf16>
    %70 = arith.truncf %67 : vector<512x256xf32> to vector<512x256xbf16>
    %cst_46 = arith.constant dense<0.000000e+00> : vector<512x256xf32>
    %71 = tpu.matmul %70, %69, %cst_46 {dimension_numbers = #tpu.dot_dimension_numbers<[1], [0], [0], [1], [0, 0, 1, 1], [], []>} : vector<512x256xbf16>, vector<256x256xbf16>, vector<512x256xf32> -> vector<512x256xf32>
    %c0_47 = arith.constant 0 : index
    %c1792 = arith.constant 1792 : index
    %72 = vector.load %arg7[%c0_47, %c1792] : memref<1x2688xf32, #tpu.memory_space<vmem>>, vector<1x256xf32>
    %73 = vector.broadcast %72 : vector<1x256xf32> to vector<512x256xf32>
    %74 = arith.addf %71, %73 : vector<512x256xf32>
    %cst_48 = arith.constant 0.000000e+00 : f32
    %75 = vector.broadcast %cst_48 : f32 to vector<512x256xf32>
    %76 = arith.maximumf %74, %75 : vector<512x256xf32>
    %c0_49 = arith.constant 0 : index
    %c0_50 = arith.constant 0 : index
    %77 = vector.load %arg5[%c0_49, %c0_50] : memref<256x512xbf16, #tpu.memory_space<vmem>>, vector<256x384xbf16>
    %78 = arith.truncf %76 : vector<512x256xf32> to vector<512x256xbf16>
    %cst_51 = arith.constant dense<0.000000e+00> : vector<512x384xf32>
    %79 = tpu.matmul %78, %77, %cst_51 {dimension_numbers = #tpu.dot_dimension_numbers<[1], [0], [0], [1], [0, 0, 1, 1], [], []>} : vector<512x256xbf16>, vector<256x384xbf16>, vector<512x384xf32> -> vector<512x384xf32>
    %c0_52 = arith.constant 0 : index
    %c2048 = arith.constant 2048 : index
    %80 = vector.load %arg7[%c0_52, %c2048] : memref<1x2688xf32, #tpu.memory_space<vmem>>, vector<1x384xf32>
    %81 = vector.broadcast %80 : vector<1x384xf32> to vector<512x384xf32>
    %82 = arith.addf %79, %81 : vector<512x384xf32>
    %83 = vector.extract_strided_slice %82 {offsets = [0, 0], sizes = [512, 256], strides = [1, 1]} : vector<512x384xf32> to vector<512x256xf32>
    %84 = vector.extract_strided_slice %82 {offsets = [0, 256], sizes = [512, 128], strides = [1, 1]} : vector<512x384xf32> to vector<512x128xf32>
    %cst_53 = arith.constant 0.000000e+00 : f32
    %85 = vector.broadcast %cst_53 : f32 to vector<512x128xf32>
    %86 = arith.maximumf %84, %85 : vector<512x128xf32>
    %c0_54 = arith.constant 0 : index
    %c384 = arith.constant 384 : index
    %87 = vector.load %arg5[%c0_54, %c384] : memref<256x512xbf16, #tpu.memory_space<vmem>>, vector<256x128xbf16>
    %88 = arith.truncf %83 : vector<512x256xf32> to vector<512x256xbf16>
    %cst_55 = arith.constant dense<0.000000e+00> : vector<512x128xf32>
    %89 = tpu.matmul %88, %87, %cst_55 {dimension_numbers = #tpu.dot_dimension_numbers<[1], [0], [0], [1], [0, 0, 1, 1], [], []>} : vector<512x256xbf16>, vector<256x128xbf16>, vector<512x128xf32> -> vector<512x128xf32>
    %c0_56 = arith.constant 0 : index
    %c0_57 = arith.constant 0 : index
    %90 = vector.load %arg6[%c0_56, %c0_57] : memref<128x256xbf16, #tpu.memory_space<vmem>>, vector<128x128xbf16>
    %cst_58 = arith.constant dense<0.000000e+00> : vector<512x128xf32>
    %91 = tpu.matmul %1, %90, %cst_58 {dimension_numbers = #tpu.dot_dimension_numbers<[1], [0], [0], [1], [0, 0, 1, 1], [], []>} : vector<512x128xbf16>, vector<128x128xbf16>, vector<512x128xf32> -> vector<512x128xf32>
    %92 = arith.addf %89, %91 : vector<512x128xf32>
    %c0_59 = arith.constant 0 : index
    %c2432 = arith.constant 2432 : index
    %93 = vector.load %arg7[%c0_59, %c2432] : memref<1x2688xf32, #tpu.memory_space<vmem>>, vector<1x128xf32>
    %94 = vector.broadcast %93 : vector<1x128xf32> to vector<512x128xf32>
    %95 = arith.addf %92, %94 : vector<512x128xf32>
    %cst_60 = arith.constant 0.000000e+00 : f32
    %96 = vector.broadcast %cst_60 : f32 to vector<512x128xf32>
    %97 = arith.maximumf %95, %96 : vector<512x128xf32>
    %c0_61 = arith.constant 0 : index
    %c128 = arith.constant 128 : index
    %98 = vector.load %arg6[%c0_61, %c128] : memref<128x256xbf16, #tpu.memory_space<vmem>>, vector<128x128xbf16>
    %99 = arith.truncf %97 : vector<512x128xf32> to vector<512x128xbf16>
    %cst_62 = arith.constant dense<0.000000e+00> : vector<512x128xf32>
    %100 = tpu.matmul %99, %98, %cst_62 {dimension_numbers = #tpu.dot_dimension_numbers<[1], [0], [0], [1], [0, 0, 1, 1], [], []>} : vector<512x128xbf16>, vector<128x128xbf16>, vector<512x128xf32> -> vector<512x128xf32>
    %c0_63 = arith.constant 0 : index
    %c2560 = arith.constant 2560 : index
    %101 = vector.load %arg7[%c0_63, %c2560] : memref<1x2688xf32, #tpu.memory_space<vmem>>, vector<1x128xf32>
    %102 = vector.broadcast %101 : vector<1x128xf32> to vector<512x128xf32>
    %103 = arith.addf %100, %102 : vector<512x128xf32>
    %104 = arith.negf %103 : vector<512x128xf32>
    %105 = math.exp %104 : vector<512x128xf32>
    %cst_64 = arith.constant 1.000000e+00 : f32
    %106 = vector.broadcast %cst_64 : f32 to vector<512x128xf32>
    %107 = arith.addf %106, %105 : vector<512x128xf32>
    %108 = arith.divf %106, %107 : vector<512x128xf32>
    %109 = tpu.iota {dimensions = array<i32: 1>} : vector<512x128xi32>
    %c0_i32 = arith.constant 0 : i32
    %110 = vector.broadcast %c0_i32 : i32 to vector<512x128xi32>
    %111 = arith.cmpi eq, %109, %110 : vector<512x128xi32>
    %112 = arith.select %111, %86, %108 : vector<512x128xi1>, vector<512x128xf32>
    %c0_65 = arith.constant 0 : index
    %c0_66 = arith.constant 0 : index
    %113 = vector.load %arg8[%c0_65, %c0_66] : memref<512x128xf32, #tpu.memory_space<vmem>>, vector<512x128xf32>
    tpu.vector_store %arg8[%c0_65, %c0_66], %112 {strides = array<i32>} : memref<512x128xf32, #tpu.memory_space<vmem>>, vector<512x128xf32>,
    return
  }
  func.func @transform_0(%arg0: i32) -> (i32, i32) {
    %c0_i32 = arith.constant 0 : i32
    %c0_i32_0 = arith.constant 0 : i32
    return %arg0, %c0_i32 : i32, i32
  }
  func.func @transform_1(%arg0: i32) -> (i32, i32) {
    %c0_i32 = arith.constant 0 : i32
    %c0_i32_0 = arith.constant 0 : i32
    return %arg0, %c0_i32 : i32, i32
  }
  func.func @transform_2(%arg0: i32) -> (i32, i32, i32) {
    %c0_i32 = arith.constant 0 : i32
    %c0_i32_0 = arith.constant 0 : i32
    %c0_i32_1 = arith.constant 0 : i32
    %c0_i32_2 = arith.constant 0 : i32
    return %c0_i32, %c0_i32_0, %c0_i32_1 : i32, i32, i32
  }
  func.func @transform_3(%arg0: i32) -> (i32, i32, i32) {
    %c0_i32 = arith.constant 0 : i32
    %c0_i32_0 = arith.constant 0 : i32
    %c0_i32_1 = arith.constant 0 : i32
    %c0_i32_2 = arith.constant 0 : i32
    return %c0_i32, %c0_i32_0, %c0_i32_1 : i32, i32, i32
  }
  func.func @transform_4(%arg0: i32) -> (i32, i32) {
    %c0_i32 = arith.constant 0 : i32
    %c0_i32_0 = arith.constant 0 : i32
    %c0_i32_1 = arith.constant 0 : i32
    return %c0_i32, %c0_i32_0 : i32, i32
  }
  func.func @transform_5(%arg0: i32) -> (i32, i32) {
    %c0_i32 = arith.constant 0 : i32
    %c0_i32_0 = arith.constant 0 : i32
    %c0_i32_1 = arith.constant 0 : i32
    return %c0_i32, %c0_i32_0 : i32, i32
  }
  func.func @transform_6(%arg0: i32) -> (i32, i32) {
    %c0_i32 = arith.constant 0 : i32
    %c0_i32_0 = arith.constant 0 : i32
    %c0_i32_1 = arith.constant 0 : i32
    return %c0_i32, %c0_i32_0 : i32, i32
  }
  func.func @transform_7(%arg0: i32) -> (i32, i32) {
    %c0_i32 = arith.constant 0 : i32
    %c0_i32_0 = arith.constant 0 : i32
    return %arg0, %c0_i32 : i32, i32
  }
}

</mosaic_0001>

<llo_original>
// kernel: _nerf_forward.1
$region0: #{_nerf_forward.1}
  #allocation0 [shape = 'u32[]', space=smem, size = 0x4, offset = 0x4, fixed_abs, tag = 'smem constant byte address 0x4 - core index']
  #allocation1 [shape = 'u32[144,128]{1,0:T(1,128)}', space=vmem, size = 0x12000, scoped, tag = 'internal scratch']
  %s0 = inlined_call_operand.vmem [shape: bf16[1024,128], index: 0, kind: input, shape index: {}]
  %s1 = inlined_call_operand.vmem [shape: bf16[1024,128], index: 1, kind: input, shape index: {}]
  %s2 = inlined_call_operand.vmem [shape: bf16[2,128,256], index: 2, kind: input, shape index: {}]
  %s3 = inlined_call_operand.vmem [shape: bf16[7,256,256], index: 3, kind: input, shape index: {}]
  %s4 = inlined_call_operand.vmem [shape: bf16[256,512], index: 4, kind: input, shape index: {}]
  %s5 = inlined_call_operand.vmem [shape: bf16[128,256], index: 5, kind: input, shape index: {}]
  %s6 = inlined_call_operand.vmem [shape: f32[1,2688], index: 6, kind: input, shape index: {}]
  %s7 = inlined_call_operand.vmem [shape: f32[1024,128], index: 7, kind: output, shape index: {}]
  %s8 = sld [smem:[#allocation0]]
  $region61: #{_nerf_forward.1} parent=0
    _
  %s10 = ssub.s32 1, %s8
  %s11 = scalar_select 0, %s10, %s8
  loop: start=0, step=1, limit=4
  $region2: #{_nerf_forward.1} parent=0 // loop_pre_header
    _
  $region3: #{_nerf_forward.1} parent=0 // loop_header
    %s13 = sphi 0, %s17
    %p14 = scmp.ge.s32.totalorder %s13, 4
    %s23 = sphi 0, %s25
    %s26 = sphi 0, %s23
    %s27 = sphi 0, %s26
    %s43 = sphi 0, %s27
    %s49 = sphi 0, %s51
    %s52 = sphi 0, %s49
    %s53 = sphi 0, %s52
    %s69 = sphi 0, %s53
    %s73 = sphi 0, %s73
    %s75 = sphi 0, %s73
    %s76 = sphi 0, %s75
    %s90 = sphi 0, %s76
    %s94 = sphi 0, %s94
    %s96 = sphi 0, %s94
    %s97 = sphi 0, %s96
    %s111 = sphi 0, %s97
    %s115 = sphi 0, %s115
    %s117 = sphi 0, %s115
    %s118 = sphi 0, %s117
    %s132 = sphi 0, %s118
    %s136 = sphi 0, %s136
    %s138 = sphi 0, %s136
    %s139 = sphi 0, %s138
    %s153 = sphi 0, %s139
    %s157 = sphi 0, %s157
    %s159 = sphi 0, %s157
    %s160 = sphi 0, %s159
    %s174 = sphi 0, %s160
    %s180 = sphi 0, %s182
    %s183 = sphi 0, %s180
    %s184 = sphi 0, %s183
    %s200 = sphi 0, %s184
  $region4: #{_nerf_forward.1} parent=0 // loop_header_branch
    %16 = sbr.rel (%p14) target = $region8
  $region5: #{_nerf_forward.1} parent=0 // loop_body
    %s18 = ssub.s32 %s13, 1
    %s19 = ssub.s32 %s13, 2
    %s20 = sadd.s32 %s13, 1
    %s21 = ssub.s32 %s13, %s20
    %p22 = scmp.eq.s32.totalorder %s21, 0
    %s24 = sadd.s32 %s23, 1
    %s25 = scalar_select %p22, %s23, %s24
    %p28 = pneg %p22
    %p29 = scmp.eq.s32.totalorder %s13, 1
    %p30 = por %p28, %p29
    %p31 = scmp.ne.s32.totalorder %s23, %s26
    %p32 = scmp.eq.s32.totalorder %s13, 0
    %p33 = por %p31, %p32
    %p34 = scmp.ne.s32.totalorder %s23, %s26
    %p35 = scmp.eq.s32.totalorder %s18, 1
    %p36 = por %p34, %p35
    %p37 = scmp.ne.s32.totalorder %s26, %s27
    %p38 = scmp.eq.s32.totalorder %s18, 0
    %p39 = por %p37, %p38
    %p40 = scmp.ne.s32.totalorder %s26, %s27
    %p41 = scmp.eq.s32.totalorder %s19, 1
    %p42 = por %p40, %p41
    %p44 = scmp.ne.s32.totalorder %s27, %s43
    %p45 = scmp.eq.s32.totalorder %s19, 0
    %p46 = por %p44, %p45
    %s47 = ssub.s32 %s13, %s20
    %p48 = scmp.eq.s32.totalorder %s47, 0
    %s50 = sadd.s32 %s49, 1
    %s51 = scalar_select %p48, %s49, %s50
    %p54 = pneg %p48
    %p55 = scmp.eq.s32.totalorder %s13, 1
    %p56 = por %p54, %p55
    %p57 = scmp.ne.s32.totalorder %s49, %s52
    %p58 = scmp.eq.s32.totalorder %s13, 0
    %p59 = por %p57, %p58
    %p60 = scmp.ne.s32.totalorder %s49, %s52
    %p61 = scmp.eq.s32.totalorder %s18, 1
    %p62 = por %p60, %p61
    %p63 = scmp.ne.s32.totalorder %s52, %s53
    %p64 = scmp.eq.s32.totalorder %s18, 0
    %p65 = por %p63, %p64
    %p66 = scmp.ne.s32.totalorder %s52, %s53
    %p67 = scmp.eq.s32.totalorder %s19, 1
    %p68 = por %p66, %p67
    %p70 = scmp.ne.s32.totalorder %s53, %s69
    %p71 = scmp.eq.s32.totalorder %s19, 0
    %p72 = por %p70, %p71
    %s74 = sadd.s32 %s73, 1
    %p77 = scmp.eq.s32.totalorder %s13, 1
    %p78 = scmp.ne.s32.totalorder %s73, %s75
    %p79 = scmp.eq.s32.totalorder %s13, 0
    %p80 = por %p78, %p79
    %p81 = scmp.ne.s32.totalorder %s73, %s75
    %p82 = scmp.eq.s32.totalorder %s18, 1
    %p83 = por %p81, %p82
    %p84 = scmp.ne.s32.totalorder %s75, %s76
    %p85 = scmp.eq.s32.totalorder %s18, 0
    %p86 = por %p84, %p85
    %p87 = scmp.ne.s32.totalorder %s75, %s76
    %p88 = scmp.eq.s32.totalorder %s19, 1
    %p89 = por %p87, %p88
    %p91 = scmp.ne.s32.totalorder %s76, %s90
    %p92 = scmp.eq.s32.totalorder %s19, 0
    %p93 = por %p91, %p92
    %s95 = sadd.s32 %s94, 1
    %p98 = scmp.eq.s32.totalorder %s13, 1
    %p99 = scmp.ne.s32.totalorder %s94, %s96
    %p100 = scmp.eq.s32.totalorder %s13, 0
    %p101 = por %p99, %p100
    %p102 = scmp.ne.s32.totalorder %s94, %s96
    %p103 = scmp.eq.s32.totalorder %s18, 1
    %p104 = por %p102, %p103
    %p105 = scmp.ne.s32.totalorder %s96, %s97
    %p106 = scmp.eq.s32.totalorder %s18, 0
    %p107 = por %p105, %p106
    %p108 = scmp.ne.s32.totalorder %s96, %s97
    %p109 = scmp.eq.s32.totalorder %s19, 1
    %p110 = por %p108, %p109
    %p112 = scmp.ne.s32.totalorder %s97, %s111
    %p113 = scmp.eq.s32.totalorder %s19, 0
    %p114 = por %p112, %p113
    %s116 = sadd.s32 %s115, 1
    %p119 = scmp.eq.s32.totalorder %s13, 1
    %p120 = scmp.ne.s32.totalorder %s115, %s117
    %p121 = scmp.eq.s32.totalorder %s13, 0
    %p122 = por %p120, %p121
    %p123 = scmp.ne.s32.totalorder %s115, %s117
    %p124 = scmp.eq.s32.totalorder %s18, 1
    %p125 = por %p123, %p124
    %p126 = scmp.ne.s32.totalorder %s117, %s118
    %p127 = scmp.eq.s32.totalorder %s18, 0
    %p128 = por %p126, %p127
    %p129 = scmp.ne.s32.totalorder %s117, %s118
    %p130 = scmp.eq.s32.totalorder %s19, 1
    %p131 = por %p129, %p130
    %p133 = scmp.ne.s32.totalorder %s118, %s132
    %p134 = scmp.eq.s32.totalorder %s19, 0
    %p135 = por %p133, %p134
    %s137 = sadd.s32 %s136, 1
    %p140 = scmp.eq.s32.totalorder %s13, 1
    %p141 = scmp.ne.s32.totalorder %s136, %s138
    %p142 = scmp.eq.s32.totalorder %s13, 0
    %p143 = por %p141, %p142
    %p144 = scmp.ne.s32.totalorder %s136, %s138
    %p145 = scmp.eq.s32.totalorder %s18, 1
    %p146 = por %p144, %p145
    %p147 = scmp.ne.s32.totalorder %s138, %s139
    %p148 = scmp.eq.s32.totalorder %s18, 0
    %p149 = por %p147, %p148
    %p150 = scmp.ne.s32.totalorder %s138, %s139
    %p151 = scmp.eq.s32.totalorder %s19, 1
    %p152 = por %p150, %p151
    %p154 = scmp.ne.s32.totalorder %s139, %s153
    %p155 = scmp.eq.s32.totalorder %s19, 0
    %p156 = por %p154, %p155
    %s158 = sadd.s32 %s157, 1
    %p161 = scmp.eq.s32.totalorder %s13, 1
    %p162 = scmp.ne.s32.totalorder %s157, %s159
    %p163 = scmp.eq.s32.totalorder %s13, 0
    %p164 = por %p162, %p163
    %p165 = scmp.ne.s32.totalorder %s157, %s159
    %p166 = scmp.eq.s32.totalorder %s18, 1
    %p167 = por %p165, %p166
    %p168 = scmp.ne.s32.totalorder %s159, %s160
    %p169 = scmp.eq.s32.totalorder %s18, 0
    %p170 = por %p168, %p169
    %p171 = scmp.ne.s32.totalorder %s159, %s160
    %p172 = scmp.eq.s32.totalorder %s19, 1
    %p173 = por %p171, %p172
    %p175 = scmp.ne.s32.totalorder %s160, %s174
    %p176 = scmp.eq.s32.totalorder %s19, 0
    %p177 = por %p175, %p176
    %s178 = ssub.s32 %s13, %s20
    %p179 = scmp.eq.s32.totalorder %s178, 0
    %s181 = sadd.s32 %s180, 1
    %s182 = scalar_select %p179, %s180, %s181
    %p185 = pneg %p179
    %p186 = scmp.eq.s32.totalorder %s13, 1
    %p187 = por %p185, %p186
    %p188 = scmp.ne.s32.totalorder %s180, %s183
    %p189 = scmp.eq.s32.totalorder %s13, 0
    %p190 = por %p188, %p189
    %p191 = scmp.ne.s32.totalorder %s180, %s183
    %p192 = scmp.eq.s32.totalorder %s18, 1
    %p193 = por %p191, %p192
    %p194 = scmp.ne.s32.totalorder %s183, %s184
    %p195 = scmp.eq.s32.totalorder %s18, 0
    %p196 = por %p194, %p195
    %p197 = scmp.ne.s32.totalorder %s183, %s184
    %p198 = scmp.eq.s32.totalorder %s19, 1
    %p199 = por %p197, %p198
    %p201 = scmp.ne.s32.totalorder %s184, %s200
    %p202 = scmp.eq.s32.totalorder %s19, 0
    %p203 = por %p201, %p202
    %p204 = scmp.le.s32.totalorder 1, %s13
    %p205 = scmp.lt.s32.totalorder %s13, 3
    %p206 = pnand %p204, %p205
    %p207 = pneg %p206
    // Predicated region
    $region9: #{_nerf_forward.1} parent=5 // pred_check
      _
    $region10: #{_nerf_forward.1} parent=5 // pred_check_branch
      %209 = sbr.rel (%p206) target = $region12
    $region11: #{_nerf_forward.1} parent=5 // pred_region
      %s210 = ssub.s32 %s13, 1
      // Predicated region
      $region13: #{_nerf_forward.1} parent=11 // pred_check
        %p211 = pneg %p86
      $region14: #{_nerf_forward.1} parent=11 // pred_check_branch
        %213 = sbr.rel (%p211) target = $region16
      $region15: #{_nerf_forward.1} parent=11 // pred_region
        _
      $region16: #{_nerf_forward.1} parent=11 // pred_fallthru
        _
      // Predicated region
      $region17: #{_nerf_forward.1} parent=11 // pred_check
        %p214 = pneg %p107
      $region18: #{_nerf_forward.1} parent=11 // pred_check_branch
        %216 = sbr.rel (%p214) target = $region20
      $region19: #{_nerf_forward.1} parent=11 // pred_region
        _
      $region20: #{_nerf_forward.1} parent=11 // pred_fallthru
        _
      // Predicated region
      $region21: #{_nerf_forward.1} parent=11 // pred_check
        %p217 = pneg %p128
      $region22: #{_nerf_forward.1} parent=11 // pred_check_branch
        %219 = sbr.rel (%p217) target = $region24
      $region23: #{_nerf_forward.1} parent=11 // pred_region
        _
      $region24: #{_nerf_forward.1} parent=11 // pred_fallthru
        _
      // Predicated region
      $region25: #{_nerf_forward.1} parent=11 // pred_check
        %p220 = pneg %p149
      $region26: #{_nerf_forward.1} parent=11 // pred_check_branch
        %222 = sbr.rel (%p220) target = $region28
      $region27: #{_nerf_forward.1} parent=11 // pred_region
        _
      $region28: #{_nerf_forward.1} parent=11 // pred_fallthru
        _
      // Predicated region
      $region29: #{_nerf_forward.1} parent=11 // pred_check
        %p223 = pneg %p170
      $region30: #{_nerf_forward.1} parent=11 // pred_check_branch
        %225 = sbr.rel (%p223) target = $region32
      $region31: #{_nerf_forward.1} parent=11 // pred_region
        _
      $region32: #{_nerf_forward.1} parent=11 // pred_fallthru
        _
    $region12: #{_nerf_forward.1} parent=5 // pred_fallthru
      _
    %p226 = scmp.lt.s32.totalorder %s13, 2
    // Predicated region
    $region33: #{_nerf_forward.1} parent=5 // pred_check
      %p227 = pneg %p226
    $region34: #{_nerf_forward.1} parent=5 // pred_check_branch
      %229 = sbr.rel (%p227) target = $region36
    $region35: #{_nerf_forward.1} parent=5 // pred_region
      // Predicated region
      $region37: #{_nerf_forward.1} parent=35 // pred_check
        %p230 = pneg %p33
      $region38: #{_nerf_forward.1} parent=35 // pred_check_branch
        %232 = sbr.rel (%p230) target = $region40
      $region39: #{_nerf_forward.1} parent=35 // pred_region
        %s233 = smul.u32 64, %s13
        %p234 = scmp.lt.s32.totalorder %s233, 127
        %s235 = scalar_select %p234, %s233, 127
        %s236 = smul.addr %s235, 4
        %s237 = scalar_lea.vmem %s0, %s236
        %s238 = smul.u32 64, %s13
      $region40: #{_nerf_forward.1} parent=35 // pred_fallthru
        _
      // Predicated region
      $region41: #{_nerf_forward.1} parent=35 // pred_check
        %p239 = pneg %p59
      $region42: #{_nerf_forward.1} parent=35 // pred_check_branch
        %241 = sbr.rel (%p239) target = $region44
      $region43: #{_nerf_forward.1} parent=35 // pred_region
        %s242 = smul.u32 64, %s13
        %p243 = scmp.lt.s32.totalorder %s242, 127
        %s244 = scalar_select %p243, %s242, 127
        %s245 = smul.addr %s244, 4
        %s246 = scalar_lea.vmem %s1, %s245
        %s247 = smul.u32 64, %s13
      $region44: #{_nerf_forward.1} parent=35 // pred_fallthru
        _
    $region36: #{_nerf_forward.1} parent=5 // pred_fallthru
      _
    %p248 = scmp.le.s32.totalorder 1, %s13
    %p249 = scmp.lt.s32.totalorder %s13, 3
    %p250 = pnand %p248, %p249
    %p251 = pneg %p250
    // Predicated region
    $region45: #{_nerf_forward.1} parent=5 // pred_check
      _
    $region46: #{_nerf_forward.1} parent=5 // pred_check_branch
      %253 = sbr.rel (%p250) target = $region48
    $region47: #{_nerf_forward.1} parent=5 // pred_region
      %s254 = ssub.s32 %s13, 1
      %s255 = smul.u32 64, %s18
      %p256 = scmp.lt.s32.totalorder %s255, 127
      %s257 = scalar_select %p256, %s255, 127
      %s258 = smul.addr %s257, 4
      %s259 = scalar_lea.vmem %s0, %s258
      %p260 = pneg %p39
      %p261 = pneg %p36
      %s262 = smul.u32 64, %s18
      %p263 = scmp.lt.s32.totalorder %s262, 127
      %s264 = scalar_select %p263, %s262, 127
      %s265 = smul.addr %s264, 4
      %s266 = scalar_lea.vmem %s1, %s265
      %p267 = pneg %p65
      %p268 = pneg %p62
      %p269 = pneg %p86
      %p270 = pneg %p83
      %p271 = pneg %p107
      %p272 = pneg %p104
      %p273 = pneg %p128
      %p274 = pneg %p125
      %p275 = pneg %p149
      %p276 = pneg %p146
      %p277 = pneg %p170
      %p278 = pneg %p167
      %p279 = pneg %p196
      %p280 = pneg %p193
      %s281 = smul.u32 64, %s18
      %p282 = scmp.lt.s32.totalorder %s281, 127
      %s283 = scalar_select %p282, %s281, 127
      %s284 = smul.addr %s283, 8
      %s285 = scalar_lea.vmem %s7, %s284
      %s286 = smul.u32 64, %s18
      %p287 = scmp.lt.s32.totalorder %s286, 127
      %s288 = scalar_select %p287, %s286, 127
      %s289 = smul.addr %s288, 4
      %s290 = scalar_lea.vmem %s0, %s289
      %s291 = smul.u32 64, %s18
      %s292 = smul.u32 64, %s18
      %p293 = scmp.lt.s32.totalorder %s292, 127
      %s294 = scalar_select %p293, %s292, 127
      %s295 = smul.addr %s294, 4
      %s296 = scalar_lea.vmem %s1, %s295
      %s297 = smul.u32 64, %s18
      %s298 = smul.u32 64, %s18
      %p299 = scmp.lt.s32.totalorder %s298, 127
      %s300 = scalar_select %p299, %s298, 127
      %s301 = smul.addr %s300, 8
      %s302 = scalar_lea.vmem %s7, %s301
      %s303 = smul.u32 64, %s18
      %v305 = vld [vmem:[%s290] sm:$0xf]
      %v306 = vld [vmem:[%s290 + $0x4] sm:$0xf]
      %v307 = vld [vmem:[%s290 + $0x8] sm:$0xf]
      %v308 = vld [vmem:[%s290 + $0xc] sm:$0xf]
      %v309 = vld [vmem:[%s290 + $0x10] sm:$0xf]
      %v310 = vld [vmem:[%s290 + $0x14] sm:$0xf]
      %v311 = vld [vmem:[%s290 + $0x18] sm:$0xf]
      %v312 = vld [vmem:[%s290 + $0x1c] sm:$0xf]
      %v313 = vld [vmem:[%s290 + $0x20] sm:$0xf]
      %v314 = vld [vmem:[%s290 + $0x24] sm:$0xf]
      %v315 = vld [vmem:[%s290 + $0x28] sm:$0xf]
      %v316 = vld [vmem:[%s290 + $0x2c] sm:$0xf]
      %v317 = vld [vmem:[%s290 + $0x30] sm:$0xf]
      %v318 = vld [vmem:[%s290 + $0x34] sm:$0xf]
      %v319 = vld [vmem:[%s290 + $0x38] sm:$0xf]
      %v320 = vld [vmem:[%s290 + $0x3c] sm:$0xf]
      %v321 = vld [vmem:[%s290 + $0x40] sm:$0xf]
      %v322 = vld [vmem:[%s290 + $0x44] sm:$0xf]
      %v323 = vld [vmem:[%s290 + $0x48] sm:$0xf]
      %v324 = vld [vmem:[%s290 + $0x4c] sm:$0xf]
      %v325 = vld [vmem:[%s290 + $0x50] sm:$0xf]
      %v326 = vld [vmem:[%s290 + $0x54] sm:$0xf]
      %v327 = vld [vmem:[%s290 + $0x58] sm:$0xf]
      %v328 = vld [vmem:[%s290 + $0x5c] sm:$0xf]
      %v329 = vld [vmem:[%s290 + $0x60] sm:$0xf]
      %v330 = vld [vmem:[%s290 + $0x64] sm:$0xf]
      %v331 = vld [vmem:[%s290 + $0x68] sm:$0xf]
      %v332 = vld [vmem:[%s290 + $0x6c] sm:$0xf]
      %v333 = vld [vmem:[%s290 + $0x70] sm:$0xf]
      %v334 = vld [vmem:[%s290 + $0x74] sm:$0xf]
      %v335 = vld [vmem:[%s290 + $0x78] sm:$0xf]
      %v336 = vld [vmem:[%s290 + $0x7c] sm:$0xf]
      %v337 = vld [vmem:[%s290 + $0x80] sm:$0xf]
      %v338 = vld [vmem:[%s290 + $0x84] sm:$0xf]
      %v339 = vld [vmem:[%s290 + $0x88] sm:$0xf]
      %v340 = vld [vmem:[%s290 + $0x8c] sm:$0xf]
      %v341 = vld [vmem:[%s290 + $0x90] sm:$0xf]
      %v342 = vld [vmem:[%s290 + $0x94] sm:$0xf]
      %v343 = vld [vmem:[%s290 + $0x98] sm:$0xf]
      %v344 = vld [vmem:[%s290 + $0x9c] sm:$0xf]
      %v345 = vld [vmem:[%s290 + $0xa0] sm:$0xf]
      %v346 = vld [vmem:[%s290 + $0xa4] sm:$0xf]
      %v347 = vld [vmem:[%s290 + $0xa8] sm:$0xf]
      %v348 = vld [vmem:[%s290 + $0xac] sm:$0xf]
      %v349 = vld [vmem:[%s290 + $0xb0] sm:$0xf]
      %v350 = vld [vmem:[%s290 + $0xb4] sm:$0xf]
      %v351 = vld [vmem:[%s290 + $0xb8] sm:$0xf]
      %v352 = vld [vmem:[%s290 + $0xbc] sm:$0xf]
      %v353 = vld [vmem:[%s290 + $0xc0] sm:$0xf]
      %v354 = vld [vmem:[%s290 + $0xc4] sm:$0xf]
      %v355 = vld [vmem:[%s290 + $0xc8] sm:$0xf]
      %v356 = vld [vmem:[%s290 + $0xcc] sm:$0xf]
      %v357 = vld [vmem:[%s290 + $0xd0] sm:$0xf]
      %v358 = vld [vmem:[%s290 + $0xd4] sm:$0xf]
      %v359 = vld [vmem:[%s290 + $0xd8] sm:$0xf]
      %v360 = vld [vmem:[%s290 + $0xdc] sm:$0xf]
      %v361 = vld [vmem:[%s290 + $0xe0] sm:$0xf]
      %v362 = vld [vmem:[%s290 + $0xe4] sm:$0xf]
      %v363 = vld [vmem:[%s290 + $0xe8] sm:$0xf]
      %v364 = vld [vmem:[%s290 + $0xec] sm:$0xf]
      %v365 = vld [vmem:[%s290 + $0xf0] sm:$0xf]
      %v366 = vld [vmem:[%s290 + $0xf4] sm:$0xf]
      %v367 = vld [vmem:[%s290 + $0xf8] sm:$0xf]
      %v368 = vld [vmem:[%s290 + $0xfc] sm:$0xf]
      %v369 = vld [vmem:[%s296] sm:$0xf]
      %v370 = vld [vmem:[%s296 + $0x4] sm:$0xf]
      %v371 = vld [vmem:[%s296 + $0x8] sm:$0xf]
      %v372 = vld [vmem:[%s296 + $0xc] sm:$0xf]
      %v373 = vld [vmem:[%s296 + $0x10] sm:$0xf]
      %v374 = vld [vmem:[%s296 + $0x14] sm:$0xf]
      %v375 = vld [vmem:[%s296 + $0x18] sm:$0xf]
      %v376 = vld [vmem:[%s296 + $0x1c] sm:$0xf]
      %v377 = vld [vmem:[%s296 + $0x20] sm:$0xf]
      %v378 = vld [vmem:[%s296 + $0x24] sm:$0xf]
      %v379 = vld [vmem:[%s296 + $0x28] sm:$0xf]
      %v380 = vld [vmem:[%s296 + $0x2c] sm:$0xf]
      %v381 = vld [vmem:[%s296 + $0x30] sm:$0xf]
      %v382 = vld [vmem:[%s296 + $0x34] sm:$0xf]
      %v383 = vld [vmem:[%s296 + $0x38] sm:$0xf]
      %v384 = vld [vmem:[%s296 + $0x3c] sm:$0xf]
      %v385 = vld [vmem:[%s296 + $0x40] sm:$0xf]
      %v386 = vld [vmem:[%s296 + $0x44] sm:$0xf]
      %v387 = vld [vmem:[%s296 + $0x48] sm:$0xf]
      %v388 = vld [vmem:[%s296 + $0x4c] sm:$0xf]
      %v389 = vld [vmem:[%s296 + $0x50] sm:$0xf]
      %v390 = vld [vmem:[%s296 + $0x54] sm:$0xf]
      %v391 = vld [vmem:[%s296 + $0x58] sm:$0xf]
      %v392 = vld [vmem:[%s296 + $0x5c] sm:$0xf]
      %v393 = vld [vmem:[%s296 + $0x60] sm:$0xf]
      %v394 = vld [vmem:[%s296 + $0x64] sm:$0xf]
      %v395 = vld [vmem:[%s296 + $0x68] sm:$0xf]
      %v396 = vld [vmem:[%s296 + $0x6c] sm:$0xf]
      %v397 = vld [vmem:[%s296 + $0x70] sm:$0xf]
      %v398 = vld [vmem:[%s296 + $0x74] sm:$0xf]
      %v399 = vld [vmem:[%s296 + $0x78] sm:$0xf]
      %v400 = vld [vmem:[%s296 + $0x7c] sm:$0xf]
      %v401 = vld [vmem:[%s296 + $0x80] sm:$0xf]
      %v402 = vld [vmem:[%s296 + $0x84] sm:$0xf]
      %v403 = vld [vmem:[%s296 + $0x88] sm:$0xf]
      %v404 = vld [vmem:[%s296 + $0x8c] sm:$0xf]
      %v405 = vld [vmem:[%s296 + $0x90] sm:$0xf]
      %v406 = vld [vmem:[%s296 + $0x94] sm:$0xf]
      %v407 = vld [vmem:[%s296 + $0x98] sm:$0xf]
      %v408 = vld [vmem:[%s296 + $0x9c] sm:$0xf]
      %v409 = vld [vmem:[%s296 + $0xa0] sm:$0xf]
      %v410 = vld [vmem:[%s296 + $0xa4] sm:$0xf]
      %v411 = vld [vmem:[%s296 + $0xa8] sm:$0xf]
      %v412 = vld [vmem:[%s296 + $0xac] sm:$0xf]
      %v413 = vld [vmem:[%s296 + $0xb0] sm:$0xf]
      %v414 = vld [vmem:[%s296 + $0xb4] sm:$0xf]
      %v415 = vld [vmem:[%s296 + $0xb8] sm:$0xf]
      %v416 = vld [vmem:[%s296 + $0xbc] sm:$0xf]
      %v417 = vld [vmem:[%s296 + $0xc0] sm:$0xf]
      %v418 = vld [vmem:[%s296 + $0xc4] sm:$0xf]
      %v419 = vld [vmem:[%s296 + $0xc8] sm:$0xf]
      %v420 = vld [vmem:[%s296 + $0xcc] sm:$0xf]
      %v421 = vld [vmem:[%s296 + $0xd0] sm:$0xf]
      %v422 = vld [vmem:[%s296 + $0xd4] sm:$0xf]
      %v423 = vld [vmem:[%s296 + $0xd8] sm:$0xf]
      %v424 = vld [vmem:[%s296 + $0xdc] sm:$0xf]
      %v425 = vld [vmem:[%s296 + $0xe0] sm:$0xf]
      %v426 = vld [vmem:[%s296 + $0xe4] sm:$0xf]
      %v427 = vld [vmem:[%s296 + $0xe8] sm:$0xf]
      %v428 = vld [vmem:[%s296 + $0xec] sm:$0xf]
      %v429 = vld [vmem:[%s296 + $0xf0] sm:$0xf]
      %v430 = vld [vmem:[%s296 + $0xf4] sm:$0xf]
      %v431 = vld [vmem:[%s296 + $0xf8] sm:$0xf]
      %v432 = vld [vmem:[%s296 + $0xfc] sm:$0xf]
      %v433 = vld [vmem:[%s2] sm:$0xff]
      %v434 = vld [vmem:[%s2 + $0x8] sm:$0xff]
      %v435 = vld [vmem:[%s2 + $0x10] sm:$0xff]
      %v436 = vld [vmem:[%s2 + $0x18] sm:$0xff]
      %v437 = vld [vmem:[%s2 + $0x20] sm:$0xff]
      %v438 = vld [vmem:[%s2 + $0x28] sm:$0xff]
      %v439 = vld [vmem:[%s2 + $0x30] sm:$0xff]
      %v440 = vld [vmem:[%s2 + $0x38] sm:$0xff]
      %v441 = vld [vmem:[%s2 + $0x40] sm:$0xff]
      %v442 = vld [vmem:[%s2 + $0x48] sm:$0xff]
      %v443 = vld [vmem:[%s2 + $0x50] sm:$0xff]
      %v444 = vld [vmem:[%s2 + $0x58] sm:$0xff]
      %v445 = vld [vmem:[%s2 + $0x60] sm:$0xff]
      %v446 = vld [vmem:[%s2 + $0x68] sm:$0xff]
      %v447 = vld [vmem:[%s2 + $0x70] sm:$0xff]
      %v448 = vld [vmem:[%s2 + $0x78] sm:$0xff]
      %v449 = vld [vmem:[%s6] sm:$0x3]
      %v451 = vlaneseq
      %v452 = vshrl.u32 %v451, 7
      %v453 = vsub.s32 0, %v452
      %v454 = vrot.slane %v449, %v453
      %v455 = vlaneseq
      %v456 = vshrl.u32 %v455, 7
      %v457 = vsub.s32 1, %v456
      %v458 = vrot.slane %v449, %v457
      %v525 = vunpack.c.l.b16 %v305
      %v526 = vunpack.c.l.b16 %v306
      %v527 = vunpack.c.l.b16 %v307
      %v528 = vunpack.c.l.b16 %v308
      %v529 = vunpack.c.l.b16 %v309
      %v530 = vunpack.c.l.b16 %v310
      %v531 = vunpack.c.l.b16 %v311
      %v532 = vunpack.c.l.b16 %v312
      %v533 = vunpack.c.l.b16 %v313
      %v534 = vunpack.c.l.b16 %v314
      %v535 = vunpack.c.l.b16 %v315
      %v536 = vunpack.c.l.b16 %v316
      %v537 = vunpack.c.l.b16 %v317
      %v538 = vunpack.c.l.b16 %v318
      %v539 = vunpack.c.l.b16 %v319
      %v540 = vunpack.c.l.b16 %v320
      %v541 = vunpack.c.l.b16 %v321
      %v542 = vunpack.c.l.b16 %v322
      %v543 = vunpack.c.l.b16 %v323
      %v544 = vunpack.c.l.b16 %v324
      %v545 = vunpack.c.l.b16 %v325
      %v546 = vunpack.c.l.b16 %v326
      %v547 = vunpack.c.l.b16 %v327
      %v548 = vunpack.c.l.b16 %v328
      %v549 = vunpack.c.l.b16 %v329
      %v550 = vunpack.c.l.b16 %v330
      %v551 = vunpack.c.l.b16 %v331
      %v552 = vunpack.c.l.b16 %v332
      %v553 = vunpack.c.l.b16 %v333
      %v554 = vunpack.c.l.b16 %v334
      %v555 = vunpack.c.l.b16 %v335
      %v556 = vunpack.c.l.b16 %v336
      %v557 = vunpack.c.l.b16 %v337
      %v558 = vunpack.c.l.b16 %v338
      %v559 = vunpack.c.l.b16 %v339
      %v560 = vunpack.c.l.b16 %v340
      %v561 = vunpack.c.l.b16 %v341
      %v562 = vunpack.c.l.b16 %v342
      %v563 = vunpack.c.l.b16 %v343
      %v564 = vunpack.c.l.b16 %v344
      %v565 = vunpack.c.l.b16 %v345
      %v566 = vunpack.c.l.b16 %v346
      %v567 = vunpack.c.l.b16 %v347
      %v568 = vunpack.c.l.b16 %v348
      %v569 = vunpack.c.l.b16 %v349
      %v570 = vunpack.c.l.b16 %v350
      %v571 = vunpack.c.l.b16 %v351
      %v572 = vunpack.c.l.b16 %v352
      %v573 = vunpack.c.l.b16 %v353
      %v574 = vunpack.c.l.b16 %v354
      %v575 = vunpack.c.l.b16 %v355
      %v576 = vunpack.c.l.b16 %v356
      %v577 = vunpack.c.l.b16 %v357
      %v578 = vunpack.c.l.b16 %v358
      %v579 = vunpack.c.l.b16 %v359
      %v580 = vunpack.c.l.b16 %v360
      %v581 = vunpack.c.l.b16 %v361
      %v582 = vunpack.c.l.b16 %v362
      %v583 = vunpack.c.l.b16 %v363
      %v584 = vunpack.c.l.b16 %v364
      %v585 = vunpack.c.l.b16 %v365
      %v586 = vunpack.c.l.b16 %v366
      %v587 = vunpack.c.l.b16 %v367
      %v588 = vunpack.c.l.b16 %v368
      %v589 = vpack.c.b16 %v526, %v525
      %v590 = vpack.c.b16 %v528, %v527
      %v591 = vpack.c.b16 %v530, %v529
      %v592 = vpack.c.b16 %v532, %v531
      %v593 = vpack.c.b16 %v534, %v533
      %v594 = vpack.c.b16 %v536, %v535
      %v595 = vpack.c.b16 %v538, %v537
      %v596 = vpack.c.b16 %v540, %v539
      %v597 = vpack.c.b16 %v542, %v541
      %v598 = vpack.c.b16 %v544, %v543
      %v599 = vpack.c.b16 %v546, %v545
      %v600 = vpack.c.b16 %v548, %v547
      %v601 = vpack.c.b16 %v550, %v549
      %v602 = vpack.c.b16 %v552, %v551
      %v603 = vpack.c.b16 %v554, %v553
      %v604 = vpack.c.b16 %v556, %v555
      %v605 = vpack.c.b16 %v558, %v557
      %v606 = vpack.c.b16 %v560, %v559
      %v607 = vpack.c.b16 %v562, %v561
      %v608 = vpack.c.b16 %v564, %v563
      %v609 = vpack.c.b16 %v566, %v565
      %v610 = vpack.c.b16 %v568, %v567
      %v611 = vpack.c.b16 %v570, %v569
      %v612 = vpack.c.b16 %v572, %v571
      %v613 = vpack.c.b16 %v574, %v573
      %v614 = vpack.c.b16 %v576, %v575
      %v615 = vpack.c.b16 %v578, %v577
      %v616 = vpack.c.b16 %v580, %v579
      %v617 = vpack.c.b16 %v582, %v581
      %v618 = vpack.c.b16 %v584, %v583
      %v619 = vpack.c.b16 %v586, %v585
      %v620 = vpack.c.b16 %v588, %v587
      %v669 = vunpack.c.l.b16 %v433
      %v670 = vunpack.c.h.b16 %v433
      %v671 = vunpack.c.l.b16 %v434
      %v672 = vunpack.c.h.b16 %v434
      %v673 = vunpack.c.l.b16 %v435
      %v674 = vunpack.c.h.b16 %v435
      %v675 = vunpack.c.l.b16 %v436
      %v676 = vunpack.c.h.b16 %v436
      %v677 = vunpack.c.l.b16 %v437
      %v678 = vunpack.c.h.b16 %v437
      %v679 = vunpack.c.l.b16 %v438
      %v680 = vunpack.c.h.b16 %v438
      %v681 = vunpack.c.l.b16 %v439
      %v682 = vunpack.c.h.b16 %v439
      %v683 = vunpack.c.l.b16 %v440
      %v684 = vunpack.c.h.b16 %v440
      %v685 = vunpack.c.l.b16 %v441
      %v686 = vunpack.c.h.b16 %v441
      %v687 = vunpack.c.l.b16 %v442
      %v688 = vunpack.c.h.b16 %v442
      %v689 = vunpack.c.l.b16 %v443
      %v690 = vunpack.c.h.b16 %v443
      %v691 = vunpack.c.l.b16 %v444
      %v692 = vunpack.c.h.b16 %v444
      %v693 = vunpack.c.l.b16 %v445
      %v694 = vunpack.c.h.b16 %v445
      %v695 = vunpack.c.l.b16 %v446
      %v696 = vunpack.c.h.b16 %v446
      %v697 = vunpack.c.l.b16 %v447
      %v698 = vunpack.c.h.b16 %v447
      %v699 = vunpack.c.l.b16 %v448
      %v700 = vunpack.c.h.b16 %v448
      %v701 = vpack.c.b16 %v671, %v669
      %v702 = vpack.c.b16 %v672, %v670
      %v703 = vpack.c.b16 %v675, %v673
      %v704 = vpack.c.b16 %v676, %v674
      %v705 = vpack.c.b16 %v679, %v677
      %v706 = vpack.c.b16 %v680, %v678
      %v707 = vpack.c.b16 %v683, %v681
      %v708 = vpack.c.b16 %v684, %v682
      %v709 = vpack.c.b16 %v687, %v685
      %v710 = vpack.c.b16 %v688, %v686
      %v711 = vpack.c.b16 %v691, %v689
      %v712 = vpack.c.b16 %v692, %v690
      %v713 = vpack.c.b16 %v695, %v693
      %v714 = vpack.c.b16 %v696, %v694
      %v715 = vpack.c.b16 %v699, %v697
      %v716 = vpack.c.b16 %v700, %v698
      %733 = vmatprep.subr.bf16.mxu0 %v702
      %734 = vmatpush1.bf16.msra.mxu0 %v701
      %735 = vmatprep.subr.bf16.mxu0 %v704
      %736 = vmatpush1.bf16.msra.mxu0 %v703
      %737 = vmatprep.subr.bf16.mxu0 %v706
      %738 = vmatpush1.bf16.msra.mxu0 %v705
      %739 = vmatprep.subr.bf16.mxu0 %v708
      %740 = vmatpush1.bf16.msra.mxu0 %v707
      %741 = vmatprep.subr.bf16.mxu0 %v710
      %742 = vmatpush1.bf16.msra.mxu0 %v709
      %743 = vmatprep.subr.bf16.mxu0 %v712
      %744 = vmatpush1.bf16.msra.mxu0 %v711
      %745 = vmatprep.subr.bf16.mxu0 %v714
      %746 = vmatpush1.bf16.msra.mxu0 %v713
      %747 = vmatprep.subr.bf16.mxu0 %v716
      %748 = vmatpush1.bf16.msra.mxu0 %v715
      %749 = vmatprep.subr.bf16.mxu0 0
      %750 = vmatpush1.bf16.msra.mxu0 0
      %751 = vmatprep.subr.bf16.mxu0 0
      %752 = vmatpush1.bf16.msra.mxu0 0
      %753 = vmatprep.subr.bf16.mxu0 0
      %754 = vmatpush1.bf16.msra.mxu0 0
      %755 = vmatprep.subr.bf16.mxu0 0
      %756 = vmatpush1.bf16.msra.mxu0 0
      %757 = vmatprep.subr.bf16.mxu0 0
      %758 = vmatpush1.bf16.msra.mxu0 0
      %759 = vmatprep.subr.bf16.mxu0 0
      %760 = vmatpush1.bf16.msra.mxu0 0
      %761 = vmatprep.subr.bf16.mxu0 0
      %762 = vmatpush1.bf16.msra.mxu0 0
      %763 = vmatprep.subr.bf16.mxu0 0
      %764 = vmatpush1.bf16.msra.mxu0 0
      %765 = vmatprep.mubr.bf16.mxu0 0
      %766 = vmatmul.mubr.bf16.gmra.mrb[0].mxu0 %v589
      %v767 = vpop.f32.mrb[0].mxu0
      %v768 = vadd.f32 %v454, %v767
      %v769 = vpop.f32.mrb[0].mxu0
      %v770 = vadd.f32 %v458, %v769
      %v771 = vpop.f32.mrb[0].mxu0
      %v772 = vadd.f32 %v454, %v771
      %v773 = vpop.f32.mrb[0].mxu0
      %v774 = vadd.f32 %v458, %v773
      %775 = vmatprep.mubr.bf16.mxu0 0
      %776 = vmatmul.mubr.bf16.gmra.mrb[0].mxu0 %v590
      %v777 = vpop.f32.mrb[0].mxu0
      %v778 = vadd.f32 %v454, %v777
      %v779 = vpop.f32.mrb[0].mxu0
      %v780 = vadd.f32 %v458, %v779
      %v781 = vpop.f32.mrb[0].mxu0
      %v782 = vadd.f32 %v454, %v781
      %v783 = vpop.f32.mrb[0].mxu0
      %v784 = vadd.f32 %v458, %v783
      %785 = vmatprep.mubr.bf16.mxu0 0
      %786 = vmatmul.mubr.bf16.gmra.mrb[0].mxu0 %v591
      %v787 = vpop.f32.mrb[0].mxu0
      %v788 = vadd.f32 %v454, %v787
      %v789 = vpop.f32.mrb[0].mxu0
      %v790 = vadd.f32 %v458, %v789
      %v791 = vpop.f32.mrb[0].mxu0
      %v792 = vadd.f32 %v454, %v791
      %v793 = vpop.f32.mrb[0].mxu0
      %v794 = vadd.f32 %v458, %v793
      %795 = vmatprep.mubr.bf16.mxu0 0
      %796 = vmatmul.mubr.bf16.gmra.mrb[0].mxu0 %v592
      %v797 = vpop.f32.mrb[0].mxu0
      %v798 = vadd.f32 %v454, %v797
      %v799 = vpop.f32.mrb[0].mxu0
      %v800 = vadd.f32 %v458, %v799
      %v801 = vpop.f32.mrb[0].mxu0
      %v802 = vadd.f32 %v454, %v801
      %v803 = vpop.f32.mrb[0].mxu0
      %v804 = vadd.f32 %v458, %v803
      %805 = vmatprep.mubr.bf16.mxu0 0
      %806 = vmatmul.mubr.bf16.gmra.mrb[0].mxu0 %v593
      %v807 = vpop.f32.mrb[0].mxu0
      %v808 = vadd.f32 %v454, %v807
      %v809 = vpop.f32.mrb[0].mxu0
      %v810 = vadd.f32 %v458, %v809
      %v811 = vpop.f32.mrb[0].mxu0
      %v812 = vadd.f32 %v454, %v811
      %v813 = vpop.f32.mrb[0].mxu0
      %v814 = vadd.f32 %v458, %v813
      %815 = vmatprep.mubr.bf16.mxu0 0
      %816 = vmatmul.mubr.bf16.gmra.mrb[0].mxu0 %v594
      %v817 = vpop.f32.mrb[0].mxu0
      %v818 = vadd.f32 %v454, %v817
      %v819 = vpop.f32.mrb[0].mxu0
      %v820 = vadd.f32 %v458, %v819
      %v821 = vpop.f32.mrb[0].mxu0
      %v822 = vadd.f32 %v454, %v821
      %v823 = vpop.f32.mrb[0].mxu0
      %v824 = vadd.f32 %v458, %v823
      %825 = vmatprep.mubr.bf16.mxu0 0
      %826 = vmatmul.mubr.bf16.gmra.mrb[0].mxu0 %v595
      %v827 = vpop.f32.mrb[0].mxu0
      %v828 = vadd.f32 %v454, %v827
      %v829 = vpop.f32.mrb[0].mxu0
      %v830 = vadd.f32 %v458, %v829
      %v831 = vpop.f32.mrb[0].mxu0
      %v832 = vadd.f32 %v454, %v831
      %v833 = vpop.f32.mrb[0].mxu0
      %v834 = vadd.f32 %v458, %v833
      %835 = vmatprep.mubr.bf16.mxu0 0
      %836 = vmatmul.mubr.bf16.gmra.mrb[0].mxu0 %v596
      %v837 = vpop.f32.mrb[0].mxu0
      %v838 = vadd.f32 %v454, %v837
      %v839 = vpop.f32.mrb[0].mxu0
      %v840 = vadd.f32 %v458, %v839
      %v841 = vpop.f32.mrb[0].mxu0
      %v842 = vadd.f32 %v454, %v841
      %v843 = vpop.f32.mrb[0].mxu0
      %v844 = vadd.f32 %v458, %v843
      %845 = vmatprep.mubr.bf16.mxu0 0
      %846 = vmatmul.mubr.bf16.gmra.mrb[0].mxu0 %v597
      %v847 = vpop.f32.mrb[0].mxu0
      %v848 = vadd.f32 %v454, %v847
      %v849 = vpop.f32.mrb[0].mxu0
      %v850 = vadd.f32 %v458, %v849
      %v851 = vpop.f32.mrb[0].mxu0
      %v852 = vadd.f32 %v454, %v851
      %v853 = vpop.f32.mrb[0].mxu0
      %v854 = vadd.f32 %v458, %v853
      %855 = vmatprep.mubr.bf16.mxu0 0
      %856 = vmatmul.mubr.bf16.gmra.mrb[0].mxu0 %v598
      %v857 = vpop.f32.mrb[0].mxu0
      %v858 = vadd.f32 %v454, %v857
      %v859 = vpop.f32.mrb[0].mxu0
      %v860 = vadd.f32 %v458, %v859
      %v861 = vpop.f32.mrb[0].mxu0
      %v862 = vadd.f32 %v454, %v861
      %v863 = vpop.f32.mrb[0].mxu0
      %v864 = vadd.f32 %v458, %v863
      %865 = vmatprep.mubr.bf16.mxu0 0
      %866 = vmatmul.mubr.bf16.gmra.mrb[0].mxu0 %v599
      %v867 = vpop.f32.mrb[0].mxu0
      %v868 = vadd.f32 %v454, %v867
      %v869 = vpop.f32.mrb[0].mxu0
      %v870 = vadd.f32 %v458, %v869
      %v871 = vpop.f32.mrb[0].mxu0
      %v872 = vadd.f32 %v454, %v871
      %v873 = vpop.f32.mrb[0].mxu0
      %v874 = vadd.f32 %v458, %v873
      %875 = vmatprep.mubr.bf16.mxu0 0
      %876 = vmatmul.mubr.bf16.gmra.mrb[0].mxu0 %v600
      %v877 = vpop.f32.mrb[0].mxu0
      %v878 = vadd.f32 %v454, %v877
      %v879 = vpop.f32.mrb[0].mxu0
      %v880 = vadd.f32 %v458, %v879
      %v881 = vpop.f32.mrb[0].mxu0
      %v882 = vadd.f32 %v454, %v881
      %v883 = vpop.f32.mrb[0].mxu0
      %v884 = vadd.f32 %v458, %v883
      %885 = vmatprep.mubr.bf16.mxu0 0
      %886 = vmatmul.mubr.bf16.gmra.mrb[0].mxu0 %v601
      %v887 = vpop.f32.mrb[0].mxu0
      %v888 = vadd.f32 %v454, %v887
      %v889 = vpop.f32.mrb[0].mxu0
      %v890 = vadd.f32 %v458, %v889
      %v891 = vpop.f32.mrb[0].mxu0
      %v892 = vadd.f32 %v454, %v891
      %v893 = vpop.f32.mrb[0].mxu0
      %v894 = vadd.f32 %v458, %v893
      %895 = vmatprep.mubr.bf16.mxu0 0
      %896 = vmatmul.mubr.bf16.gmra.mrb[0].mxu0 %v602
      %v897 = vpop.f32.mrb[0].mxu0
      %v898 = vadd.f32 %v454, %v897
      %v899 = vpop.f32.mrb[0].mxu0
      %v900 = vadd.f32 %v458, %v899
      %v901 = vpop.f32.mrb[0].mxu0
      %v902 = vadd.f32 %v454, %v901
      %v903 = vpop.f32.mrb[0].mxu0
      %v904 = vadd.f32 %v458, %v903
      %905 = vmatprep.mubr.bf16.mxu0 0
      %906 = vmatmul.mubr.bf16.gmra.mrb[0].mxu0 %v603
      %v907 = vpop.f32.mrb[0].mxu0
      %v908 = vadd.f32 %v454, %v907
      %v909 = vpop.f32.mrb[0].mxu0
      %v910 = vadd.f32 %v458, %v909
      %v911 = vpop.f32.mrb[0].mxu0
      %v912 = vadd.f32 %v454, %v911
      %v913 = vpop.f32.mrb[0].mxu0
      %v914 = vadd.f32 %v458, %v913
      %915 = vmatprep.mubr.bf16.mxu0 0
      %916 = vmatmul.mubr.bf16.gmra.mrb[0].mxu0 %v604
      %v917 = vpop.f32.mrb[0].mxu0
      %v918 = vadd.f32 %v454, %v917
      %v919 = vpop.f32.mrb[0].mxu0
      %v920 = vadd.f32 %v458, %v919
      %v921 = vpop.f32.mrb[0].mxu0
      %v922 = vadd.f32 %v454, %v921
      %v923 = vpop.f32.mrb[0].mxu0
      %v924 = vadd.f32 %v458, %v923
      %925 = vmatprep.mubr.bf16.mxu0 0
      %926 = vmatmul.mubr.bf16.gmra.mrb[0].mxu0 %v605
      %v927 = vpop.f32.mrb[0].mxu0
      %v928 = vadd.f32 %v454, %v927
      %v929 = vpop.f32.mrb[0].mxu0
      %v930 = vadd.f32 %v458, %v929
      %v931 = vpop.f32.mrb[0].mxu0
      %v932 = vadd.f32 %v454, %v931
      %v933 = vpop.f32.mrb[0].mxu0
      %v934 = vadd.f32 %v458, %v933
      %935 = vmatprep.mubr.bf16.mxu0 0
      %936 = vmatmul.mubr.bf16.gmra.mrb[0].mxu0 %v606
      %v937 = vpop.f32.mrb[0].mxu0
      %v938 = vadd.f32 %v454, %v937
      %v939 = vpop.f32.mrb[0].mxu0
      %v940 = vadd.f32 %v458, %v939
      %v941 = vpop.f32.mrb[0].mxu0
      %v942 = vadd.f32 %v454, %v941
      %v943 = vpop.f32.mrb[0].mxu0
      %v944 = vadd.f32 %v458, %v943
      %945 = vmatprep.mubr.bf16.mxu0 0
      %946 = vmatmul.mubr.bf16.gmra.mrb[0].mxu0 %v607
      %v947 = vpop.f32.mrb[0].mxu0
      %v948 = vadd.f32 %v454, %v947
      %v949 = vpop.f32.mrb[0].mxu0
      %v950 = vadd.f32 %v458, %v949
      %v951 = vpop.f32.mrb[0].mxu0
      %v952 = vadd.f32 %v454, %v951
      %v953 = vpop.f32.mrb[0].mxu0
      %v954 = vadd.f32 %v458, %v953
      %955 = vmatprep.mubr.bf16.mxu0 0
      %956 = vmatmul.mubr.bf16.gmra.mrb[0].mxu0 %v608
      %v957 = vpop.f32.mrb[0].mxu0
      %v958 = vadd.f32 %v454, %v957
      %v959 = vpop.f32.mrb[0].mxu0
      %v960 = vadd.f32 %v458, %v959
      %v961 = vpop.f32.mrb[0].mxu0
      %v962 = vadd.f32 %v454, %v961
      %v963 = vpop.f32.mrb[0].mxu0
      %v964 = vadd.f32 %v458, %v963
      %965 = vmatprep.mubr.bf16.mxu0 0
      %966 = vmatmul.mubr.bf16.gmra.mrb[0].mxu0 %v609
      %v967 = vpop.f32.mrb[0].mxu0
      %v968 = vadd.f32 %v454, %v967
      %v969 = vpop.f32.mrb[0].mxu0
      %v970 = vadd.f32 %v458, %v969
      %v971 = vpop.f32.mrb[0].mxu0
      %v972 = vadd.f32 %v454, %v971
      %v973 = vpop.f32.mrb[0].mxu0
      %v974 = vadd.f32 %v458, %v973
      %975 = vmatprep.mubr.bf16.mxu0 0
      %976 = vmatmul.mubr.bf16.gmra.mrb[0].mxu0 %v610
      %v977 = vpop.f32.mrb[0].mxu0
      %v978 = vadd.f32 %v454, %v977
      %v979 = vpop.f32.mrb[0].mxu0
      %v980 = vadd.f32 %v458, %v979
      %v981 = vpop.f32.mrb[0].mxu0
      %v982 = vadd.f32 %v454, %v981
      %v983 = vpop.f32.mrb[0].mxu0
      %v984 = vadd.f32 %v458, %v983
      %985 = vmatprep.mubr.bf16.mxu0 0
      %986 = vmatmul.mubr.bf16.gmra.mrb[0].mxu0 %v611
      %v987 = vpop.f32.mrb[0].mxu0
      %v988 = vadd.f32 %v454, %v987
      %v989 = vpop.f32.mrb[0].mxu0
      %v990 = vadd.f32 %v458, %v989
      %v991 = vpop.f32.mrb[0].mxu0
      %v992 = vadd.f32 %v454, %v991
      %v993 = vpop.f32.mrb[0].mxu0
      %v994 = vadd.f32 %v458, %v993
      %995 = vmatprep.mubr.bf16.mxu0 0
      %996 = vmatmul.mubr.bf16.gmra.mrb[0].mxu0 %v612
      %v997 = vpop.f32.mrb[0].mxu0
      %v998 = vadd.f32 %v454, %v997
      %v999 = vpop.f32.mrb[0].mxu0
      %v1000 = vadd.f32 %v458, %v999
      %v1001 = vpop.f32.mrb[0].mxu0
      %v1002 = vadd.f32 %v454, %v1001
      %v1003 = vpop.f32.mrb[0].mxu0
      %v1004 = vadd.f32 %v458, %v1003
      %1005 = vmatprep.mubr.bf16.mxu0 0
      %1006 = vmatmul.mubr.bf16.gmra.mrb[0].mxu0 %v613
      %v1007 = vpop.f32.mrb[0].mxu0
      %v1008 = vadd.f32 %v454, %v1007
      %v1009 = vpop.f32.mrb[0].mxu0
      %v1010 = vadd.f32 %v458, %v1009
      %v1011 = vpop.f32.mrb[0].mxu0
      %v1012 = vadd.f32 %v454, %v1011
      %v1013 = vpop.f32.mrb[0].mxu0
      %v1014 = vadd.f32 %v458, %v1013
      %1015 = vmatprep.mubr.bf16.mxu0 0
      %1016 = vmatmul.mubr.bf16.gmra.mrb[0].mxu0 %v614
      %v1017 = vpop.f32.mrb[0].mxu0
      %v1018 = vadd.f32 %v454, %v1017
      %v1019 = vpop.f32.mrb[0].mxu0
      %v1020 = vadd.f32 %v458, %v1019
      %v1021 = vpop.f32.mrb[0].mxu0
      %v1022 = vadd.f32 %v454, %v1021
      %v1023 = vpop.f32.mrb[0].mxu0
      %v1024 = vadd.f32 %v458, %v1023
      %1025 = vmatprep.mubr.bf16.mxu0 0
      %1026 = vmatmul.mubr.bf16.gmra.mrb[0].mxu0 %v615
      %v1027 = vpop.f32.mrb[0].mxu0
      %v1028 = vadd.f32 %v454, %v1027
      %v1029 = vpop.f32.mrb[0].mxu0
      %v1030 = vadd.f32 %v458, %v1029
      %v1031 = vpop.f32.mrb[0].mxu0
      %v1032 = vadd.f32 %v454, %v1031
      %v1033 = vpop.f32.mrb[0].mxu0
      %v1034 = vadd.f32 %v458, %v1033
      %1035 = vmatprep.mubr.bf16.mxu0 0
      %1036 = vmatmul.mubr.bf16.gmra.mrb[0].mxu0 %v616
      %v1037 = vpop.f32.mrb[0].mxu0
      %v1038 = vadd.f32 %v454, %v1037
      %v1039 = vpop.f32.mrb[0].mxu0
      %v1040 = vadd.f32 %v458, %v1039
      %v1041 = vpop.f32.mrb[0].mxu0
      %v1042 = vadd.f32 %v454, %v1041
      %v1043 = vpop.f32.mrb[0].mxu0
      %v1044 = vadd.f32 %v458, %v1043
      %1045 = vmatprep.mubr.bf16.mxu0 0
      %1046 = vmatmul.mubr.bf16.gmra.mrb[0].mxu0 %v617
      %v1047 = vpop.f32.mrb[0].mxu0
      %v1048 = vadd.f32 %v454, %v1047
      %v1049 = vpop.f32.mrb[0].mxu0
      %v1050 = vadd.f32 %v458, %v1049
      %v1051 = vpop.f32.mrb[0].mxu0
      %v1052 = vadd.f32 %v454, %v1051
      %v1053 = vpop.f32.mrb[0].mxu0
      %v1054 = vadd.f32 %v458, %v1053
      %1055 = vmatprep.mubr.bf16.mxu0 0
      %1056 = vmatmul.mubr.bf16.gmra.mrb[0].mxu0 %v618
      %v1057 = vpop.f32.mrb[0].mxu0
      %v1058 = vadd.f32 %v454, %v1057
      %v1059 = vpop.f32.mrb[0].mxu0
      %v1060 = vadd.f32 %v458, %v1059
      %v1061 = vpop.f32.mrb[0].mxu0
      %v1062 = vadd.f32 %v454, %v1061
      %v1063 = vpop.f32.mrb[0].mxu0
      %v1064 = vadd.f32 %v458, %v1063
      %1065 = vmatprep.mubr.bf16.mxu0 0
      %1066 = vmatmul.mubr.bf16.gmra.mrb[0].mxu0 %v619
      %v1067 = vpop.f32.mrb[0].mxu0
      %v1068 = vadd.f32 %v454, %v1067
      %v1069 = vpop.f32.mrb[0].mxu0
      %v1070 = vadd.f32 %v458, %v1069
      %v1071 = vpop.f32.mrb[0].mxu0
      %v1072 = vadd.f32 %v454, %v1071
      %v1073 = vpop.f32.mrb[0].mxu0
      %v1074 = vadd.f32 %v458, %v1073
      %1075 = vmatprep.mubr.bf16.mxu0 0
      %1076 = vmatmul.mubr.bf16.gmra.mrb[0].mxu0 %v620
      %v1077 = vpop.f32.mrb[0].mxu0
      %v1078 = vadd.f32 %v454, %v1077
      %v1079 = vpop.f32.mrb[0].mxu0
      %v1080 = vadd.f32 %v458, %v1079
      %v1081 = vpop.f32.mrb[0].mxu0
      %v1082 = vadd.f32 %v454, %v1081
      %v1083 = vpop.f32.mrb[0].mxu0
      %v1084 = vadd.f32 %v458, %v1083
      %1085 = vdwg.mxu0
      %v1086 = vmax.f32 %v768, 0.0
      %v1087 = vmax.f32 %v770, 0.0
      %v1088 = vmax.f32 %v772, 0.0
      %v1089 = vmax.f32 %v774, 0.0
      %v1090 = vmax.f32 %v778, 0.0
      %v1091 = vmax.f32 %v780, 0.0
      %v1092 = vmax.f32 %v782, 0.0
      %v1093 = vmax.f32 %v784, 0.0
      %v1094 = vmax.f32 %v788, 0.0
      %v1095 = vmax.f32 %v790, 0.0
      %v1096 = vmax.f32 %v792, 0.0
      %v1097 = vmax.f32 %v794, 0.0
      %v1098 = vmax.f32 %v798, 0.0
      %v1099 = vmax.f32 %v800, 0.0
      %v1100 = vmax.f32 %v802, 0.0
      %v1101 = vmax.f32 %v804, 0.0
      %v1102 = vmax.f32 %v808, 0.0
      %v1103 = vmax.f32 %v810, 0.0
      %v1104 = vmax.f32 %v812, 0.0
      %v1105 = vmax.f32 %v814, 0.0
      %v1106 = vmax.f32 %v818, 0.0
      %v1107 = vmax.f32 %v820, 0.0
      %v1108 = vmax.f32 %v822, 0.0
      %v1109 = vmax.f32 %v824, 0.0
      %v1110 = vmax.f32 %v828, 0.0
      %v1111 = vmax.f32 %v830, 0.0
      %v1112 = vmax.f32 %v832, 0.0
      %v1113 = vmax.f32 %v834, 0.0
      %v1114 = vmax.f32 %v838, 0.0
      %v1115 = vmax.f32 %v840, 0.0
      %v1116 = vmax.f32 %v842, 0.0
      %v1117 = vmax.f32 %v844, 0.0
      %v1118 = vmax.f32 %v848, 0.0
      %v1119 = vmax.f32 %v850, 0.0
      %v1120 = vmax.f32 %v852, 0.0
      %v1121 = vmax.f32 %v854, 0.0
      %v1122 = vmax.f32 %v858, 0.0
      %v1123 = vmax.f32 %v860, 0.0
      %v1124 = vmax.f32 %v862, 0.0
      %v1125 = vmax.f32 %v864, 0.0
      %v1126 = vmax.f32 %v868, 0.0
      %v1127 = vmax.f32 %v870, 0.0
      %v1128 = vmax.f32 %v872, 0.0
      %v1129 = vmax.f32 %v874, 0.0
      %v1130 = vmax.f32 %v878, 0.0
      %v1131 = vmax.f32 %v880, 0.0
      %v1132 = vmax.f32 %v882, 0.0
      %v1133 = vmax.f32 %v884, 0.0
      %v1134 = vmax.f32 %v888, 0.0
      %v1135 = vmax.f32 %v890, 0.0
      %v1136 = vmax.f32 %v892, 0.0
      %v1137 = vmax.f32 %v894, 0.0
      %v1138 = vmax.f32 %v898, 0.0
      %v1139 = vmax.f32 %v900, 0.0
      %v1140 = vmax.f32 %v902, 0.0
      %v1141 = vmax.f32 %v904, 0.0
      %v1142 = vmax.f32 %v908, 0.0
      %v1143 = vmax.f32 %v910, 0.0
      %v1144 = vmax.f32 %v912, 0.0
      %v1145 = vmax.f32 %v914, 0.0
      %v1146 = vmax.f32 %v918, 0.0
      %v1147 = vmax.f32 %v920, 0.0
      %v1148 = vmax.f32 %v922, 0.0
      %v1149 = vmax.f32 %v924, 0.0
      %v1150 = vmax.f32 %v928, 0.0
      %v1151 = vmax.f32 %v930, 0.0
      %v1152 = vmax.f32 %v932, 0.0
      %v1153 = vmax.f32 %v934, 0.0
      %v1154 = vmax.f32 %v938, 0.0
      %v1155 = vmax.f32 %v940, 0.0
      %v1156 = vmax.f32 %v942, 0.0
      %v1157 = vmax.f32 %v944, 0.0
      %v1158 = vmax.f32 %v948, 0.0
      %v1159 = vmax.f32 %v950, 0.0
      %v1160 = vmax.f32 %v952, 0.0
      %v1161 = vmax.f32 %v954, 0.0
      %v1162 = vmax.f32 %v958, 0.0
      %v1163 = vmax.f32 %v960, 0.0
      %v1164 = vmax.f32 %v962, 0.0
      %v1165 = vmax.f32 %v964, 0.0
      %v1166 = vmax.f32 %v968, 0.0
      %v1167 = vmax.f32 %v970, 0.0
      %v1168 = vmax.f32 %v972, 0.0
      %v1169 = vmax.f32 %v974, 0.0
      %v1170 = vmax.f32 %v978, 0.0
      %v1171 = vmax.f32 %v980, 0.0
      %v1172 = vmax.f32 %v982, 0.0
      %v1173 = vmax.f32 %v984, 0.0
      %v1174 = vmax.f32 %v988, 0.0
      %v1175 = vmax.f32 %v990, 0.0
      %v1176 = vmax.f32 %v992, 0.0
      %v1177 = vmax.f32 %v994, 0.0
      %v1178 = vmax.f32 %v998, 0.0
      %v1179 = vmax.f32 %v1000, 0.0
      %v1180 = vmax.f32 %v1002, 0.0
      %v1181 = vmax.f32 %v1004, 0.0
      %v1182 = vmax.f32 %v1008, 0.0
      %v1183 = vmax.f32 %v1010, 0.0
      %v1184 = vmax.f32 %v1012, 0.0
      %v1185 = vmax.f32 %v1014, 0.0
      %v1186 = vmax.f32 %v1018, 0.0
      %v1187 = vmax.f32 %v1020, 0.0
      %v1188 = vmax.f32 %v1022, 0.0
      %v1189 = vmax.f32 %v1024, 0.0
      %v1190 = vmax.f32 %v1028, 0.0
      %v1191 = vmax.f32 %v1030, 0.0
      %v1192 = vmax.f32 %v1032, 0.0
      %v1193 = vmax.f32 %v1034, 0.0
      %v1194 = vmax.f32 %v1038, 0.0
      %v1195 = vmax.f32 %v1040, 0.0
      %v1196 = vmax.f32 %v1042, 0.0
      %v1197 = vmax.f32 %v1044, 0.0
      %v1198 = vmax.f32 %v1048, 0.0
      %v1199 = vmax.f32 %v1050, 0.0
      %v1200 = vmax.f32 %v1052, 0.0
      %v1201 = vmax.f32 %v1054, 0.0
      %v1202 = vmax.f32 %v1058, 0.0
      %v1203 = vmax.f32 %v1060, 0.0
      %v1204 = vmax.f32 %v1062, 0.0
      %v1205 = vmax.f32 %v1064, 0.0
      %v1206 = vmax.f32 %v1068, 0.0
      %v1207 = vmax.f32 %v1070, 0.0
      %v1208 = vmax.f32 %v1072, 0.0
      %v1209 = vmax.f32 %v1074, 0.0
      %v1210 = vmax.f32 %v1078, 0.0
      %v1211 = vmax.f32 %v1080, 0.0
      %v1212 = vmax.f32 %v1082, 0.0
      %v1213 = vmax.f32 %v1084, 0.0
      %v1214 = vld [vmem:[%s3] sm:$0xff]
      %v1215 = vld [vmem:[%s3 + $0x8] sm:$0xff]
      %v1216 = vld [vmem:[%s3 + $0x10] sm:$0xff]
      %v1217 = vld [vmem:[%s3 + $0x18] sm:$0xff]
      %v1218 = vld [vmem:[%s3 + $0x20] sm:$0xff]
      %v1219 = vld [vmem:[%s3 + $0x28] sm:$0xff]
      %v1220 = vld [vmem:[%s3 + $0x30] sm:$0xff]
      %v1221 = vld [vmem:[%s3 + $0x38] sm:$0xff]
      %v1222 = vld [vmem:[%s3 + $0x40] sm:$0xff]
      %v1223 = vld [vmem:[%s3 + $0x48] sm:$0xff]
      %v1224 = vld [vmem:[%s3 + $0x50] sm:$0xff]
      %v1225 = vld [vmem:[%s3 + $0x58] sm:$0xff]
      %v1226 = vld [vmem:[%s3 + $0x60] sm:$0xff]
      %v1227 = vld [vmem:[%s3 + $0x68] sm:$0xff]
      %v1228 = vld [vmem:[%s3 + $0x70] sm:$0xff]
      %v1229 = vld [vmem:[%s3 + $0x78] sm:$0xff]
      %v1230 = vld [vmem:[%s3 + $0x80] sm:$0xff]
      %v1231 = vld [vmem:[%s3 + $0x88] sm:$0xff]
      %v1232 = vld [vmem:[%s3 + $0x90] sm:$0xff]
      %v1233 = vld [vmem:[%s3 + $0x98] sm:$0xff]
      %v1234 = vld [vmem:[%s3 + $0xa0] sm:$0xff]
      %v1235 = vld [vmem:[%s3 + $0xa8] sm:$0xff]
      %v1236 = vld [vmem:[%s3 + $0xb0] sm:$0xff]
      %v1237 = vld [vmem:[%s3 + $0xb8] sm:$0xff]
      %v1238 = vld [vmem:[%s3 + $0xc0] sm:$0xff]
      %v1239 = vld [vmem:[%s3 + $0xc8] sm:$0xff]
      %v1240 = vld [vmem:[%s3 + $0xd0] sm:$0xff]
      %v1241 = vld [vmem:[%s3 + $0xd8] sm:$0xff]
      %v1242 = vld [vmem:[%s3 + $0xe0] sm:$0xff]
      %v1243 = vld [vmem:[%s3 + $0xe8] sm:$0xff]
      %v1244 = vld [vmem:[%s3 + $0xf0] sm:$0xff]
      %v1245 = vld [vmem:[%s3 + $0xf8] sm:$0xff]
      %v1246 = vpack.c.bf16 %v1088, %v1086
      %v1247 = vpack.c.bf16 %v1089, %v1087
      %v1248 = vpack.c.bf16 %v1092, %v1090
      %v1249 = vpack.c.bf16 %v1093, %v1091
      %v1250 = vpack.c.bf16 %v1096, %v1094
      %v1251 = vpack.c.bf16 %v1097, %v1095
      %v1252 = vpack.c.bf16 %v1100, %v1098
      %v1253 = vpack.c.bf16 %v1101, %v1099
      %v1254 = vpack.c.bf16 %v1104, %v1102
      %v1255 = vpack.c.bf16 %v1105, %v1103
      %v1256 = vpack.c.bf16 %v1108, %v1106
      %v1257 = vpack.c.bf16 %v1109, %v1107
      %v1258 = vpack.c.bf16 %v1112, %v1110
      %v1259 = vpack.c.bf16 %v1113, %v1111
      %v1260 = vpack.c.bf16 %v1116, %v1114
      %v1261 = vpack.c.bf16 %v1117, %v1115
      %v1262 = vpack.c.bf16 %v1120, %v1118
      %v1263 = vpack.c.bf16 %v1121, %v1119
      %v1264 = vpack.c.bf16 %v1124, %v1122
      %v1265 = vpack.c.bf16 %v1125, %v1123
      %v1266 = vpack.c.bf16 %v1128, %v1126
      %v1267 = vpack.c.bf16 %v1129, %v1127
      %v1268 = vpack.c.bf16 %v1132, %v1130
      %v1269 = vpack.c.bf16 %v1133, %v1131
      %v1270 = vpack.c.bf16 %v1136, %v1134
      %v1271 = vpack.c.bf16 %v1137, %v1135
      %v1272 = vpack.c.bf16 %v1140, %v1138
      %v1273 = vpack.c.bf16 %v1141, %v1139
      %v1274 = vpack.c.bf16 %v1144, %v1142
      %v1275 = vpack.c.bf16 %v1145, %v1143
      %v1276 = vpack.c.bf16 %v1148, %v1146
      %v1277 = vpack.c.bf16 %v1149, %v1147
      %v1278 = vpack.c.bf16 %v1152, %v1150
      %v1279 = vpack.c.bf16 %v1153, %v1151
      %v1280 = vpack.c.bf16 %v1156, %v1154
      %v1281 = vpack.c.bf16 %v1157, %v1155
      %v1282 = vpack.c.bf16 %v1160, %v1158
      %v1283 = vpack.c.bf16 %v1161, %v1159
      %v1284 = vpack.c.bf16 %v1164, %v1162
      %v1285 = vpack.c.bf16 %v1165, %v1163
      %v1286 = vpack.c.bf16 %v1168, %v1166
      %v1287 = vpack.c.bf16 %v1169, %v1167
      %v1288 = vpack.c.bf16 %v1172, %v1170
      %v1289 = vpack.c.bf16 %v1173, %v1171
      %v1290 = vpack.c.bf16 %v1176, %v1174
      %v1291 = vpack.c.bf16 %v1177, %v1175
      %v1292 = vpack.c.bf16 %v1180, %v1178
      %v1293 = vpack.c.bf16 %v1181, %v1179
      %v1294 = vpack.c.bf16 %v1184, %v1182
      %v1295 = vpack.c.bf16 %v1185, %v1183
      %v1296 = vpack.c.bf16 %v1188, %v1186
      %v1297 = vpack.c.bf16 %v1189, %v1187
      %v1298 = vpack.c.bf16 %v1192, %v1190
      %v1299 = vpack.c.bf16 %v1193, %v1191
      %v1300 = vpack.c.bf16 %v1196, %v1194
      %v1301 = vpack.c.bf16 %v1197, %v1195
      %v1302 = vpack.c.bf16 %v1200, %v1198
      %v1303 = vpack.c.bf16 %v1201, %v1199
      %v1304 = vpack.c.bf16 %v1204, %v1202
      %v1305 = vpack.c.bf16 %v1205, %v1203
      %v1306 = vpack.c.bf16 %v1208, %v1206
      %v1307 = vpack.c.bf16 %v1209, %v1207
      %v1308 = vpack.c.bf16 %v1212, %v1210
      %v1309 = vpack.c.bf16 %v1213, %v1211
      %v1310 = vld [vmem:[%s6 + $0x2] sm:$0x3]
      %v1312 = vlaneseq
      %v1313 = vshrl.u32 %v1312, 7
      %v1314 = vsub.s32 0, %v1313
      %v1315 = vrot.slane %v1310, %v1314
      %v1316 = vlaneseq
      %v1317 = vshrl.u32 %v1316, 7
      %v1318 = vsub.s32 1, %v1317
      %v1319 = vrot.slane %v1310, %v1318
      %v1354 = vunpack.c.l.b16 %v1214
      %v1355 = vunpack.c.h.b16 %v1214
      %v1356 = vunpack.c.l.b16 %v1215
      %v1357 = vunpack.c.h.b16 %v1215
      %v1358 = vunpack.c.l.b16 %v1216
      %v1359 = vunpack.c.h.b16 %v1216
      %v1360 = vunpack.c.l.b16 %v1217
      %v1361 = vunpack.c.h.b16 %v1217
      %v1362 = vunpack.c.l.b16 %v1218
      %v1363 = vunpack.c.h.b16 %v1218
      %v1364 = vunpack.c.l.b16 %v1219
      %v1365 = vunpack.c.h.b16 %v1219
      %v1366 = vunpack.c.l.b16 %v1220
      %v1367 = vunpack.c.h.b16 %v1220
      %v1368 = vunpack.c.l.b16 %v1221
      %v1369 = vunpack.c.h.b16 %v1221
      %v1370 = vunpack.c.l.b16 %v1222
      %v1371 = vunpack.c.h.b16 %v1222
      %v1372 = vunpack.c.l.b16 %v1223
      %v1373 = vunpack.c.h.b16 %v1223
      %v1374 = vunpack.c.l.b16 %v1224
      %v1375 = vunpack.c.h.b16 %v1224
      %v1376 = vunpack.c.l.b16 %v1225
      %v1377 = vunpack.c.h.b16 %v1225
      %v1378 = vunpack.c.l.b16 %v1226
      %v1379 = vunpack.c.h.b16 %v1226
      %v1380 = vunpack.c.l.b16 %v1227
      %v1381 = vunpack.c.h.b16 %v1227
      %v1382 = vunpack.c.l.b16 %v1228
      %v1383 = vunpack.c.h.b16 %v1228
      %v1384 = vunpack.c.l.b16 %v1229
      %v1385 = vunpack.c.h.b16 %v1229
      %v1386 = vunpack.c.l.b16 %v1230
      %v1387 = vunpack.c.h.b16 %v1230
      %v1388 = vunpack.c.l.b16 %v1231
      %v1389 = vunpack.c.h.b16 %v1231
      %v1390 = vunpack.c.l.b16 %v1232
      %v1391 = vunpack.c.h.b16 %v1232
      %v1392 = vunpack.c.l.b16 %v1233
      %v1393 = vunpack.c.h.b16 %v1233
      %v1394 = vunpack.c.l.b16 %v1234
      %v1395 = vunpack.c.h.b16 %v1234
      %v1396 = vunpack.c.l.b16 %v1235
      %v1397 = vunpack.c.h.b16 %v1235
      %v1398 = vunpack.c.l.b16 %v1236
      %v1399 = vunpack.c.h.b16 %v1236
      %v1400 = vunpack.c.l.b16 %v1237
      %v1401 = vunpack.c.h.b16 %v1237
      %v1402 = vunpack.c.l.b16 %v1238
      %v1403 = vunpack.c.h.b16 %v1238
      %v1404 = vunpack.c.l.b16 %v1239
      %v1405 = vunpack.c.h.b16 %v1239
      %v1406 = vunpack.c.l.b16 %v1240
      %v1407 = vunpack.c.h.b16 %v1240
      %v1408 = vunpack.c.l.b16 %v1241
      %v1409 = vunpack.c.h.b16 %v1241
      %v1410 = vunpack.c.l.b16 %v1242
      %v1411 = vunpack.c.h.b16 %v1242
      %v1412 = vunpack.c.l.b16 %v1243
      %v1413 = vunpack.c.h.b16 %v1243
      %v1414 = vunpack.c.l.b16 %v1244
      %v1415 = vunpack.c.h.b16 %v1244
      %v1416 = vunpack.c.l.b16 %v1245
      %v1417 = vunpack.c.h.b16 %v1245
      %v1418 = vpack.c.b16 %v1356, %v1354
      %v1419 = vpack.c.b16 %v1357, %v1355
      %v1420 = vpack.c.b16 %v1360, %v1358
      %v1421 = vpack.c.b16 %v1361, %v1359
      %v1422 = vpack.c.b16 %v1364, %v1362
      %v1423 = vpack.c.b16 %v1365, %v1363
      %v1424 = vpack.c.b16 %v1368, %v1366
      %v1425 = vpack.c.b16 %v1369, %v1367
      %v1426 = vpack.c.b16 %v1372, %v1370
      %v1427 = vpack.c.b16 %v1373, %v1371
      %v1428 = vpack.c.b16 %v1376, %v1374
      %v1429 = vpack.c.b16 %v1377, %v1375
      %v1430 = vpack.c.b16 %v1380, %v1378
      %v1431 = vpack.c.b16 %v1381, %v1379
      %v1432 = vpack.c.b16 %v1384, %v1382
      %v1433 = vpack.c.b16 %v1385, %v1383
      %v1434 = vpack.c.b16 %v1388, %v1386
      %v1435 = vpack.c.b16 %v1389, %v1387
      %v1436 = vpack.c.b16 %v1392, %v1390
      %v1437 = vpack.c.b16 %v1393, %v1391
      %v1438 = vpack.c.b16 %v1396, %v1394
      %v1439 = vpack.c.b16 %v1397, %v1395
      %v1440 = vpack.c.b16 %v1400, %v1398
      %v1441 = vpack.c.b16 %v1401, %v1399
      %v1442 = vpack.c.b16 %v1404, %v1402
      %v1443 = vpack.c.b16 %v1405, %v1403
      %v1444 = vpack.c.b16 %v1408, %v1406
      %v1445 = vpack.c.b16 %v1409, %v1407
      %v1446 = vpack.c.b16 %v1412, %v1410
      %v1447 = vpack.c.b16 %v1413, %v1411
      %v1448 = vpack.c.b16 %v1416, %v1414
      %v1449 = vpack.c.b16 %v1417, %v1415
      %1482 = vmatprep.subr.bf16.mxu0 %v1419
      %1483 = vmatpush1.bf16.msra.mxu0 %v1418
      %1484 = vmatprep.subr.bf16.mxu0 %v1421
      %1485 = vmatpush1.bf16.msra.mxu0 %v1420
      %1486 = vmatprep.subr.bf16.mxu0 %v1423
      %1487 = vmatpush1.bf16.msra.mxu0 %v1422
      %1488 = vmatprep.subr.bf16.mxu0 %v1425
      %1489 = vmatpush1.bf16.msra.mxu0 %v1424
      %1490 = vmatprep.subr.bf16.mxu0 %v1427
      %1491 = vmatpush1.bf16.msra.mxu0 %v1426
      %1492 = vmatprep.subr.bf16.mxu0 %v1429
      %1493 = vmatpush1.bf16.msra.mxu0 %v1428
      %1494 = vmatprep.subr.bf16.mxu0 %v1431
      %1495 = vmatpush1.bf16.msra.mxu0 %v1430
      %1496 = vmatprep.subr.bf16.mxu0 %v1433
      %1497 = vmatpush1.bf16.msra.mxu0 %v1432
      %1498 = vmatprep.subr.bf16.mxu0 %v1435
      %1499 = vmatpush1.bf16.msra.mxu0 %v1434
      %1500 = vmatprep.subr.bf16.mxu0 %v1437
      %1501 = vmatpush1.bf16.msra.mxu0 %v1436
      %1502 = vmatprep.subr.bf16.mxu0 %v1439
      %1503 = vmatpush1.bf16.msra.mxu0 %v1438
      %1504 = vmatprep.subr.bf16.mxu0 %v1441
      %1505 = vmatpush1.bf16.msra.mxu0 %v1440
      %1506 = vmatprep.subr.bf16.mxu0 %v1443
      %1507 = vmatpush1.bf16.msra.mxu0 %v1442
      %1508 = vmatprep.subr.bf16.mxu0 %v1445
      %1509 = vmatpush1.bf16.msra.mxu0 %v1444
      %1510 = vmatprep.subr.bf16.mxu0 %v1447
      %1511 = vmatpush1.bf16.msra.mxu0 %v1446
      %1512 = vmatprep.subr.bf16.mxu0 %v1449
      %1513 = vmatpush1.bf16.msra.mxu0 %v1448
      %1514 = vmatprep.mubr.bf16.mxu0 %v1247
      %1515 = vmatmul.mubr.bf16.gmra.mrb[0].mxu0 %v1246
      %v1516 = vpop.f32.mrb[0].mxu0
      %v1517 = vadd.f32 %v1315, %v1516
      %v1518 = vpop.f32.mrb[0].mxu0
      %v1519 = vadd.f32 %v1319, %v1518
      %v1520 = vpop.f32.mrb[0].mxu0
      %v1521 = vadd.f32 %v1315, %v1520
      %v1522 = vpop.f32.mrb[0].mxu0
      %v1523 = vadd.f32 %v1319, %v1522
      %1524 = vmatprep.mubr.bf16.mxu0 %v1249
      %1525 = vmatmul.mubr.bf16.gmra.mrb[0].mxu0 %v1248
      %v1526 = vpop.f32.mrb[0].mxu0
      %v1527 = vadd.f32 %v1315, %v1526
      %v1528 = vpop.f32.mrb[0].mxu0
      %v1529 = vadd.f32 %v1319, %v1528
      %v1530 = vpop.f32.mrb[0].mxu0
      %v1531 = vadd.f32 %v1315, %v1530
      %v1532 = vpop.f32.mrb[0].mxu0
      %v1533 = vadd.f32 %v1319, %v1532
      %1534 = vmatprep.mubr.bf16.mxu0 %v1251
      %1535 = vmatmul.mubr.bf16.gmra.mrb[0].mxu0 %v1250
      %v1536 = vpop.f32.mrb[0].mxu0
      %v1537 = vadd.f32 %v1315, %v1536
      %v1538 = vpop.f32.mrb[0].mxu0
      %v1539 = vadd.f32 %v1319, %v1538
      %v1540 = vpop.f32.mrb[0].mxu0
      %v1541 = vadd.f32 %v1315, %v1540
      %v1542 = vpop.f32.mrb[0].mxu0
      %v1543 = vadd.f32 %v1319, %v1542
      %1544 = vmatprep.mubr.bf16.mxu0 %v1253
      %1545 = vmatmul.mubr.bf16.gmra.mrb[0].mxu0 %v1252
      %v1546 = vpop.f32.mrb[0].mxu0
      %v1547 = vadd.f32 %v1315, %v1546
      %v1548 = vpop.f32.mrb[0].mxu0
      %v1549 = vadd.f32 %v1319, %v1548
      %v1550 = vpop.f32.mrb[0].mxu0
      %v1551 = vadd.f32 %v1315, %v1550
      %v1552 = vpop.f32.mrb[0].mxu0
      %v1553 = vadd.f32 %v1319, %v1552
      %1554 = vmatprep.mubr.bf16.mxu0 %v1255
      %1555 = vmatmul.mubr.bf16.gmra.mrb[0].mxu0 %v1254
      %v1556 = vpop.f32.mrb[0].mxu0
      %v1557 = vadd.f32 %v1315, %v1556
      %v1558 = vpop.f32.mrb[0].mxu0
      %v1559 = vadd.f32 %v1319, %v1558
      %v1560 = vpop.f32.mrb[0].mxu0
      %v1561 = vadd.f32 %v1315, %v1560
      %v1562 = vpop.f32.mrb[0].mxu0
      %v1563 = vadd.f32 %v1319, %v1562
      %1564 = vmatprep.mubr.bf16.mxu0 %v1257
      %1565 = vmatmul.mubr.bf16.gmra.mrb[0].mxu0 %v1256
      %v1566 = vpop.f32.mrb[0].mxu0
      %v1567 = vadd.f32 %v1315, %v1566
      %v1568 = vpop.f32.mrb[0].mxu0
      %v1569 = vadd.f32 %v1319, %v1568
      %v1570 = vpop.f32.mrb[0].mxu0
      %v1571 = vadd.f32 %v1315, %v1570
      %v1572 = vpop.f32.mrb[0].mxu0
      %v1573 = vadd.f32 %v1319, %v1572
      %1574 = vmatprep.mubr.bf16.mxu0 %v1259
      %1575 = vmatmul.mubr.bf16.gmra.mrb[0].mxu0 %v1258
      %v1576 = vpop.f32.mrb[0].mxu0
      %v1577 = vadd.f32 %v1315, %v1576
      %v1578 = vpop.f32.mrb[0].mxu0
      %v1579 = vadd.f32 %v1319, %v1578
      %v1580 = vpop.f32.mrb[0].mxu0
      %v1581 = vadd.f32 %v1315, %v1580
      %v1582 = vpop.f32.mrb[0].mxu0
      %v1583 = vadd.f32 %v1319, %v1582
      %1584 = vmatprep.mubr.bf16.mxu0 %v1261
      %1585 = vmatmul.mubr.bf16.gmra.mrb[0].mxu0 %v1260
      %v1586 = vpop.f32.mrb[0].mxu0
      %v1587 = vadd.f32 %v1315, %v1586
      %v1588 = vpop.f32.mrb[0].mxu0
      %v1589 = vadd.f32 %v1319, %v1588
      %v1590 = vpop.f32.mrb[0].mxu0
      %v1591 = vadd.f32 %v1315, %v1590
      %v1592 = vpop.f32.mrb[0].mxu0
      %v1593 = vadd.f32 %v1319, %v1592
      %1594 = vmatprep.mubr.bf16.mxu0 %v1263
      %1595 = vmatmul.mubr.bf16.gmra.mrb[0].mxu0 %v1262
      %v1596 = vpop.f32.mrb[0].mxu0
      %v1597 = vadd.f32 %v1315, %v1596
      %v1598 = vpop.f32.mrb[0].mxu0
      %v1599 = vadd.f32 %v1319, %v1598
      %v1600 = vpop.f32.mrb[0].mxu0
      %v1601 = vadd.f32 %v1315, %v1600
      %v1602 = vpop.f32.mrb[0].mxu0
      %v1603 = vadd.f32 %v1319, %v1602
      %1604 = vmatprep.mubr.bf16.mxu0 %v1265
      %1605 = vmatmul.mubr.bf16.gmra.mrb[0].mxu0 %v1264
      %v1606 = vpop.f32.mrb[0].mxu0
      %v1607 = vadd.f32 %v1315, %v1606
      %v1608 = vpop.f32.mrb[0].mxu0
      %v1609 = vadd.f32 %v1319, %v1608
      %v1610 = vpop.f32.mrb[0].mxu0
      %v1611 = vadd.f32 %v1315, %v1610
      %v1612 = vpop.f32.mrb[0].mxu0
      %v1613 = vadd.f32 %v1319, %v1612
      %1614 = vmatprep.mubr.bf16.mxu0 %v1267
      %1615 = vmatmul.mubr.bf16.gmra.mrb[0].mxu0 %v1266
      %v1616 = vpop.f32.mrb[0].mxu0
      %v1617 = vadd.f32 %v1315, %v1616
      %v1618 = vpop.f32.mrb[0].mxu0
      %v1619 = vadd.f32 %v1319, %v1618
      %v1620 = vpop.f32.mrb[0].mxu0
      %v1621 = vadd.f32 %v1315, %v1620
      %v1622 = vpop.f32.mrb[0].mxu0
      %v1623 = vadd.f32 %v1319, %v1622
      %1624 = vmatprep.mubr.bf16.mxu0 %v1269
      %1625 = vmatmul.mubr.bf16.gmra.mrb[0].mxu0 %v1268
      %v1626 = vpop.f32.mrb[0].mxu0
      %v1627 = vadd.f32 %v1315, %v1626
      %v1628 = vpop.f32.mrb[0].mxu0
      %v1629 = vadd.f32 %v1319, %v1628
      %v1630 = vpop.f32.mrb[0].mxu0
      %v1631 = vadd.f32 %v1315, %v1630
      %v1632 = vpop.f32.mrb[0].mxu0
      %v1633 = vadd.f32 %v1319, %v1632
      %1634 = vmatprep.mubr.bf16.mxu0 %v1271
      %1635 = vmatmul.mubr.bf16.gmra.mrb[0].mxu0 %v1270
      %v1636 = vpop.f32.mrb[0].mxu0
      %v1637 = vadd.f32 %v1315, %v1636
      %v1638 = vpop.f32.mrb[0].mxu0
      %v1639 = vadd.f32 %v1319, %v1638
      %v1640 = vpop.f32.mrb[0].mxu0
      %v1641 = vadd.f32 %v1315, %v1640
      %v1642 = vpop.f32.mrb[0].mxu0
      %v1643 = vadd.f32 %v1319, %v1642
      %1644 = vmatprep.mubr.bf16.mxu0 %v1273
      %1645 = vmatmul.mubr.bf16.gmra.mrb[0].mxu0 %v1272
      %v1646 = vpop.f32.mrb[0].mxu0
      %v1647 = vadd.f32 %v1315, %v1646
      %v1648 = vpop.f32.mrb[0].mxu0
      %v1649 = vadd.f32 %v1319, %v1648
      %v1650 = vpop.f32.mrb[0].mxu0
      %v1651 = vadd.f32 %v1315, %v1650
      %v1652 = vpop.f32.mrb[0].mxu0
      %v1653 = vadd.f32 %v1319, %v1652
      %1654 = vmatprep.mubr.bf16.mxu0 %v1275
      %1655 = vmatmul.mubr.bf16.gmra.mrb[0].mxu0 %v1274
      %v1656 = vpop.f32.mrb[0].mxu0
      %v1657 = vadd.f32 %v1315, %v1656
      %v1658 = vpop.f32.mrb[0].mxu0
      %v1659 = vadd.f32 %v1319, %v1658
      %v1660 = vpop.f32.mrb[0].mxu0
      %v1661 = vadd.f32 %v1315, %v1660
      %v1662 = vpop.f32.mrb[0].mxu0
      %v1663 = vadd.f32 %v1319, %v1662
      %1664 = vmatprep.mubr.bf16.mxu0 %v1277
      %1665 = vmatmul.mubr.bf16.gmra.mrb[0].mxu0 %v1276
      %v1666 = vpop.f32.mrb[0].mxu0
      %v1667 = vadd.f32 %v1315, %v1666
      %v1668 = vpop.f32.mrb[0].mxu0
      %v1669 = vadd.f32 %v1319, %v1668
      %v1670 = vpop.f32.mrb[0].mxu0
      %v1671 = vadd.f32 %v1315, %v1670
      %v1672 = vpop.f32.mrb[0].mxu0
      %v1673 = vadd.f32 %v1319, %v1672
      %1674 = vmatprep.mubr.bf16.mxu0 %v1279
      %1675 = vmatmul.mubr.bf16.gmra.mrb[0].mxu0 %v1278
      %v1676 = vpop.f32.mrb[0].mxu0
      %v1677 = vadd.f32 %v1315, %v1676
      %v1678 = vpop.f32.mrb[0].mxu0
      %v1679 = vadd.f32 %v1319, %v1678
      %v1680 = vpop.f32.mrb[0].mxu0
      %v1681 = vadd.f32 %v1315, %v1680
      %v1682 = vpop.f32.mrb[0].mxu0
      %v1683 = vadd.f32 %v1319, %v1682
      %1684 = vmatprep.mubr.bf16.mxu0 %v1281
      %1685 = vmatmul.mubr.bf16.gmra.mrb[0].mxu0 %v1280
      %v1686 = vpop.f32.mrb[0].mxu0
      %v1687 = vadd.f32 %v1315, %v1686
      %v1688 = vpop.f32.mrb[0].mxu0
      %v1689 = vadd.f32 %v1319, %v1688
      %v1690 = vpop.f32.mrb[0].mxu0
      %v1691 = vadd.f32 %v1315, %v1690
      %v1692 = vpop.f32.mrb[0].mxu0
      %v1693 = vadd.f32 %v1319, %v1692
      %1694 = vmatprep.mubr.bf16.mxu0 %v1283
      %1695 = vmatmul.mubr.bf16.gmra.mrb[0].mxu0 %v1282
      %v1696 = vpop.f32.mrb[0].mxu0
      %v1697 = vadd.f32 %v1315, %v1696
      %v1698 = vpop.f32.mrb[0].mxu0
      %v1699 = vadd.f32 %v1319, %v1698
      %v1700 = vpop.f32.mrb[0].mxu0
      %v1701 = vadd.f32 %v1315, %v1700
      %v1702 = vpop.f32.mrb[0].mxu0
      %v1703 = vadd.f32 %v1319, %v1702
      %1704 = vmatprep.mubr.bf16.mxu0 %v1285
      %1705 = vmatmul.mubr.bf16.gmra.mrb[0].mxu0 %v1284
      %v1706 = vpop.f32.mrb[0].mxu0
      %v1707 = vadd.f32 %v1315, %v1706
      %v1708 = vpop.f32.mrb[0].mxu0
      %v1709 = vadd.f32 %v1319, %v1708
      %v1710 = vpop.f32.mrb[0].mxu0
      %v1711 = vadd.f32 %v1315, %v1710
      %v1712 = vpop.f32.mrb[0].mxu0
      %v1713 = vadd.f32 %v1319, %v1712
      %1714 = vmatprep.mubr.bf16.mxu0 %v1287
      %1715 = vmatmul.mubr.bf16.gmra.mrb[0].mxu0 %v1286
      %v1716 = vpop.f32.mrb[0].mxu0
      %v1717 = vadd.f32 %v1315, %v1716
      %v1718 = vpop.f32.mrb[0].mxu0
      %v1719 = vadd.f32 %v1319, %v1718
      %v1720 = vpop.f32.mrb[0].mxu0
      %v1721 = vadd.f32 %v1315, %v1720
      %v1722 = vpop.f32.mrb[0].mxu0
      %v1723 = vadd.f32 %v1319, %v1722
      %1724 = vmatprep.mubr.bf16.mxu0 %v1289
      %1725 = vmatmul.mubr.bf16.gmra.mrb[0].mxu0 %v1288
      %v1726 = vpop.f32.mrb[0].mxu0
      %v1727 = vadd.f32 %v1315, %v1726
      %v1728 = vpop.f32.mrb[0].mxu0
      %v1729 = vadd.f32 %v1319, %v1728
      %v1730 = vpop.f32.mrb[0].mxu0
      %v1731 = vadd.f32 %v1315, %v1730
      %v1732 = vpop.f32.mrb[0].mxu0
      %v1733 = vadd.f32 %v1319, %v1732
      %1734 = vmatprep.mubr.bf16.mxu0 %v1291
      %1735 = vmatmul.mubr.bf16.gmra.mrb[0].mxu0 %v1290
      %v1736 = vpop.f32.mrb[0].mxu0
      %v1737 = vadd.f32 %v1315, %v1736
      %v1738 = vpop.f32.mrb[0].mxu0
      %v1739 = vadd.f32 %v1319, %v1738
      %v1740 = vpop.f32.mrb[0].mxu0
      %v1741 = vadd.f32 %v1315, %v1740
      %v1742 = vpop.f32.mrb[0].mxu0
      %v1743 = vadd.f32 %v1319, %v1742
      %1744 = vmatprep.mubr.bf16.mxu0 %v1293
      %1745 = vmatmul.mubr.bf16.gmra.mrb[0].mxu0 %v1292
      %v1746 = vpop.f32.mrb[0].mxu0
      %v1747 = vadd.f32 %v1315, %v1746
      %v1748 = vpop.f32.mrb[0].mxu0
      %v1749 = vadd.f32 %v1319, %v1748
      %v1750 = vpop.f32.mrb[0].mxu0
      %v1751 = vadd.f32 %v1315, %v1750
      %v1752 = vpop.f32.mrb[0].mxu0
      %v1753 = vadd.f32 %v1319, %v1752
      %1754 = vmatprep.mubr.bf16.mxu0 %v1295
      %1755 = vmatmul.mubr.bf16.gmra.mrb[0].mxu0 %v1294
      %v1756 = vpop.f32.mrb[0].mxu0
      %v1757 = vadd.f32 %v1315, %v1756
      %v1758 = vpop.f32.mrb[0].mxu0
      %v1759 = vadd.f32 %v1319, %v1758
      %v1760 = vpop.f32.mrb[0].mxu0
      %v1761 = vadd.f32 %v1315, %v1760
      %v1762 = vpop.f32.mrb[0].mxu0
      %v1763 = vadd.f32 %v1319, %v1762
      %1764 = vmatprep.mubr.bf16.mxu0 %v1297
      %1765 = vmatmul.mubr.bf16.gmra.mrb[0].mxu0 %v1296
      %v1766 = vpop.f32.mrb[0].mxu0
      %v1767 = vadd.f32 %v1315, %v1766
      %v1768 = vpop.f32.mrb[0].mxu0
      %v1769 = vadd.f32 %v1319, %v1768
      %v1770 = vpop.f32.mrb[0].mxu0
      %v1771 = vadd.f32 %v1315, %v1770
      %v1772 = vpop.f32.mrb[0].mxu0
      %v1773 = vadd.f32 %v1319, %v1772
      %1774 = vmatprep.mubr.bf16.mxu0 %v1299
      %1775 = vmatmul.mubr.bf16.gmra.mrb[0].mxu0 %v1298
      %v1776 = vpop.f32.mrb[0].mxu0
      %v1777 = vadd.f32 %v1315, %v1776
      %v1778 = vpop.f32.mrb[0].mxu0
      %v1779 = vadd.f32 %v1319, %v1778
      %v1780 = vpop.f32.mrb[0].mxu0
      %v1781 = vadd.f32 %v1315, %v1780
      %v1782 = vpop.f32.mrb[0].mxu0
      %v1783 = vadd.f32 %v1319, %v1782
      %1784 = vmatprep.mubr.bf16.mxu0 %v1301
      %1785 = vmatmul.mubr.bf16.gmra.mrb[0].mxu0 %v1300
      %v1786 = vpop.f32.mrb[0].mxu0
      %v1787 = vadd.f32 %v1315, %v1786
      %v1788 = vpop.f32.mrb[0].mxu0
      %v1789 = vadd.f32 %v1319, %v1788
      %v1790 = vpop.f32.mrb[0].mxu0
      %v1791 = vadd.f32 %v1315, %v1790
      %v1792 = vpop.f32.mrb[0].mxu0
      %v1793 = vadd.f32 %v1319, %v1792
      %1794 = vmatprep.mubr.bf16.mxu0 %v1303
      %1795 = vmatmul.mubr.bf16.gmra.mrb[0].mxu0 %v1302
      %v1796 = vpop.f32.mrb[0].mxu0
      %v1797 = vadd.f32 %v1315, %v1796
      %v1798 = vpop.f32.mrb[0].mxu0
      %v1799 = vadd.f32 %v1319, %v1798
      %v1800 = vpop.f32.mrb[0].mxu0
      %v1801 = vadd.f32 %v1315, %v1800
      %v1802 = vpop.f32.mrb[0].mxu0
      %v1803 = vadd.f32 %v1319, %v1802
      %1804 = vmatprep.mubr.bf16.mxu0 %v1305
      %1805 = vmatmul.mubr.bf16.gmra.mrb[0].mxu0 %v1304
      %v1806 = vpop.f32.mrb[0].mxu0
      %v1807 = vadd.f32 %v1315, %v1806
      %v1808 = vpop.f32.mrb[0].mxu0
      %v1809 = vadd.f32 %v1319, %v1808
      %v1810 = vpop.f32.mrb[0].mxu0
      %v1811 = vadd.f32 %v1315, %v1810
      %v1812 = vpop.f32.mrb[0].mxu0
      %v1813 = vadd.f32 %v1319, %v1812
      %1814 = vmatprep.mubr.bf16.mxu0 %v1307
      %1815 = vmatmul.mubr.bf16.gmra.mrb[0].mxu0 %v1306
      %v1816 = vpop.f32.mrb[0].mxu0
      %v1817 = vadd.f32 %v1315, %v1816
      %v1818 = vpop.f32.mrb[0].mxu0
      %v1819 = vadd.f32 %v1319, %v1818
      %v1820 = vpop.f32.mrb[0].mxu0
      %v1821 = vadd.f32 %v1315, %v1820
      %v1822 = vpop.f32.mrb[0].mxu0
      %v1823 = vadd.f32 %v1319, %v1822
      %1824 = vmatprep.mubr.bf16.mxu0 %v1309
      %1825 = vmatmul.mubr.bf16.gmra.mrb[0].mxu0 %v1308
      %v1826 = vpop.f32.mrb[0].mxu0
      %v1827 = vadd.f32 %v1315, %v1826
      %v1828 = vpop.f32.mrb[0].mxu0
      %v1829 = vadd.f32 %v1319, %v1828
      %v1830 = vpop.f32.mrb[0].mxu0
      %v1831 = vadd.f32 %v1315, %v1830
      %v1832 = vpop.f32.mrb[0].mxu0
      %v1833 = vadd.f32 %v1319, %v1832
      %1834 = vdwg.mxu0
      %v1835 = vmax.f32 %v1517, 0.0
      %v1836 = vmax.f32 %v1519, 0.0
      %v1837 = vmax.f32 %v1521, 0.0
      %v1838 = vmax.f32 %v1523, 0.0
      %v1839 = vmax.f32 %v1527, 0.0
      %v1840 = vmax.f32 %v1529, 0.0
      %v1841 = vmax.f32 %v1531, 0.0
      %v1842 = vmax.f32 %v1533, 0.0
      %v1843 = vmax.f32 %v1537, 0.0
      %v1844 = vmax.f32 %v1539, 0.0
      %v1845 = vmax.f32 %v1541, 0.0
      %v1846 = vmax.f32 %v1543, 0.0
      %v1847 = vmax.f32 %v1547, 0.0
      %v1848 = vmax.f32 %v1549, 0.0
      %v1849 = vmax.f32 %v1551, 0.0
      %v1850 = vmax.f32 %v1553, 0.0
      %v1851 = vmax.f32 %v1557, 0.0
      %v1852 = vmax.f32 %v1559, 0.0
      %v1853 = vmax.f32 %v1561, 0.0
      %v1854 = vmax.f32 %v1563, 0.0
      %v1855 = vmax.f32 %v1567, 0.0
      %v1856 = vmax.f32 %v1569, 0.0
      %v1857 = vmax.f32 %v1571, 0.0
      %v1858 = vmax.f32 %v1573, 0.0
      %v1859 = vmax.f32 %v1577, 0.0
      %v1860 = vmax.f32 %v1579, 0.0
      %v1861 = vmax.f32 %v1581, 0.0
      %v1862 = vmax.f32 %v1583, 0.0
      %v1863 = vmax.f32 %v1587, 0.0
      %v1864 = vmax.f32 %v1589, 0.0
      %v1865 = vmax.f32 %v1591, 0.0
      %v1866 = vmax.f32 %v1593, 0.0
      %v1867 = vmax.f32 %v1597, 0.0
      %v1868 = vmax.f32 %v1599, 0.0
      %v1869 = vmax.f32 %v1601, 0.0
      %v1870 = vmax.f32 %v1603, 0.0
      %v1871 = vmax.f32 %v1607, 0.0
      %v1872 = vmax.f32 %v1609, 0.0
      %v1873 = vmax.f32 %v1611, 0.0
      %v1874 = vmax.f32 %v1613, 0.0
      %v1875 = vmax.f32 %v1617, 0.0
      %v1876 = vmax.f32 %v1619, 0.0
      %v1877 = vmax.f32 %v1621, 0.0
      %v1878 = vmax.f32 %v1623, 0.0
      %v1879 = vmax.f32 %v1627, 0.0
      %v1880 = vmax.f32 %v1629, 0.0
      %v1881 = vmax.f32 %v1631, 0.0
      %v1882 = vmax.f32 %v1633, 0.0
      %v1883 = vmax.f32 %v1637, 0.0
      %v1884 = vmax.f32 %v1639, 0.0
      %v1885 = vmax.f32 %v1641, 0.0
      %v1886 = vmax.f32 %v1643, 0.0
      %v1887 = vmax.f32 %v1647, 0.0
      %v1888 = vmax.f32 %v1649, 0.0
      %v1889 = vmax.f32 %v1651, 0.0
      %v1890 = vmax.f32 %v1653, 0.0
      %v1891 = vmax.f32 %v1657, 0.0
      %v1892 = vmax.f32 %v1659, 0.0
      %v1893 = vmax.f32 %v1661, 0.0
      %v1894 = vmax.f32 %v1663, 0.0
      %v1895 = vmax.f32 %v1667, 0.0
      %v1896 = vmax.f32 %v1669, 0.0
      %v1897 = vmax.f32 %v1671, 0.0
      %v1898 = vmax.f32 %v1673, 0.0
      %v1899 = vmax.f32 %v1677, 0.0
      %v1900 = vmax.f32 %v1679, 0.0
      %v1901 = vmax.f32 %v1681, 0.0
      %v1902 = vmax.f32 %v1683, 0.0
      %v1903 = vmax.f32 %v1687, 0.0
      %v1904 = vmax.f32 %v1689, 0.0
      %v1905 = vmax.f32 %v1691, 0.0
      %v1906 = vmax.f32 %v1693, 0.0
      %v1907 = vmax.f32 %v1697, 0.0
      %v1908 = vmax.f32 %v1699, 0.0
      %v1909 = vmax.f32 %v1701, 0.0
      %v1910 = vmax.f32 %v1703, 0.0
      %v1911 = vmax.f32 %v1707, 0.0
      %v1912 = vmax.f32 %v1709, 0.0
      %v1913 = vmax.f32 %v1711, 0.0
      %v1914 = vmax.f32 %v1713, 0.0
      %v1915 = vmax.f32 %v1717, 0.0
      %v1916 = vmax.f32 %v1719, 0.0
      %v1917 = vmax.f32 %v1721, 0.0
      %v1918 = vmax.f32 %v1723, 0.0
      %v1919 = vmax.f32 %v1727, 0.0
      %v1920 = vmax.f32 %v1729, 0.0
      %v1921 = vmax.f32 %v1731, 0.0
      %v1922 = vmax.f32 %v1733, 0.0
      %v1923 = vmax.f32 %v1737, 0.0
      %v1924 = vmax.f32 %v1739, 0.0
      %v1925 = vmax.f32 %v1741, 0.0
      %v1926 = vmax.f32 %v1743, 0.0
      %v1927 = vmax.f32 %v1747, 0.0
      %v1928 = vmax.f32 %v1749, 0.0
      %v1929 = vmax.f32 %v1751, 0.0
      %v1930 = vmax.f32 %v1753, 0.0
      %v1931 = vmax.f32 %v1757, 0.0
      %v1932 = vmax.f32 %v1759, 0.0
      %v1933 = vmax.f32 %v1761, 0.0
      %v1934 = vmax.f32 %v1763, 0.0
      %v1935 = vmax.f32 %v1767, 0.0
      %v1936 = vmax.f32 %v1769, 0.0
      %v1937 = vmax.f32 %v1771, 0.0
      %v1938 = vmax.f32 %v1773, 0.0
      %v1939 = vmax.f32 %v1777, 0.0
      %v1940 = vmax.f32 %v1779, 0.0
      %v1941 = vmax.f32 %v1781, 0.0
      %v1942 = vmax.f32 %v1783, 0.0
      %v1943 = vmax.f32 %v1787, 0.0
      %v1944 = vmax.f32 %v1789, 0.0
      %v1945 = vmax.f32 %v1791, 0.0
      %v1946 = vmax.f32 %v1793, 0.0
      %v1947 = vmax.f32 %v1797, 0.0
      %v1948 = vmax.f32 %v1799, 0.0
      %v1949 = vmax.f32 %v1801, 0.0
      %v1950 = vmax.f32 %v1803, 0.0
      %v1951 = vmax.f32 %v1807, 0.0
      %v1952 = vmax.f32 %v1809, 0.0
      %v1953 = vmax.f32 %v1811, 0.0
      %v1954 = vmax.f32 %v1813, 0.0
      %v1955 = vmax.f32 %v1817, 0.0
      %v1956 = vmax.f32 %v1819, 0.0
      %v1957 = vmax.f32 %v1821, 0.0
      %v1958 = vmax.f32 %v1823, 0.0
      %v1959 = vmax.f32 %v1827, 0.0
      %v1960 = vmax.f32 %v1829, 0.0
      %v1961 = vmax.f32 %v1831, 0.0
      %v1962 = vmax.f32 %v1833, 0.0
      %s1963 = scalar_lea.vmem %s3, 256
      %v1964 = vld [vmem:[%s1963] sm:$0xff]
      %v1965 = vld [vmem:[%s1963 + $0x8] sm:$0xff]
      %v1966 = vld [vmem:[%s1963 + $0x10] sm:$0xff]
      %v1967 = vld [vmem:[%s1963 + $0x18] sm:$0xff]
      %v1968 = vld [vmem:[%s1963 + $0x20] sm:$0xff]
      %v1969 = vld [vmem:[%s1963 + $0x28] sm:$0xff]
      %v1970 = vld [vmem:[%s1963 + $0x30] sm:$0xff]
      %v1971 = vld [vmem:[%s1963 + $0x38] sm:$0xff]
      %v1972 = vld [vmem:[%s1963 + $0x40] sm:$0xff]
      %v1973 = vld [vmem:[%s1963 + $0x48] sm:$0xff]
      %v1974 = vld [vmem:[%s1963 + $0x50] sm:$0xff]
      %v1975 = vld [vmem:[%s1963 + $0x58] sm:$0xff]
      %v1976 = vld [vmem:[%s1963 + $0x60] sm:$0xff]
      %v1977 = vld [vmem:[%s1963 + $0x68] sm:$0xff]
      %v1978 = vld [vmem:[%s1963 + $0x70] sm:$0xff]
      %v1979 = vld [vmem:[%s1963 + $0x78] sm:$0xff]
      %v1980 = vld [vmem:[%s1963 + $0x80] sm:$0xff]
      %v1981 = vld [vmem:[%s1963 + $0x88] sm:$0xff]
      %v1982 = vld [vmem:[%s1963 + $0x90] sm:$0xff]
      %v1983 = vld [vmem:[%s1963 + $0x98] sm:$0xff]
      %v1984 = vld [vmem:[%s1963 + $0xa0] sm:$0xff]
      %v1985 = vld [vmem:[%s1963 + $0xa8] sm:$0xff]
      %v1986 = vld [vmem:[%s1963 + $0xb0] sm:$0xff]
      %v1987 = vld [vmem:[%s1963 + $0xb8] sm:$0xff]
      %v1988 = vld [vmem:[%s1963 + $0xc0] sm:$0xff]
      %v1989 = vld [vmem:[%s1963 + $0xc8] sm:$0xff]
      %v1990 = vld [vmem:[%s1963 + $0xd0] sm:$0xff]
      %v1991 = vld [vmem:[%s1963 + $0xd8] sm:$0xff]
      %v1992 = vld [vmem:[%s1963 + $0xe0] sm:$0xff]
      %v1993 = vld [vmem:[%s1963 + $0xe8] sm:$0xff]
      %v1994 = vld [vmem:[%s1963 + $0xf0] sm:$0xff]
      %v1995 = vld [vmem:[%s1963 + $0xf8] sm:$0xff]
      %v1996 = vpack.c.bf16 %v1837, %v1835
      %v1997 = vpack.c.bf16 %v1838, %v1836
      %v1998 = vpack.c.bf16 %v1841, %v1839
      %v1999 = vpack.c.bf16 %v1842, %v1840
      %v2000 = vpack.c.bf16 %v1845, %v1843
      %v2001 = vpack.c.bf16 %v1846, %v1844
      %v2002 = vpack.c.bf16 %v1849, %v1847
      %v2003 = vpack.c.bf16 %v1850, %v1848
      %v2004 = vpack.c.bf16 %v1853, %v1851
      %v2005 = vpack.c.bf16 %v1854, %v1852
      %v2006 = vpack.c.bf16 %v1857, %v1855
      %v2007 = vpack.c.bf16 %v1858, %v1856
      %v2008 = vpack.c.bf16 %v1861, %v1859
      %v2009 = vpack.c.bf16 %v1862, %v1860
      %v2010 = vpack.c.bf16 %v1865, %v1863
      %v2011 = vpack.c.bf16 %v1866, %v1864
      %v2012 = vpack.c.bf16 %v1869, %v1867
      %v2013 = vpack.c.bf16 %v1870, %v1868
      %v2014 = vpack.c.bf16 %v1873, %v1871
      %v2015 = vpack.c.bf16 %v1874, %v1872
      %v2016 = vpack.c.bf16 %v1877, %v1875
      %v2017 = vpack.c.bf16 %v1878, %v1876
      %v2018 = vpack.c.bf16 %v1881, %v1879
      %v2019 = vpack.c.bf16 %v1882, %v1880
      %v2020 = vpack.c.bf16 %v1885, %v1883
      %v2021 = vpack.c.bf16 %v1886, %v1884
      %v2022 = vpack.c.bf16 %v1889, %v1887
      %v2023 = vpack.c.bf16 %v1890, %v1888
      %v2024 = vpack.c.bf16 %v1893, %v1891
      %v2025 = vpack.c.bf16 %v1894, %v1892
      %v2026 = vpack.c.bf16 %v1897, %v1895
      %v2027 = vpack.c.bf16 %v1898, %v1896
      %v2028 = vpack.c.bf16 %v1901, %v1899
      %v2029 = vpack.c.bf16 %v1902, %v1900
      %v2030 = vpack.c.bf16 %v1905, %v1903
      %v2031 = vpack.c.bf16 %v1906, %v1904
      %v2032 = vpack.c.bf16 %v1909, %v1907
      %v2033 = vpack.c.bf16 %v1910, %v1908
      %v2034 = vpack.c.bf16 %v1913, %v1911
      %v2035 = vpack.c.bf16 %v1914, %v1912
      %v2036 = vpack.c.bf16 %v1917, %v1915
      %v2037 = vpack.c.bf16 %v1918, %v1916
      %v2038 = vpack.c.bf16 %v1921, %v1919
      %v2039 = vpack.c.bf16 %v1922, %v1920
      %v2040 = vpack.c.bf16 %v1925, %v1923
      %v2041 = vpack.c.bf16 %v1926, %v1924
      %v2042 = vpack.c.bf16 %v1929, %v1927
      %v2043 = vpack.c.bf16 %v1930, %v1928
      %v2044 = vpack.c.bf16 %v1933, %v1931
      %v2045 = vpack.c.bf16 %v1934, %v1932
      %v2046 = vpack.c.bf16 %v1937, %v1935
      %v2047 = vpack.c.bf16 %v1938, %v1936
      %v2048 = vpack.c.bf16 %v1941, %v1939
      %v2049 = vpack.c.bf16 %v1942, %v1940
      %v2050 = vpack.c.bf16 %v1945, %v1943
      %v2051 = vpack.c.bf16 %v1946, %v1944
      %v2052 = vpack.c.bf16 %v1949, %v1947
      %v2053 = vpack.c.bf16 %v1950, %v1948
      %v2054 = vpack.c.bf16 %v1953, %v1951
      %v2055 = vpack.c.bf16 %v1954, %v1952
      %v2056 = vpack.c.bf16 %v1957, %v1955
      %v2057 = vpack.c.bf16 %v1958, %v1956
      %v2058 = vpack.c.bf16 %v1961, %v1959
      %v2059 = vpack.c.bf16 %v1962, %v1960
      %v2060 = vld [vmem:[%s6 + $0x4] sm:$0x3]
      %v2062 = vlaneseq
      %v2063 = vshrl.u32 %v2062, 7
      %v2064 = vsub.s32 0, %v2063
      %v2065 = vrot.slane %v2060, %v2064
      %v2066 = vlaneseq
      %v2067 = vshrl.u32 %v2066, 7
      %v2068 = vsub.s32 1, %v2067
      %v2069 = vrot.slane %v2060, %v2068
      %v2104 = vunpack.c.l.b16 %v1964
      %v2105 = vunpack.c.h.b16 %v1964
      %v2106 = vunpack.c.l.b16 %v1965
      %v2107 = vunpack.c.h.b16 %v1965
      %v2108 = vunpack.c.l.b16 %v1966
      %v2109 = vunpack.c.h.b16 %v1966
      %v2110 = vunpack.c.l.b16 %v1967
      %v2111 = vunpack.c.h.b16 %v1967
      %v2112 = vunpack.c.l.b16 %v1968
      %v2113 = vunpack.c.h.b16 %v1968
      %v2114 = vunpack.c.l.b16 %v1969
      %v2115 = vunpack.c.h.b16 %v1969
      %v2116 = vunpack.c.l.b16 %v1970
      %v2117 = vunpack.c.h.b16 %v1970
      %v2118 = vunpack.c.l.b16 %v1971
      %v2119 = vunpack.c.h.b16 %v1971
      %v2120 = vunpack.c.l.b16 %v1972
      %v2121 = vunpack.c.h.b16 %v1972
      %v2122 = vunpack.c.l.b16 %v1973
      %v2123 = vunpack.c.h.b16 %v1973
      %v2124 = vunpack.c.l.b16 %v1974
      %v2125 = vunpack.c.h.b16 %v1974
      %v2126 = vunpack.c.l.b16 %v1975
      %v2127 = vunpack.c.h.b16 %v1975
      %v2128 = vunpack.c.l.b16 %v1976
      %v2129 = vunpack.c.h.b16 %v1976
      %v2130 = vunpack.c.l.b16 %v1977
      %v2131 = vunpack.c.h.b16 %v1977
      %v2132 = vunpack.c.l.b16 %v1978
      %v2133 = vunpack.c.h.b16 %v1978
      %v2134 = vunpack.c.l.b16 %v1979
      %v2135 = vunpack.c.h.b16 %v1979
      %v2136 = vunpack.c.l.b16 %v1980
      %v2137 = vunpack.c.h.b16 %v1980
      %v2138 = vunpack.c.l.b16 %v1981
      %v2139 = vunpack.c.h.b16 %v1981
      %v2140 = vunpack.c.l.b16 %v1982
      %v2141 = vunpack.c.h.b16 %v1982
      %v2142 = vunpack.c.l.b16 %v1983
      %v2143 = vunpack.c.h.b16 %v1983
      %v2144 = vunpack.c.l.b16 %v1984
      %v2145 = vunpack.c.h.b16 %v1984
      %v2146 = vunpack.c.l.b16 %v1985
      %v2147 = vunpack.c.h.b16 %v1985
      %v2148 = vunpack.c.l.b16 %v1986
      %v2149 = vunpack.c.h.b16 %v1986
      %v2150 = vunpack.c.l.b16 %v1987
      %v2151 = vunpack.c.h.b16 %v1987
      %v2152 = vunpack.c.l.b16 %v1988
      %v2153 = vunpack.c.h.b16 %v1988
      %v2154 = vunpack.c.l.b16 %v1989
      %v2155 = vunpack.c.h.b16 %v1989
      %v2156 = vunpack.c.l.b16 %v1990
      %v2157 = vunpack.c.h.b16 %v1990
      %v2158 = vunpack.c.l.b16 %v1991
      %v2159 = vunpack.c.h.b16 %v1991
      %v2160 = vunpack.c.l.b16 %v1992
      %v2161 = vunpack.c.h.b16 %v1992
      %v2162 = vunpack.c.l.b16 %v1993
      %v2163 = vunpack.c.h.b16 %v1993
      %v2164 = vunpack.c.l.b16 %v1994
      %v2165 = vunpack.c.h.b16 %v1994
      %v2166 = vunpack.c.l.b16 %v1995
      %v2167 = vunpack.c.h.b16 %v1995
      %v2168 = vpack.c.b16 %v2106, %v2104
      %v2169 = vpack.c.b16 %v2107, %v2105
      %v2170 = vpack.c.b16 %v2110, %v2108
      %v2171 = vpack.c.b16 %v2111, %v2109
      %v2172 = vpack.c.b16 %v2114, %v2112
      %v2173 = vpack.c.b16 %v2115, %v2113
      %v2174 = vpack.c.b16 %v2118, %v2116
      %v2175 = vpack.c.b16 %v2119, %v2117
      %v2176 = vpack.c.b16 %v2122, %v2120
      %v2177 = vpack.c.b16 %v2123, %v2121
      %v2178 = vpack.c.b16 %v2126, %v2124
      %v2179 = vpack.c.b16 %v2127, %v2125
      %v2180 = vpack.c.b16 %v2130, %v2128
      %v2181 = vpack.c.b16 %v2131, %v2129
      %v2182 = vpack.c.b16 %v2134, %v2132
      %v2183 = vpack.c.b16 %v2135, %v2133
      %v2184 = vpack.c.b16 %v2138, %v2136
      %v2185 = vpack.c.b16 %v2139, %v2137
      %v2186 = vpack.c.b16 %v2142, %v2140
      %v2187 = vpack.c.b16 %v2143, %v2141
      %v2188 = vpack.c.b16 %v2146, %v2144
      %v2189 = vpack.c.b16 %v2147, %v2145
      %v2190 = vpack.c.b16 %v2150, %v2148
      %v2191 = vpack.c.b16 %v2151, %v2149
      %v2192 = vpack.c.b16 %v2154, %v2152
      %v2193 = vpack.c.b16 %v2155, %v2153
      %v2194 = vpack.c.b16 %v2158, %v2156
      %v2195 = vpack.c.b16 %v2159, %v2157
      %v2196 = vpack.c.b16 %v2162, %v2160
      %v2197 = vpack.c.b16 %v2163, %v2161
      %v2198 = vpack.c.b16 %v2166, %v2164
      %v2199 = vpack.c.b16 %v2167, %v2165
      %2232 = vmatprep.subr.bf16.mxu0 %v2169
      %2233 = vmatpush1.bf16.msra.mxu0 %v2168
      %2234 = vmatprep.subr.bf16.mxu0 %v2171
      %2235 = vmatpush1.bf16.msra.mxu0 %v2170
      %2236 = vmatprep.subr.bf16.mxu0 %v2173
      %2237 = vmatpush1.bf16.msra.mxu0 %v2172
      %2238 = vmatprep.subr.bf16.mxu0 %v2175
      %2239 = vmatpush1.bf16.msra.mxu0 %v2174
      %2240 = vmatprep.subr.bf16.mxu0 %v2177
      %2241 = vmatpush1.bf16.msra.mxu0 %v2176
      %2242 = vmatprep.subr.bf16.mxu0 %v2179
      %2243 = vmatpush1.bf16.msra.mxu0 %v2178
      %2244 = vmatprep.subr.bf16.mxu0 %v2181
      %2245 = vmatpush1.bf16.msra.mxu0 %v2180
      %2246 = vmatprep.subr.bf16.mxu0 %v2183
      %2247 = vmatpush1.bf16.msra.mxu0 %v2182
      %2248 = vmatprep.subr.bf16.mxu0 %v2185
      %2249 = vmatpush1.bf16.msra.mxu0 %v2184
      %2250 = vmatprep.subr.bf16.mxu0 %v2187
      %2251 = vmatpush1.bf16.msra.mxu0 %v2186
      %2252 = vmatprep.subr.bf16.mxu0 %v2189
      %2253 = vmatpush1.bf16.msra.mxu0 %v2188
      %2254 = vmatprep.subr.bf16.mxu0 %v2191
      %2255 = vmatpush1.bf16.msra.mxu0 %v2190
      %2256 = vmatprep.subr.bf16.mxu0 %v2193
      %2257 = vmatpush1.bf16.msra.mxu0 %v2192
      %2258 = vmatprep.subr.bf16.mxu0 %v2195
      %2259 = vmatpush1.bf16.msra.mxu0 %v2194
      %2260 = vmatprep.subr.bf16.mxu0 %v2197
      %2261 = vmatpush1.bf16.msra.mxu0 %v2196
      %2262 = vmatprep.subr.bf16.mxu0 %v2199
      %2263 = vmatpush1.bf16.msra.mxu0 %v2198
      %2264 = vmatprep.mubr.bf16.mxu0 %v1997
      %2265 = vmatmul.mubr.bf16.gmra.mrb[0].mxu0 %v1996
      %v2266 = vpop.f32.mrb[0].mxu0
      %v2267 = vadd.f32 %v2065, %v2266
      %v2268 = vpop.f32.mrb[0].mxu0
      %v2269 = vadd.f32 %v2069, %v2268
      %v2270 = vpop.f32.mrb[0].mxu0
      %v2271 = vadd.f32 %v2065, %v2270
      %v2272 = vpop.f32.mrb[0].mxu0
      %v2273 = vadd.f32 %v2069, %v2272
      %2274 = vmatprep.mubr.bf16.mxu0 %v1999
      %2275 = vmatmul.mubr.bf16.gmra.mrb[0].mxu0 %v1998
      %v2276 = vpop.f32.mrb[0].mxu0
      %v2277 = vadd.f32 %v2065, %v2276
      %v2278 = vpop.f32.mrb[0].mxu0
      %v2279 = vadd.f32 %v2069, %v2278
      %v2280 = vpop.f32.mrb[0].mxu0
      %v2281 = vadd.f32 %v2065, %v2280
      %v2282 = vpop.f32.mrb[0].mxu0
      %v2283 = vadd.f32 %v2069, %v2282
      %2284 = vmatprep.mubr.bf16.mxu0 %v2001
      %2285 = vmatmul.mubr.bf16.gmra.mrb[0].mxu0 %v2000
      %v2286 = vpop.f32.mrb[0].mxu0
      %v2287 = vadd.f32 %v2065, %v2286
      %v2288 = vpop.f32.mrb[0].mxu0
      %v2289 = vadd.f32 %v2069, %v2288
      %v2290 = vpop.f32.mrb[0].mxu0
      %v2291 = vadd.f32 %v2065, %v2290
      %v2292 = vpop.f32.mrb[0].mxu0
      %v2293 = vadd.f32 %v2069, %v2292
      %2294 = vmatprep.mubr.bf16.mxu0 %v2003
      %2295 = vmatmul.mubr.bf16.gmra.mrb[0].mxu0 %v2002
      %v2296 = vpop.f32.mrb[0].mxu0
      %v2297 = vadd.f32 %v2065, %v2296
      %v2298 = vpop.f32.mrb[0].mxu0
      %v2299 = vadd.f32 %v2069, %v2298
      %v2300 = vpop.f32.mrb[0].mxu0
      %v2301 = vadd.f32 %v2065, %v2300
      %v2302 = vpop.f32.mrb[0].mxu0
      %v2303 = vadd.f32 %v2069, %v2302
      %2304 = vmatprep.mubr.bf16.mxu0 %v2005
      %2305 = vmatmul.mubr.bf16.gmra.mrb[0].mxu0 %v2004
      %v2306 = vpop.f32.mrb[0].mxu0
      %v2307 = vadd.f32 %v2065, %v2306
      %v2308 = vpop.f32.mrb[0].mxu0
      %v2309 = vadd.f32 %v2069, %v2308
      %v2310 = vpop.f32.mrb[0].mxu0
      %v2311 = vadd.f32 %v2065, %v2310
      %v2312 = vpop.f32.mrb[0].mxu0
      %v2313 = vadd.f32 %v2069, %v2312
      %2314 = vmatprep.mubr.bf16.mxu0 %v2007
      %2315 = vmatmul.mubr.bf16.gmra.mrb[0].mxu0 %v2006
      %v2316 = vpop.f32.mrb[0].mxu0
      %v2317 = vadd.f32 %v2065, %v2316
      %v2318 = vpop.f32.mrb[0].mxu0
      %v2319 = vadd.f32 %v2069, %v2318
      %v2320 = vpop.f32.mrb[0].mxu0
      %v2321 = vadd.f32 %v2065, %v2320
      %v2322 = vpop.f32.mrb[0].mxu0
      %v2323 = vadd.f32 %v2069, %v2322
      %2324 = vmatprep.mubr.bf16.mxu0 %v2009
      %2325 = vmatmul.mubr.bf16.gmra.mrb[0].mxu0 %v2008
      %v2326 = vpop.f32.mrb[0].mxu0
      %v2327 = vadd.f32 %v2065, %v2326
      %v2328 = vpop.f32.mrb[0].mxu0
      %v2329 = vadd.f32 %v2069, %v2328
      %v2330 = vpop.f32.mrb[0].mxu0
      %v2331 = vadd.f32 %v2065, %v2330
      %v2332 = vpop.f32.mrb[0].mxu0
      %v2333 = vadd.f32 %v2069, %v2332
      %2334 = vmatprep.mubr.bf16.mxu0 %v2011
      %2335 = vmatmul.mubr.bf16.gmra.mrb[0].mxu0 %v2010
      %v2336 = vpop.f32.mrb[0].mxu0
      %v2337 = vadd.f32 %v2065, %v2336
      %v2338 = vpop.f32.mrb[0].mxu0
      %v2339 = vadd.f32 %v2069, %v2338
      %v2340 = vpop.f32.mrb[0].mxu0
      %v2341 = vadd.f32 %v2065, %v2340
      %v2342 = vpop.f32.mrb[0].mxu0
      %v2343 = vadd.f32 %v2069, %v2342
      %2344 = vmatprep.mubr.bf16.mxu0 %v2013
      %2345 = vmatmul.mubr.bf16.gmra.mrb[0].mxu0 %v2012
      %v2346 = vpop.f32.mrb[0].mxu0
      %v2347 = vadd.f32 %v2065, %v2346
      %v2348 = vpop.f32.mrb[0].mxu0
      %v2349 = vadd.f32 %v2069, %v2348
      %v2350 = vpop.f32.mrb[0].mxu0
      %v2351 = vadd.f32 %v2065, %v2350
      %v2352 = vpop.f32.mrb[0].mxu0
      %v2353 = vadd.f32 %v2069, %v2352
      %2354 = vmatprep.mubr.bf16.mxu0 %v2015
      %2355 = vmatmul.mubr.bf16.gmra.mrb[0].mxu0 %v2014
      %v2356 = vpop.f32.mrb[0].mxu0
      %v2357 = vadd.f32 %v2065, %v2356
      %v2358 = vpop.f32.mrb[0].mxu0
      %v2359 = vadd.f32 %v2069, %v2358
      %v2360 = vpop.f32.mrb[0].mxu0
      %v2361 = vadd.f32 %v2065, %v2360
      %v2362 = vpop.f32.mrb[0].mxu0
      %v2363 = vadd.f32 %v2069, %v2362
      %2364 = vmatprep.mubr.bf16.mxu0 %v2017
      %2365 = vmatmul.mubr.bf16.gmra.mrb[0].mxu0 %v2016
      %v2366 = vpop.f32.mrb[0].mxu0
      %v2367 = vadd.f32 %v2065, %v2366
      %v2368 = vpop.f32.mrb[0].mxu0
      %v2369 = vadd.f32 %v2069, %v2368
      %v2370 = vpop.f32.mrb[0].mxu0
      %v2371 = vadd.f32 %v2065, %v2370
      %v2372 = vpop.f32.mrb[0].mxu0
      %v2373 = vadd.f32 %v2069, %v2372
      %2374 = vmatprep.mubr.bf16.mxu0 %v2019
      %2375 = vmatmul.mubr.bf16.gmra.mrb[0].mxu0 %v2018
      %v2376 = vpop.f32.mrb[0].mxu0
      %v2377 = vadd.f32 %v2065, %v2376
      %v2378 = vpop.f32.mrb[0].mxu0
      %v2379 = vadd.f32 %v2069, %v2378
      %v2380 = vpop.f32.mrb[0].mxu0
      %v2381 = vadd.f32 %v2065, %v2380
      %v2382 = vpop.f32.mrb[0].mxu0
      %v2383 = vadd.f32 %v2069, %v2382
      %2384 = vmatprep.mubr.bf16.mxu0 %v2021
      %2385 = vmatmul.mubr.bf16.gmra.mrb[0].mxu0 %v2020
      %v2386 = vpop.f32.mrb[0].mxu0
      %v2387 = vadd.f32 %v2065, %v2386
      %v2388 = vpop.f32.mrb[0].mxu0
      %v2389 = vadd.f32 %v2069, %v2388
      %v2390 = vpop.f32.mrb[0].mxu0
      %v2391 = vadd.f32 %v2065, %v2390
      %v2392 = vpop.f32.mrb[0].mxu0
      %v2393 = vadd.f32 %v2069, %v2392
      %2394 = vmatprep.mubr.bf16.mxu0 %v2023
      %2395 = vmatmul.mubr.bf16.gmra.mrb[0].mxu0 %v2022
      %v2396 = vpop.f32.mrb[0].mxu0
      %v2397 = vadd.f32 %v2065, %v2396
      %v2398 = vpop.f32.mrb[0].mxu0
      %v2399 = vadd.f32 %v2069, %v2398
      %v2400 = vpop.f32.mrb[0].mxu0
      %v2401 = vadd.f32 %v2065, %v2400
      %v2402 = vpop.f32.mrb[0].mxu0
      %v2403 = vadd.f32 %v2069, %v2402
      %2404 = vmatprep.mubr.bf16.mxu0 %v2025
      %2405 = vmatmul.mubr.bf16.gmra.mrb[0].mxu0 %v2024
      %v2406 = vpop.f32.mrb[0].mxu0
      %v2407 = vadd.f32 %v2065, %v2406
      %v2408 = vpop.f32.mrb[0].mxu0
      %v2409 = vadd.f32 %v2069, %v2408
      %v2410 = vpop.f32.mrb[0].mxu0
      %v2411 = vadd.f32 %v2065, %v2410
      %v2412 = vpop.f32.mrb[0].mxu0
      %v2413 = vadd.f32 %v2069, %v2412
      %2414 = vmatprep.mubr.bf16.mxu0 %v2027
      %2415 = vmatmul.mubr.bf16.gmra.mrb[0].mxu0 %v2026
      %v2416 = vpop.f32.mrb[0].mxu0
      %v2417 = vadd.f32 %v2065, %v2416
      %v2418 = vpop.f32.mrb[0].mxu0
      %v2419 = vadd.f32 %v2069, %v2418
      %v2420 = vpop.f32.mrb[0].mxu0
      %v2421 = vadd.f32 %v2065, %v2420
      %v2422 = vpop.f32.mrb[0].mxu0
      %v2423 = vadd.f32 %v2069, %v2422
      %2424 = vmatprep.mubr.bf16.mxu0 %v2029
      %2425 = vmatmul.mubr.bf16.gmra.mrb[0].mxu0 %v2028
      %v2426 = vpop.f32.mrb[0].mxu0
      %v2427 = vadd.f32 %v2065, %v2426
      %v2428 = vpop.f32.mrb[0].mxu0
      %v2429 = vadd.f32 %v2069, %v2428
      %v2430 = vpop.f32.mrb[0].mxu0
      %v2431 = vadd.f32 %v2065, %v2430
      %v2432 = vpop.f32.mrb[0].mxu0
      %v2433 = vadd.f32 %v2069, %v2432
      %2434 = vmatprep.mubr.bf16.mxu0 %v2031
      %2435 = vmatmul.mubr.bf16.gmra.mrb[0].mxu0 %v2030
      %v2436 = vpop.f32.mrb[0].mxu0
      %v2437 = vadd.f32 %v2065, %v2436
      %v2438 = vpop.f32.mrb[0].mxu0
      %v2439 = vadd.f32 %v2069, %v2438
      %v2440 = vpop.f32.mrb[0].mxu0
      %v2441 = vadd.f32 %v2065, %v2440
      %v2442 = vpop.f32.mrb[0].mxu0
      %v2443 = vadd.f32 %v2069, %v2442
      %2444 = vmatprep.mubr.bf16.mxu0 %v2033
      %2445 = vmatmul.mubr.bf16.gmra.mrb[0].mxu0 %v2032
      %v2446 = vpop.f32.mrb[0].mxu0
      %v2447 = vadd.f32 %v2065, %v2446
      %v2448 = vpop.f32.mrb[0].mxu0
      %v2449 = vadd.f32 %v2069, %v2448
      %v2450 = vpop.f32.mrb[0].mxu0
      %v2451 = vadd.f32 %v2065, %v2450
      %v2452 = vpop.f32.mrb[0].mxu0
      %v2453 = vadd.f32 %v2069, %v2452
      %2454 = vmatprep.mubr.bf16.mxu0 %v2035
      %2455 = vmatmul.mubr.bf16.gmra.mrb[0].mxu0 %v2034
      %v2456 = vpop.f32.mrb[0].mxu0
      %v2457 = vadd.f32 %v2065, %v2456
      %v2458 = vpop.f32.mrb[0].mxu0
      %v2459 = vadd.f32 %v2069, %v2458
      %v2460 = vpop.f32.mrb[0].mxu0
      %v2461 = vadd.f32 %v2065, %v2460
      %v2462 = vpop.f32.mrb[0].mxu0
      %v2463 = vadd.f32 %v2069, %v2462
      %2464 = vmatprep.mubr.bf16.mxu0 %v2037
      %2465 = vmatmul.mubr.bf16.gmra.mrb[0].mxu0 %v2036
      %v2466 = vpop.f32.mrb[0].mxu0
      %v2467 = vadd.f32 %v2065, %v2466
      %v2468 = vpop.f32.mrb[0].mxu0
      %v2469 = vadd.f32 %v2069, %v2468
      %v2470 = vpop.f32.mrb[0].mxu0
      %v2471 = vadd.f32 %v2065, %v2470
      %v2472 = vpop.f32.mrb[0].mxu0
      %v2473 = vadd.f32 %v2069, %v2472
      %2474 = vmatprep.mubr.bf16.mxu0 %v2039
      %2475 = vmatmul.mubr.bf16.gmra.mrb[0].mxu0 %v2038
      %v2476 = vpop.f32.mrb[0].mxu0
      %v2477 = vadd.f32 %v2065, %v2476
      %v2478 = vpop.f32.mrb[0].mxu0
      %v2479 = vadd.f32 %v2069, %v2478
      %v2480 = vpop.f32.mrb[0].mxu0
      %v2481 = vadd.f32 %v2065, %v2480
      %v2482 = vpop.f32.mrb[0].mxu0
      %v2483 = vadd.f32 %v2069, %v2482
      %2484 = vmatprep.mubr.bf16.mxu0 %v2041
      %2485 = vmatmul.mubr.bf16.gmra.mrb[0].mxu0 %v2040
      %v2486 = vpop.f32.mrb[0].mxu0
      %v2487 = vadd.f32 %v2065, %v2486
      %v2488 = vpop.f32.mrb[0].mxu0
      %v2489 = vadd.f32 %v2069, %v2488
      %v2490 = vpop.f32.mrb[0].mxu0
      %v2491 = vadd.f32 %v2065, %v2490
      %v2492 = vpop.f32.mrb[0].mxu0
      %v2493 = vadd.f32 %v2069, %v2492
      %2494 = vmatprep.mubr.bf16.mxu0 %v2043
      %2495 = vmatmul.mubr.bf16.gmra.mrb[0].mxu0 %v2042
      %v2496 = vpop.f32.mrb[0].mxu0
      %v2497 = vadd.f32 %v2065, %v2496
      %v2498 = vpop.f32.mrb[0].mxu0
      %v2499 = vadd.f32 %v2069, %v2498
      %v2500 = vpop.f32.mrb[0].mxu0
      %v2501 = vadd.f32 %v2065, %v2500
      %v2502 = vpop.f32.mrb[0].mxu0
      %v2503 = vadd.f32 %v2069, %v2502
      %2504 = vmatprep.mubr.bf16.mxu0 %v2045
      %2505 = vmatmul.mubr.bf16.gmra.mrb[0].mxu0 %v2044
      %v2506 = vpop.f32.mrb[0].mxu0
      %v2507 = vadd.f32 %v2065, %v2506
      %v2508 = vpop.f32.mrb[0].mxu0
      %v2509 = vadd.f32 %v2069, %v2508
      %v2510 = vpop.f32.mrb[0].mxu0
      %v2511 = vadd.f32 %v2065, %v2510
      %v2512 = vpop.f32.mrb[0].mxu0
      %v2513 = vadd.f32 %v2069, %v2512
      %2514 = vmatprep.mubr.bf16.mxu0 %v2047
      %2515 = vmatmul.mubr.bf16.gmra.mrb[0].mxu0 %v2046
      %v2516 = vpop.f32.mrb[0].mxu0
      %v2517 = vadd.f32 %v2065, %v2516
      %v2518 = vpop.f32.mrb[0].mxu0
      %v2519 = vadd.f32 %v2069, %v2518
      %v2520 = vpop.f32.mrb[0].mxu0
      %v2521 = vadd.f32 %v2065, %v2520
      %v2522 = vpop.f32.mrb[0].mxu0
      %v2523 = vadd.f32 %v2069, %v2522
      %2524 = vmatprep.mubr.bf16.mxu0 %v2049
      %2525 = vmatmul.mubr.bf16.gmra.mrb[0].mxu0 %v2048
      %v2526 = vpop.f32.mrb[0].mxu0
      %v2527 = vadd.f32 %v2065, %v2526
      %v2528 = vpop.f32.mrb[0].mxu0
      %v2529 = vadd.f32 %v2069, %v2528
      %v2530 = vpop.f32.mrb[0].mxu0
      %v2531 = vadd.f32 %v2065, %v2530
      %v2532 = vpop.f32.mrb[0].mxu0
      %v2533 = vadd.f32 %v2069, %v2532
      %2534 = vmatprep.mubr.bf16.mxu0 %v2051
      %2535 = vmatmul.mubr.bf16.gmra.mrb[0].mxu0 %v2050
      %v2536 = vpop.f32.mrb[0].mxu0
      %v2537 = vadd.f32 %v2065, %v2536
      %v2538 = vpop.f32.mrb[0].mxu0
      %v2539 = vadd.f32 %v2069, %v2538
      %v2540 = vpop.f32.mrb[0].mxu0
      %v2541 = vadd.f32 %v2065, %v2540
      %v2542 = vpop.f32.mrb[0].mxu0
      %v2543 = vadd.f32 %v2069, %v2542
      %2544 = vmatprep.mubr.bf16.mxu0 %v2053
      %2545 = vmatmul.mubr.bf16.gmra.mrb[0].mxu0 %v2052
      %v2546 = vpop.f32.mrb[0].mxu0
      %v2547 = vadd.f32 %v2065, %v2546
      %v2548 = vpop.f32.mrb[0].mxu0
      %v2549 = vadd.f32 %v2069, %v2548
      %v2550 = vpop.f32.mrb[0].mxu0
      %v2551 = vadd.f32 %v2065, %v2550
      %v2552 = vpop.f32.mrb[0].mxu0
      %v2553 = vadd.f32 %v2069, %v2552
      %2554 = vmatprep.mubr.bf16.mxu0 %v2055
      %2555 = vmatmul.mubr.bf16.gmra.mrb[0].mxu0 %v2054
      %v2556 = vpop.f32.mrb[0].mxu0
      %v2557 = vadd.f32 %v2065, %v2556
      %v2558 = vpop.f32.mrb[0].mxu0
      %v2559 = vadd.f32 %v2069, %v2558
      %v2560 = vpop.f32.mrb[0].mxu0
      %v2561 = vadd.f32 %v2065, %v2560
      %v2562 = vpop.f32.mrb[0].mxu0
      %v2563 = vadd.f32 %v2069, %v2562
      %2564 = vmatprep.mubr.bf16.mxu0 %v2057
      %2565 = vmatmul.mubr.bf16.gmra.mrb[0].mxu0 %v2056
      %v2566 = vpop.f32.mrb[0].mxu0
      %v2567 = vadd.f32 %v2065, %v2566
      %v2568 = vpop.f32.mrb[0].mxu0
      %v2569 = vadd.f32 %v2069, %v2568
      %v2570 = vpop.f32.mrb[0].mxu0
      %v2571 = vadd.f32 %v2065, %v2570
      %v2572 = vpop.f32.mrb[0].mxu0
      %v2573 = vadd.f32 %v2069, %v2572
      %2574 = vmatprep.mubr.bf16.mxu0 %v2059
      %2575 = vmatmul.mubr.bf16.gmra.mrb[0].mxu0 %v2058
      %v2576 = vpop.f32.mrb[0].mxu0
      %v2577 = vadd.f32 %v2065, %v2576
      %v2578 = vpop.f32.mrb[0].mxu0
      %v2579 = vadd.f32 %v2069, %v2578
      %v2580 = vpop.f32.mrb[0].mxu0
      %v2581 = vadd.f32 %v2065, %v2580
      %v2582 = vpop.f32.mrb[0].mxu0
      %v2583 = vadd.f32 %v2069, %v2582
      %2584 = vdwg.mxu0
      %v2585 = vmax.f32 %v2267, 0.0
      %v2586 = vmax.f32 %v2269, 0.0
      %v2587 = vmax.f32 %v2271, 0.0
      %v2588 = vmax.f32 %v2273, 0.0
      %v2589 = vmax.f32 %v2277, 0.0
      %v2590 = vmax.f32 %v2279, 0.0
      %v2591 = vmax.f32 %v2281, 0.0
      %v2592 = vmax.f32 %v2283, 0.0
      %v2593 = vmax.f32 %v2287, 0.0
      %v2594 = vmax.f32 %v2289, 0.0
      %v2595 = vmax.f32 %v2291, 0.0
      %v2596 = vmax.f32 %v2293, 0.0
      %v2597 = vmax.f32 %v2297, 0.0
      %v2598 = vmax.f32 %v2299, 0.0
      %v2599 = vmax.f32 %v2301, 0.0
      %v2600 = vmax.f32 %v2303, 0.0
      %v2601 = vmax.f32 %v2307, 0.0
      %v2602 = vmax.f32 %v2309, 0.0
      %v2603 = vmax.f32 %v2311, 0.0
      %v2604 = vmax.f32 %v2313, 0.0
      %v2605 = vmax.f32 %v2317, 0.0
      %v2606 = vmax.f32 %v2319, 0.0
      %v2607 = vmax.f32 %v2321, 0.0
      %v2608 = vmax.f32 %v2323, 0.0
      %v2609 = vmax.f32 %v2327, 0.0
      %v2610 = vmax.f32 %v2329, 0.0
      %v2611 = vmax.f32 %v2331, 0.0
      %v2612 = vmax.f32 %v2333, 0.0
      %v2613 = vmax.f32 %v2337, 0.0
      %v2614 = vmax.f32 %v2339, 0.0
      %v2615 = vmax.f32 %v2341, 0.0
      %v2616 = vmax.f32 %v2343, 0.0
      %v2617 = vmax.f32 %v2347, 0.0
      %v2618 = vmax.f32 %v2349, 0.0
      %v2619 = vmax.f32 %v2351, 0.0
      %v2620 = vmax.f32 %v2353, 0.0
      %v2621 = vmax.f32 %v2357, 0.0
      %v2622 = vmax.f32 %v2359, 0.0
      %v2623 = vmax.f32 %v2361, 0.0
      %v2624 = vmax.f32 %v2363, 0.0
      %v2625 = vmax.f32 %v2367, 0.0
      %v2626 = vmax.f32 %v2369, 0.0
      %v2627 = vmax.f32 %v2371, 0.0
      %v2628 = vmax.f32 %v2373, 0.0
      %v2629 = vmax.f32 %v2377, 0.0
      %v2630 = vmax.f32 %v2379, 0.0
      %v2631 = vmax.f32 %v2381, 0.0
      %v2632 = vmax.f32 %v2383, 0.0
      %v2633 = vmax.f32 %v2387, 0.0
      %v2634 = vmax.f32 %v2389, 0.0
      %v2635 = vmax.f32 %v2391, 0.0
      %v2636 = vmax.f32 %v2393, 0.0
      %v2637 = vmax.f32 %v2397, 0.0
      %v2638 = vmax.f32 %v2399, 0.0
      %v2639 = vmax.f32 %v2401, 0.0
      %v2640 = vmax.f32 %v2403, 0.0
      %v2641 = vmax.f32 %v2407, 0.0
      %v2642 = vmax.f32 %v2409, 0.0
      %v2643 = vmax.f32 %v2411, 0.0
      %v2644 = vmax.f32 %v2413, 0.0
      %v2645 = vmax.f32 %v2417, 0.0
      %v2646 = vmax.f32 %v2419, 0.0
      %v2647 = vmax.f32 %v2421, 0.0
      %v2648 = vmax.f32 %v2423, 0.0
      %v2649 = vmax.f32 %v2427, 0.0
      %v2650 = vmax.f32 %v2429, 0.0
      %v2651 = vmax.f32 %v2431, 0.0
      %v2652 = vmax.f32 %v2433, 0.0
      %v2653 = vmax.f32 %v2437, 0.0
      %v2654 = vmax.f32 %v2439, 0.0
      %v2655 = vmax.f32 %v2441, 0.0
      %v2656 = vmax.f32 %v2443, 0.0
      %v2657 = vmax.f32 %v2447, 0.0
      %v2658 = vmax.f32 %v2449, 0.0
      %v2659 = vmax.f32 %v2451, 0.0
      %v2660 = vmax.f32 %v2453, 0.0
      %v2661 = vmax.f32 %v2457, 0.0
      %v2662 = vmax.f32 %v2459, 0.0
      %v2663 = vmax.f32 %v2461, 0.0
      %v2664 = vmax.f32 %v2463, 0.0
      %v2665 = vmax.f32 %v2467, 0.0
      %v2666 = vmax.f32 %v2469, 0.0
      %v2667 = vmax.f32 %v2471, 0.0
      %v2668 = vmax.f32 %v2473, 0.0
      %v2669 = vmax.f32 %v2477, 0.0
      %v2670 = vmax.f32 %v2479, 0.0
      %v2671 = vmax.f32 %v2481, 0.0
      %v2672 = vmax.f32 %v2483, 0.0
      %v2673 = vmax.f32 %v2487, 0.0
      %v2674 = vmax.f32 %v2489, 0.0
      %v2675 = vmax.f32 %v2491, 0.0
      %v2676 = vmax.f32 %v2493, 0.0
      %v2677 = vmax.f32 %v2497, 0.0
      %v2678 = vmax.f32 %v2499, 0.0
      %v2679 = vmax.f32 %v2501, 0.0
      %v2680 = vmax.f32 %v2503, 0.0
      %v2681 = vmax.f32 %v2507, 0.0
      %v2682 = vmax.f32 %v2509, 0.0
      %v2683 = vmax.f32 %v2511, 0.0
      %v2684 = vmax.f32 %v2513, 0.0
      %v2685 = vmax.f32 %v2517, 0.0
      %v2686 = vmax.f32 %v2519, 0.0
      %v2687 = vmax.f32 %v2521, 0.0
      %v2688 = vmax.f32 %v2523, 0.0
      %v2689 = vmax.f32 %v2527, 0.0
      %v2690 = vmax.f32 %v2529, 0.0
      %v2691 = vmax.f32 %v2531, 0.0
      %v2692 = vmax.f32 %v2533, 0.0
      %v2693 = vmax.f32 %v2537, 0.0
      %v2694 = vmax.f32 %v2539, 0.0
      %v2695 = vmax.f32 %v2541, 0.0
      %v2696 = vmax.f32 %v2543, 0.0
      %v2697 = vmax.f32 %v2547, 0.0
      %v2698 = vmax.f32 %v2549, 0.0
      %v2699 = vmax.f32 %v2551, 0.0
      %v2700 = vmax.f32 %v2553, 0.0
      %v2701 = vmax.f32 %v2557, 0.0
      %v2702 = vmax.f32 %v2559, 0.0
      %v2703 = vmax.f32 %v2561, 0.0
      %v2704 = vmax.f32 %v2563, 0.0
      %v2705 = vmax.f32 %v2567, 0.0
      %v2706 = vmax.f32 %v2569, 0.0
      %v2707 = vmax.f32 %v2571, 0.0
      %v2708 = vmax.f32 %v2573, 0.0
      %v2709 = vmax.f32 %v2577, 0.0
      %v2710 = vmax.f32 %v2579, 0.0
      %v2711 = vmax.f32 %v2581, 0.0
      %v2712 = vmax.f32 %v2583, 0.0
      %s2713 = scalar_lea.vmem %s3, 512
      %v2714 = vld [vmem:[%s2713] sm:$0xff]
      %v2715 = vld [vmem:[%s2713 + $0x8] sm:$0xff]
      %v2716 = vld [vmem:[%s2713 + $0x10] sm:$0xff]
      %v2717 = vld [vmem:[%s2713 + $0x18] sm:$0xff]
      %v2718 = vld [vmem:[%s2713 + $0x20] sm:$0xff]
      %v2719 = vld [vmem:[%s2713 + $0x28] sm:$0xff]
      %v2720 = vld [vmem:[%s2713 + $0x30] sm:$0xff]
      %v2721 = vld [vmem:[%s2713 + $0x38] sm:$0xff]
      %v2722 = vld [vmem:[%s2713 + $0x40] sm:$0xff]
      %v2723 = vld [vmem:[%s2713 + $0x48] sm:$0xff]
      %v2724 = vld [vmem:[%s2713 + $0x50] sm:$0xff]
      %v2725 = vld [vmem:[%s2713 + $0x58] sm:$0xff]
      %v2726 = vld [vmem:[%s2713 + $0x60] sm:$0xff]
      %v2727 = vld [vmem:[%s2713 + $0x68] sm:$0xff]
      %v2728 = vld [vmem:[%s2713 + $0x70] sm:$0xff]
      %v2729 = vld [vmem:[%s2713 + $0x78] sm:$0xff]
      %v2730 = vld [vmem:[%s2713 + $0x80] sm:$0xff]
      %v2731 = vld [vmem:[%s2713 + $0x88] sm:$0xff]
      %v2732 = vld [vmem:[%s2713 + $0x90] sm:$0xff]
      %v2733 = vld [vmem:[%s2713 + $0x98] sm:$0xff]
      %v2734 = vld [vmem:[%s2713 + $0xa0] sm:$0xff]
      %v2735 = vld [vmem:[%s2713 + $0xa8] sm:$0xff]
      %v2736 = vld [vmem:[%s2713 + $0xb0] sm:$0xff]
      %v2737 = vld [vmem:[%s2713 + $0xb8] sm:$0xff]
      %v2738 = vld [vmem:[%s2713 + $0xc0] sm:$0xff]
      %v2739 = vld [vmem:[%s2713 + $0xc8] sm:$0xff]
      %v2740 = vld [vmem:[%s2713 + $0xd0] sm:$0xff]
      %v2741 = vld [vmem:[%s2713 + $0xd8] sm:$0xff]
      %v2742 = vld [vmem:[%s2713 + $0xe0] sm:$0xff]
      %v2743 = vld [vmem:[%s2713 + $0xe8] sm:$0xff]
      %v2744 = vld [vmem:[%s2713 + $0xf0] sm:$0xff]
      %v2745 = vld [vmem:[%s2713 + $0xf8] sm:$0xff]
      %v2746 = vpack.c.bf16 %v2587, %v2585
      %v2747 = vpack.c.bf16 %v2588, %v2586
      %v2748 = vpack.c.bf16 %v2591, %v2589
      %v2749 = vpack.c.bf16 %v2592, %v2590
      %v2750 = vpack.c.bf16 %v2595, %v2593
      %v2751 = vpack.c.bf16 %v2596, %v2594
      %v2752 = vpack.c.bf16 %v2599, %v2597
      %v2753 = vpack.c.bf16 %v2600, %v2598
      %v2754 = vpack.c.bf16 %v2603, %v2601
      %v2755 = vpack.c.bf16 %v2604, %v2602
      %v2756 = vpack.c.bf16 %v2607, %v2605
      %v2757 = vpack.c.bf16 %v2608, %v2606
      %v2758 = vpack.c.bf16 %v2611, %v2609
      %v2759 = vpack.c.bf16 %v2612, %v2610
      %v2760 = vpack.c.bf16 %v2615, %v2613
      %v2761 = vpack.c.bf16 %v2616, %v2614
      %v2762 = vpack.c.bf16 %v2619, %v2617
      %v2763 = vpack.c.bf16 %v2620, %v2618
      %v2764 = vpack.c.bf16 %v2623, %v2621
      %v2765 = vpack.c.bf16 %v2624, %v2622
      %v2766 = vpack.c.bf16 %v2627, %v2625
      %v2767 = vpack.c.bf16 %v2628, %v2626
      %v2768 = vpack.c.bf16 %v2631, %v2629
      %v2769 = vpack.c.bf16 %v2632, %v2630
      %v2770 = vpack.c.bf16 %v2635, %v2633
      %v2771 = vpack.c.bf16 %v2636, %v2634
      %v2772 = vpack.c.bf16 %v2639, %v2637
      %v2773 = vpack.c.bf16 %v2640, %v2638
      %v2774 = vpack.c.bf16 %v2643, %v2641
      %v2775 = vpack.c.bf16 %v2644, %v2642
      %v2776 = vpack.c.bf16 %v2647, %v2645
      %v2777 = vpack.c.bf16 %v2648, %v2646
      %v2778 = vpack.c.bf16 %v2651, %v2649
      %v2779 = vpack.c.bf16 %v2652, %v2650
      %v2780 = vpack.c.bf16 %v2655, %v2653
      %v2781 = vpack.c.bf16 %v2656, %v2654
      %v2782 = vpack.c.bf16 %v2659, %v2657
      %v2783 = vpack.c.bf16 %v2660, %v2658
      %v2784 = vpack.c.bf16 %v2663, %v2661
      %v2785 = vpack.c.bf16 %v2664, %v2662
      %v2786 = vpack.c.bf16 %v2667, %v2665
      %v2787 = vpack.c.bf16 %v2668, %v2666
      %v2788 = vpack.c.bf16 %v2671, %v2669
      %v2789 = vpack.c.bf16 %v2672, %v2670
      %v2790 = vpack.c.bf16 %v2675, %v2673
      %v2791 = vpack.c.bf16 %v2676, %v2674
      %v2792 = vpack.c.bf16 %v2679, %v2677
      %v2793 = vpack.c.bf16 %v2680, %v2678
      %v2794 = vpack.c.bf16 %v2683, %v2681
      %v2795 = vpack.c.bf16 %v2684, %v2682
      %v2796 = vpack.c.bf16 %v2687, %v2685
      %v2797 = vpack.c.bf16 %v2688, %v2686
      %v2798 = vpack.c.bf16 %v2691, %v2689
      %v2799 = vpack.c.bf16 %v2692, %v2690
      %v2800 = vpack.c.bf16 %v2695, %v2693
      %v2801 = vpack.c.bf16 %v2696, %v2694
      %v2802 = vpack.c.bf16 %v2699, %v2697
      %v2803 = vpack.c.bf16 %v2700, %v2698
      %v2804 = vpack.c.bf16 %v2703, %v2701
      %v2805 = vpack.c.bf16 %v2704, %v2702
      %v2806 = vpack.c.bf16 %v2707, %v2705
      %v2807 = vpack.c.bf16 %v2708, %v2706
      %v2808 = vpack.c.bf16 %v2711, %v2709
      %v2809 = vpack.c.bf16 %v2712, %v2710
      %v2810 = vld [vmem:[%s6 + $0x6] sm:$0x3]
      %v2812 = vlaneseq
      %v2813 = vshrl.u32 %v2812, 7
      %v2814 = vsub.s32 0, %v2813
      %v2815 = vrot.slane %v2810, %v2814
      %v2816 = vlaneseq
      %v2817 = vshrl.u32 %v2816, 7
      %v2818 = vsub.s32 1, %v2817
      %v2819 = vrot.slane %v2810, %v2818
      %v2854 = vunpack.c.l.b16 %v2714
      %v2855 = vunpack.c.h.b16 %v2714
      %v2856 = vunpack.c.l.b16 %v2715
      %v2857 = vunpack.c.h.b16 %v2715
      %v2858 = vunpack.c.l.b16 %v2716
      %v2859 = vunpack.c.h.b16 %v2716
      %v2860 = vunpack.c.l.b16 %v2717
      %v2861 = vunpack.c.h.b16 %v2717
      %v2862 = vunpack.c.l.b16 %v2718
      %v2863 = vunpack.c.h.b16 %v2718
      %v2864 = vunpack.c.l.b16 %v2719
      %v2865 = vunpack.c.h.b16 %v2719
      %v2866 = vunpack.c.l.b16 %v2720
      %v2867 = vunpack.c.h.b16 %v2720
      %v2868 = vunpack.c.l.b16 %v2721
      %v2869 = vunpack.c.h.b16 %v2721
      %v2870 = vunpack.c.l.b16 %v2722
      %v2871 = vunpack.c.h.b16 %v2722
      %v2872 = vunpack.c.l.b16 %v2723
      %v2873 = vunpack.c.h.b16 %v2723
      %v2874 = vunpack.c.l.b16 %v2724
      %v2875 = vunpack.c.h.b16 %v2724
      %v2876 = vunpack.c.l.b16 %v2725
      %v2877 = vunpack.c.h.b16 %v2725
      %v2878 = vunpack.c.l.b16 %v2726
      %v2879 = vunpack.c.h.b16 %v2726
      %v2880 = vunpack.c.l.b16 %v2727
      %v2881 = vunpack.c.h.b16 %v2727
      %v2882 = vunpack.c.l.b16 %v2728
      %v2883 = vunpack.c.h.b16 %v2728
      %v2884 = vunpack.c.l.b16 %v2729
      %v2885 = vunpack.c.h.b16 %v2729
      %v2886 = vunpack.c.l.b16 %v2730
      %v2887 = vunpack.c.h.b16 %v2730
      %v2888 = vunpack.c.l.b16 %v2731
      %v2889 = vunpack.c.h.b16 %v2731
      %v2890 = vunpack.c.l.b16 %v2732
      %v2891 = vunpack.c.h.b16 %v2732
      %v2892 = vunpack.c.l.b16 %v2733
      %v2893 = vunpack.c.h.b16 %v2733
      %v2894 = vunpack.c.l.b16 %v2734
      %v2895 = vunpack.c.h.b16 %v2734
      %v2896 = vunpack.c.l.b16 %v2735
      %v2897 = vunpack.c.h.b16 %v2735
      %v2898 = vunpack.c.l.b16 %v2736
      %v2899 = vunpack.c.h.b16 %v2736
      %v2900 = vunpack.c.l.b16 %v2737
      %v2901 = vunpack.c.h.b16 %v2737
      %v2902 = vunpack.c.l.b16 %v2738
      %v2903 = vunpack.c.h.b16 %v2738
      %v2904 = vunpack.c.l.b16 %v2739
      %v2905 = vunpack.c.h.b16 %v2739
      %v2906 = vunpack.c.l.b16 %v2740
      %v2907 = vunpack.c.h.b16 %v2740
      %v2908 = vunpack.c.l.b16 %v2741
      %v2909 = vunpack.c.h.b16 %v2741
      %v2910 = vunpack.c.l.b16 %v2742
      %v2911 = vunpack.c.h.b16 %v2742
      %v2912 = vunpack.c.l.b16 %v2743
      %v2913 = vunpack.c.h.b16 %v2743
      %v2914 = vunpack.c.l.b16 %v2744
      %v2915 = vunpack.c.h.b16 %v2744
      %v2916 = vunpack.c.l.b16 %v2745
      %v2917 = vunpack.c.h.b16 %v2745
      %v2918 = vpack.c.b16 %v2856, %v2854
      %v2919 = vpack.c.b16 %v2857, %v2855
      %v2920 = vpack.c.b16 %v2860, %v2858
      %v2921 = vpack.c.b16 %v2861, %v2859
      %v2922 = vpack.c.b16 %v2864, %v2862
      %v2923 = vpack.c.b16 %v2865, %v2863
      %v2924 = vpack.c.b16 %v2868, %v2866
      %v2925 = vpack.c.b16 %v2869, %v2867
      %v2926 = vpack.c.b16 %v2872, %v2870
      %v2927 = vpack.c.b16 %v2873, %v2871
      %v2928 = vpack.c.b16 %v2876, %v2874
      %v2929 = vpack.c.b16 %v2877, %v2875
      %v2930 = vpack.c.b16 %v2880, %v2878
      %v2931 = vpack.c.b16 %v2881, %v2879
      %v2932 = vpack.c.b16 %v2884, %v2882
      %v2933 = vpack.c.b16 %v2885, %v2883
      %v2934 = vpack.c.b16 %v2888, %v2886
      %v2935 = vpack.c.b16 %v2889, %v2887
      %v2936 = vpack.c.b16 %v2892, %v2890
      %v2937 = vpack.c.b16 %v2893, %v2891
      %v2938 = vpack.c.b16 %v2896, %v2894
      %v2939 = vpack.c.b16 %v2897, %v2895
      %v2940 = vpack.c.b16 %v2900, %v2898
      %v2941 = vpack.c.b16 %v2901, %v2899
      %v2942 = vpack.c.b16 %v2904, %v2902
      %v2943 = vpack.c.b16 %v2905, %v2903
      %v2944 = vpack.c.b16 %v2908, %v2906
      %v2945 = vpack.c.b16 %v2909, %v2907
      %v2946 = vpack.c.b16 %v2912, %v2910
      %v2947 = vpack.c.b16 %v2913, %v2911
      %v2948 = vpack.c.b16 %v2916, %v2914
      %v2949 = vpack.c.b16 %v2917, %v2915
      %2982 = vmatprep.subr.bf16.mxu0 %v2919
      %2983 = vmatpush1.bf16.msra.mxu0 %v2918
      %2984 = vmatprep.subr.bf16.mxu0 %v2921
      %2985 = vmatpush1.bf16.msra.mxu0 %v2920
      %2986 = vmatprep.subr.bf16.mxu0 %v2923
      %2987 = vmatpush1.bf16.msra.mxu0 %v2922
      %2988 = vmatprep.subr.bf16.mxu0 %v2925
      %2989 = vmatpush1.bf16.msra.mxu0 %v2924
      %2990 = vmatprep.subr.bf16.mxu0 %v2927
      %2991 = vmatpush1.bf16.msra.mxu0 %v2926
      %2992 = vmatprep.subr.bf16.mxu0 %v2929
      %2993 = vmatpush1.bf16.msra.mxu0 %v2928
      %2994 = vmatprep.subr.bf16.mxu0 %v2931
      %2995 = vmatpush1.bf16.msra.mxu0 %v2930
      %2996 = vmatprep.subr.bf16.mxu0 %v2933
      %2997 = vmatpush1.bf16.msra.mxu0 %v2932
      %2998 = vmatprep.subr.bf16.mxu0 %v2935
      %2999 = vmatpush1.bf16.msra.mxu0 %v2934
      %3000 = vmatprep.subr.bf16.mxu0 %v2937
      %3001 = vmatpush1.bf16.msra.mxu0 %v2936
      %3002 = vmatprep.subr.bf16.mxu0 %v2939
      %3003 = vmatpush1.bf16.msra.mxu0 %v2938
      %3004 = vmatprep.subr.bf16.mxu0 %v2941
      %3005 = vmatpush1.bf16.msra.mxu0 %v2940
      %3006 = vmatprep.subr.bf16.mxu0 %v2943
      %3007 = vmatpush1.bf16.msra.mxu0 %v2942
      %3008 = vmatprep.subr.bf16.mxu0 %v2945
      %3009 = vmatpush1.bf16.msra.mxu0 %v2944
      %3010 = vmatprep.subr.bf16.mxu0 %v2947
      %3011 = vmatpush1.bf16.msra.mxu0 %v2946
      %3012 = vmatprep.subr.bf16.mxu0 %v2949
      %3013 = vmatpush1.bf16.msra.mxu0 %v2948
      %3014 = vmatprep.mubr.bf16.mxu0 %v2747
      %3015 = vmatmul.mubr.bf16.gmra.mrb[0].mxu0 %v2746
      %v3016 = vpop.f32.mrb[0].mxu0
      %v3017 = vadd.f32 %v2815, %v3016
      %v3018 = vpop.f32.mrb[0].mxu0
      %v3019 = vadd.f32 %v2819, %v3018
      %v3020 = vpop.f32.mrb[0].mxu0
      %v3021 = vadd.f32 %v2815, %v3020
      %v3022 = vpop.f32.mrb[0].mxu0
      %v3023 = vadd.f32 %v2819, %v3022
      %3024 = vmatprep.mubr.bf16.mxu0 %v2749
      %3025 = vmatmul.mubr.bf16.gmra.mrb[0].mxu0 %v2748
      %v3026 = vpop.f32.mrb[0].mxu0
      %v3027 = vadd.f32 %v2815, %v3026
      %v3028 = vpop.f32.mrb[0].mxu0
      %v3029 = vadd.f32 %v2819, %v3028
      %v3030 = vpop.f32.mrb[0].mxu0
      %v3031 = vadd.f32 %v2815, %v3030
      %v3032 = vpop.f32.mrb[0].mxu0
      %v3033 = vadd.f32 %v2819, %v3032
      %3034 = vmatprep.mubr.bf16.mxu0 %v2751
      %3035 = vmatmul.mubr.bf16.gmra.mrb[0].mxu0 %v2750
      %v3036 = vpop.f32.mrb[0].mxu0
      %v3037 = vadd.f32 %v2815, %v3036
      %v3038 = vpop.f32.mrb[0].mxu0
      %v3039 = vadd.f32 %v2819, %v3038
      %v3040 = vpop.f32.mrb[0].mxu0
      %v3041 = vadd.f32 %v2815, %v3040
      %v3042 = vpop.f32.mrb[0].mxu0
      %v3043 = vadd.f32 %v2819, %v3042
      %3044 = vmatprep.mubr.bf16.mxu0 %v2753
      %3045 = vmatmul.mubr.bf16.gmra.mrb[0].mxu0 %v2752
      %v3046 = vpop.f32.mrb[0].mxu0
      %v3047 = vadd.f32 %v2815, %v3046
      %v3048 = vpop.f32.mrb[0].mxu0
      %v3049 = vadd.f32 %v2819, %v3048
      %v3050 = vpop.f32.mrb[0].mxu0
      %v3051 = vadd.f32 %v2815, %v3050
      %v3052 = vpop.f32.mrb[0].mxu0
      %v3053 = vadd.f32 %v2819, %v3052
      %3054 = vmatprep.mubr.bf16.mxu0 %v2755
      %3055 = vmatmul.mubr.bf16.gmra.mrb[0].mxu0 %v2754
      %v3056 = vpop.f32.mrb[0].mxu0
      %v3057 = vadd.f32 %v2815, %v3056
      %v3058 = vpop.f32.mrb[0].mxu0
      %v3059 = vadd.f32 %v2819, %v3058
      %v3060 = vpop.f32.mrb[0].mxu0
      %v3061 = vadd.f32 %v2815, %v3060
      %v3062 = vpop.f32.mrb[0].mxu0
      %v3063 = vadd.f32 %v2819, %v3062
      %3064 = vmatprep.mubr.bf16.mxu0 %v2757
      %3065 = vmatmul.mubr.bf16.gmra.mrb[0].mxu0 %v2756
      %v3066 = vpop.f32.mrb[0].mxu0
      %v3067 = vadd.f32 %v2815, %v3066
      %v3068 = vpop.f32.mrb[0].mxu0
      %v3069 = vadd.f32 %v2819, %v3068
      %v3070 = vpop.f32.mrb[0].mxu0
      %v3071 = vadd.f32 %v2815, %v3070
      %v3072 = vpop.f32.mrb[0].mxu0
      %v3073 = vadd.f32 %v2819, %v3072
      %3074 = vmatprep.mubr.bf16.mxu0 %v2759
      %3075 = vmatmul.mubr.bf16.gmra.mrb[0].mxu0 %v2758
      %v3076 = vpop.f32.mrb[0].mxu0
      %v3077 = vadd.f32 %v2815, %v3076
      %v3078 = vpop.f32.mrb[0].mxu0
      %v3079 = vadd.f32 %v2819, %v3078
      %v3080 = vpop.f32.mrb[0].mxu0
      %v3081 = vadd.f32 %v2815, %v3080
      %v3082 = vpop.f32.mrb[0].mxu0
      %v3083 = vadd.f32 %v2819, %v3082
      %3084 = vmatprep.mubr.bf16.mxu0 %v2761
      %3085 = vmatmul.mubr.bf16.gmra.mrb[0].mxu0 %v2760
      %v3086 = vpop.f32.mrb[0].mxu0
      %v3087 = vadd.f32 %v2815, %v3086
      %v3088 = vpop.f32.mrb[0].mxu0
      %v3089 = vadd.f32 %v2819, %v3088
      %v3090 = vpop.f32.mrb[0].mxu0
      %v3091 = vadd.f32 %v2815, %v3090
      %v3092 = vpop.f32.mrb[0].mxu0
      %v3093 = vadd.f32 %v2819, %v3092
      %3094 = vmatprep.mubr.bf16.mxu0 %v2763
      %3095 = vmatmul.mubr.bf16.gmra.mrb[0].mxu0 %v2762
      %v3096 = vpop.f32.mrb[0].mxu0
      %v3097 = vadd.f32 %v2815, %v3096
      %v3098 = vpop.f32.mrb[0].mxu0
      %v3099 = vadd.f32 %v2819, %v3098
      %v3100 = vpop.f32.mrb[0].mxu0
      %v3101 = vadd.f32 %v2815, %v3100
      %v3102 = vpop.f32.mrb[0].mxu0
      %v3103 = vadd.f32 %v2819, %v3102
      %3104 = vmatprep.mubr.bf16.mxu0 %v2765
      %3105 = vmatmul.mubr.bf16.gmra.mrb[0].mxu0 %v2764
      %v3106 = vpop.f32.mrb[0].mxu0
      %v3107 = vadd.f32 %v2815, %v3106
      %v3108 = vpop.f32.mrb[0].mxu0
      %v3109 = vadd.f32 %v2819, %v3108
      %v3110 = vpop.f32.mrb[0].mxu0
      %v3111 = vadd.f32 %v2815, %v3110
      %v3112 = vpop.f32.mrb[0].mxu0
      %v3113 = vadd.f32 %v2819, %v3112
      %3114 = vmatprep.mubr.bf16.mxu0 %v2767
      %3115 = vmatmul.mubr.bf16.gmra.mrb[0].mxu0 %v2766
      %v3116 = vpop.f32.mrb[0].mxu0
      %v3117 = vadd.f32 %v2815, %v3116
      %v3118 = vpop.f32.mrb[0].mxu0
      %v3119 = vadd.f32 %v2819, %v3118
      %v3120 = vpop.f32.mrb[0].mxu0
      %v3121 = vadd.f32 %v2815, %v3120
      %v3122 = vpop.f32.mrb[0].mxu0
      %v3123 = vadd.f32 %v2819, %v3122
      %3124 = vmatprep.mubr.bf16.mxu0 %v2769
      %3125 = vmatmul.mubr.bf16.gmra.mrb[0].mxu0 %v2768
      %v3126 = vpop.f32.mrb[0].mxu0
      %v3127 = vadd.f32 %v2815, %v3126
      %v3128 = vpop.f32.mrb[0].mxu0
      %v3129 = vadd.f32 %v2819, %v3128
      %v3130 = vpop.f32.mrb[0].mxu0
      %v3131 = vadd.f32 %v2815, %v3130
      %v3132 = vpop.f32.mrb[0].mxu0
      %v3133 = vadd.f32 %v2819, %v3132
      %3134 = vmatprep.mubr.bf16.mxu0 %v2771
      %3135 = vmatmul.mubr.bf16.gmra.mrb[0].mxu0 %v2770
      %v3136 = vpop.f32.mrb[0].mxu0
      %v3137 = vadd.f32 %v2815, %v3136
      %v3138 = vpop.f32.mrb[0].mxu0
      %v3139 = vadd.f32 %v2819, %v3138
      %v3140 = vpop.f32.mrb[0].mxu0
      %v3141 = vadd.f32 %v2815, %v3140
      %v3142 = vpop.f32.mrb[0].mxu0
      %v3143 = vadd.f32 %v2819, %v3142
      %3144 = vmatprep.mubr.bf16.mxu0 %v2773
      %3145 = vmatmul.mubr.bf16.gmra.mrb[0].mxu0 %v2772
      %v3146 = vpop.f32.mrb[0].mxu0
      %v3147 = vadd.f32 %v2815, %v3146
      %v3148 = vpop.f32.mrb[0].mxu0
      %v3149 = vadd.f32 %v2819, %v3148
      %v3150 = vpop.f32.mrb[0].mxu0
      %v3151 = vadd.f32 %v2815, %v3150
      %v3152 = vpop.f32.mrb[0].mxu0
      %v3153 = vadd.f32 %v2819, %v3152
      %3154 = vmatprep.mubr.bf16.mxu0 %v2775
      %3155 = vmatmul.mubr.bf16.gmra.mrb[0].mxu0 %v2774
      %v3156 = vpop.f32.mrb[0].mxu0
      %v3157 = vadd.f32 %v2815, %v3156
      %v3158 = vpop.f32.mrb[0].mxu0
      %v3159 = vadd.f32 %v2819, %v3158
      %v3160 = vpop.f32.mrb[0].mxu0
      %v3161 = vadd.f32 %v2815, %v3160
      %v3162 = vpop.f32.mrb[0].mxu0
      %v3163 = vadd.f32 %v2819, %v3162
      %3164 = vmatprep.mubr.bf16.mxu0 %v2777
      %3165 = vmatmul.mubr.bf16.gmra.mrb[0].mxu0 %v2776
      %v3166 = vpop.f32.mrb[0].mxu0
      %v3167 = vadd.f32 %v2815, %v3166
      %v3168 = vpop.f32.mrb[0].mxu0
      %v3169 = vadd.f32 %v2819, %v3168
      %v3170 = vpop.f32.mrb[0].mxu0
      %v3171 = vadd.f32 %v2815, %v3170
      %v3172 = vpop.f32.mrb[0].mxu0
      %v3173 = vadd.f32 %v2819, %v3172
      %3174 = vmatprep.mubr.bf16.mxu0 %v2779
      %3175 = vmatmul.mubr.bf16.gmra.mrb[0].mxu0 %v2778
      %v3176 = vpop.f32.mrb[0].mxu0
      %v3177 = vadd.f32 %v2815, %v3176
      %v3178 = vpop.f32.mrb[0].mxu0
      %v3179 = vadd.f32 %v2819, %v3178
      %v3180 = vpop.f32.mrb[0].mxu0
      %v3181 = vadd.f32 %v2815, %v3180
      %v3182 = vpop.f32.mrb[0].mxu0
      %v3183 = vadd.f32 %v2819, %v3182
      %3184 = vmatprep.mubr.bf16.mxu0 %v2781
      %3185 = vmatmul.mubr.bf16.gmra.mrb[0].mxu0 %v2780
      %v3186 = vpop.f32.mrb[0].mxu0
      %v3187 = vadd.f32 %v2815, %v3186
      %v3188 = vpop.f32.mrb[0].mxu0
      %v3189 = vadd.f32 %v2819, %v3188
      %v3190 = vpop.f32.mrb[0].mxu0
      %v3191 = vadd.f32 %v2815, %v3190
      %v3192 = vpop.f32.mrb[0].mxu0
      %v3193 = vadd.f32 %v2819, %v3192
      %3194 = vmatprep.mubr.bf16.mxu0 %v2783
      %3195 = vmatmul.mubr.bf16.gmra.mrb[0].mxu0 %v2782
      %v3196 = vpop.f32.mrb[0].mxu0
      %v3197 = vadd.f32 %v2815, %v3196
      %v3198 = vpop.f32.mrb[0].mxu0
      %v3199 = vadd.f32 %v2819, %v3198
      %v3200 = vpop.f32.mrb[0].mxu0
      %v3201 = vadd.f32 %v2815, %v3200
      %v3202 = vpop.f32.mrb[0].mxu0
      %v3203 = vadd.f32 %v2819, %v3202
      %3204 = vmatprep.mubr.bf16.mxu0 %v2785
      %3205 = vmatmul.mubr.bf16.gmra.mrb[0].mxu0 %v2784
      %v3206 = vpop.f32.mrb[0].mxu0
      %v3207 = vadd.f32 %v2815, %v3206
      %v3208 = vpop.f32.mrb[0].mxu0
      %v3209 = vadd.f32 %v2819, %v3208
      %v3210 = vpop.f32.mrb[0].mxu0
      %v3211 = vadd.f32 %v2815, %v3210
      %v3212 = vpop.f32.mrb[0].mxu0
      %v3213 = vadd.f32 %v2819, %v3212
      %3214 = vmatprep.mubr.bf16.mxu0 %v2787
      %3215 = vmatmul.mubr.bf16.gmra.mrb[0].mxu0 %v2786
      %v3216 = vpop.f32.mrb[0].mxu0
      %v3217 = vadd.f32 %v2815, %v3216
      %v3218 = vpop.f32.mrb[0].mxu0
      %v3219 = vadd.f32 %v2819, %v3218
      %v3220 = vpop.f32.mrb[0].mxu0
      %v3221 = vadd.f32 %v2815, %v3220
      %v3222 = vpop.f32.mrb[0].mxu0
      %v3223 = vadd.f32 %v2819, %v3222
      %3224 = vmatprep.mubr.bf16.mxu0 %v2789
      %3225 = vmatmul.mubr.bf16.gmra.mrb[0].mxu0 %v2788
      %v3226 = vpop.f32.mrb[0].mxu0
      %v3227 = vadd.f32 %v2815, %v3226
      %v3228 = vpop.f32.mrb[0].mxu0
      %v3229 = vadd.f32 %v2819, %v3228
      %v3230 = vpop.f32.mrb[0].mxu0
      %v3231 = vadd.f32 %v2815, %v3230
      %v3232 = vpop.f32.mrb[0].mxu0
      %v3233 = vadd.f32 %v2819, %v3232
      %3234 = vmatprep.mubr.bf16.mxu0 %v2791
      %3235 = vmatmul.mubr.bf16.gmra.mrb[0].mxu0 %v2790
      %v3236 = vpop.f32.mrb[0].mxu0
      %v3237 = vadd.f32 %v2815, %v3236
      %v3238 = vpop.f32.mrb[0].mxu0
      %v3239 = vadd.f32 %v2819, %v3238
      %v3240 = vpop.f32.mrb[0].mxu0
      %v3241 = vadd.f32 %v2815, %v3240
      %v3242 = vpop.f32.mrb[0].mxu0
      %v3243 = vadd.f32 %v2819, %v3242
      %3244 = vmatprep.mubr.bf16.mxu0 %v2793
      %3245 = vmatmul.mubr.bf16.gmra.mrb[0].mxu0 %v2792
      %v3246 = vpop.f32.mrb[0].mxu0
      %v3247 = vadd.f32 %v2815, %v3246
      %v3248 = vpop.f32.mrb[0].mxu0
      %v3249 = vadd.f32 %v2819, %v3248
      %v3250 = vpop.f32.mrb[0].mxu0
      %v3251 = vadd.f32 %v2815, %v3250
      %v3252 = vpop.f32.mrb[0].mxu0
      %v3253 = vadd.f32 %v2819, %v3252
      %3254 = vmatprep.mubr.bf16.mxu0 %v2795
      %3255 = vmatmul.mubr.bf16.gmra.mrb[0].mxu0 %v2794
      %v3256 = vpop.f32.mrb[0].mxu0
      %v3257 = vadd.f32 %v2815, %v3256
      %v3258 = vpop.f32.mrb[0].mxu0
      %v3259 = vadd.f32 %v2819, %v3258
      %v3260 = vpop.f32.mrb[0].mxu0
      %v3261 = vadd.f32 %v2815, %v3260
      %v3262 = vpop.f32.mrb[0].mxu0
      %v3263 = vadd.f32 %v2819, %v3262
      %3264 = vmatprep.mubr.bf16.mxu0 %v2797
      %3265 = vmatmul.mubr.bf16.gmra.mrb[0].mxu0 %v2796
      %v3266 = vpop.f32.mrb[0].mxu0
      %v3267 = vadd.f32 %v2815, %v3266
      %v3268 = vpop.f32.mrb[0].mxu0
      %v3269 = vadd.f32 %v2819, %v3268
      %v3270 = vpop.f32.mrb[0].mxu0
      %v3271 = vadd.f32 %v2815, %v3270
      %v3272 = vpop.f32.mrb[0].mxu0
      %v3273 = vadd.f32 %v2819, %v3272
      %3274 = vmatprep.mubr.bf16.mxu0 %v2799
      %3275 = vmatmul.mubr.bf16.gmra.mrb[0].mxu0 %v2798
      %v3276 = vpop.f32.mrb[0].mxu0
      %v3277 = vadd.f32 %v2815, %v3276
      %v3278 = vpop.f32.mrb[0].mxu0
      %v3279 = vadd.f32 %v2819, %v3278
      %v3280 = vpop.f32.mrb[0].mxu0
      %v3281 = vadd.f32 %v2815, %v3280
      %v3282 = vpop.f32.mrb[0].mxu0
      %v3283 = vadd.f32 %v2819, %v3282
      %3284 = vmatprep.mubr.bf16.mxu0 %v2801
      %3285 = vmatmul.mubr.bf16.gmra.mrb[0].mxu0 %v2800
      %v3286 = vpop.f32.mrb[0].mxu0
      %v3287 = vadd.f32 %v2815, %v3286
      %v3288 = vpop.f32.mrb[0].mxu0
      %v3289 = vadd.f32 %v2819, %v3288
      %v3290 = vpop.f32.mrb[0].mxu0
      %v3291 = vadd.f32 %v2815, %v3290
      %v3292 = vpop.f32.mrb[0].mxu0
      %v3293 = vadd.f32 %v2819, %v3292
      %3294 = vmatprep.mubr.bf16.mxu0 %v2803
      %3295 = vmatmul.mubr.bf16.gmra.mrb[0].mxu0 %v2802
      %v3296 = vpop.f32.mrb[0].mxu0
      %v3297 = vadd.f32 %v2815, %v3296
      %v3298 = vpop.f32.mrb[0].mxu0
      %v3299 = vadd.f32 %v2819, %v3298
      %v3300 = vpop.f32.mrb[0].mxu0
      %v3301 = vadd.f32 %v2815, %v3300
      %v3302 = vpop.f32.mrb[0].mxu0
      %v3303 = vadd.f32 %v2819, %v3302
      %3304 = vmatprep.mubr.bf16.mxu0 %v2805
      %3305 = vmatmul.mubr.bf16.gmra.mrb[0].mxu0 %v2804
      %v3306 = vpop.f32.mrb[0].mxu0
      %v3307 = vadd.f32 %v2815, %v3306
      %v3308 = vpop.f32.mrb[0].mxu0
      %v3309 = vadd.f32 %v2819, %v3308
      %v3310 = vpop.f32.mrb[0].mxu0
      %v3311 = vadd.f32 %v2815, %v3310
      %v3312 = vpop.f32.mrb[0].mxu0
      %v3313 = vadd.f32 %v2819, %v3312
      %3314 = vmatprep.mubr.bf16.mxu0 %v2807
      %3315 = vmatmul.mubr.bf16.gmra.mrb[0].mxu0 %v2806
      %v3316 = vpop.f32.mrb[0].mxu0
      %v3317 = vadd.f32 %v2815, %v3316
      %v3318 = vpop.f32.mrb[0].mxu0
      %v3319 = vadd.f32 %v2819, %v3318
      %v3320 = vpop.f32.mrb[0].mxu0
      %v3321 = vadd.f32 %v2815, %v3320
      %v3322 = vpop.f32.mrb[0].mxu0
      %v3323 = vadd.f32 %v2819, %v3322
      %3324 = vmatprep.mubr.bf16.mxu0 %v2809
      %3325 = vmatmul.mubr.bf16.gmra.mrb[0].mxu0 %v2808
      %v3326 = vpop.f32.mrb[0].mxu0
      %v3327 = vadd.f32 %v2815, %v3326
      %v3328 = vpop.f32.mrb[0].mxu0
      %v3329 = vadd.f32 %v2819, %v3328
      %v3330 = vpop.f32.mrb[0].mxu0
      %v3331 = vadd.f32 %v2815, %v3330
      %v3332 = vpop.f32.mrb[0].mxu0
      %v3333 = vadd.f32 %v2819, %v3332
      %3334 = vdwg.mxu0
      %v3335 = vmax.f32 %v3017, 0.0
      %v3336 = vmax.f32 %v3019, 0.0
      %v3337 = vmax.f32 %v3021, 0.0
      %v3338 = vmax.f32 %v3023, 0.0
      %v3339 = vmax.f32 %v3027, 0.0
      %v3340 = vmax.f32 %v3029, 0.0
      %v3341 = vmax.f32 %v3031, 0.0
      %v3342 = vmax.f32 %v3033, 0.0
      %v3343 = vmax.f32 %v3037, 0.0
      %v3344 = vmax.f32 %v3039, 0.0
      %v3345 = vmax.f32 %v3041, 0.0
      %v3346 = vmax.f32 %v3043, 0.0
      %v3347 = vmax.f32 %v3047, 0.0
      %v3348 = vmax.f32 %v3049, 0.0
      %v3349 = vmax.f32 %v3051, 0.0
      %v3350 = vmax.f32 %v3053, 0.0
      %v3351 = vmax.f32 %v3057, 0.0
      %v3352 = vmax.f32 %v3059, 0.0
      %v3353 = vmax.f32 %v3061, 0.0
      %v3354 = vmax.f32 %v3063, 0.0
      %v3355 = vmax.f32 %v3067, 0.0
      %v3356 = vmax.f32 %v3069, 0.0
      %v3357 = vmax.f32 %v3071, 0.0
      %v3358 = vmax.f32 %v3073, 0.0
      %v3359 = vmax.f32 %v3077, 0.0
      %v3360 = vmax.f32 %v3079, 0.0
      %v3361 = vmax.f32 %v3081, 0.0
      %v3362 = vmax.f32 %v3083, 0.0
      %v3363 = vmax.f32 %v3087, 0.0
      %v3364 = vmax.f32 %v3089, 0.0
      %v3365 = vmax.f32 %v3091, 0.0
      %v3366 = vmax.f32 %v3093, 0.0
      %v3367 = vmax.f32 %v3097, 0.0
      %v3368 = vmax.f32 %v3099, 0.0
      %v3369 = vmax.f32 %v3101, 0.0
      %v3370 = vmax.f32 %v3103, 0.0
      %v3371 = vmax.f32 %v3107, 0.0
      %v3372 = vmax.f32 %v3109, 0.0
      %v3373 = vmax.f32 %v3111, 0.0
      %v3374 = vmax.f32 %v3113, 0.0
      %v3375 = vmax.f32 %v3117, 0.0
      %v3376 = vmax.f32 %v3119, 0.0
      %v3377 = vmax.f32 %v3121, 0.0
      %v3378 = vmax.f32 %v3123, 0.0
      %v3379 = vmax.f32 %v3127, 0.0
      %v3380 = vmax.f32 %v3129, 0.0
      %v3381 = vmax.f32 %v3131, 0.0
      %v3382 = vmax.f32 %v3133, 0.0
      %v3383 = vmax.f32 %v3137, 0.0
      %v3384 = vmax.f32 %v3139, 0.0
      %v3385 = vmax.f32 %v3141, 0.0
      %v3386 = vmax.f32 %v3143, 0.0
      %v3387 = vmax.f32 %v3147, 0.0
      %v3388 = vmax.f32 %v3149, 0.0
      %v3389 = vmax.f32 %v3151, 0.0
      %v3390 = vmax.f32 %v3153, 0.0
      %v3391 = vmax.f32 %v3157, 0.0
      %v3392 = vmax.f32 %v3159, 0.0
      %v3393 = vmax.f32 %v3161, 0.0
      %v3394 = vmax.f32 %v3163, 0.0
      %v3395 = vmax.f32 %v3167, 0.0
      %v3396 = vmax.f32 %v3169, 0.0
      %v3397 = vmax.f32 %v3171, 0.0
      %v3398 = vmax.f32 %v3173, 0.0
      %v3399 = vmax.f32 %v3177, 0.0
      %v3400 = vmax.f32 %v3179, 0.0
      %v3401 = vmax.f32 %v3181, 0.0
      %v3402 = vmax.f32 %v3183, 0.0
      %v3403 = vmax.f32 %v3187, 0.0
      %v3404 = vmax.f32 %v3189, 0.0
      %v3405 = vmax.f32 %v3191, 0.0
      %v3406 = vmax.f32 %v3193, 0.0
      %v3407 = vmax.f32 %v3197, 0.0
      %v3408 = vmax.f32 %v3199, 0.0
      %v3409 = vmax.f32 %v3201, 0.0
      %v3410 = vmax.f32 %v3203, 0.0
      %v3411 = vmax.f32 %v3207, 0.0
      %v3412 = vmax.f32 %v3209, 0.0
      %v3413 = vmax.f32 %v3211, 0.0
      %v3414 = vmax.f32 %v3213, 0.0
      %v3415 = vmax.f32 %v3217, 0.0
      %v3416 = vmax.f32 %v3219, 0.0
      %v3417 = vmax.f32 %v3221, 0.0
      %v3418 = vmax.f32 %v3223, 0.0
      %v3419 = vmax.f32 %v3227, 0.0
      %v3420 = vmax.f32 %v3229, 0.0
      %v3421 = vmax.f32 %v3231, 0.0
      %v3422 = vmax.f32 %v3233, 0.0
      %v3423 = vmax.f32 %v3237, 0.0
      %v3424 = vmax.f32 %v3239, 0.0
      %v3425 = vmax.f32 %v3241, 0.0
      %v3426 = vmax.f32 %v3243, 0.0
      %v3427 = vmax.f32 %v3247, 0.0
      %v3428 = vmax.f32 %v3249, 0.0
      %v3429 = vmax.f32 %v3251, 0.0
      %v3430 = vmax.f32 %v3253, 0.0
      %v3431 = vmax.f32 %v3257, 0.0
      %v3432 = vmax.f32 %v3259, 0.0
      %v3433 = vmax.f32 %v3261, 0.0
      %v3434 = vmax.f32 %v3263, 0.0
      %v3435 = vmax.f32 %v3267, 0.0
      %v3436 = vmax.f32 %v3269, 0.0
      %v3437 = vmax.f32 %v3271, 0.0
      %v3438 = vmax.f32 %v3273, 0.0
      %v3439 = vmax.f32 %v3277, 0.0
      %v3440 = vmax.f32 %v3279, 0.0
      %v3441 = vmax.f32 %v3281, 0.0
      %v3442 = vmax.f32 %v3283, 0.0
      %v3443 = vmax.f32 %v3287, 0.0
      %v3444 = vmax.f32 %v3289, 0.0
      %v3445 = vmax.f32 %v3291, 0.0
      %v3446 = vmax.f32 %v3293, 0.0
      %v3447 = vmax.f32 %v3297, 0.0
      %v3448 = vmax.f32 %v3299, 0.0
      %v3449 = vmax.f32 %v3301, 0.0
      %v3450 = vmax.f32 %v3303, 0.0
      %v3451 = vmax.f32 %v3307, 0.0
      %v3452 = vmax.f32 %v3309, 0.0
      %v3453 = vmax.f32 %v3311, 0.0
      %v3454 = vmax.f32 %v3313, 0.0
      %v3455 = vmax.f32 %v3317, 0.0
      %v3456 = vmax.f32 %v3319, 0.0
      %v3457 = vmax.f32 %v3321, 0.0
      %v3458 = vmax.f32 %v3323, 0.0
      %v3459 = vmax.f32 %v3327, 0.0
      %v3460 = vmax.f32 %v3329, 0.0
      %v3461 = vmax.f32 %v3331, 0.0
      %v3462 = vmax.f32 %v3333, 0.0
      %s3463 = scalar_lea.vmem %s3, 768
      %v3464 = vld [vmem:[%s3463] sm:$0xff]
      %v3465 = vld [vmem:[%s3463 + $0x8] sm:$0xff]
      %v3466 = vld [vmem:[%s3463 + $0x10] sm:$0xff]
      %v3467 = vld [vmem:[%s3463 + $0x18] sm:$0xff]
      %v3468 = vld [vmem:[%s3463 + $0x20] sm:$0xff]
      %v3469 = vld [vmem:[%s3463 + $0x28] sm:$0xff]
      %v3470 = vld [vmem:[%s3463 + $0x30] sm:$0xff]
      %v3471 = vld [vmem:[%s3463 + $0x38] sm:$0xff]
      %v3472 = vld [vmem:[%s3463 + $0x40] sm:$0xff]
      %v3473 = vld [vmem:[%s3463 + $0x48] sm:$0xff]
      %v3474 = vld [vmem:[%s3463 + $0x50] sm:$0xff]
      %v3475 = vld [vmem:[%s3463 + $0x58] sm:$0xff]
      %v3476 = vld [vmem:[%s3463 + $0x60] sm:$0xff]
      %v3477 = vld [vmem:[%s3463 + $0x68] sm:$0xff]
      %v3478 = vld [vmem:[%s3463 + $0x70] sm:$0xff]
      %v3479 = vld [vmem:[%s3463 + $0x78] sm:$0xff]
      %v3480 = vld [vmem:[%s3463 + $0x80] sm:$0xff]
      %v3481 = vld [vmem:[%s3463 + $0x88] sm:$0xff]
      %v3482 = vld [vmem:[%s3463 + $0x90] sm:$0xff]
      %v3483 = vld [vmem:[%s3463 + $0x98] sm:$0xff]
      %v3484 = vld [vmem:[%s3463 + $0xa0] sm:$0xff]
      %v3485 = vld [vmem:[%s3463 + $0xa8] sm:$0xff]
      %v3486 = vld [vmem:[%s3463 + $0xb0] sm:$0xff]
      %v3487 = vld [vmem:[%s3463 + $0xb8] sm:$0xff]
      %v3488 = vld [vmem:[%s3463 + $0xc0] sm:$0xff]
      %v3489 = vld [vmem:[%s3463 + $0xc8] sm:$0xff]
      %v3490 = vld [vmem:[%s3463 + $0xd0] sm:$0xff]
      %v3491 = vld [vmem:[%s3463 + $0xd8] sm:$0xff]
      %v3492 = vld [vmem:[%s3463 + $0xe0] sm:$0xff]
      %v3493 = vld [vmem:[%s3463 + $0xe8] sm:$0xff]
      %v3494 = vld [vmem:[%s3463 + $0xf0] sm:$0xff]
      %v3495 = vld [vmem:[%s3463 + $0xf8] sm:$0xff]
      %v3496 = vpack.c.bf16 %v3337, %v3335
      %v3497 = vpack.c.bf16 %v3338, %v3336
      %v3498 = vpack.c.bf16 %v3341, %v3339
      %v3499 = vpack.c.bf16 %v3342, %v3340
      %v3500 = vpack.c.bf16 %v3345, %v3343
      %v3501 = vpack.c.bf16 %v3346, %v3344
      %v3502 = vpack.c.bf16 %v3349, %v3347
      %v3503 = vpack.c.bf16 %v3350, %v3348
      %v3504 = vpack.c.bf16 %v3353, %v3351
      %v3505 = vpack.c.bf16 %v3354, %v3352
      %v3506 = vpack.c.bf16 %v3357, %v3355
      %v3507 = vpack.c.bf16 %v3358, %v3356
      %v3508 = vpack.c.bf16 %v3361, %v3359
      %v3509 = vpack.c.bf16 %v3362, %v3360
      %v3510 = vpack.c.bf16 %v3365, %v3363
      %v3511 = vpack.c.bf16 %v3366, %v3364
      %v3512 = vpack.c.bf16 %v3369, %v3367
      %v3513 = vpack.c.bf16 %v3370, %v3368
      %v3514 = vpack.c.bf16 %v3373, %v3371
      %v3515 = vpack.c.bf16 %v3374, %v3372
      %v3516 = vpack.c.bf16 %v3377, %v3375
      %v3517 = vpack.c.bf16 %v3378, %v3376
      %v3518 = vpack.c.bf16 %v3381, %v3379
      %v3519 = vpack.c.bf16 %v3382, %v3380
      %v3520 = vpack.c.bf16 %v3385, %v3383
      %v3521 = vpack.c.bf16 %v3386, %v3384
      %v3522 = vpack.c.bf16 %v3389, %v3387
      %v3523 = vpack.c.bf16 %v3390, %v3388
      %v3524 = vpack.c.bf16 %v3393, %v3391
      %v3525 = vpack.c.bf16 %v3394, %v3392
      %v3526 = vpack.c.bf16 %v3397, %v3395
      %v3527 = vpack.c.bf16 %v3398, %v3396
      %v3528 = vpack.c.bf16 %v3401, %v3399
      %v3529 = vpack.c.bf16 %v3402, %v3400
      %v3530 = vpack.c.bf16 %v3405, %v3403
      %v3531 = vpack.c.bf16 %v3406, %v3404
      %v3532 = vpack.c.bf16 %v3409, %v3407
      %v3533 = vpack.c.bf16 %v3410, %v3408
      %v3534 = vpack.c.bf16 %v3413, %v3411
      %v3535 = vpack.c.bf16 %v3414, %v3412
      %v3536 = vpack.c.bf16 %v3417, %v3415
      %v3537 = vpack.c.bf16 %v3418, %v3416
      %v3538 = vpack.c.bf16 %v3421, %v3419
      %v3539 = vpack.c.bf16 %v3422, %v3420
      %v3540 = vpack.c.bf16 %v3425, %v3423
      %v3541 = vpack.c.bf16 %v3426, %v3424
      %v3542 = vpack.c.bf16 %v3429, %v3427
      %v3543 = vpack.c.bf16 %v3430, %v3428
      %v3544 = vpack.c.bf16 %v3433, %v3431
      %v3545 = vpack.c.bf16 %v3434, %v3432
      %v3546 = vpack.c.bf16 %v3437, %v3435
      %v3547 = vpack.c.bf16 %v3438, %v3436
      %v3548 = vpack.c.bf16 %v3441, %v3439
      %v3549 = vpack.c.bf16 %v3442, %v3440
      %v3550 = vpack.c.bf16 %v3445, %v3443
      %v3551 = vpack.c.bf16 %v3446, %v3444
      %v3552 = vpack.c.bf16 %v3449, %v3447
      %v3553 = vpack.c.bf16 %v3450, %v3448
      %v3554 = vpack.c.bf16 %v3453, %v3451
      %v3555 = vpack.c.bf16 %v3454, %v3452
      %v3556 = vpack.c.bf16 %v3457, %v3455
      %v3557 = vpack.c.bf16 %v3458, %v3456
      %v3558 = vpack.c.bf16 %v3461, %v3459
      %v3559 = vpack.c.bf16 %v3462, %v3460
      %v3560 = vld [vmem:[%s6 + $0x8] sm:$0x3]
      %v3562 = vlaneseq
      %v3563 = vshrl.u32 %v3562, 7
      %v3564 = vsub.s32 0, %v3563
      %v3565 = vrot.slane %v3560, %v3564
      %v3566 = vlaneseq
      %v3567 = vshrl.u32 %v3566, 7
      %v3568 = vsub.s32 1, %v3567
      %v3569 = vrot.slane %v3560, %v3568
      %v3604 = vunpack.c.l.b16 %v3464
      %v3605 = vunpack.c.h.b16 %v3464
      %v3606 = vunpack.c.l.b16 %v3465
      %v3607 = vunpack.c.h.b16 %v3465
      %v3608 = vunpack.c.l.b16 %v3466
      %v3609 = vunpack.c.h.b16 %v3466
      %v3610 = vunpack.c.l.b16 %v3467
      %v3611 = vunpack.c.h.b16 %v3467
      %v3612 = vunpack.c.l.b16 %v3468
      %v3613 = vunpack.c.h.b16 %v3468
      %v3614 = vunpack.c.l.b16 %v3469
      %v3615 = vunpack.c.h.b16 %v3469
      %v3616 = vunpack.c.l.b16 %v3470
      %v3617 = vunpack.c.h.b16 %v3470
      %v3618 = vunpack.c.l.b16 %v3471
      %v3619 = vunpack.c.h.b16 %v3471
      %v3620 = vunpack.c.l.b16 %v3472
      %v3621 = vunpack.c.h.b16 %v3472
      %v3622 = vunpack.c.l.b16 %v3473
      %v3623 = vunpack.c.h.b16 %v3473
      %v3624 = vunpack.c.l.b16 %v3474
      %v3625 = vunpack.c.h.b16 %v3474
      %v3626 = vunpack.c.l.b16 %v3475
      %v3627 = vunpack.c.h.b16 %v3475
      %v3628 = vunpack.c.l.b16 %v3476
      %v3629 = vunpack.c.h.b16 %v3476
      %v3630 = vunpack.c.l.b16 %v3477
      %v3631 = vunpack.c.h.b16 %v3477
      %v3632 = vunpack.c.l.b16 %v3478
      %v3633 = vunpack.c.h.b16 %v3478
      %v3634 = vunpack.c.l.b16 %v3479
      %v3635 = vunpack.c.h.b16 %v3479
      %v3636 = vunpack.c.l.b16 %v3480
      %v3637 = vunpack.c.h.b16 %v3480
      %v3638 = vunpack.c.l.b16 %v3481
      %v3639 = vunpack.c.h.b16 %v3481
      %v3640 = vunpack.c.l.b16 %v3482
      %v3641 = vunpack.c.h.b16 %v3482
      %v3642 = vunpack.c.l.b16 %v3483
      %v3643 = vunpack.c.h.b16 %v3483
      %v3644 = vunpack.c.l.b16 %v3484
      %v3645 = vunpack.c.h.b16 %v3484
      %v3646 = vunpack.c.l.b16 %v3485
      %v3647 = vunpack.c.h.b16 %v3485
      %v3648 = vunpack.c.l.b16 %v3486
      %v3649 = vunpack.c.h.b16 %v3486
      %v3650 = vunpack.c.l.b16 %v3487
      %v3651 = vunpack.c.h.b16 %v3487
      %v3652 = vunpack.c.l.b16 %v3488
      %v3653 = vunpack.c.h.b16 %v3488
      %v3654 = vunpack.c.l.b16 %v3489
      %v3655 = vunpack.c.h.b16 %v3489
      %v3656 = vunpack.c.l.b16 %v3490
      %v3657 = vunpack.c.h.b16 %v3490
      %v3658 = vunpack.c.l.b16 %v3491
      %v3659 = vunpack.c.h.b16 %v3491
      %v3660 = vunpack.c.l.b16 %v3492
      %v3661 = vunpack.c.h.b16 %v3492
      %v3662 = vunpack.c.l.b16 %v3493
      %v3663 = vunpack.c.h.b16 %v3493
      %v3664 = vunpack.c.l.b16 %v3494
      %v3665 = vunpack.c.h.b16 %v3494
      %v3666 = vunpack.c.l.b16 %v3495
      %v3667 = vunpack.c.h.b16 %v3495
      %v3668 = vpack.c.b16 %v3606, %v3604
      %v3669 = vpack.c.b16 %v3607, %v3605
      %v3670 = vpack.c.b16 %v3610, %v3608
      %v3671 = vpack.c.b16 %v3611, %v3609
      %v3672 = vpack.c.b16 %v3614, %v3612
      %v3673 = vpack.c.b16 %v3615, %v3613
      %v3674 = vpack.c.b16 %v3618, %v3616
      %v3675 = vpack.c.b16 %v3619, %v3617
      %v3676 = vpack.c.b16 %v3622, %v3620
      %v3677 = vpack.c.b16 %v3623, %v3621
      %v3678 = vpack.c.b16 %v3626, %v3624
      %v3679 = vpack.c.b16 %v3627, %v3625
      %v3680 = vpack.c.b16 %v3630, %v3628
      %v3681 = vpack.c.b16 %v3631, %v3629
      %v3682 = vpack.c.b16 %v3634, %v3632
      %v3683 = vpack.c.b16 %v3635, %v3633
      %v3684 = vpack.c.b16 %v3638, %v3636
      %v3685 = vpack.c.b16 %v3639, %v3637
      %v3686 = vpack.c.b16 %v3642, %v3640
      %v3687 = vpack.c.b16 %v3643, %v3641
      %v3688 = vpack.c.b16 %v3646, %v3644
      %v3689 = vpack.c.b16 %v3647, %v3645
      %v3690 = vpack.c.b16 %v3650, %v3648
      %v3691 = vpack.c.b16 %v3651, %v3649
      %v3692 = vpack.c.b16 %v3654, %v3652
      %v3693 = vpack.c.b16 %v3655, %v3653
      %v3694 = vpack.c.b16 %v3658, %v3656
      %v3695 = vpack.c.b16 %v3659, %v3657
      %v3696 = vpack.c.b16 %v3662, %v3660
      %v3697 = vpack.c.b16 %v3663, %v3661
      %v3698 = vpack.c.b16 %v3666, %v3664
      %v3699 = vpack.c.b16 %v3667, %v3665
      %3732 = vmatprep.subr.bf16.mxu0 %v3669
      %3733 = vmatpush1.bf16.msra.mxu0 %v3668
      %3734 = vmatprep.subr.bf16.mxu0 %v3671
      %3735 = vmatpush1.bf16.msra.mxu0 %v3670
      %3736 = vmatprep.subr.bf16.mxu0 %v3673
      %3737 = vmatpush1.bf16.msra.mxu0 %v3672
      %3738 = vmatprep.subr.bf16.mxu0 %v3675
      %3739 = vmatpush1.bf16.msra.mxu0 %v3674
      %3740 = vmatprep.subr.bf16.mxu0 %v3677
      %3741 = vmatpush1.bf16.msra.mxu0 %v3676
      %3742 = vmatprep.subr.bf16.mxu0 %v3679
      %3743 = vmatpush1.bf16.msra.mxu0 %v3678
      %3744 = vmatprep.subr.bf16.mxu0 %v3681
      %3745 = vmatpush1.bf16.msra.mxu0 %v3680
      %3746 = vmatprep.subr.bf16.mxu0 %v3683
      %3747 = vmatpush1.bf16.msra.mxu0 %v3682
      %3748 = vmatprep.subr.bf16.mxu0 %v3685
      %3749 = vmatpush1.bf16.msra.mxu0 %v3684
      %3750 = vmatprep.subr.bf16.mxu0 %v3687
      %3751 = vmatpush1.bf16.msra.mxu0 %v3686
      %3752 = vmatprep.subr.bf16.mxu0 %v3689
      %3753 = vmatpush1.bf16.msra.mxu0 %v3688
      %3754 = vmatprep.subr.bf16.mxu0 %v3691
      %3755 = vmatpush1.bf16.msra.mxu0 %v3690
      %3756 = vmatprep.subr.bf16.mxu0 %v3693
      %3757 = vmatpush1.bf16.msra.mxu0 %v3692
      %3758 = vmatprep.subr.bf16.mxu0 %v3695
      %3759 = vmatpush1.bf16.msra.mxu0 %v3694
      %3760 = vmatprep.subr.bf16.mxu0 %v3697
      %3761 = vmatpush1.bf16.msra.mxu0 %v3696
      %3762 = vmatprep.subr.bf16.mxu0 %v3699
      %3763 = vmatpush1.bf16.msra.mxu0 %v3698
      %3764 = vmatprep.mubr.bf16.mxu0 %v3497
      %3765 = vmatmul.mubr.bf16.gmra.mrb[0].mxu0 %v3496
      %v3766 = vpop.f32.mrb[0].mxu0
      %v3767 = vadd.f32 %v3565, %v3766
      %v3768 = vpop.f32.mrb[0].mxu0
      %v3769 = vadd.f32 %v3569, %v3768
      %v3770 = vpop.f32.mrb[0].mxu0
      %v3771 = vadd.f32 %v3565, %v3770
      %v3772 = vpop.f32.mrb[0].mxu0
      %v3773 = vadd.f32 %v3569, %v3772
      %3774 = vmatprep.mubr.bf16.mxu0 %v3499
      %3775 = vmatmul.mubr.bf16.gmra.mrb[0].mxu0 %v3498
      %v3776 = vpop.f32.mrb[0].mxu0
      %v3777 = vadd.f32 %v3565, %v3776
      %v3778 = vpop.f32.mrb[0].mxu0
      %v3779 = vadd.f32 %v3569, %v3778
      %v3780 = vpop.f32.mrb[0].mxu0
      %v3781 = vadd.f32 %v3565, %v3780
      %v3782 = vpop.f32.mrb[0].mxu0
      %v3783 = vadd.f32 %v3569, %v3782
      %3784 = vmatprep.mubr.bf16.mxu0 %v3501
      %3785 = vmatmul.mubr.bf16.gmra.mrb[0].mxu0 %v3500
      %v3786 = vpop.f32.mrb[0].mxu0
      %v3787 = vadd.f32 %v3565, %v3786
      %v3788 = vpop.f32.mrb[0].mxu0
      %v3789 = vadd.f32 %v3569, %v3788
      %v3790 = vpop.f32.mrb[0].mxu0
      %v3791 = vadd.f32 %v3565, %v3790
      %v3792 = vpop.f32.mrb[0].mxu0
      %v3793 = vadd.f32 %v3569, %v3792
      %3794 = vmatprep.mubr.bf16.mxu0 %v3503
      %3795 = vmatmul.mubr.bf16.gmra.mrb[0].mxu0 %v3502
      %v3796 = vpop.f32.mrb[0].mxu0
      %v3797 = vadd.f32 %v3565, %v3796
      %v3798 = vpop.f32.mrb[0].mxu0
      %v3799 = vadd.f32 %v3569, %v3798
      %v3800 = vpop.f32.mrb[0].mxu0
      %v3801 = vadd.f32 %v3565, %v3800
      %v3802 = vpop.f32.mrb[0].mxu0
      %v3803 = vadd.f32 %v3569, %v3802
      %3804 = vmatprep.mubr.bf16.mxu0 %v3505
      %3805 = vmatmul.mubr.bf16.gmra.mrb[0].mxu0 %v3504
      %v3806 = vpop.f32.mrb[0].mxu0
      %v3807 = vadd.f32 %v3565, %v3806
      %v3808 = vpop.f32.mrb[0].mxu0
      %v3809 = vadd.f32 %v3569, %v3808
      %v3810 = vpop.f32.mrb[0].mxu0
      %v3811 = vadd.f32 %v3565, %v3810
      %v3812 = vpop.f32.mrb[0].mxu0
      %v3813 = vadd.f32 %v3569, %v3812
      %3814 = vmatprep.mubr.bf16.mxu0 %v3507
      %3815 = vmatmul.mubr.bf16.gmra.mrb[0].mxu0 %v3506
      %v3816 = vpop.f32.mrb[0].mxu0
      %v3817 = vadd.f32 %v3565, %v3816
      %v3818 = vpop.f32.mrb[0].mxu0
      %v3819 = vadd.f32 %v3569, %v3818
      %v3820 = vpop.f32.mrb[0].mxu0
      %v3821 = vadd.f32 %v3565, %v3820
      %v3822 = vpop.f32.mrb[0].mxu0
      %v3823 = vadd.f32 %v3569, %v3822
      %3824 = vmatprep.mubr.bf16.mxu0 %v3509
      %3825 = vmatmul.mubr.bf16.gmra.mrb[0].mxu0 %v3508
      %v3826 = vpop.f32.mrb[0].mxu0
      %v3827 = vadd.f32 %v3565, %v3826
      %v3828 = vpop.f32.mrb[0].mxu0
      %v3829 = vadd.f32 %v3569, %v3828
      %v3830 = vpop.f32.mrb[0].mxu0
      %v3831 = vadd.f32 %v3565, %v3830
      %v3832 = vpop.f32.mrb[0].mxu0
      %v3833 = vadd.f32 %v3569, %v3832
      %3834 = vmatprep.mubr.bf16.mxu0 %v3511
      %3835 = vmatmul.mubr.bf16.gmra.mrb[0].mxu0 %v3510
      %v3836 = vpop.f32.mrb[0].mxu0
      %v3837 = vadd.f32 %v3565, %v3836
      %v3838 = vpop.f32.mrb[0].mxu0
      %v3839 = vadd.f32 %v3569, %v3838
      %v3840 = vpop.f32.mrb[0].mxu0
      %v3841 = vadd.f32 %v3565, %v3840
      %v3842 = vpop.f32.mrb[0].mxu0
      %v3843 = vadd.f32 %v3569, %v3842
      %3844 = vmatprep.mubr.bf16.mxu0 %v3513
      %3845 = vmatmul.mubr.bf16.gmra.mrb[0].mxu0 %v3512
      %v3846 = vpop.f32.mrb[0].mxu0
      %v3847 = vadd.f32 %v3565, %v3846
      %v3848 = vpop.f32.mrb[0].mxu0
      %v3849 = vadd.f32 %v3569, %v3848
      %v3850 = vpop.f32.mrb[0].mxu0
      %v3851 = vadd.f32 %v3565, %v3850
      %v3852 = vpop.f32.mrb[0].mxu0
      %v3853 = vadd.f32 %v3569, %v3852
      %3854 = vmatprep.mubr.bf16.mxu0 %v3515
      %3855 = vmatmul.mubr.bf16.gmra.mrb[0].mxu0 %v3514
      %v3856 = vpop.f32.mrb[0].mxu0
      %v3857 = vadd.f32 %v3565, %v3856
      %v3858 = vpop.f32.mrb[0].mxu0
      %v3859 = vadd.f32 %v3569, %v3858
      %v3860 = vpop.f32.mrb[0].mxu0
      %v3861 = vadd.f32 %v3565, %v3860
      %v3862 = vpop.f32.mrb[0].mxu0
      %v3863 = vadd.f32 %v3569, %v3862
      %3864 = vmatprep.mubr.bf16.mxu0 %v3517
      %3865 = vmatmul.mubr.bf16.gmra.mrb[0].mxu0 %v3516
      %v3866 = vpop.f32.mrb[0].mxu0
      %v3867 = vadd.f32 %v3565, %v3866
      %v3868 = vpop.f32.mrb[0].mxu0
      %v3869 = vadd.f32 %v3569, %v3868
      %v3870 = vpop.f32.mrb[0].mxu0
      %v3871 = vadd.f32 %v3565, %v3870
      %v3872 = vpop.f32.mrb[0].mxu0
      %v3873 = vadd.f32 %v3569, %v3872
      %3874 = vmatprep.mubr.bf16.mxu0 %v3519
      %3875 = vmatmul.mubr.bf16.gmra.mrb[0].mxu0 %v3518
      %v3876 = vpop.f32.mrb[0].mxu0
      %v3877 = vadd.f32 %v3565, %v3876
      %v3878 = vpop.f32.mrb[0].mxu0
      %v3879 = vadd.f32 %v3569, %v3878
      %v3880 = vpop.f32.mrb[0].mxu0
      %v3881 = vadd.f32 %v3565, %v3880
      %v3882 = vpop.f32.mrb[0].mxu0
      %v3883 = vadd.f32 %v3569, %v3882
      %3884 = vmatprep.mubr.bf16.mxu0 %v3521
      %3885 = vmatmul.mubr.bf16.gmra.mrb[0].mxu0 %v3520
      %v3886 = vpop.f32.mrb[0].mxu0
      %v3887 = vadd.f32 %v3565, %v3886
      %v3888 = vpop.f32.mrb[0].mxu0
      %v3889 = vadd.f32 %v3569, %v3888
      %v3890 = vpop.f32.mrb[0].mxu0
      %v3891 = vadd.f32 %v3565, %v3890
      %v3892 = vpop.f32.mrb[0].mxu0
      %v3893 = vadd.f32 %v3569, %v3892
      %3894 = vmatprep.mubr.bf16.mxu0 %v3523
      %3895 = vmatmul.mubr.bf16.gmra.mrb[0].mxu0 %v3522
      %v3896 = vpop.f32.mrb[0].mxu0
      %v3897 = vadd.f32 %v3565, %v3896
      %v3898 = vpop.f32.mrb[0].mxu0
      %v3899 = vadd.f32 %v3569, %v3898
      %v3900 = vpop.f32.mrb[0].mxu0
      %v3901 = vadd.f32 %v3565, %v3900
      %v3902 = vpop.f32.mrb[0].mxu0
      %v3903 = vadd.f32 %v3569, %v3902
      %3904 = vmatprep.mubr.bf16.mxu0 %v3525
      %3905 = vmatmul.mubr.bf16.gmra.mrb[0].mxu0 %v3524
      %v3906 = vpop.f32.mrb[0].mxu0
      %v3907 = vadd.f32 %v3565, %v3906
      %v3908 = vpop.f32.mrb[0].mxu0
      %v3909 = vadd.f32 %v3569, %v3908
      %v3910 = vpop.f32.mrb[0].mxu0
      %v3911 = vadd.f32 %v3565, %v3910
      %v3912 = vpop.f32.mrb[0].mxu0
      %v3913 = vadd.f32 %v3569, %v3912
      %3914 = vmatprep.mubr.bf16.mxu0 %v3527
      %3915 = vmatmul.mubr.bf16.gmra.mrb[0].mxu0 %v3526
      %v3916 = vpop.f32.mrb[0].mxu0
      %v3917 = vadd.f32 %v3565, %v3916
      %v3918 = vpop.f32.mrb[0].mxu0
      %v3919 = vadd.f32 %v3569, %v3918
      %v3920 = vpop.f32.mrb[0].mxu0
      %v3921 = vadd.f32 %v3565, %v3920
      %v3922 = vpop.f32.mrb[0].mxu0
      %v3923 = vadd.f32 %v3569, %v3922
      %3924 = vmatprep.mubr.bf16.mxu0 %v3529
      %3925 = vmatmul.mubr.bf16.gmra.mrb[0].mxu0 %v3528
      %v3926 = vpop.f32.mrb[0].mxu0
      %v3927 = vadd.f32 %v3565, %v3926
      %v3928 = vpop.f32.mrb[0].mxu0
      %v3929 = vadd.f32 %v3569, %v3928
      %v3930 = vpop.f32.mrb[0].mxu0
      %v3931 = vadd.f32 %v3565, %v3930
      %v3932 = vpop.f32.mrb[0].mxu0
      %v3933 = vadd.f32 %v3569, %v3932
      %3934 = vmatprep.mubr.bf16.mxu0 %v3531
      %3935 = vmatmul.mubr.bf16.gmra.mrb[0].mxu0 %v3530
      %v3936 = vpop.f32.mrb[0].mxu0
      %v3937 = vadd.f32 %v3565, %v3936
      %v3938 = vpop.f32.mrb[0].mxu0
      %v3939 = vadd.f32 %v3569, %v3938
      %v3940 = vpop.f32.mrb[0].mxu0
      %v3941 = vadd.f32 %v3565, %v3940
      %v3942 = vpop.f32.mrb[0].mxu0
      %v3943 = vadd.f32 %v3569, %v3942
      %3944 = vmatprep.mubr.bf16.mxu0 %v3533
      %3945 = vmatmul.mubr.bf16.gmra.mrb[0].mxu0 %v3532
      %v3946 = vpop.f32.mrb[0].mxu0
      %v3947 = vadd.f32 %v3565, %v3946
      %v3948 = vpop.f32.mrb[0].mxu0
      %v3949 = vadd.f32 %v3569, %v3948
      %v3950 = vpop.f32.mrb[0].mxu0
      %v3951 = vadd.f32 %v3565, %v3950
      %v3952 = vpop.f32.mrb[0].mxu0
      %v3953 = vadd.f32 %v3569, %v3952
      %3954 = vmatprep.mubr.bf16.mxu0 %v3535
      %3955 = vmatmul.mubr.bf16.gmra.mrb[0].mxu0 %v3534
      %v3956 = vpop.f32.mrb[0].mxu0
      %v3957 = vadd.f32 %v3565, %v3956
      %v3958 = vpop.f32.mrb[0].mxu0
      %v3959 = vadd.f32 %v3569, %v3958
      %v3960 = vpop.f32.mrb[0].mxu0
      %v3961 = vadd.f32 %v3565, %v3960
      %v3962 = vpop.f32.mrb[0].mxu0
      %v3963 = vadd.f32 %v3569, %v3962
      %3964 = vmatprep.mubr.bf16.mxu0 %v3537
      %3965 = vmatmul.mubr.bf16.gmra.mrb[0].mxu0 %v3536
      %v3966 = vpop.f32.mrb[0].mxu0
      %v3967 = vadd.f32 %v3565, %v3966
      %v3968 = vpop.f32.mrb[0].mxu0
      %v3969 = vadd.f32 %v3569, %v3968
      %v3970 = vpop.f32.mrb[0].mxu0
      %v3971 = vadd.f32 %v3565, %v3970
      %v3972 = vpop.f32.mrb[0].mxu0
      %v3973 = vadd.f32 %v3569, %v3972
      %3974 = vmatprep.mubr.bf16.mxu0 %v3539
      %3975 = vmatmul.mubr.bf16.gmra.mrb[0].mxu0 %v3538
      %v3976 = vpop.f32.mrb[0].mxu0
      %v3977 = vadd.f32 %v3565, %v3976
      %v3978 = vpop.f32.mrb[0].mxu0
      %v3979 = vadd.f32 %v3569, %v3978
      %v3980 = vpop.f32.mrb[0].mxu0
      %v3981 = vadd.f32 %v3565, %v3980
      %v3982 = vpop.f32.mrb[0].mxu0
      %v3983 = vadd.f32 %v3569, %v3982
      %3984 = vmatprep.mubr.bf16.mxu0 %v3541
      %3985 = vmatmul.mubr.bf16.gmra.mrb[0].mxu0 %v3540
      %v3986 = vpop.f32.mrb[0].mxu0
      %v3987 = vadd.f32 %v3565, %v3986
      %v3988 = vpop.f32.mrb[0].mxu0
      %v3989 = vadd.f32 %v3569, %v3988
      %v3990 = vpop.f32.mrb[0].mxu0
      %v3991 = vadd.f32 %v3565, %v3990
      %v3992 = vpop.f32.mrb[0].mxu0
      %v3993 = vadd.f32 %v3569, %v3992
      %3994 = vmatprep.mubr.bf16.mxu0 %v3543
      %3995 = vmatmul.mubr.bf16.gmra.mrb[0].mxu0 %v3542
      %v3996 = vpop.f32.mrb[0].mxu0
      %v3997 = vadd.f32 %v3565, %v3996
      %v3998 = vpop.f32.mrb[0].mxu0
      %v3999 = vadd.f32 %v3569, %v3998
      %v4000 = vpop.f32.mrb[0].mxu0
      %v4001 = vadd.f32 %v3565, %v4000
      %v4002 = vpop.f32.mrb[0].mxu0
      %v4003 = vadd.f32 %v3569, %v4002
      %4004 = vmatprep.mubr.bf16.mxu0 %v3545
      %4005 = vmatmul.mubr.bf16.gmra.mrb[0].mxu0 %v3544
      %v4006 = vpop.f32.mrb[0].mxu0
      %v4007 = vadd.f32 %v3565, %v4006
      %v4008 = vpop.f32.mrb[0].mxu0
      %v4009 = vadd.f32 %v3569, %v4008
      %v4010 = vpop.f32.mrb[0].mxu0
      %v4011 = vadd.f32 %v3565, %v4010
      %v4012 = vpop.f32.mrb[0].mxu0
      %v4013 = vadd.f32 %v3569, %v4012
      %4014 = vmatprep.mubr.bf16.mxu0 %v3547
      %4015 = vmatmul.mubr.bf16.gmra.mrb[0].mxu0 %v3546
      %v4016 = vpop.f32.mrb[0].mxu0
      %v4017 = vadd.f32 %v3565, %v4016
      %v4018 = vpop.f32.mrb[0].mxu0
      %v4019 = vadd.f32 %v3569, %v4018
      %v4020 = vpop.f32.mrb[0].mxu0
      %v4021 = vadd.f32 %v3565, %v4020
      %v4022 = vpop.f32.mrb[0].mxu0
      %v4023 = vadd.f32 %v3569, %v4022
      %4024 = vmatprep.mubr.bf16.mxu0 %v3549
      %4025 = vmatmul.mubr.bf16.gmra.mrb[0].mxu0 %v3548
      %v4026 = vpop.f32.mrb[0].mxu0
      %v4027 = vadd.f32 %v3565, %v4026
      %v4028 = vpop.f32.mrb[0].mxu0
      %v4029 = vadd.f32 %v3569, %v4028
      %v4030 = vpop.f32.mrb[0].mxu0
      %v4031 = vadd.f32 %v3565, %v4030
      %v4032 = vpop.f32.mrb[0].mxu0
      %v4033 = vadd.f32 %v3569, %v4032
      %4034 = vmatprep.mubr.bf16.mxu0 %v3551
      %4035 = vmatmul.mubr.bf16.gmra.mrb[0].mxu0 %v3550
      %v4036 = vpop.f32.mrb[0].mxu0
      %v4037 = vadd.f32 %v3565, %v4036
      %v4038 = vpop.f32.mrb[0].mxu0
      %v4039 = vadd.f32 %v3569, %v4038
      %v4040 = vpop.f32.mrb[0].mxu0
      %v4041 = vadd.f32 %v3565, %v4040
      %v4042 = vpop.f32.mrb[0].mxu0
      %v4043 = vadd.f32 %v3569, %v4042
      %4044 = vmatprep.mubr.bf16.mxu0 %v3553
      %4045 = vmatmul.mubr.bf16.gmra.mrb[0].mxu0 %v3552
      %v4046 = vpop.f32.mrb[0].mxu0
      %v4047 = vadd.f32 %v3565, %v4046
      %v4048 = vpop.f32.mrb[0].mxu0
      %v4049 = vadd.f32 %v3569, %v4048
      %v4050 = vpop.f32.mrb[0].mxu0
      %v4051 = vadd.f32 %v3565, %v4050
      %v4052 = vpop.f32.mrb[0].mxu0
      %v4053 = vadd.f32 %v3569, %v4052
      %4054 = vmatprep.mubr.bf16.mxu0 %v3555
      %4055 = vmatmul.mubr.bf16.gmra.mrb[0].mxu0 %v3554
      %v4056 = vpop.f32.mrb[0].mxu0
      %v4057 = vadd.f32 %v3565, %v4056
      %v4058 = vpop.f32.mrb[0].mxu0
      %v4059 = vadd.f32 %v3569, %v4058
      %v4060 = vpop.f32.mrb[0].mxu0
      %v4061 = vadd.f32 %v3565, %v4060
      %v4062 = vpop.f32.mrb[0].mxu0
      %v4063 = vadd.f32 %v3569, %v4062
      %4064 = vmatprep.mubr.bf16.mxu0 %v3557
      %4065 = vmatmul.mubr.bf16.gmra.mrb[0].mxu0 %v3556
      %v4066 = vpop.f32.mrb[0].mxu0
      %v4067 = vadd.f32 %v3565, %v4066
      %v4068 = vpop.f32.mrb[0].mxu0
      %v4069 = vadd.f32 %v3569, %v4068
      %v4070 = vpop.f32.mrb[0].mxu0
      %v4071 = vadd.f32 %v3565, %v4070
      %v4072 = vpop.f32.mrb[0].mxu0
      %v4073 = vadd.f32 %v3569, %v4072
      %4074 = vmatprep.mubr.bf16.mxu0 %v3559
      %4075 = vmatmul.mubr.bf16.gmra.mrb[0].mxu0 %v3558
      %v4076 = vpop.f32.mrb[0].mxu0
      %v4077 = vadd.f32 %v3565, %v4076
      %v4078 = vpop.f32.mrb[0].mxu0
      %v4079 = vadd.f32 %v3569, %v4078
      %v4080 = vpop.f32.mrb[0].mxu0
      %v4081 = vadd.f32 %v3565, %v4080
      %v4082 = vpop.f32.mrb[0].mxu0
      %v4083 = vadd.f32 %v3569, %v4082
      %4084 = vdwg.mxu0
      %v4085 = vmax.f32 %v3767, 0.0
      %v4086 = vmax.f32 %v3769, 0.0
      %v4087 = vmax.f32 %v3771, 0.0
      %v4088 = vmax.f32 %v3773, 0.0
      %v4089 = vmax.f32 %v3777, 0.0
      %v4090 = vmax.f32 %v3779, 0.0
      %v4091 = vmax.f32 %v3781, 0.0
      %v4092 = vmax.f32 %v3783, 0.0
      %v4093 = vmax.f32 %v3787, 0.0
      %v4094 = vmax.f32 %v3789, 0.0
      %v4095 = vmax.f32 %v3791, 0.0
      %v4096 = vmax.f32 %v3793, 0.0
      %v4097 = vmax.f32 %v3797, 0.0
      %v4098 = vmax.f32 %v3799, 0.0
      %v4099 = vmax.f32 %v3801, 0.0
      %v4100 = vmax.f32 %v3803, 0.0
      %v4101 = vmax.f32 %v3807, 0.0
      %v4102 = vmax.f32 %v3809, 0.0
      %v4103 = vmax.f32 %v3811, 0.0
      %v4104 = vmax.f32 %v3813, 0.0
      %v4105 = vmax.f32 %v3817, 0.0
      %v4106 = vmax.f32 %v3819, 0.0
      %v4107 = vmax.f32 %v3821, 0.0
      %v4108 = vmax.f32 %v3823, 0.0
      %v4109 = vmax.f32 %v3827, 0.0
      %v4110 = vmax.f32 %v3829, 0.0
      %v4111 = vmax.f32 %v3831, 0.0
      %v4112 = vmax.f32 %v3833, 0.0
      %v4113 = vmax.f32 %v3837, 0.0
      %v4114 = vmax.f32 %v3839, 0.0
      %v4115 = vmax.f32 %v3841, 0.0
      %v4116 = vmax.f32 %v3843, 0.0
      %v4117 = vmax.f32 %v3847, 0.0
      %v4118 = vmax.f32 %v3849, 0.0
      %v4119 = vmax.f32 %v3851, 0.0
      %v4120 = vmax.f32 %v3853, 0.0
      %v4121 = vmax.f32 %v3857, 0.0
      %v4122 = vmax.f32 %v3859, 0.0
      %v4123 = vmax.f32 %v3861, 0.0
      %v4124 = vmax.f32 %v3863, 0.0
      %v4125 = vmax.f32 %v3867, 0.0
      %v4126 = vmax.f32 %v3869, 0.0
      %v4127 = vmax.f32 %v3871, 0.0
      %v4128 = vmax.f32 %v3873, 0.0
      %v4129 = vmax.f32 %v3877, 0.0
      %v4130 = vmax.f32 %v3879, 0.0
      %v4131 = vmax.f32 %v3881, 0.0
      %v4132 = vmax.f32 %v3883, 0.0
      %v4133 = vmax.f32 %v3887, 0.0
      %v4134 = vmax.f32 %v3889, 0.0
      %v4135 = vmax.f32 %v3891, 0.0
      %v4136 = vmax.f32 %v3893, 0.0
      %v4137 = vmax.f32 %v3897, 0.0
      %v4138 = vmax.f32 %v3899, 0.0
      %v4139 = vmax.f32 %v3901, 0.0
      %v4140 = vmax.f32 %v3903, 0.0
      %v4141 = vmax.f32 %v3907, 0.0
      %v4142 = vmax.f32 %v3909, 0.0
      %v4143 = vmax.f32 %v3911, 0.0
      %v4144 = vmax.f32 %v3913, 0.0
      %v4145 = vmax.f32 %v3917, 0.0
      %v4146 = vmax.f32 %v3919, 0.0
      %v4147 = vmax.f32 %v3921, 0.0
      %v4148 = vmax.f32 %v3923, 0.0
      %v4149 = vmax.f32 %v3927, 0.0
      %v4150 = vmax.f32 %v3929, 0.0
      %v4151 = vmax.f32 %v3931, 0.0
      %v4152 = vmax.f32 %v3933, 0.0
      %v4153 = vmax.f32 %v3937, 0.0
      %v4154 = vmax.f32 %v3939, 0.0
      %v4155 = vmax.f32 %v3941, 0.0
      %v4156 = vmax.f32 %v3943, 0.0
      %v4157 = vmax.f32 %v3947, 0.0
      %v4158 = vmax.f32 %v3949, 0.0
      %v4159 = vmax.f32 %v3951, 0.0
      %v4160 = vmax.f32 %v3953, 0.0
      %v4161 = vmax.f32 %v3957, 0.0
      %v4162 = vmax.f32 %v3959, 0.0
      %v4163 = vmax.f32 %v3961, 0.0
      %v4164 = vmax.f32 %v3963, 0.0
      %v4165 = vmax.f32 %v3967, 0.0
      %v4166 = vmax.f32 %v3969, 0.0
      %v4167 = vmax.f32 %v3971, 0.0
      %v4168 = vmax.f32 %v3973, 0.0
      %v4169 = vmax.f32 %v3977, 0.0
      %v4170 = vmax.f32 %v3979, 0.0
      %v4171 = vmax.f32 %v3981, 0.0
      %v4172 = vmax.f32 %v3983, 0.0
      %v4173 = vmax.f32 %v3987, 0.0
      %v4174 = vmax.f32 %v3989, 0.0
      %v4175 = vmax.f32 %v3991, 0.0
      %v4176 = vmax.f32 %v3993, 0.0
      %v4177 = vmax.f32 %v3997, 0.0
      %v4178 = vmax.f32 %v3999, 0.0
      %v4179 = vmax.f32 %v4001, 0.0
      %v4180 = vmax.f32 %v4003, 0.0
      %v4181 = vmax.f32 %v4007, 0.0
      %v4182 = vmax.f32 %v4009, 0.0
      %v4183 = vmax.f32 %v4011, 0.0
      %v4184 = vmax.f32 %v4013, 0.0
      %v4185 = vmax.f32 %v4017, 0.0
      %v4186 = vmax.f32 %v4019, 0.0
      %v4187 = vmax.f32 %v4021, 0.0
      %v4188 = vmax.f32 %v4023, 0.0
      %v4189 = vmax.f32 %v4027, 0.0
      %v4190 = vmax.f32 %v4029, 0.0
      %v4191 = vmax.f32 %v4031, 0.0
      %v4192 = vmax.f32 %v4033, 0.0
      %v4193 = vmax.f32 %v4037, 0.0
      %v4194 = vmax.f32 %v4039, 0.0
      %v4195 = vmax.f32 %v4041, 0.0
      %v4196 = vmax.f32 %v4043, 0.0
      %v4197 = vmax.f32 %v4047, 0.0
      %v4198 = vmax.f32 %v4049, 0.0
      %v4199 = vmax.f32 %v4051, 0.0
      %v4200 = vmax.f32 %v4053, 0.0
      %v4201 = vmax.f32 %v4057, 0.0
      %v4202 = vmax.f32 %v4059, 0.0
      %v4203 = vmax.f32 %v4061, 0.0
      %v4204 = vmax.f32 %v4063, 0.0
      %v4205 = vmax.f32 %v4067, 0.0
      %v4206 = vmax.f32 %v4069, 0.0
      %v4207 = vmax.f32 %v4071, 0.0
      %v4208 = vmax.f32 %v4073, 0.0
      %v4209 = vmax.f32 %v4077, 0.0
      %v4210 = vmax.f32 %v4079, 0.0
      %v4211 = vmax.f32 %v4081, 0.0
      %v4212 = vmax.f32 %v4083, 0.0
      %s4213 = scalar_lea.vmem %s3, 1024
      %v4214 = vld [vmem:[%s4213] sm:$0xff]
      %v4215 = vld [vmem:[%s4213 + $0x8] sm:$0xff]
      %v4216 = vld [vmem:[%s4213 + $0x10] sm:$0xff]
      %v4217 = vld [vmem:[%s4213 + $0x18] sm:$0xff]
      %v4218 = vld [vmem:[%s4213 + $0x20] sm:$0xff]
      %v4219 = vld [vmem:[%s4213 + $0x28] sm:$0xff]
      %v4220 = vld [vmem:[%s4213 + $0x30] sm:$0xff]
      %v4221 = vld [vmem:[%s4213 + $0x38] sm:$0xff]
      %v4222 = vld [vmem:[%s4213 + $0x40] sm:$0xff]
      %v4223 = vld [vmem:[%s4213 + $0x48] sm:$0xff]
      %v4224 = vld [vmem:[%s4213 + $0x50] sm:$0xff]
      %v4225 = vld [vmem:[%s4213 + $0x58] sm:$0xff]
      %v4226 = vld [vmem:[%s4213 + $0x60] sm:$0xff]
      %v4227 = vld [vmem:[%s4213 + $0x68] sm:$0xff]
      %v4228 = vld [vmem:[%s4213 + $0x70] sm:$0xff]
      %v4229 = vld [vmem:[%s4213 + $0x78] sm:$0xff]
      %v4230 = vld [vmem:[%s4213 + $0x80] sm:$0xff]
      %v4231 = vld [vmem:[%s4213 + $0x88] sm:$0xff]
      %v4232 = vld [vmem:[%s4213 + $0x90] sm:$0xff]
      %v4233 = vld [vmem:[%s4213 + $0x98] sm:$0xff]
      %v4234 = vld [vmem:[%s4213 + $0xa0] sm:$0xff]
      %v4235 = vld [vmem:[%s4213 + $0xa8] sm:$0xff]
      %v4236 = vld [vmem:[%s4213 + $0xb0] sm:$0xff]
      %v4237 = vld [vmem:[%s4213 + $0xb8] sm:$0xff]
      %v4238 = vld [vmem:[%s4213 + $0xc0] sm:$0xff]
      %v4239 = vld [vmem:[%s4213 + $0xc8] sm:$0xff]
      %v4240 = vld [vmem:[%s4213 + $0xd0] sm:$0xff]
      %v4241 = vld [vmem:[%s4213 + $0xd8] sm:$0xff]
      %v4242 = vld [vmem:[%s4213 + $0xe0] sm:$0xff]
      %v4243 = vld [vmem:[%s4213 + $0xe8] sm:$0xff]
      %v4244 = vld [vmem:[%s4213 + $0xf0] sm:$0xff]
      %v4245 = vld [vmem:[%s4213 + $0xf8] sm:$0xff]
      %v4246 = vpack.c.bf16 %v4087, %v4085
      %v4247 = vpack.c.bf16 %v4088, %v4086
      %v4248 = vpack.c.bf16 %v4091, %v4089
      %v4249 = vpack.c.bf16 %v4092, %v4090
      %v4250 = vpack.c.bf16 %v4095, %v4093
      %v4251 = vpack.c.bf16 %v4096, %v4094
      %v4252 = vpack.c.bf16 %v4099, %v4097
      %v4253 = vpack.c.bf16 %v4100, %v4098
      %v4254 = vpack.c.bf16 %v4103, %v4101
      %v4255 = vpack.c.bf16 %v4104, %v4102
      %v4256 = vpack.c.bf16 %v4107, %v4105
      %v4257 = vpack.c.bf16 %v4108, %v4106
      %v4258 = vpack.c.bf16 %v4111, %v4109
      %v4259 = vpack.c.bf16 %v4112, %v4110
      %v4260 = vpack.c.bf16 %v4115, %v4113
      %v4261 = vpack.c.bf16 %v4116, %v4114
      %v4262 = vpack.c.bf16 %v4119, %v4117
      %v4263 = vpack.c.bf16 %v4120, %v4118
      %v4264 = vpack.c.bf16 %v4123, %v4121
      %v4265 = vpack.c.bf16 %v4124, %v4122
      %v4266 = vpack.c.bf16 %v4127, %v4125
      %v4267 = vpack.c.bf16 %v4128, %v4126
      %v4268 = vpack.c.bf16 %v4131, %v4129
      %v4269 = vpack.c.bf16 %v4132, %v4130
      %v4270 = vpack.c.bf16 %v4135, %v4133
      %v4271 = vpack.c.bf16 %v4136, %v4134
      %v4272 = vpack.c.bf16 %v4139, %v4137
      %v4273 = vpack.c.bf16 %v4140, %v4138
      %v4274 = vpack.c.bf16 %v4143, %v4141
      %v4275 = vpack.c.bf16 %v4144, %v4142
      %v4276 = vpack.c.bf16 %v4147, %v4145
      %v4277 = vpack.c.bf16 %v4148, %v4146
      %v4278 = vpack.c.bf16 %v4151, %v4149
      %v4279 = vpack.c.bf16 %v4152, %v4150
      %v4280 = vpack.c.bf16 %v4155, %v4153
      %v4281 = vpack.c.bf16 %v4156, %v4154
      %v4282 = vpack.c.bf16 %v4159, %v4157
      %v4283 = vpack.c.bf16 %v4160, %v4158
      %v4284 = vpack.c.bf16 %v4163, %v4161
      %v4285 = vpack.c.bf16 %v4164, %v4162
      %v4286 = vpack.c.bf16 %v4167, %v4165
      %v4287 = vpack.c.bf16 %v4168, %v4166
      %v4288 = vpack.c.bf16 %v4171, %v4169
      %v4289 = vpack.c.bf16 %v4172, %v4170
      %v4290 = vpack.c.bf16 %v4175, %v4173
      %v4291 = vpack.c.bf16 %v4176, %v4174
      %v4292 = vpack.c.bf16 %v4179, %v4177
      %v4293 = vpack.c.bf16 %v4180, %v4178
      %v4294 = vpack.c.bf16 %v4183, %v4181
      %v4295 = vpack.c.bf16 %v4184, %v4182
      %v4296 = vpack.c.bf16 %v4187, %v4185
      %v4297 = vpack.c.bf16 %v4188, %v4186
      %v4298 = vpack.c.bf16 %v4191, %v4189
      %v4299 = vpack.c.bf16 %v4192, %v4190
      %v4300 = vpack.c.bf16 %v4195, %v4193
      %v4301 = vpack.c.bf16 %v4196, %v4194
      %v4302 = vpack.c.bf16 %v4199, %v4197
      %v4303 = vpack.c.bf16 %v4200, %v4198
      %v4304 = vpack.c.bf16 %v4203, %v4201
      %v4305 = vpack.c.bf16 %v4204, %v4202
      %v4306 = vpack.c.bf16 %v4207, %v4205
      %v4307 = vpack.c.bf16 %v4208, %v4206
      %v4308 = vpack.c.bf16 %v4211, %v4209
      %v4309 = vpack.c.bf16 %v4212, %v4210
      %s4310 = scalar_lea.vmem %s2, 128
      %v4311 = vld [vmem:[%s4310] sm:$0xff]
      %v4312 = vld [vmem:[%s4310 + $0x8] sm:$0xff]
      %v4313 = vld [vmem:[%s4310 + $0x10] sm:$0xff]
      %v4314 = vld [vmem:[%s4310 + $0x18] sm:$0xff]
      %v4315 = vld [vmem:[%s4310 + $0x20] sm:$0xff]
      %v4316 = vld [vmem:[%s4310 + $0x28] sm:$0xff]
      %v4317 = vld [vmem:[%s4310 + $0x30] sm:$0xff]
      %v4318 = vld [vmem:[%s4310 + $0x38] sm:$0xff]
      %v4319 = vld [vmem:[%s4310 + $0x40] sm:$0xff]
      %v4320 = vld [vmem:[%s4310 + $0x48] sm:$0xff]
      %v4321 = vld [vmem:[%s4310 + $0x50] sm:$0xff]
      %v4322 = vld [vmem:[%s4310 + $0x58] sm:$0xff]
      %v4323 = vld [vmem:[%s4310 + $0x60] sm:$0xff]
      %v4324 = vld [vmem:[%s4310 + $0x68] sm:$0xff]
      %v4325 = vld [vmem:[%s4310 + $0x70] sm:$0xff]
      %v4326 = vld [vmem:[%s4310 + $0x78] sm:$0xff]
      %v4343 = vunpack.c.l.b16 %v4311
      %v4344 = vunpack.c.h.b16 %v4311
      %v4345 = vunpack.c.l.b16 %v4312
      %v4346 = vunpack.c.h.b16 %v4312
      %v4347 = vunpack.c.l.b16 %v4313
      %v4348 = vunpack.c.h.b16 %v4313
      %v4349 = vunpack.c.l.b16 %v4314
      %v4350 = vunpack.c.h.b16 %v4314
      %v4351 = vunpack.c.l.b16 %v4315
      %v4352 = vunpack.c.h.b16 %v4315
      %v4353 = vunpack.c.l.b16 %v4316
      %v4354 = vunpack.c.h.b16 %v4316
      %v4355 = vunpack.c.l.b16 %v4317
      %v4356 = vunpack.c.h.b16 %v4317
      %v4357 = vunpack.c.l.b16 %v4318
      %v4358 = vunpack.c.h.b16 %v4318
      %v4359 = vunpack.c.l.b16 %v4319
      %v4360 = vunpack.c.h.b16 %v4319
      %v4361 = vunpack.c.l.b16 %v4320
      %v4362 = vunpack.c.h.b16 %v4320
      %v4363 = vunpack.c.l.b16 %v4321
      %v4364 = vunpack.c.h.b16 %v4321
      %v4365 = vunpack.c.l.b16 %v4322
      %v4366 = vunpack.c.h.b16 %v4322
      %v4367 = vunpack.c.l.b16 %v4323
      %v4368 = vunpack.c.h.b16 %v4323
      %v4369 = vunpack.c.l.b16 %v4324
      %v4370 = vunpack.c.h.b16 %v4324
      %v4371 = vunpack.c.l.b16 %v4325
      %v4372 = vunpack.c.h.b16 %v4325
      %v4373 = vunpack.c.l.b16 %v4326
      %v4374 = vunpack.c.h.b16 %v4326
      %v4375 = vpack.c.b16 %v4345, %v4343
      %v4376 = vpack.c.b16 %v4346, %v4344
      %v4377 = vpack.c.b16 %v4349, %v4347
      %v4378 = vpack.c.b16 %v4350, %v4348
      %v4379 = vpack.c.b16 %v4353, %v4351
      %v4380 = vpack.c.b16 %v4354, %v4352
      %v4381 = vpack.c.b16 %v4357, %v4355
      %v4382 = vpack.c.b16 %v4358, %v4356
      %v4383 = vpack.c.b16 %v4361, %v4359
      %v4384 = vpack.c.b16 %v4362, %v4360
      %v4385 = vpack.c.b16 %v4365, %v4363
      %v4386 = vpack.c.b16 %v4366, %v4364
      %v4387 = vpack.c.b16 %v4369, %v4367
      %v4388 = vpack.c.b16 %v4370, %v4368
      %v4389 = vpack.c.b16 %v4373, %v4371
      %v4390 = vpack.c.b16 %v4374, %v4372
      %4407 = vmatprep.subr.bf16.mxu0 %v4376
      %4408 = vmatpush1.bf16.msra.mxu0 %v4375
      %4409 = vmatprep.subr.bf16.mxu0 %v4378
      %4410 = vmatpush1.bf16.msra.mxu0 %v4377
      %4411 = vmatprep.subr.bf16.mxu0 %v4380
      %4412 = vmatpush1.bf16.msra.mxu0 %v4379
      %4413 = vmatprep.subr.bf16.mxu0 %v4382
      %4414 = vmatpush1.bf16.msra.mxu0 %v4381
      %4415 = vmatprep.subr.bf16.mxu0 %v4384
      %4416 = vmatpush1.bf16.msra.mxu0 %v4383
      %4417 = vmatprep.subr.bf16.mxu0 %v4386
      %4418 = vmatpush1.bf16.msra.mxu0 %v4385
      %4419 = vmatprep.subr.bf16.mxu0 %v4388
      %4420 = vmatpush1.bf16.msra.mxu0 %v4387
      %4421 = vmatprep.subr.bf16.mxu0 %v4390
      %4422 = vmatpush1.bf16.msra.mxu0 %v4389
      %4423 = vmatprep.subr.bf16.mxu0 0
      %4424 = vmatpush1.bf16.msra.mxu0 0
      %4425 = vmatprep.subr.bf16.mxu0 0
      %4426 = vmatpush1.bf16.msra.mxu0 0
      %4427 = vmatprep.subr.bf16.mxu0 0
      %4428 = vmatpush1.bf16.msra.mxu0 0
      %4429 = vmatprep.subr.bf16.mxu0 0
      %4430 = vmatpush1.bf16.msra.mxu0 0
      %4431 = vmatprep.subr.bf16.mxu0 0
      %4432 = vmatpush1.bf16.msra.mxu0 0
      %4433 = vmatprep.subr.bf16.mxu0 0
      %4434 = vmatpush1.bf16.msra.mxu0 0
      %4435 = vmatprep.subr.bf16.mxu0 0
      %4436 = vmatpush1.bf16.msra.mxu0 0
      %4437 = vmatprep.subr.bf16.mxu0 0
      %4438 = vmatpush1.bf16.msra.mxu0 0
      %4439 = vmatprep.mubr.bf16.mxu0 0
      %4440 = vmatmul.mubr.bf16.gmra.mrb[0].mxu0 %v589
      %v4441 = vpop.f32.mrb[0].mxu0
      %v4442 = vadd.f32 0.0, %v4441
      %v4443 = vpop.f32.mrb[0].mxu0
      %v4444 = vadd.f32 0.0, %v4443
      %v4445 = vpop.f32.mrb[0].mxu0
      %v4446 = vadd.f32 0.0, %v4445
      %v4447 = vpop.f32.mrb[0].mxu0
      %v4448 = vadd.f32 0.0, %v4447
      %4449 = vmatprep.mubr.bf16.mxu0 0
      %4450 = vmatmul.mubr.bf16.gmra.mrb[0].mxu0 %v590
      %v4451 = vpop.f32.mrb[0].mxu0
      %v4452 = vadd.f32 0.0, %v4451
      %v4453 = vpop.f32.mrb[0].mxu0
      %v4454 = vadd.f32 0.0, %v4453
      %v4455 = vpop.f32.mrb[0].mxu0
      %v4456 = vadd.f32 0.0, %v4455
      %v4457 = vpop.f32.mrb[0].mxu0
      %v4458 = vadd.f32 0.0, %v4457
      %4459 = vmatprep.mubr.bf16.mxu0 0
      %4460 = vmatmul.mubr.bf16.gmra.mrb[0].mxu0 %v591
      %v4461 = vpop.f32.mrb[0].mxu0
      %v4462 = vadd.f32 0.0, %v4461
      %v4463 = vpop.f32.mrb[0].mxu0
      %v4464 = vadd.f32 0.0, %v4463
      %v4465 = vpop.f32.mrb[0].mxu0
      %v4466 = vadd.f32 0.0, %v4465
      %v4467 = vpop.f32.mrb[0].mxu0
      %v4468 = vadd.f32 0.0, %v4467
      %4469 = vmatprep.mubr.bf16.mxu0 0
      %4470 = vmatmul.mubr.bf16.gmra.mrb[0].mxu0 %v592
      %v4471 = vpop.f32.mrb[0].mxu0
      %v4472 = vadd.f32 0.0, %v4471
      %v4473 = vpop.f32.mrb[0].mxu0
      %v4474 = vadd.f32 0.0, %v4473
      %v4475 = vpop.f32.mrb[0].mxu0
      %v4476 = vadd.f32 0.0, %v4475
      %v4477 = vpop.f32.mrb[0].mxu0
      %v4478 = vadd.f32 0.0, %v4477
      %4479 = vmatprep.mubr.bf16.mxu0 0
      %4480 = vmatmul.mubr.bf16.gmra.mrb[0].mxu0 %v593
      %v4481 = vpop.f32.mrb[0].mxu0
      %v4482 = vadd.f32 0.0, %v4481
      %v4483 = vpop.f32.mrb[0].mxu0
      %v4484 = vadd.f32 0.0, %v4483
      %v4485 = vpop.f32.mrb[0].mxu0
      %v4486 = vadd.f32 0.0, %v4485
      %v4487 = vpop.f32.mrb[0].mxu0
      %v4488 = vadd.f32 0.0, %v4487
      %4489 = vmatprep.mubr.bf16.mxu0 0
      %4490 = vmatmul.mubr.bf16.gmra.mrb[0].mxu0 %v594
      %v4491 = vpop.f32.mrb[0].mxu0
      %v4492 = vadd.f32 0.0, %v4491
      %v4493 = vpop.f32.mrb[0].mxu0
      %v4494 = vadd.f32 0.0, %v4493
      %v4495 = vpop.f32.mrb[0].mxu0
      %v4496 = vadd.f32 0.0, %v4495
      %v4497 = vpop.f32.mrb[0].mxu0
      %v4498 = vadd.f32 0.0, %v4497
      %4499 = vmatprep.mubr.bf16.mxu0 0
      %4500 = vmatmul.mubr.bf16.gmra.mrb[0].mxu0 %v595
      %v4501 = vpop.f32.mrb[0].mxu0
      %v4502 = vadd.f32 0.0, %v4501
      %v4503 = vpop.f32.mrb[0].mxu0
      %v4504 = vadd.f32 0.0, %v4503
      %v4505 = vpop.f32.mrb[0].mxu0
      %v4506 = vadd.f32 0.0, %v4505
      %v4507 = vpop.f32.mrb[0].mxu0
      %v4508 = vadd.f32 0.0, %v4507
      %4509 = vmatprep.mubr.bf16.mxu0 0
      %4510 = vmatmul.mubr.bf16.gmra.mrb[0].mxu0 %v596
      %v4511 = vpop.f32.mrb[0].mxu0
      %v4512 = vadd.f32 0.0, %v4511
      %v4513 = vpop.f32.mrb[0].mxu0
      %v4514 = vadd.f32 0.0, %v4513
      %v4515 = vpop.f32.mrb[0].mxu0
      %v4516 = vadd.f32 0.0, %v4515
      %v4517 = vpop.f32.mrb[0].mxu0
      %v4518 = vadd.f32 0.0, %v4517
      %4519 = vmatprep.mubr.bf16.mxu0 0
      %4520 = vmatmul.mubr.bf16.gmra.mrb[0].mxu0 %v597
      %v4521 = vpop.f32.mrb[0].mxu0
      %v4522 = vadd.f32 0.0, %v4521
      %v4523 = vpop.f32.mrb[0].mxu0
      %v4524 = vadd.f32 0.0, %v4523
      %v4525 = vpop.f32.mrb[0].mxu0
      %v4526 = vadd.f32 0.0, %v4525
      %v4527 = vpop.f32.mrb[0].mxu0
      %v4528 = vadd.f32 0.0, %v4527
      %4529 = vmatprep.mubr.bf16.mxu0 0
      %4530 = vmatmul.mubr.bf16.gmra.mrb[0].mxu0 %v598
      %v4531 = vpop.f32.mrb[0].mxu0
      %v4532 = vadd.f32 0.0, %v4531
      %v4533 = vpop.f32.mrb[0].mxu0
      %v4534 = vadd.f32 0.0, %v4533
      %v4535 = vpop.f32.mrb[0].mxu0
      %v4536 = vadd.f32 0.0, %v4535
      %v4537 = vpop.f32.mrb[0].mxu0
      %v4538 = vadd.f32 0.0, %v4537
      %4539 = vmatprep.mubr.bf16.mxu0 0
      %4540 = vmatmul.mubr.bf16.gmra.mrb[0].mxu0 %v599
      %v4541 = vpop.f32.mrb[0].mxu0
      %v4542 = vadd.f32 0.0, %v4541
      %v4543 = vpop.f32.mrb[0].mxu0
      %v4544 = vadd.f32 0.0, %v4543
      %v4545 = vpop.f32.mrb[0].mxu0
      %v4546 = vadd.f32 0.0, %v4545
      %v4547 = vpop.f32.mrb[0].mxu0
      %v4548 = vadd.f32 0.0, %v4547
      %4549 = vmatprep.mubr.bf16.mxu0 0
      %4550 = vmatmul.mubr.bf16.gmra.mrb[0].mxu0 %v600
      %v4551 = vpop.f32.mrb[0].mxu0
      %v4552 = vadd.f32 0.0, %v4551
      %v4553 = vpop.f32.mrb[0].mxu0
      %v4554 = vadd.f32 0.0, %v4553
      %v4555 = vpop.f32.mrb[0].mxu0
      %v4556 = vadd.f32 0.0, %v4555
      %v4557 = vpop.f32.mrb[0].mxu0
      %v4558 = vadd.f32 0.0, %v4557
      %4559 = vmatprep.mubr.bf16.mxu0 0
      %4560 = vmatmul.mubr.bf16.gmra.mrb[0].mxu0 %v601
      %v4561 = vpop.f32.mrb[0].mxu0
      %v4562 = vadd.f32 0.0, %v4561
      %v4563 = vpop.f32.mrb[0].mxu0
      %v4564 = vadd.f32 0.0, %v4563
      %v4565 = vpop.f32.mrb[0].mxu0
      %v4566 = vadd.f32 0.0, %v4565
      %v4567 = vpop.f32.mrb[0].mxu0
      %v4568 = vadd.f32 0.0, %v4567
      %4569 = vmatprep.mubr.bf16.mxu0 0
      %4570 = vmatmul.mubr.bf16.gmra.mrb[0].mxu0 %v602
      %v4571 = vpop.f32.mrb[0].mxu0
      %v4572 = vadd.f32 0.0, %v4571
      %v4573 = vpop.f32.mrb[0].mxu0
      %v4574 = vadd.f32 0.0, %v4573
      %v4575 = vpop.f32.mrb[0].mxu0
      %v4576 = vadd.f32 0.0, %v4575
      %v4577 = vpop.f32.mrb[0].mxu0
      %v4578 = vadd.f32 0.0, %v4577
      %4579 = vmatprep.mubr.bf16.mxu0 0
      %4580 = vmatmul.mubr.bf16.gmra.mrb[0].mxu0 %v603
      %v4581 = vpop.f32.mrb[0].mxu0
      %v4582 = vadd.f32 0.0, %v4581
      %v4583 = vpop.f32.mrb[0].mxu0
      %v4584 = vadd.f32 0.0, %v4583
      %v4585 = vpop.f32.mrb[0].mxu0
      %v4586 = vadd.f32 0.0, %v4585
      %v4587 = vpop.f32.mrb[0].mxu0
      %v4588 = vadd.f32 0.0, %v4587
      %4589 = vmatprep.mubr.bf16.mxu0 0
      %4590 = vmatmul.mubr.bf16.gmra.mrb[0].mxu0 %v604
      %v4591 = vpop.f32.mrb[0].mxu0
      %v4592 = vadd.f32 0.0, %v4591
      %v4593 = vpop.f32.mrb[0].mxu0
      %v4594 = vadd.f32 0.0, %v4593
      %v4595 = vpop.f32.mrb[0].mxu0
      %v4596 = vadd.f32 0.0, %v4595
      %v4597 = vpop.f32.mrb[0].mxu0
      %v4598 = vadd.f32 0.0, %v4597
      %4599 = vmatprep.mubr.bf16.mxu0 0
      %4600 = vmatmul.mubr.bf16.gmra.mrb[0].mxu0 %v605
      %v4601 = vpop.f32.mrb[0].mxu0
      %v4602 = vadd.f32 0.0, %v4601
      %v4603 = vpop.f32.mrb[0].mxu0
      %v4604 = vadd.f32 0.0, %v4603
      %v4605 = vpop.f32.mrb[0].mxu0
      %v4606 = vadd.f32 0.0, %v4605
      %v4607 = vpop.f32.mrb[0].mxu0
      %v4608 = vadd.f32 0.0, %v4607
      %4609 = vmatprep.mubr.bf16.mxu0 0
      %4610 = vmatmul.mubr.bf16.gmra.mrb[0].mxu0 %v606
      %v4611 = vpop.f32.mrb[0].mxu0
      %v4612 = vadd.f32 0.0, %v4611
      %v4613 = vpop.f32.mrb[0].mxu0
      %v4614 = vadd.f32 0.0, %v4613
      %v4615 = vpop.f32.mrb[0].mxu0
      %v4616 = vadd.f32 0.0, %v4615
      %v4617 = vpop.f32.mrb[0].mxu0
      %v4618 = vadd.f32 0.0, %v4617
      %4619 = vmatprep.mubr.bf16.mxu0 0
      %4620 = vmatmul.mubr.bf16.gmra.mrb[0].mxu0 %v607
      %v4621 = vpop.f32.mrb[0].mxu0
      %v4622 = vadd.f32 0.0, %v4621
      %v4623 = vpop.f32.mrb[0].mxu0
      %v4624 = vadd.f32 0.0, %v4623
      %v4625 = vpop.f32.mrb[0].mxu0
      %v4626 = vadd.f32 0.0, %v4625
      %v4627 = vpop.f32.mrb[0].mxu0
      %v4628 = vadd.f32 0.0, %v4627
      %4629 = vmatprep.mubr.bf16.mxu0 0
      %4630 = vmatmul.mubr.bf16.gmra.mrb[0].mxu0 %v608
      %v4631 = vpop.f32.mrb[0].mxu0
      %v4632 = vadd.f32 0.0, %v4631
      %v4633 = vpop.f32.mrb[0].mxu0
      %v4634 = vadd.f32 0.0, %v4633
      %v4635 = vpop.f32.mrb[0].mxu0
      %v4636 = vadd.f32 0.0, %v4635
      %v4637 = vpop.f32.mrb[0].mxu0
      %v4638 = vadd.f32 0.0, %v4637
      %4639 = vmatprep.mubr.bf16.mxu0 0
      %4640 = vmatmul.mubr.bf16.gmra.mrb[0].mxu0 %v609
      %v4641 = vpop.f32.mrb[0].mxu0
      %v4642 = vadd.f32 0.0, %v4641
      %v4643 = vpop.f32.mrb[0].mxu0
      %v4644 = vadd.f32 0.0, %v4643
      %v4645 = vpop.f32.mrb[0].mxu0
      %v4646 = vadd.f32 0.0, %v4645
      %v4647 = vpop.f32.mrb[0].mxu0
      %v4648 = vadd.f32 0.0, %v4647
      %4649 = vmatprep.mubr.bf16.mxu0 0
      %4650 = vmatmul.mubr.bf16.gmra.mrb[0].mxu0 %v610
      %v4651 = vpop.f32.mrb[0].mxu0
      %v4652 = vadd.f32 0.0, %v4651
      %v4653 = vpop.f32.mrb[0].mxu0
      %v4654 = vadd.f32 0.0, %v4653
      %v4655 = vpop.f32.mrb[0].mxu0
      %v4656 = vadd.f32 0.0, %v4655
      %v4657 = vpop.f32.mrb[0].mxu0
      %v4658 = vadd.f32 0.0, %v4657
      %4659 = vmatprep.mubr.bf16.mxu0 0
      %4660 = vmatmul.mubr.bf16.gmra.mrb[0].mxu0 %v611
      %v4661 = vpop.f32.mrb[0].mxu0
      %v4662 = vadd.f32 0.0, %v4661
      %v4663 = vpop.f32.mrb[0].mxu0
      %v4664 = vadd.f32 0.0, %v4663
      %v4665 = vpop.f32.mrb[0].mxu0
      %v4666 = vadd.f32 0.0, %v4665
      %v4667 = vpop.f32.mrb[0].mxu0
      %v4668 = vadd.f32 0.0, %v4667
      %4669 = vmatprep.mubr.bf16.mxu0 0
      %4670 = vmatmul.mubr.bf16.gmra.mrb[0].mxu0 %v612
      %v4671 = vpop.f32.mrb[0].mxu0
      %v4672 = vadd.f32 0.0, %v4671
      %v4673 = vpop.f32.mrb[0].mxu0
      %v4674 = vadd.f32 0.0, %v4673
      %v4675 = vpop.f32.mrb[0].mxu0
      %v4676 = vadd.f32 0.0, %v4675
      %v4677 = vpop.f32.mrb[0].mxu0
      %v4678 = vadd.f32 0.0, %v4677
      %4679 = vmatprep.mubr.bf16.mxu0 0
      %4680 = vmatmul.mubr.bf16.gmra.mrb[0].mxu0 %v613
      %v4681 = vpop.f32.mrb[0].mxu0
      %v4682 = vadd.f32 0.0, %v4681
      %v4683 = vpop.f32.mrb[0].mxu0
      %v4684 = vadd.f32 0.0, %v4683
      %v4685 = vpop.f32.mrb[0].mxu0
      %v4686 = vadd.f32 0.0, %v4685
      %v4687 = vpop.f32.mrb[0].mxu0
      %v4688 = vadd.f32 0.0, %v4687
      %4689 = vmatprep.mubr.bf16.mxu0 0
      %4690 = vmatmul.mubr.bf16.gmra.mrb[0].mxu0 %v614
      %v4691 = vpop.f32.mrb[0].mxu0
      %v4692 = vadd.f32 0.0, %v4691
      %v4693 = vpop.f32.mrb[0].mxu0
      %v4694 = vadd.f32 0.0, %v4693
      %v4695 = vpop.f32.mrb[0].mxu0
      %v4696 = vadd.f32 0.0, %v4695
      %v4697 = vpop.f32.mrb[0].mxu0
      %v4698 = vadd.f32 0.0, %v4697
      %4699 = vmatprep.mubr.bf16.mxu0 0
      %4700 = vmatmul.mubr.bf16.gmra.mrb[0].mxu0 %v615
      %v4701 = vpop.f32.mrb[0].mxu0
      %v4702 = vadd.f32 0.0, %v4701
      %v4703 = vpop.f32.mrb[0].mxu0
      %v4704 = vadd.f32 0.0, %v4703
      %v4705 = vpop.f32.mrb[0].mxu0
      %v4706 = vadd.f32 0.0, %v4705
      %v4707 = vpop.f32.mrb[0].mxu0
      %v4708 = vadd.f32 0.0, %v4707
      %4709 = vmatprep.mubr.bf16.mxu0 0
      %4710 = vmatmul.mubr.bf16.gmra.mrb[0].mxu0 %v616
      %v4711 = vpop.f32.mrb[0].mxu0
      %v4712 = vadd.f32 0.0, %v4711
      %v4713 = vpop.f32.mrb[0].mxu0
      %v4714 = vadd.f32 0.0, %v4713
      %v4715 = vpop.f32.mrb[0].mxu0
      %v4716 = vadd.f32 0.0, %v4715
      %v4717 = vpop.f32.mrb[0].mxu0
      %v4718 = vadd.f32 0.0, %v4717
      %4719 = vmatprep.mubr.bf16.mxu0 0
      %4720 = vmatmul.mubr.bf16.gmra.mrb[0].mxu0 %v617
      %v4721 = vpop.f32.mrb[0].mxu0
      %v4722 = vadd.f32 0.0, %v4721
      %v4723 = vpop.f32.mrb[0].mxu0
      %v4724 = vadd.f32 0.0, %v4723
      %v4725 = vpop.f32.mrb[0].mxu0
      %v4726 = vadd.f32 0.0, %v4725
      %v4727 = vpop.f32.mrb[0].mxu0
      %v4728 = vadd.f32 0.0, %v4727
      %4729 = vmatprep.mubr.bf16.mxu0 0
      %4730 = vmatmul.mubr.bf16.gmra.mrb[0].mxu0 %v618
      %v4731 = vpop.f32.mrb[0].mxu0
      %v4732 = vadd.f32 0.0, %v4731
      %v4733 = vpop.f32.mrb[0].mxu0
      %v4734 = vadd.f32 0.0, %v4733
      %v4735 = vpop.f32.mrb[0].mxu0
      %v4736 = vadd.f32 0.0, %v4735
      %v4737 = vpop.f32.mrb[0].mxu0
      %v4738 = vadd.f32 0.0, %v4737
      %4739 = vmatprep.mubr.bf16.mxu0 0
      %4740 = vmatmul.mubr.bf16.gmra.mrb[0].mxu0 %v619
      %v4741 = vpop.f32.mrb[0].mxu0
      %v4742 = vadd.f32 0.0, %v4741
      %v4743 = vpop.f32.mrb[0].mxu0
      %v4744 = vadd.f32 0.0, %v4743
      %v4745 = vpop.f32.mrb[0].mxu0
      %v4746 = vadd.f32 0.0, %v4745
      %v4747 = vpop.f32.mrb[0].mxu0
      %v4748 = vadd.f32 0.0, %v4747
      %4749 = vmatprep.mubr.bf16.mxu0 0
      %4750 = vmatmul.mubr.bf16.gmra.mrb[0].mxu0 %v620
      %v4751 = vpop.f32.mrb[0].mxu0
      %v4752 = vadd.f32 0.0, %v4751
      %v4753 = vpop.f32.mrb[0].mxu0
      %v4754 = vadd.f32 0.0, %v4753
      %v4755 = vpop.f32.mrb[0].mxu0
      %v4756 = vadd.f32 0.0, %v4755
      %v4757 = vpop.f32.mrb[0].mxu0
      %v4758 = vadd.f32 0.0, %v4757
      %4759 = vdwg.mxu0
      %v4792 = vunpack.c.l.b16 %v4214
      %v4793 = vunpack.c.h.b16 %v4214
      %v4794 = vunpack.c.l.b16 %v4215
      %v4795 = vunpack.c.h.b16 %v4215
      %v4796 = vunpack.c.l.b16 %v4216
      %v4797 = vunpack.c.h.b16 %v4216
      %v4798 = vunpack.c.l.b16 %v4217
      %v4799 = vunpack.c.h.b16 %v4217
      %v4800 = vunpack.c.l.b16 %v4218
      %v4801 = vunpack.c.h.b16 %v4218
      %v4802 = vunpack.c.l.b16 %v4219
      %v4803 = vunpack.c.h.b16 %v4219
      %v4804 = vunpack.c.l.b16 %v4220
      %v4805 = vunpack.c.h.b16 %v4220
      %v4806 = vunpack.c.l.b16 %v4221
      %v4807 = vunpack.c.h.b16 %v4221
      %v4808 = vunpack.c.l.b16 %v4222
      %v4809 = vunpack.c.h.b16 %v4222
      %v4810 = vunpack.c.l.b16 %v4223
      %v4811 = vunpack.c.h.b16 %v4223
      %v4812 = vunpack.c.l.b16 %v4224
      %v4813 = vunpack.c.h.b16 %v4224
      %v4814 = vunpack.c.l.b16 %v4225
      %v4815 = vunpack.c.h.b16 %v4225
      %v4816 = vunpack.c.l.b16 %v4226
      %v4817 = vunpack.c.h.b16 %v4226
      %v4818 = vunpack.c.l.b16 %v4227
      %v4819 = vunpack.c.h.b16 %v4227
      %v4820 = vunpack.c.l.b16 %v4228
      %v4821 = vunpack.c.h.b16 %v4228
      %v4822 = vunpack.c.l.b16 %v4229
      %v4823 = vunpack.c.h.b16 %v4229
      %v4824 = vunpack.c.l.b16 %v4230
      %v4825 = vunpack.c.h.b16 %v4230
      %v4826 = vunpack.c.l.b16 %v4231
      %v4827 = vunpack.c.h.b16 %v4231
      %v4828 = vunpack.c.l.b16 %v4232
      %v4829 = vunpack.c.h.b16 %v4232
      %v4830 = vunpack.c.l.b16 %v4233
      %v4831 = vunpack.c.h.b16 %v4233
      %v4832 = vunpack.c.l.b16 %v4234
      %v4833 = vunpack.c.h.b16 %v4234
      %v4834 = vunpack.c.l.b16 %v4235
      %v4835 = vunpack.c.h.b16 %v4235
      %v4836 = vunpack.c.l.b16 %v4236
      %v4837 = vunpack.c.h.b16 %v4236
      %v4838 = vunpack.c.l.b16 %v4237
      %v4839 = vunpack.c.h.b16 %v4237
      %v4840 = vunpack.c.l.b16 %v4238
      %v4841 = vunpack.c.h.b16 %v4238
      %v4842 = vunpack.c.l.b16 %v4239
      %v4843 = vunpack.c.h.b16 %v4239
      %v4844 = vunpack.c.l.b16 %v4240
      %v4845 = vunpack.c.h.b16 %v4240
      %v4846 = vunpack.c.l.b16 %v4241
      %v4847 = vunpack.c.h.b16 %v4241
      %v4848 = vunpack.c.l.b16 %v4242
      %v4849 = vunpack.c.h.b16 %v4242
      %v4850 = vunpack.c.l.b16 %v4243
      %v4851 = vunpack.c.h.b16 %v4243
      %v4852 = vunpack.c.l.b16 %v4244
      %v4853 = vunpack.c.h.b16 %v4244
      %v4854 = vunpack.c.l.b16 %v4245
      %v4855 = vunpack.c.h.b16 %v4245
      %v4856 = vpack.c.b16 %v4794, %v4792
      %v4857 = vpack.c.b16 %v4795, %v4793
      %v4858 = vpack.c.b16 %v4798, %v4796
      %v4859 = vpack.c.b16 %v4799, %v4797
      %v4860 = vpack.c.b16 %v4802, %v4800
      %v4861 = vpack.c.b16 %v4803, %v4801
      %v4862 = vpack.c.b16 %v4806, %v4804
      %v4863 = vpack.c.b16 %v4807, %v4805
      %v4864 = vpack.c.b16 %v4810, %v4808
      %v4865 = vpack.c.b16 %v4811, %v4809
      %v4866 = vpack.c.b16 %v4814, %v4812
      %v4867 = vpack.c.b16 %v4815, %v4813
      %v4868 = vpack.c.b16 %v4818, %v4816
      %v4869 = vpack.c.b16 %v4819, %v4817
      %v4870 = vpack.c.b16 %v4822, %v4820
      %v4871 = vpack.c.b16 %v4823, %v4821
      %v4872 = vpack.c.b16 %v4826, %v4824
      %v4873 = vpack.c.b16 %v4827, %v4825
      %v4874 = vpack.c.b16 %v4830, %v4828
      %v4875 = vpack.c.b16 %v4831, %v4829
      %v4876 = vpack.c.b16 %v4834, %v4832
      %v4877 = vpack.c.b16 %v4835, %v4833
      %v4878 = vpack.c.b16 %v4838, %v4836
      %v4879 = vpack.c.b16 %v4839, %v4837
      %v4880 = vpack.c.b16 %v4842, %v4840
      %v4881 = vpack.c.b16 %v4843, %v4841
      %v4882 = vpack.c.b16 %v4846, %v4844
      %v4883 = vpack.c.b16 %v4847, %v4845
      %v4884 = vpack.c.b16 %v4850, %v4848
      %v4885 = vpack.c.b16 %v4851, %v4849
      %v4886 = vpack.c.b16 %v4854, %v4852
      %v4887 = vpack.c.b16 %v4855, %v4853
      %4920 = vmatprep.subr.bf16.mxu0 %v4857
      %4921 = vmatpush1.bf16.msra.mxu0 %v4856
      %4922 = vmatprep.subr.bf16.mxu0 %v4859
      %4923 = vmatpush1.bf16.msra.mxu0 %v4858
      %4924 = vmatprep.subr.bf16.mxu0 %v4861
      %4925 = vmatpush1.bf16.msra.mxu0 %v4860
      %4926 = vmatprep.subr.bf16.mxu0 %v4863
      %4927 = vmatpush1.bf16.msra.mxu0 %v4862
      %4928 = vmatprep.subr.bf16.mxu0 %v4865
      %4929 = vmatpush1.bf16.msra.mxu0 %v4864
      %4930 = vmatprep.subr.bf16.mxu0 %v4867
      %4931 = vmatpush1.bf16.msra.mxu0 %v4866
      %4932 = vmatprep.subr.bf16.mxu0 %v4869
      %4933 = vmatpush1.bf16.msra.mxu0 %v4868
      %4934 = vmatprep.subr.bf16.mxu0 %v4871
      %4935 = vmatpush1.bf16.msra.mxu0 %v4870
      %4936 = vmatprep.subr.bf16.mxu0 %v4873
      %4937 = vmatpush1.bf16.msra.mxu0 %v4872
      %4938 = vmatprep.subr.bf16.mxu0 %v4875
      %4939 = vmatpush1.bf16.msra.mxu0 %v4874
      %4940 = vmatprep.subr.bf16.mxu0 %v4877
      %4941 = vmatpush1.bf16.msra.mxu0 %v4876
      %4942 = vmatprep.subr.bf16.mxu0 %v4879
      %4943 = vmatpush1.bf16.msra.mxu0 %v4878
      %4944 = vmatprep.subr.bf16.mxu0 %v4881
      %4945 = vmatpush1.bf16.msra.mxu0 %v4880
      %4946 = vmatprep.subr.bf16.mxu0 %v4883
      %4947 = vmatpush1.bf16.msra.mxu0 %v4882
      %4948 = vmatprep.subr.bf16.mxu0 %v4885
      %4949 = vmatpush1.bf16.msra.mxu0 %v4884
      %4950 = vmatprep.subr.bf16.mxu0 %v4887
      %4951 = vmatpush1.bf16.msra.mxu0 %v4886
      %4952 = vmatprep.mubr.bf16.mxu0 %v4247
      %4953 = vmatmul.mubr.bf16.gmra.mrb[0].mxu0 %v4246
      %v4954 = vpop.f32.mrb[0].mxu0
      %v4955 = vadd.f32 %v4442, %v4954
      %v4956 = vpop.f32.mrb[0].mxu0
      %v4957 = vadd.f32 %v4444, %v4956
      %v4958 = vpop.f32.mrb[0].mxu0
      %v4959 = vadd.f32 %v4446, %v4958
      %v4960 = vpop.f32.mrb[0].mxu0
      %v4961 = vadd.f32 %v4448, %v4960
      %4962 = vmatprep.mubr.bf16.mxu0 %v4249
      %4963 = vmatmul.mubr.bf16.gmra.mrb[0].mxu0 %v4248
      %v4964 = vpop.f32.mrb[0].mxu0
      %v4965 = vadd.f32 %v4452, %v4964
      %v4966 = vpop.f32.mrb[0].mxu0
      %v4967 = vadd.f32 %v4454, %v4966
      %v4968 = vpop.f32.mrb[0].mxu0
      %v4969 = vadd.f32 %v4456, %v4968
      %v4970 = vpop.f32.mrb[0].mxu0
      %v4971 = vadd.f32 %v4458, %v4970
      %4972 = vmatprep.mubr.bf16.mxu0 %v4251
      %4973 = vmatmul.mubr.bf16.gmra.mrb[0].mxu0 %v4250
      %v4974 = vpop.f32.mrb[0].mxu0
      %v4975 = vadd.f32 %v4462, %v4974
      %v4976 = vpop.f32.mrb[0].mxu0
      %v4977 = vadd.f32 %v4464, %v4976
      %v4978 = vpop.f32.mrb[0].mxu0
      %v4979 = vadd.f32 %v4466, %v4978
      %v4980 = vpop.f32.mrb[0].mxu0
      %v4981 = vadd.f32 %v4468, %v4980
      %4982 = vmatprep.mubr.bf16.mxu0 %v4253
      %4983 = vmatmul.mubr.bf16.gmra.mrb[0].mxu0 %v4252
      %v4984 = vpop.f32.mrb[0].mxu0
      %v4985 = vadd.f32 %v4472, %v4984
      %v4986 = vpop.f32.mrb[0].mxu0
      %v4987 = vadd.f32 %v4474, %v4986
      %v4988 = vpop.f32.mrb[0].mxu0
      %v4989 = vadd.f32 %v4476, %v4988
      %v4990 = vpop.f32.mrb[0].mxu0
      %v4991 = vadd.f32 %v4478, %v4990
      %4992 = vmatprep.mubr.bf16.mxu0 %v4255
      %4993 = vmatmul.mubr.bf16.gmra.mrb[0].mxu0 %v4254
      %v4994 = vpop.f32.mrb[0].mxu0
      %v4995 = vadd.f32 %v4482, %v4994
      %v4996 = vpop.f32.mrb[0].mxu0
      %v4997 = vadd.f32 %v4484, %v4996
      %v4998 = vpop.f32.mrb[0].mxu0
      %v4999 = vadd.f32 %v4486, %v4998
      %v5000 = vpop.f32.mrb[0].mxu0
      %v5001 = vadd.f32 %v4488, %v5000
      %5002 = vmatprep.mubr.bf16.mxu0 %v4257
      %5003 = vmatmul.mubr.bf16.gmra.mrb[0].mxu0 %v4256
      %v5004 = vpop.f32.mrb[0].mxu0
      %v5005 = vadd.f32 %v4492, %v5004
      %v5006 = vpop.f32.mrb[0].mxu0
      %v5007 = vadd.f32 %v4494, %v5006
      %v5008 = vpop.f32.mrb[0].mxu0
      %v5009 = vadd.f32 %v4496, %v5008
      %v5010 = vpop.f32.mrb[0].mxu0
      %v5011 = vadd.f32 %v4498, %v5010
      %5012 = vmatprep.mubr.bf16.mxu0 %v4259
      %5013 = vmatmul.mubr.bf16.gmra.mrb[0].mxu0 %v4258
      %v5014 = vpop.f32.mrb[0].mxu0
      %v5015 = vadd.f32 %v4502, %v5014
      %v5016 = vpop.f32.mrb[0].mxu0
      %v5017 = vadd.f32 %v4504, %v5016
      %v5018 = vpop.f32.mrb[0].mxu0
      %v5019 = vadd.f32 %v4506, %v5018
      %v5020 = vpop.f32.mrb[0].mxu0
      %v5021 = vadd.f32 %v4508, %v5020
      %5022 = vmatprep.mubr.bf16.mxu0 %v4261
      %5023 = vmatmul.mubr.bf16.gmra.mrb[0].mxu0 %v4260
      %v5024 = vpop.f32.mrb[0].mxu0
      %v5025 = vadd.f32 %v4512, %v5024
      %v5026 = vpop.f32.mrb[0].mxu0
      %v5027 = vadd.f32 %v4514, %v5026
      %v5028 = vpop.f32.mrb[0].mxu0
      %v5029 = vadd.f32 %v4516, %v5028
      %v5030 = vpop.f32.mrb[0].mxu0
      %v5031 = vadd.f32 %v4518, %v5030
      %5032 = vmatprep.mubr.bf16.mxu0 %v4263
      %5033 = vmatmul.mubr.bf16.gmra.mrb[0].mxu0 %v4262
      %v5034 = vpop.f32.mrb[0].mxu0
      %v5035 = vadd.f32 %v4522, %v5034
      %v5036 = vpop.f32.mrb[0].mxu0
      %v5037 = vadd.f32 %v4524, %v5036
      %v5038 = vpop.f32.mrb[0].mxu0
      %v5039 = vadd.f32 %v4526, %v5038
      %v5040 = vpop.f32.mrb[0].mxu0
      %v5041 = vadd.f32 %v4528, %v5040
      %5042 = vmatprep.mubr.bf16.mxu0 %v4265
      %5043 = vmatmul.mubr.bf16.gmra.mrb[0].mxu0 %v4264
      %v5044 = vpop.f32.mrb[0].mxu0
      %v5045 = vadd.f32 %v4532, %v5044
      %v5046 = vpop.f32.mrb[0].mxu0
      %v5047 = vadd.f32 %v4534, %v5046
      %v5048 = vpop.f32.mrb[0].mxu0
      %v5049 = vadd.f32 %v4536, %v5048
      %v5050 = vpop.f32.mrb[0].mxu0
      %v5051 = vadd.f32 %v4538, %v5050
      %5052 = vmatprep.mubr.bf16.mxu0 %v4267
      %5053 = vmatmul.mubr.bf16.gmra.mrb[0].mxu0 %v4266
      %v5054 = vpop.f32.mrb[0].mxu0
      %v5055 = vadd.f32 %v4542, %v5054
      %v5056 = vpop.f32.mrb[0].mxu0
      %v5057 = vadd.f32 %v4544, %v5056
      %v5058 = vpop.f32.mrb[0].mxu0
      %v5059 = vadd.f32 %v4546, %v5058
      %v5060 = vpop.f32.mrb[0].mxu0
      %v5061 = vadd.f32 %v4548, %v5060
      %5062 = vmatprep.mubr.bf16.mxu0 %v4269
      %5063 = vmatmul.mubr.bf16.gmra.mrb[0].mxu0 %v4268
      %v5064 = vpop.f32.mrb[0].mxu0
      %v5065 = vadd.f32 %v4552, %v5064
      %v5066 = vpop.f32.mrb[0].mxu0
      %v5067 = vadd.f32 %v4554, %v5066
      %v5068 = vpop.f32.mrb[0].mxu0
      %v5069 = vadd.f32 %v4556, %v5068
      %v5070 = vpop.f32.mrb[0].mxu0
      %v5071 = vadd.f32 %v4558, %v5070
      %5072 = vmatprep.mubr.bf16.mxu0 %v4271
      %5073 = vmatmul.mubr.bf16.gmra.mrb[0].mxu0 %v4270
      %v5074 = vpop.f32.mrb[0].mxu0
      %v5075 = vadd.f32 %v4562, %v5074
      %v5076 = vpop.f32.mrb[0].mxu0
      %v5077 = vadd.f32 %v4564, %v5076
      %v5078 = vpop.f32.mrb[0].mxu0
      %v5079 = vadd.f32 %v4566, %v5078
      %v5080 = vpop.f32.mrb[0].mxu0
      %v5081 = vadd.f32 %v4568, %v5080
      %5082 = vmatprep.mubr.bf16.mxu0 %v4273
      %5083 = vmatmul.mubr.bf16.gmra.mrb[0].mxu0 %v4272
      %v5084 = vpop.f32.mrb[0].mxu0
      %v5085 = vadd.f32 %v4572, %v5084
      %v5086 = vpop.f32.mrb[0].mxu0
      %v5087 = vadd.f32 %v4574, %v5086
      %v5088 = vpop.f32.mrb[0].mxu0
      %v5089 = vadd.f32 %v4576, %v5088
      %v5090 = vpop.f32.mrb[0].mxu0
      %v5091 = vadd.f32 %v4578, %v5090
      %5092 = vmatprep.mubr.bf16.mxu0 %v4275
      %5093 = vmatmul.mubr.bf16.gmra.mrb[0].mxu0 %v4274
      %v5094 = vpop.f32.mrb[0].mxu0
      %v5095 = vadd.f32 %v4582, %v5094
      %v5096 = vpop.f32.mrb[0].mxu0
      %v5097 = vadd.f32 %v4584, %v5096
      %v5098 = vpop.f32.mrb[0].mxu0
      %v5099 = vadd.f32 %v4586, %v5098
      %v5100 = vpop.f32.mrb[0].mxu0
      %v5101 = vadd.f32 %v4588, %v5100
      %5102 = vmatprep.mubr.bf16.mxu0 %v4277
      %5103 = vmatmul.mubr.bf16.gmra.mrb[0].mxu0 %v4276
      %v5104 = vpop.f32.mrb[0].mxu0
      %v5105 = vadd.f32 %v4592, %v5104
      %v5106 = vpop.f32.mrb[0].mxu0
      %v5107 = vadd.f32 %v4594, %v5106
      %v5108 = vpop.f32.mrb[0].mxu0
      %v5109 = vadd.f32 %v4596, %v5108
      %v5110 = vpop.f32.mrb[0].mxu0
      %v5111 = vadd.f32 %v4598, %v5110
      %5112 = vmatprep.mubr.bf16.mxu0 %v4279
      %5113 = vmatmul.mubr.bf16.gmra.mrb[0].mxu0 %v4278
      %v5114 = vpop.f32.mrb[0].mxu0
      %v5115 = vadd.f32 %v4602, %v5114
      %v5116 = vpop.f32.mrb[0].mxu0
      %v5117 = vadd.f32 %v4604, %v5116
      %v5118 = vpop.f32.mrb[0].mxu0
      %v5119 = vadd.f32 %v4606, %v5118
      %v5120 = vpop.f32.mrb[0].mxu0
      %v5121 = vadd.f32 %v4608, %v5120
      %5122 = vmatprep.mubr.bf16.mxu0 %v4281
      %5123 = vmatmul.mubr.bf16.gmra.mrb[0].mxu0 %v4280
      %v5124 = vpop.f32.mrb[0].mxu0
      %v5125 = vadd.f32 %v4612, %v5124
      %v5126 = vpop.f32.mrb[0].mxu0
      %v5127 = vadd.f32 %v4614, %v5126
      %v5128 = vpop.f32.mrb[0].mxu0
      %v5129 = vadd.f32 %v4616, %v5128
      %v5130 = vpop.f32.mrb[0].mxu0
      %v5131 = vadd.f32 %v4618, %v5130
      %5132 = vmatprep.mubr.bf16.mxu0 %v4283
      %5133 = vmatmul.mubr.bf16.gmra.mrb[0].mxu0 %v4282
      %v5134 = vpop.f32.mrb[0].mxu0
      %v5135 = vadd.f32 %v4622, %v5134
      %v5136 = vpop.f32.mrb[0].mxu0
      %v5137 = vadd.f32 %v4624, %v5136
      %v5138 = vpop.f32.mrb[0].mxu0
      %v5139 = vadd.f32 %v4626, %v5138
      %v5140 = vpop.f32.mrb[0].mxu0
      %v5141 = vadd.f32 %v4628, %v5140
      %5142 = vmatprep.mubr.bf16.mxu0 %v4285
      %5143 = vmatmul.mubr.bf16.gmra.mrb[0].mxu0 %v4284
      %v5144 = vpop.f32.mrb[0].mxu0
      %v5145 = vadd.f32 %v4632, %v5144
      %v5146 = vpop.f32.mrb[0].mxu0
      %v5147 = vadd.f32 %v4634, %v5146
      %v5148 = vpop.f32.mrb[0].mxu0
      %v5149 = vadd.f32 %v4636, %v5148
      %v5150 = vpop.f32.mrb[0].mxu0
      %v5151 = vadd.f32 %v4638, %v5150
      %5152 = vmatprep.mubr.bf16.mxu0 %v4287
      %5153 = vmatmul.mubr.bf16.gmra.mrb[0].mxu0 %v4286
      %v5154 = vpop.f32.mrb[0].mxu0
      %v5155 = vadd.f32 %v4642, %v5154
      %v5156 = vpop.f32.mrb[0].mxu0
      %v5157 = vadd.f32 %v4644, %v5156
      %v5158 = vpop.f32.mrb[0].mxu0
      %v5159 = vadd.f32 %v4646, %v5158
      %v5160 = vpop.f32.mrb[0].mxu0
      %v5161 = vadd.f32 %v4648, %v5160
      %5162 = vmatprep.mubr.bf16.mxu0 %v4289
      %5163 = vmatmul.mubr.bf16.gmra.mrb[0].mxu0 %v4288
      %v5164 = vpop.f32.mrb[0].mxu0
      %v5165 = vadd.f32 %v4652, %v5164
      %v5166 = vpop.f32.mrb[0].mxu0
      %v5167 = vadd.f32 %v4654, %v5166
      %v5168 = vpop.f32.mrb[0].mxu0
      %v5169 = vadd.f32 %v4656, %v5168
      %v5170 = vpop.f32.mrb[0].mxu0
      %v5171 = vadd.f32 %v4658, %v5170
      %5172 = vmatprep.mubr.bf16.mxu0 %v4291
      %5173 = vmatmul.mubr.bf16.gmra.mrb[0].mxu0 %v4290
      %v5174 = vpop.f32.mrb[0].mxu0
      %v5175 = vadd.f32 %v4662, %v5174
      %v5176 = vpop.f32.mrb[0].mxu0
      %v5177 = vadd.f32 %v4664, %v5176
      %v5178 = vpop.f32.mrb[0].mxu0
      %v5179 = vadd.f32 %v4666, %v5178
      %v5180 = vpop.f32.mrb[0].mxu0
      %v5181 = vadd.f32 %v4668, %v5180
      %5182 = vmatprep.mubr.bf16.mxu0 %v4293
      %5183 = vmatmul.mubr.bf16.gmra.mrb[0].mxu0 %v4292
      %v5184 = vpop.f32.mrb[0].mxu0
      %v5185 = vadd.f32 %v4672, %v5184
      %v5186 = vpop.f32.mrb[0].mxu0
      %v5187 = vadd.f32 %v4674, %v5186
      %v5188 = vpop.f32.mrb[0].mxu0
      %v5189 = vadd.f32 %v4676, %v5188
      %v5190 = vpop.f32.mrb[0].mxu0
      %v5191 = vadd.f32 %v4678, %v5190
      %5192 = vmatprep.mubr.bf16.mxu0 %v4295
      %5193 = vmatmul.mubr.bf16.gmra.mrb[0].mxu0 %v4294
      %v5194 = vpop.f32.mrb[0].mxu0
      %v5195 = vadd.f32 %v4682, %v5194
      %v5196 = vpop.f32.mrb[0].mxu0
      %v5197 = vadd.f32 %v4684, %v5196
      %v5198 = vpop.f32.mrb[0].mxu0
      %v5199 = vadd.f32 %v4686, %v5198
      %v5200 = vpop.f32.mrb[0].mxu0
      %v5201 = vadd.f32 %v4688, %v5200
      %5202 = vmatprep.mubr.bf16.mxu0 %v4297
      %5203 = vmatmul.mubr.bf16.gmra.mrb[0].mxu0 %v4296
      %v5204 = vpop.f32.mrb[0].mxu0
      %v5205 = vadd.f32 %v4692, %v5204
      %v5206 = vpop.f32.mrb[0].mxu0
      %v5207 = vadd.f32 %v4694, %v5206
      %v5208 = vpop.f32.mrb[0].mxu0
      %v5209 = vadd.f32 %v4696, %v5208
      %v5210 = vpop.f32.mrb[0].mxu0
      %v5211 = vadd.f32 %v4698, %v5210
      %5212 = vmatprep.mubr.bf16.mxu0 %v4299
      %5213 = vmatmul.mubr.bf16.gmra.mrb[0].mxu0 %v4298
      %v5214 = vpop.f32.mrb[0].mxu0
      %v5215 = vadd.f32 %v4702, %v5214
      %v5216 = vpop.f32.mrb[0].mxu0
      %v5217 = vadd.f32 %v4704, %v5216
      %v5218 = vpop.f32.mrb[0].mxu0
      %v5219 = vadd.f32 %v4706, %v5218
      %v5220 = vpop.f32.mrb[0].mxu0
      %v5221 = vadd.f32 %v4708, %v5220
      %5222 = vmatprep.mubr.bf16.mxu0 %v4301
      %5223 = vmatmul.mubr.bf16.gmra.mrb[0].mxu0 %v4300
      %v5224 = vpop.f32.mrb[0].mxu0
      %v5225 = vadd.f32 %v4712, %v5224
      %v5226 = vpop.f32.mrb[0].mxu0
      %v5227 = vadd.f32 %v4714, %v5226
      %v5228 = vpop.f32.mrb[0].mxu0
      %v5229 = vadd.f32 %v4716, %v5228
      %v5230 = vpop.f32.mrb[0].mxu0
      %v5231 = vadd.f32 %v4718, %v5230
      %5232 = vmatprep.mubr.bf16.mxu0 %v4303
      %5233 = vmatmul.mubr.bf16.gmra.mrb[0].mxu0 %v4302
      %v5234 = vpop.f32.mrb[0].mxu0
      %v5235 = vadd.f32 %v4722, %v5234
      %v5236 = vpop.f32.mrb[0].mxu0
      %v5237 = vadd.f32 %v4724, %v5236
      %v5238 = vpop.f32.mrb[0].mxu0
      %v5239 = vadd.f32 %v4726, %v5238
      %v5240 = vpop.f32.mrb[0].mxu0
      %v5241 = vadd.f32 %v4728, %v5240
      %5242 = vmatprep.mubr.bf16.mxu0 %v4305
      %5243 = vmatmul.mubr.bf16.gmra.mrb[0].mxu0 %v4304
      %v5244 = vpop.f32.mrb[0].mxu0
      %v5245 = vadd.f32 %v4732, %v5244
      %v5246 = vpop.f32.mrb[0].mxu0
      %v5247 = vadd.f32 %v4734, %v5246
      %v5248 = vpop.f32.mrb[0].mxu0
      %v5249 = vadd.f32 %v4736, %v5248
      %v5250 = vpop.f32.mrb[0].mxu0
      %v5251 = vadd.f32 %v4738, %v5250
      %5252 = vmatprep.mubr.bf16.mxu0 %v4307
      %5253 = vmatmul.mubr.bf16.gmra.mrb[0].mxu0 %v4306
      %v5254 = vpop.f32.mrb[0].mxu0
      %v5255 = vadd.f32 %v4742, %v5254
      %v5256 = vpop.f32.mrb[0].mxu0
      %v5257 = vadd.f32 %v4744, %v5256
      %v5258 = vpop.f32.mrb[0].mxu0
      %v5259 = vadd.f32 %v4746, %v5258
      %v5260 = vpop.f32.mrb[0].mxu0
      %v5261 = vadd.f32 %v4748, %v5260
      %5262 = vmatprep.mubr.bf16.mxu0 %v4309
      %5263 = vmatmul.mubr.bf16.gmra.mrb[0].mxu0 %v4308
      %v5264 = vpop.f32.mrb[0].mxu0
      %v5265 = vadd.f32 %v4752, %v5264
      %v5266 = vpop.f32.mrb[0].mxu0
      %v5267 = vadd.f32 %v4754, %v5266
      %v5268 = vpop.f32.mrb[0].mxu0
      %v5269 = vadd.f32 %v4756, %v5268
      %v5270 = vpop.f32.mrb[0].mxu0
      %v5271 = vadd.f32 %v4758, %v5270
      %5272 = vdwg.mxu0
      %v5273 = vld [vmem:[%s6 + $0xa] sm:$0x3]
      %v5275 = vlaneseq
      %v5276 = vshrl.u32 %v5275, 7
      %v5277 = vsub.s32 0, %v5276
      %v5278 = vrot.slane %v5273, %v5277
      %v5279 = vlaneseq
      %v5280 = vshrl.u32 %v5279, 7
      %v5281 = vsub.s32 1, %v5280
      %v5282 = vrot.slane %v5273, %v5281
      %v5285 = vadd.f32 %v4955, %v5278
      %v5286 = vadd.f32 %v4957, %v5282
      %v5287 = vadd.f32 %v4959, %v5278
      %v5288 = vadd.f32 %v4961, %v5282
      %v5289 = vadd.f32 %v4965, %v5278
      %v5290 = vadd.f32 %v4967, %v5282
      %v5291 = vadd.f32 %v4969, %v5278
      %v5292 = vadd.f32 %v4971, %v5282
      %v5293 = vadd.f32 %v4975, %v5278
      %v5294 = vadd.f32 %v4977, %v5282
      %v5295 = vadd.f32 %v4979, %v5278
      %v5296 = vadd.f32 %v4981, %v5282
      %v5297 = vadd.f32 %v4985, %v5278
      %v5298 = vadd.f32 %v4987, %v5282
      %v5299 = vadd.f32 %v4989, %v5278
      %v5300 = vadd.f32 %v4991, %v5282
      %v5301 = vadd.f32 %v4995, %v5278
      %v5302 = vadd.f32 %v4997, %v5282
      %v5303 = vadd.f32 %v4999, %v5278
      %v5304 = vadd.f32 %v5001, %v5282
      %v5305 = vadd.f32 %v5005, %v5278
      %v5306 = vadd.f32 %v5007, %v5282
      %v5307 = vadd.f32 %v5009, %v5278
      %v5308 = vadd.f32 %v5011, %v5282
      %v5309 = vadd.f32 %v5015, %v5278
      %v5310 = vadd.f32 %v5017, %v5282
      %v5311 = vadd.f32 %v5019, %v5278
      %v5312 = vadd.f32 %v5021, %v5282
      %v5313 = vadd.f32 %v5025, %v5278
      %v5314 = vadd.f32 %v5027, %v5282
      %v5315 = vadd.f32 %v5029, %v5278
      %v5316 = vadd.f32 %v5031, %v5282
      %v5317 = vadd.f32 %v5035, %v5278
      %v5318 = vadd.f32 %v5037, %v5282
      %v5319 = vadd.f32 %v5039, %v5278
      %v5320 = vadd.f32 %v5041, %v5282
      %v5321 = vadd.f32 %v5045, %v5278
      %v5322 = vadd.f32 %v5047, %v5282
      %v5323 = vadd.f32 %v5049, %v5278
      %v5324 = vadd.f32 %v5051, %v5282
      %v5325 = vadd.f32 %v5055, %v5278
      %v5326 = vadd.f32 %v5057, %v5282
      %v5327 = vadd.f32 %v5059, %v5278
      %v5328 = vadd.f32 %v5061, %v5282
      %v5329 = vadd.f32 %v5065, %v5278
      %v5330 = vadd.f32 %v5067, %v5282
      %v5331 = vadd.f32 %v5069, %v5278
      %v5332 = vadd.f32 %v5071, %v5282
      %v5333 = vadd.f32 %v5075, %v5278
      %v5334 = vadd.f32 %v5077, %v5282
      %v5335 = vadd.f32 %v5079, %v5278
      %v5336 = vadd.f32 %v5081, %v5282
      %v5337 = vadd.f32 %v5085, %v5278
      %v5338 = vadd.f32 %v5087, %v5282
      %v5339 = vadd.f32 %v5089, %v5278
      %v5340 = vadd.f32 %v5091, %v5282
      %v5341 = vadd.f32 %v5095, %v5278
      %v5342 = vadd.f32 %v5097, %v5282
      %v5343 = vadd.f32 %v5099, %v5278
      %v5344 = vadd.f32 %v5101, %v5282
      %v5345 = vadd.f32 %v5105, %v5278
      %v5346 = vadd.f32 %v5107, %v5282
      %v5347 = vadd.f32 %v5109, %v5278
      %v5348 = vadd.f32 %v5111, %v5282
      %v5349 = vadd.f32 %v5115, %v5278
      %v5350 = vadd.f32 %v5117, %v5282
      %v5351 = vadd.f32 %v5119, %v5278
      %v5352 = vadd.f32 %v5121, %v5282
      %v5353 = vadd.f32 %v5125, %v5278
      %v5354 = vadd.f32 %v5127, %v5282
      %v5355 = vadd.f32 %v5129, %v5278
      %v5356 = vadd.f32 %v5131, %v5282
      %v5357 = vadd.f32 %v5135, %v5278
      %v5358 = vadd.f32 %v5137, %v5282
      %v5359 = vadd.f32 %v5139, %v5278
      %v5360 = vadd.f32 %v5141, %v5282
      %v5361 = vadd.f32 %v5145, %v5278
      %v5362 = vadd.f32 %v5147, %v5282
      %v5363 = vadd.f32 %v5149, %v5278
      %v5364 = vadd.f32 %v5151, %v5282
      %v5365 = vadd.f32 %v5155, %v5278
      %v5366 = vadd.f32 %v5157, %v5282
      %v5367 = vadd.f32 %v5159, %v5278
      %v5368 = vadd.f32 %v5161, %v5282
      %v5369 = vadd.f32 %v5165, %v5278
      %v5370 = vadd.f32 %v5167, %v5282
      %v5371 = vadd.f32 %v5169, %v5278
      %v5372 = vadd.f32 %v5171, %v5282
      %v5373 = vadd.f32 %v5175, %v5278
      %v5374 = vadd.f32 %v5177, %v5282
      %v5375 = vadd.f32 %v5179, %v5278
      %v5376 = vadd.f32 %v5181, %v5282
      %v5377 = vadd.f32 %v5185, %v5278
      %v5378 = vadd.f32 %v5187, %v5282
      %v5379 = vadd.f32 %v5189, %v5278
      %v5380 = vadd.f32 %v5191, %v5282
      %v5381 = vadd.f32 %v5195, %v5278
      %v5382 = vadd.f32 %v5197, %v5282
      %v5383 = vadd.f32 %v5199, %v5278
      %v5384 = vadd.f32 %v5201, %v5282
      %v5385 = vadd.f32 %v5205, %v5278
      %v5386 = vadd.f32 %v5207, %v5282
      %v5387 = vadd.f32 %v5209, %v5278
      %v5388 = vadd.f32 %v5211, %v5282
      %v5389 = vadd.f32 %v5215, %v5278
      %v5390 = vadd.f32 %v5217, %v5282
      %v5391 = vadd.f32 %v5219, %v5278
      %v5392 = vadd.f32 %v5221, %v5282
      %v5393 = vadd.f32 %v5225, %v5278
      %v5394 = vadd.f32 %v5227, %v5282
      %v5395 = vadd.f32 %v5229, %v5278
      %v5396 = vadd.f32 %v5231, %v5282
      %v5397 = vadd.f32 %v5235, %v5278
      %v5398 = vadd.f32 %v5237, %v5282
      %v5399 = vadd.f32 %v5239, %v5278
      %v5400 = vadd.f32 %v5241, %v5282
      %v5401 = vadd.f32 %v5245, %v5278
      %v5402 = vadd.f32 %v5247, %v5282
      %v5403 = vadd.f32 %v5249, %v5278
      %v5404 = vadd.f32 %v5251, %v5282
      %v5405 = vadd.f32 %v5255, %v5278
      %v5406 = vadd.f32 %v5257, %v5282
      %v5407 = vadd.f32 %v5259, %v5278
      %v5408 = vadd.f32 %v5261, %v5282
      %v5409 = vadd.f32 %v5265, %v5278
      %v5410 = vadd.f32 %v5267, %v5282
      %v5411 = vadd.f32 %v5269, %v5278
      %v5412 = vadd.f32 %v5271, %v5282
      %v5413 = vmax.f32 %v5285, 0.0
      %v5414 = vmax.f32 %v5286, 0.0
      %v5415 = vmax.f32 %v5287, 0.0
      %v5416 = vmax.f32 %v5288, 0.0
      %v5417 = vmax.f32 %v5289, 0.0
      %v5418 = vmax.f32 %v5290, 0.0
      %v5419 = vmax.f32 %v5291, 0.0
      %v5420 = vmax.f32 %v5292, 0.0
      %v5421 = vmax.f32 %v5293, 0.0
      %v5422 = vmax.f32 %v5294, 0.0
      %v5423 = vmax.f32 %v5295, 0.0
      %v5424 = vmax.f32 %v5296, 0.0
      %v5425 = vmax.f32 %v5297, 0.0
      %v5426 = vmax.f32 %v5298, 0.0
      %v5427 = vmax.f32 %v5299, 0.0
      %v5428 = vmax.f32 %v5300, 0.0
      %v5429 = vmax.f32 %v5301, 0.0
      %v5430 = vmax.f32 %v5302, 0.0
      %v5431 = vmax.f32 %v5303, 0.0
      %v5432 = vmax.f32 %v5304, 0.0
      %v5433 = vmax.f32 %v5305, 0.0
      %v5434 = vmax.f32 %v5306, 0.0
      %v5435 = vmax.f32 %v5307, 0.0
      %v5436 = vmax.f32 %v5308, 0.0
      %v5437 = vmax.f32 %v5309, 0.0
      %v5438 = vmax.f32 %v5310, 0.0
      %v5439 = vmax.f32 %v5311, 0.0
      %v5440 = vmax.f32 %v5312, 0.0
      %v5441 = vmax.f32 %v5313, 0.0
      %v5442 = vmax.f32 %v5314, 0.0
      %v5443 = vmax.f32 %v5315, 0.0
      %v5444 = vmax.f32 %v5316, 0.0
      %v5445 = vmax.f32 %v5317, 0.0
      %v5446 = vmax.f32 %v5318, 0.0
      %v5447 = vmax.f32 %v5319, 0.0
      %v5448 = vmax.f32 %v5320, 0.0
      %v5449 = vmax.f32 %v5321, 0.0
      %v5450 = vmax.f32 %v5322, 0.0
      %v5451 = vmax.f32 %v5323, 0.0
      %v5452 = vmax.f32 %v5324, 0.0
      %v5453 = vmax.f32 %v5325, 0.0
      %v5454 = vmax.f32 %v5326, 0.0
      %v5455 = vmax.f32 %v5327, 0.0
      %v5456 = vmax.f32 %v5328, 0.0
      %v5457 = vmax.f32 %v5329, 0.0
      %v5458 = vmax.f32 %v5330, 0.0
      %v5459 = vmax.f32 %v5331, 0.0
      %v5460 = vmax.f32 %v5332, 0.0
      %v5461 = vmax.f32 %v5333, 0.0
      %v5462 = vmax.f32 %v5334, 0.0
      %v5463 = vmax.f32 %v5335, 0.0
      %v5464 = vmax.f32 %v5336, 0.0
      %v5465 = vmax.f32 %v5337, 0.0
      %v5466 = vmax.f32 %v5338, 0.0
      %v5467 = vmax.f32 %v5339, 0.0
      %v5468 = vmax.f32 %v5340, 0.0
      %v5469 = vmax.f32 %v5341, 0.0
      %v5470 = vmax.f32 %v5342, 0.0
      %v5471 = vmax.f32 %v5343, 0.0
      %v5472 = vmax.f32 %v5344, 0.0
      %v5473 = vmax.f32 %v5345, 0.0
      %v5474 = vmax.f32 %v5346, 0.0
      %v5475 = vmax.f32 %v5347, 0.0
      %v5476 = vmax.f32 %v5348, 0.0
      %v5477 = vmax.f32 %v5349, 0.0
      %v5478 = vmax.f32 %v5350, 0.0
      %v5479 = vmax.f32 %v5351, 0.0
      %v5480 = vmax.f32 %v5352, 0.0
      %v5481 = vmax.f32 %v5353, 0.0
      %v5482 = vmax.f32 %v5354, 0.0
      %v5483 = vmax.f32 %v5355, 0.0
      %v5484 = vmax.f32 %v5356, 0.0
      %v5485 = vmax.f32 %v5357, 0.0
      %v5486 = vmax.f32 %v5358, 0.0
      %v5487 = vmax.f32 %v5359, 0.0
      %v5488 = vmax.f32 %v5360, 0.0
      %v5489 = vmax.f32 %v5361, 0.0
      %v5490 = vmax.f32 %v5362, 0.0
      %v5491 = vmax.f32 %v5363, 0.0
      %v5492 = vmax.f32 %v5364, 0.0
      %v5493 = vmax.f32 %v5365, 0.0
      %v5494 = vmax.f32 %v5366, 0.0
      %v5495 = vmax.f32 %v5367, 0.0
      %v5496 = vmax.f32 %v5368, 0.0
      %v5497 = vmax.f32 %v5369, 0.0
      %v5498 = vmax.f32 %v5370, 0.0
      %v5499 = vmax.f32 %v5371, 0.0
      %v5500 = vmax.f32 %v5372, 0.0
      %v5501 = vmax.f32 %v5373, 0.0
      %v5502 = vmax.f32 %v5374, 0.0
      %v5503 = vmax.f32 %v5375, 0.0
      %v5504 = vmax.f32 %v5376, 0.0
      %v5505 = vmax.f32 %v5377, 0.0
      %v5506 = vmax.f32 %v5378, 0.0
      %v5507 = vmax.f32 %v5379, 0.0
      %v5508 = vmax.f32 %v5380, 0.0
      %v5509 = vmax.f32 %v5381, 0.0
      %v5510 = vmax.f32 %v5382, 0.0
      %v5511 = vmax.f32 %v5383, 0.0
      %v5512 = vmax.f32 %v5384, 0.0
      %v5513 = vmax.f32 %v5385, 0.0
      %v5514 = vmax.f32 %v5386, 0.0
      %v5515 = vmax.f32 %v5387, 0.0
      %v5516 = vmax.f32 %v5388, 0.0
      %v5517 = vmax.f32 %v5389, 0.0
      %v5518 = vmax.f32 %v5390, 0.0
      %v5519 = vmax.f32 %v5391, 0.0
      %v5520 = vmax.f32 %v5392, 0.0
      %v5521 = vmax.f32 %v5393, 0.0
      %v5522 = vmax.f32 %v5394, 0.0
      %v5523 = vmax.f32 %v5395, 0.0
      %v5524 = vmax.f32 %v5396, 0.0
      %v5525 = vmax.f32 %v5397, 0.0
      %v5526 = vmax.f32 %v5398, 0.0
      %v5527 = vmax.f32 %v5399, 0.0
      %v5528 = vmax.f32 %v5400, 0.0
      %v5529 = vmax.f32 %v5401, 0.0
      %v5530 = vmax.f32 %v5402, 0.0
      %v5531 = vmax.f32 %v5403, 0.0
      %v5532 = vmax.f32 %v5404, 0.0
      %v5533 = vmax.f32 %v5405, 0.0
      %v5534 = vmax.f32 %v5406, 0.0
      %v5535 = vmax.f32 %v5407, 0.0
      %v5536 = vmax.f32 %v5408, 0.0
      %v5537 = vmax.f32 %v5409, 0.0
      %v5538 = vmax.f32 %v5410, 0.0
      %v5539 = vmax.f32 %v5411, 0.0
      %v5540 = vmax.f32 %v5412, 0.0
      %s5541 = scalar_lea.vmem %s3, 1280
      %v5542 = vld [vmem:[%s5541] sm:$0xff]
      %v5543 = vld [vmem:[%s5541 + $0x8] sm:$0xff]
      %v5544 = vld [vmem:[%s5541 + $0x10] sm:$0xff]
      %v5545 = vld [vmem:[%s5541 + $0x18] sm:$0xff]
      %v5546 = vld [vmem:[%s5541 + $0x20] sm:$0xff]
      %v5547 = vld [vmem:[%s5541 + $0x28] sm:$0xff]
      %v5548 = vld [vmem:[%s5541 + $0x30] sm:$0xff]
      %v5549 = vld [vmem:[%s5541 + $0x38] sm:$0xff]
      %v5550 = vld [vmem:[%s5541 + $0x40] sm:$0xff]
      %v5551 = vld [vmem:[%s5541 + $0x48] sm:$0xff]
      %v5552 = vld [vmem:[%s5541 + $0x50] sm:$0xff]
      %v5553 = vld [vmem:[%s5541 + $0x58] sm:$0xff]
      %v5554 = vld [vmem:[%s5541 + $0x60] sm:$0xff]
      %v5555 = vld [vmem:[%s5541 + $0x68] sm:$0xff]
      %v5556 = vld [vmem:[%s5541 + $0x70] sm:$0xff]
      %v5557 = vld [vmem:[%s5541 + $0x78] sm:$0xff]
      %v5558 = vld [vmem:[%s5541 + $0x80] sm:$0xff]
      %v5559 = vld [vmem:[%s5541 + $0x88] sm:$0xff]
      %v5560 = vld [vmem:[%s5541 + $0x90] sm:$0xff]
      %v5561 = vld [vmem:[%s5541 + $0x98] sm:$0xff]
      %v5562 = vld [vmem:[%s5541 + $0xa0] sm:$0xff]
      %v5563 = vld [vmem:[%s5541 + $0xa8] sm:$0xff]
      %v5564 = vld [vmem:[%s5541 + $0xb0] sm:$0xff]
      %v5565 = vld [vmem:[%s5541 + $0xb8] sm:$0xff]
      %v5566 = vld [vmem:[%s5541 + $0xc0] sm:$0xff]
      %v5567 = vld [vmem:[%s5541 + $0xc8] sm:$0xff]
      %v5568 = vld [vmem:[%s5541 + $0xd0] sm:$0xff]
      %v5569 = vld [vmem:[%s5541 + $0xd8] sm:$0xff]
      %v5570 = vld [vmem:[%s5541 + $0xe0] sm:$0xff]
      %v5571 = vld [vmem:[%s5541 + $0xe8] sm:$0xff]
      %v5572 = vld [vmem:[%s5541 + $0xf0] sm:$0xff]
      %v5573 = vld [vmem:[%s5541 + $0xf8] sm:$0xff]
      %v5574 = vpack.c.bf16 %v5415, %v5413
      %v5575 = vpack.c.bf16 %v5416, %v5414
      %v5576 = vpack.c.bf16 %v5419, %v5417
      %v5577 = vpack.c.bf16 %v5420, %v5418
      %v5578 = vpack.c.bf16 %v5423, %v5421
      %v5579 = vpack.c.bf16 %v5424, %v5422
      %v5580 = vpack.c.bf16 %v5427, %v5425
      %v5581 = vpack.c.bf16 %v5428, %v5426
      %v5582 = vpack.c.bf16 %v5431, %v5429
      %v5583 = vpack.c.bf16 %v5432, %v5430
      %v5584 = vpack.c.bf16 %v5435, %v5433
      %v5585 = vpack.c.bf16 %v5436, %v5434
      %v5586 = vpack.c.bf16 %v5439, %v5437
      %v5587 = vpack.c.bf16 %v5440, %v5438
      %v5588 = vpack.c.bf16 %v5443, %v5441
      %v5589 = vpack.c.bf16 %v5444, %v5442
      %v5590 = vpack.c.bf16 %v5447, %v5445
      %v5591 = vpack.c.bf16 %v5448, %v5446
      %v5592 = vpack.c.bf16 %v5451, %v5449
      %v5593 = vpack.c.bf16 %v5452, %v5450
      %v5594 = vpack.c.bf16 %v5455, %v5453
      %v5595 = vpack.c.bf16 %v5456, %v5454
      %v5596 = vpack.c.bf16 %v5459, %v5457
      %v5597 = vpack.c.bf16 %v5460, %v5458
      %v5598 = vpack.c.bf16 %v5463, %v5461
      %v5599 = vpack.c.bf16 %v5464, %v5462
      %v5600 = vpack.c.bf16 %v5467, %v5465
      %v5601 = vpack.c.bf16 %v5468, %v5466
      %v5602 = vpack.c.bf16 %v5471, %v5469
      %v5603 = vpack.c.bf16 %v5472, %v5470
      %v5604 = vpack.c.bf16 %v5475, %v5473
      %v5605 = vpack.c.bf16 %v5476, %v5474
      %v5606 = vpack.c.bf16 %v5479, %v5477
      %v5607 = vpack.c.bf16 %v5480, %v5478
      %v5608 = vpack.c.bf16 %v5483, %v5481
      %v5609 = vpack.c.bf16 %v5484, %v5482
      %v5610 = vpack.c.bf16 %v5487, %v5485
      %v5611 = vpack.c.bf16 %v5488, %v5486
      %v5612 = vpack.c.bf16 %v5491, %v5489
      %v5613 = vpack.c.bf16 %v5492, %v5490
      %v5614 = vpack.c.bf16 %v5495, %v5493
      %v5615 = vpack.c.bf16 %v5496, %v5494
      %v5616 = vpack.c.bf16 %v5499, %v5497
      %v5617 = vpack.c.bf16 %v5500, %v5498
      %v5618 = vpack.c.bf16 %v5503, %v5501
      %v5619 = vpack.c.bf16 %v5504, %v5502
      %v5620 = vpack.c.bf16 %v5507, %v5505
      %v5621 = vpack.c.bf16 %v5508, %v5506
      %v5622 = vpack.c.bf16 %v5511, %v5509
      %v5623 = vpack.c.bf16 %v5512, %v5510
      %v5624 = vpack.c.bf16 %v5515, %v5513
      %v5625 = vpack.c.bf16 %v5516, %v5514
      %v5626 = vpack.c.bf16 %v5519, %v5517
      %v5627 = vpack.c.bf16 %v5520, %v5518
      %v5628 = vpack.c.bf16 %v5523, %v5521
      %v5629 = vpack.c.bf16 %v5524, %v5522
      %v5630 = vpack.c.bf16 %v5527, %v5525
      %v5631 = vpack.c.bf16 %v5528, %v5526
      %v5632 = vpack.c.bf16 %v5531, %v5529
      %v5633 = vpack.c.bf16 %v5532, %v5530
      %v5634 = vpack.c.bf16 %v5535, %v5533
      %v5635 = vpack.c.bf16 %v5536, %v5534
      %v5636 = vpack.c.bf16 %v5539, %v5537
      %v5637 = vpack.c.bf16 %v5540, %v5538
      %v5638 = vld [vmem:[%s6 + $0xc] sm:$0x3]
      %v5640 = vlaneseq
      %v5641 = vshrl.u32 %v5640, 7
      %v5642 = vsub.s32 0, %v5641
      %v5643 = vrot.slane %v5638, %v5642
      %v5644 = vlaneseq
      %v5645 = vshrl.u32 %v5644, 7
      %v5646 = vsub.s32 1, %v5645
      %v5647 = vrot.slane %v5638, %v5646
      %v5682 = vunpack.c.l.b16 %v5542
      %v5683 = vunpack.c.h.b16 %v5542
      %v5684 = vunpack.c.l.b16 %v5543
      %v5685 = vunpack.c.h.b16 %v5543
      %v5686 = vunpack.c.l.b16 %v5544
      %v5687 = vunpack.c.h.b16 %v5544
      %v5688 = vunpack.c.l.b16 %v5545
      %v5689 = vunpack.c.h.b16 %v5545
      %v5690 = vunpack.c.l.b16 %v5546
      %v5691 = vunpack.c.h.b16 %v5546
      %v5692 = vunpack.c.l.b16 %v5547
      %v5693 = vunpack.c.h.b16 %v5547
      %v5694 = vunpack.c.l.b16 %v5548
      %v5695 = vunpack.c.h.b16 %v5548
      %v5696 = vunpack.c.l.b16 %v5549
      %v5697 = vunpack.c.h.b16 %v5549
      %v5698 = vunpack.c.l.b16 %v5550
      %v5699 = vunpack.c.h.b16 %v5550
      %v5700 = vunpack.c.l.b16 %v5551
      %v5701 = vunpack.c.h.b16 %v5551
      %v5702 = vunpack.c.l.b16 %v5552
      %v5703 = vunpack.c.h.b16 %v5552
      %v5704 = vunpack.c.l.b16 %v5553
      %v5705 = vunpack.c.h.b16 %v5553
      %v5706 = vunpack.c.l.b16 %v5554
      %v5707 = vunpack.c.h.b16 %v5554
      %v5708 = vunpack.c.l.b16 %v5555
      %v5709 = vunpack.c.h.b16 %v5555
      %v5710 = vunpack.c.l.b16 %v5556
      %v5711 = vunpack.c.h.b16 %v5556
      %v5712 = vunpack.c.l.b16 %v5557
      %v5713 = vunpack.c.h.b16 %v5557
      %v5714 = vunpack.c.l.b16 %v5558
      %v5715 = vunpack.c.h.b16 %v5558
      %v5716 = vunpack.c.l.b16 %v5559
      %v5717 = vunpack.c.h.b16 %v5559
      %v5718 = vunpack.c.l.b16 %v5560
      %v5719 = vunpack.c.h.b16 %v5560
      %v5720 = vunpack.c.l.b16 %v5561
      %v5721 = vunpack.c.h.b16 %v5561
      %v5722 = vunpack.c.l.b16 %v5562
      %v5723 = vunpack.c.h.b16 %v5562
      %v5724 = vunpack.c.l.b16 %v5563
      %v5725 = vunpack.c.h.b16 %v5563
      %v5726 = vunpack.c.l.b16 %v5564
      %v5727 = vunpack.c.h.b16 %v5564
      %v5728 = vunpack.c.l.b16 %v5565
      %v5729 = vunpack.c.h.b16 %v5565
      %v5730 = vunpack.c.l.b16 %v5566
      %v5731 = vunpack.c.h.b16 %v5566
      %v5732 = vunpack.c.l.b16 %v5567
      %v5733 = vunpack.c.h.b16 %v5567
      %v5734 = vunpack.c.l.b16 %v5568
      %v5735 = vunpack.c.h.b16 %v5568
      %v5736 = vunpack.c.l.b16 %v5569
      %v5737 = vunpack.c.h.b16 %v5569
      %v5738 = vunpack.c.l.b16 %v5570
      %v5739 = vunpack.c.h.b16 %v5570
      %v5740 = vunpack.c.l.b16 %v5571
      %v5741 = vunpack.c.h.b16 %v5571
      %v5742 = vunpack.c.l.b16 %v5572
      %v5743 = vunpack.c.h.b16 %v5572
      %v5744 = vunpack.c.l.b16 %v5573
      %v5745 = vunpack.c.h.b16 %v5573
      %v5746 = vpack.c.b16 %v5684, %v5682
      %v5747 = vpack.c.b16 %v5685, %v5683
      %v5748 = vpack.c.b16 %v5688, %v5686
      %v5749 = vpack.c.b16 %v5689, %v5687
      %v5750 = vpack.c.b16 %v5692, %v5690
      %v5751 = vpack.c.b16 %v5693, %v5691
      %v5752 = vpack.c.b16 %v5696, %v5694
      %v5753 = vpack.c.b16 %v5697, %v5695
      %v5754 = vpack.c.b16 %v5700, %v5698
      %v5755 = vpack.c.b16 %v5701, %v5699
      %v5756 = vpack.c.b16 %v5704, %v5702
      %v5757 = vpack.c.b16 %v5705, %v5703
      %v5758 = vpack.c.b16 %v5708, %v5706
      %v5759 = vpack.c.b16 %v5709, %v5707
      %v5760 = vpack.c.b16 %v5712, %v5710
      %v5761 = vpack.c.b16 %v5713, %v5711
      %v5762 = vpack.c.b16 %v5716, %v5714
      %v5763 = vpack.c.b16 %v5717, %v5715
      %v5764 = vpack.c.b16 %v5720, %v5718
      %v5765 = vpack.c.b16 %v5721, %v5719
      %v5766 = vpack.c.b16 %v5724, %v5722
      %v5767 = vpack.c.b16 %v5725, %v5723
      %v5768 = vpack.c.b16 %v5728, %v5726
      %v5769 = vpack.c.b16 %v5729, %v5727
      %v5770 = vpack.c.b16 %v5732, %v5730
      %v5771 = vpack.c.b16 %v5733, %v5731
      %v5772 = vpack.c.b16 %v5736, %v5734
      %v5773 = vpack.c.b16 %v5737, %v5735
      %v5774 = vpack.c.b16 %v5740, %v5738
      %v5775 = vpack.c.b16 %v5741, %v5739
      %v5776 = vpack.c.b16 %v5744, %v5742
      %v5777 = vpack.c.b16 %v5745, %v5743
      %5810 = vmatprep.subr.bf16.mxu0 %v5747
      %5811 = vmatpush1.bf16.msra.mxu0 %v5746
      %5812 = vmatprep.subr.bf16.mxu0 %v5749
      %5813 = vmatpush1.bf16.msra.mxu0 %v5748
      %5814 = vmatprep.subr.bf16.mxu0 %v5751
      %5815 = vmatpush1.bf16.msra.mxu0 %v5750
      %5816 = vmatprep.subr.bf16.mxu0 %v5753
      %5817 = vmatpush1.bf16.msra.mxu0 %v5752
      %5818 = vmatprep.subr.bf16.mxu0 %v5755
      %5819 = vmatpush1.bf16.msra.mxu0 %v5754
      %5820 = vmatprep.subr.bf16.mxu0 %v5757
      %5821 = vmatpush1.bf16.msra.mxu0 %v5756
      %5822 = vmatprep.subr.bf16.mxu0 %v5759
      %5823 = vmatpush1.bf16.msra.mxu0 %v5758
      %5824 = vmatprep.subr.bf16.mxu0 %v5761
      %5825 = vmatpush1.bf16.msra.mxu0 %v5760
      %5826 = vmatprep.subr.bf16.mxu0 %v5763
      %5827 = vmatpush1.bf16.msra.mxu0 %v5762
      %5828 = vmatprep.subr.bf16.mxu0 %v5765
      %5829 = vmatpush1.bf16.msra.mxu0 %v5764
      %5830 = vmatprep.subr.bf16.mxu0 %v5767
      %5831 = vmatpush1.bf16.msra.mxu0 %v5766
      %5832 = vmatprep.subr.bf16.mxu0 %v5769
      %5833 = vmatpush1.bf16.msra.mxu0 %v5768
      %5834 = vmatprep.subr.bf16.mxu0 %v5771
      %5835 = vmatpush1.bf16.msra.mxu0 %v5770
      %5836 = vmatprep.subr.bf16.mxu0 %v5773
      %5837 = vmatpush1.bf16.msra.mxu0 %v5772
      %5838 = vmatprep.subr.bf16.mxu0 %v5775
      %5839 = vmatpush1.bf16.msra.mxu0 %v5774
      %5840 = vmatprep.subr.bf16.mxu0 %v5777
      %5841 = vmatpush1.bf16.msra.mxu0 %v5776
      %5842 = vmatprep.mubr.bf16.mxu0 %v5575
      %5843 = vmatmul.mubr.bf16.gmra.mrb[0].mxu0 %v5574
      %v5844 = vpop.f32.mrb[0].mxu0
      %v5845 = vadd.f32 %v5643, %v5844
      %v5846 = vpop.f32.mrb[0].mxu0
      %v5847 = vadd.f32 %v5647, %v5846
      %v5848 = vpop.f32.mrb[0].mxu0
      %v5849 = vadd.f32 %v5643, %v5848
      %v5850 = vpop.f32.mrb[0].mxu0
      %v5851 = vadd.f32 %v5647, %v5850
      %5852 = vmatprep.mubr.bf16.mxu0 %v5577
      %5853 = vmatmul.mubr.bf16.gmra.mrb[0].mxu0 %v5576
      %v5854 = vpop.f32.mrb[0].mxu0
      %v5855 = vadd.f32 %v5643, %v5854
      %v5856 = vpop.f32.mrb[0].mxu0
      %v5857 = vadd.f32 %v5647, %v5856
      %v5858 = vpop.f32.mrb[0].mxu0
      %v5859 = vadd.f32 %v5643, %v5858
      %v5860 = vpop.f32.mrb[0].mxu0
      %v5861 = vadd.f32 %v5647, %v5860
      %5862 = vmatprep.mubr.bf16.mxu0 %v5579
      %5863 = vmatmul.mubr.bf16.gmra.mrb[0].mxu0 %v5578
      %v5864 = vpop.f32.mrb[0].mxu0
      %v5865 = vadd.f32 %v5643, %v5864
      %v5866 = vpop.f32.mrb[0].mxu0
      %v5867 = vadd.f32 %v5647, %v5866
      %v5868 = vpop.f32.mrb[0].mxu0
      %v5869 = vadd.f32 %v5643, %v5868
      %v5870 = vpop.f32.mrb[0].mxu0
      %v5871 = vadd.f32 %v5647, %v5870
      %5872 = vmatprep.mubr.bf16.mxu0 %v5581
      %5873 = vmatmul.mubr.bf16.gmra.mrb[0].mxu0 %v5580
      %v5874 = vpop.f32.mrb[0].mxu0
      %v5875 = vadd.f32 %v5643, %v5874
      %v5876 = vpop.f32.mrb[0].mxu0
      %v5877 = vadd.f32 %v5647, %v5876
      %v5878 = vpop.f32.mrb[0].mxu0
      %v5879 = vadd.f32 %v5643, %v5878
      %v5880 = vpop.f32.mrb[0].mxu0
      %v5881 = vadd.f32 %v5647, %v5880
      %5882 = vmatprep.mubr.bf16.mxu0 %v5583
      %5883 = vmatmul.mubr.bf16.gmra.mrb[0].mxu0 %v5582
      %v5884 = vpop.f32.mrb[0].mxu0
      %v5885 = vadd.f32 %v5643, %v5884
      %v5886 = vpop.f32.mrb[0].mxu0
      %v5887 = vadd.f32 %v5647, %v5886
      %v5888 = vpop.f32.mrb[0].mxu0
      %v5889 = vadd.f32 %v5643, %v5888
      %v5890 = vpop.f32.mrb[0].mxu0
      %v5891 = vadd.f32 %v5647, %v5890
      %5892 = vmatprep.mubr.bf16.mxu0 %v5585
      %5893 = vmatmul.mubr.bf16.gmra.mrb[0].mxu0 %v5584
      %v5894 = vpop.f32.mrb[0].mxu0
      %v5895 = vadd.f32 %v5643, %v5894
      %v5896 = vpop.f32.mrb[0].mxu0
      %v5897 = vadd.f32 %v5647, %v5896
      %v5898 = vpop.f32.mrb[0].mxu0
      %v5899 = vadd.f32 %v5643, %v5898
      %v5900 = vpop.f32.mrb[0].mxu0
      %v5901 = vadd.f32 %v5647, %v5900
      %5902 = vmatprep.mubr.bf16.mxu0 %v5587
      %5903 = vmatmul.mubr.bf16.gmra.mrb[0].mxu0 %v5586
      %v5904 = vpop.f32.mrb[0].mxu0
      %v5905 = vadd.f32 %v5643, %v5904
      %v5906 = vpop.f32.mrb[0].mxu0
      %v5907 = vadd.f32 %v5647, %v5906
      %v5908 = vpop.f32.mrb[0].mxu0
      %v5909 = vadd.f32 %v5643, %v5908
      %v5910 = vpop.f32.mrb[0].mxu0
      %v5911 = vadd.f32 %v5647, %v5910
      %5912 = vmatprep.mubr.bf16.mxu0 %v5589
      %5913 = vmatmul.mubr.bf16.gmra.mrb[0].mxu0 %v5588
      %v5914 = vpop.f32.mrb[0].mxu0
      %v5915 = vadd.f32 %v5643, %v5914
      %v5916 = vpop.f32.mrb[0].mxu0
      %v5917 = vadd.f32 %v5647, %v5916
      %v5918 = vpop.f32.mrb[0].mxu0
      %v5919 = vadd.f32 %v5643, %v5918
      %v5920 = vpop.f32.mrb[0].mxu0
      %v5921 = vadd.f32 %v5647, %v5920
      %5922 = vmatprep.mubr.bf16.mxu0 %v5591
      %5923 = vmatmul.mubr.bf16.gmra.mrb[0].mxu0 %v5590
      %v5924 = vpop.f32.mrb[0].mxu0
      %v5925 = vadd.f32 %v5643, %v5924
      %v5926 = vpop.f32.mrb[0].mxu0
      %v5927 = vadd.f32 %v5647, %v5926
      %v5928 = vpop.f32.mrb[0].mxu0
      %v5929 = vadd.f32 %v5643, %v5928
      %v5930 = vpop.f32.mrb[0].mxu0
      %v5931 = vadd.f32 %v5647, %v5930
      %5932 = vmatprep.mubr.bf16.mxu0 %v5593
      %5933 = vmatmul.mubr.bf16.gmra.mrb[0].mxu0 %v5592
      %v5934 = vpop.f32.mrb[0].mxu0
      %v5935 = vadd.f32 %v5643, %v5934
      %v5936 = vpop.f32.mrb[0].mxu0
      %v5937 = vadd.f32 %v5647, %v5936
      %v5938 = vpop.f32.mrb[0].mxu0
      %v5939 = vadd.f32 %v5643, %v5938
      %v5940 = vpop.f32.mrb[0].mxu0
      %v5941 = vadd.f32 %v5647, %v5940
      %5942 = vmatprep.mubr.bf16.mxu0 %v5595
      %5943 = vmatmul.mubr.bf16.gmra.mrb[0].mxu0 %v5594
      %v5944 = vpop.f32.mrb[0].mxu0
      %v5945 = vadd.f32 %v5643, %v5944
      %v5946 = vpop.f32.mrb[0].mxu0
      %v5947 = vadd.f32 %v5647, %v5946
      %v5948 = vpop.f32.mrb[0].mxu0
      %v5949 = vadd.f32 %v5643, %v5948
      %v5950 = vpop.f32.mrb[0].mxu0
      %v5951 = vadd.f32 %v5647, %v5950
      %5952 = vmatprep.mubr.bf16.mxu0 %v5597
      %5953 = vmatmul.mubr.bf16.gmra.mrb[0].mxu0 %v5596
      %v5954 = vpop.f32.mrb[0].mxu0
      %v5955 = vadd.f32 %v5643, %v5954
      %v5956 = vpop.f32.mrb[0].mxu0
      %v5957 = vadd.f32 %v5647, %v5956
      %v5958 = vpop.f32.mrb[0].mxu0
      %v5959 = vadd.f32 %v5643, %v5958
      %v5960 = vpop.f32.mrb[0].mxu0
      %v5961 = vadd.f32 %v5647, %v5960
      %5962 = vmatprep.mubr.bf16.mxu0 %v5599
      %5963 = vmatmul.mubr.bf16.gmra.mrb[0].mxu0 %v5598
      %v5964 = vpop.f32.mrb[0].mxu0
      %v5965 = vadd.f32 %v5643, %v5964
      %v5966 = vpop.f32.mrb[0].mxu0
      %v5967 = vadd.f32 %v5647, %v5966
      %v5968 = vpop.f32.mrb[0].mxu0
      %v5969 = vadd.f32 %v5643, %v5968
      %v5970 = vpop.f32.mrb[0].mxu0
      %v5971 = vadd.f32 %v5647, %v5970
      %5972 = vmatprep.mubr.bf16.mxu0 %v5601
      %5973 = vmatmul.mubr.bf16.gmra.mrb[0].mxu0 %v5600
      %v5974 = vpop.f32.mrb[0].mxu0
      %v5975 = vadd.f32 %v5643, %v5974
      %v5976 = vpop.f32.mrb[0].mxu0
      %v5977 = vadd.f32 %v5647, %v5976
      %v5978 = vpop.f32.mrb[0].mxu0
      %v5979 = vadd.f32 %v5643, %v5978
      %v5980 = vpop.f32.mrb[0].mxu0
      %v5981 = vadd.f32 %v5647, %v5980
      %5982 = vmatprep.mubr.bf16.mxu0 %v5603
      %5983 = vmatmul.mubr.bf16.gmra.mrb[0].mxu0 %v5602
      %v5984 = vpop.f32.mrb[0].mxu0
      %v5985 = vadd.f32 %v5643, %v5984
      %v5986 = vpop.f32.mrb[0].mxu0
      %v5987 = vadd.f32 %v5647, %v5986
      %v5988 = vpop.f32.mrb[0].mxu0
      %v5989 = vadd.f32 %v5643, %v5988
      %v5990 = vpop.f32.mrb[0].mxu0
      %v5991 = vadd.f32 %v5647, %v5990
      %5992 = vmatprep.mubr.bf16.mxu0 %v5605
      %5993 = vmatmul.mubr.bf16.gmra.mrb[0].mxu0 %v5604
      %v5994 = vpop.f32.mrb[0].mxu0
      %v5995 = vadd.f32 %v5643, %v5994
      %v5996 = vpop.f32.mrb[0].mxu0
      %v5997 = vadd.f32 %v5647, %v5996
      %v5998 = vpop.f32.mrb[0].mxu0
      %v5999 = vadd.f32 %v5643, %v5998
      %v6000 = vpop.f32.mrb[0].mxu0
      %v6001 = vadd.f32 %v5647, %v6000
      %6002 = vmatprep.mubr.bf16.mxu0 %v5607
      %6003 = vmatmul.mubr.bf16.gmra.mrb[0].mxu0 %v5606
      %v6004 = vpop.f32.mrb[0].mxu0
      %v6005 = vadd.f32 %v5643, %v6004
      %v6006 = vpop.f32.mrb[0].mxu0
      %v6007 = vadd.f32 %v5647, %v6006
      %v6008 = vpop.f32.mrb[0].mxu0
      %v6009 = vadd.f32 %v5643, %v6008
      %v6010 = vpop.f32.mrb[0].mxu0
      %v6011 = vadd.f32 %v5647, %v6010
      %6012 = vmatprep.mubr.bf16.mxu0 %v5609
      %6013 = vmatmul.mubr.bf16.gmra.mrb[0].mxu0 %v5608
      %v6014 = vpop.f32.mrb[0].mxu0
      %v6015 = vadd.f32 %v5643, %v6014
      %v6016 = vpop.f32.mrb[0].mxu0
      %v6017 = vadd.f32 %v5647, %v6016
      %v6018 = vpop.f32.mrb[0].mxu0
      %v6019 = vadd.f32 %v5643, %v6018
      %v6020 = vpop.f32.mrb[0].mxu0
      %v6021 = vadd.f32 %v5647, %v6020
      %6022 = vmatprep.mubr.bf16.mxu0 %v5611
      %6023 = vmatmul.mubr.bf16.gmra.mrb[0].mxu0 %v5610
      %v6024 = vpop.f32.mrb[0].mxu0
      %v6025 = vadd.f32 %v5643, %v6024
      %v6026 = vpop.f32.mrb[0].mxu0
      %v6027 = vadd.f32 %v5647, %v6026
      %v6028 = vpop.f32.mrb[0].mxu0
      %v6029 = vadd.f32 %v5643, %v6028
      %v6030 = vpop.f32.mrb[0].mxu0
      %v6031 = vadd.f32 %v5647, %v6030
      %6032 = vmatprep.mubr.bf16.mxu0 %v5613
      %6033 = vmatmul.mubr.bf16.gmra.mrb[0].mxu0 %v5612
      %v6034 = vpop.f32.mrb[0].mxu0
      %v6035 = vadd.f32 %v5643, %v6034
      %v6036 = vpop.f32.mrb[0].mxu0
      %v6037 = vadd.f32 %v5647, %v6036
      %v6038 = vpop.f32.mrb[0].mxu0
      %v6039 = vadd.f32 %v5643, %v6038
      %v6040 = vpop.f32.mrb[0].mxu0
      %v6041 = vadd.f32 %v5647, %v6040
      %6042 = vmatprep.mubr.bf16.mxu0 %v5615
      %6043 = vmatmul.mubr.bf16.gmra.mrb[0].mxu0 %v5614
      %v6044 = vpop.f32.mrb[0].mxu0
      %v6045 = vadd.f32 %v5643, %v6044
      %v6046 = vpop.f32.mrb[0].mxu0
      %v6047 = vadd.f32 %v5647, %v6046
      %v6048 = vpop.f32.mrb[0].mxu0
      %v6049 = vadd.f32 %v5643, %v6048
      %v6050 = vpop.f32.mrb[0].mxu0
      %v6051 = vadd.f32 %v5647, %v6050
      %6052 = vmatprep.mubr.bf16.mxu0 %v5617
      %6053 = vmatmul.mubr.bf16.gmra.mrb[0].mxu0 %v5616
      %v6054 = vpop.f32.mrb[0].mxu0
      %v6055 = vadd.f32 %v5643, %v6054
      %v6056 = vpop.f32.mrb[0].mxu0
      %v6057 = vadd.f32 %v5647, %v6056
      %v6058 = vpop.f32.mrb[0].mxu0
      %v6059 = vadd.f32 %v5643, %v6058
      %v6060 = vpop.f32.mrb[0].mxu0
      %v6061 = vadd.f32 %v5647, %v6060
      %6062 = vmatprep.mubr.bf16.mxu0 %v5619
      %6063 = vmatmul.mubr.bf16.gmra.mrb[0].mxu0 %v5618
      %v6064 = vpop.f32.mrb[0].mxu0
      %v6065 = vadd.f32 %v5643, %v6064
      %v6066 = vpop.f32.mrb[0].mxu0
      %v6067 = vadd.f32 %v5647, %v6066
      %v6068 = vpop.f32.mrb[0].mxu0
      %v6069 = vadd.f32 %v5643, %v6068
      %v6070 = vpop.f32.mrb[0].mxu0
      %v6071 = vadd.f32 %v5647, %v6070
      %6072 = vmatprep.mubr.bf16.mxu0 %v5621
      %6073 = vmatmul.mubr.bf16.gmra.mrb[0].mxu0 %v5620
      %v6074 = vpop.f32.mrb[0].mxu0
      %v6075 = vadd.f32 %v5643, %v6074
      %v6076 = vpop.f32.mrb[0].mxu0
      %v6077 = vadd.f32 %v5647, %v6076
      %v6078 = vpop.f32.mrb[0].mxu0
      %v6079 = vadd.f32 %v5643, %v6078
      %v6080 = vpop.f32.mrb[0].mxu0
      %v6081 = vadd.f32 %v5647, %v6080
      %6082 = vmatprep.mubr.bf16.mxu0 %v5623
      %6083 = vmatmul.mubr.bf16.gmra.mrb[0].mxu0 %v5622
      %v6084 = vpop.f32.mrb[0].mxu0
      %v6085 = vadd.f32 %v5643, %v6084
      %v6086 = vpop.f32.mrb[0].mxu0
      %v6087 = vadd.f32 %v5647, %v6086
      %v6088 = vpop.f32.mrb[0].mxu0
      %v6089 = vadd.f32 %v5643, %v6088
      %v6090 = vpop.f32.mrb[0].mxu0
      %v6091 = vadd.f32 %v5647, %v6090
      %6092 = vmatprep.mubr.bf16.mxu0 %v5625
      %6093 = vmatmul.mubr.bf16.gmra.mrb[0].mxu0 %v5624
      %v6094 = vpop.f32.mrb[0].mxu0
      %v6095 = vadd.f32 %v5643, %v6094
      %v6096 = vpop.f32.mrb[0].mxu0
      %v6097 = vadd.f32 %v5647, %v6096
      %v6098 = vpop.f32.mrb[0].mxu0
      %v6099 = vadd.f32 %v5643, %v6098
      %v6100 = vpop.f32.mrb[0].mxu0
      %v6101 = vadd.f32 %v5647, %v6100
      %6102 = vmatprep.mubr.bf16.mxu0 %v5627
      %6103 = vmatmul.mubr.bf16.gmra.mrb[0].mxu0 %v5626
      %v6104 = vpop.f32.mrb[0].mxu0
      %v6105 = vadd.f32 %v5643, %v6104
      %v6106 = vpop.f32.mrb[0].mxu0
      %v6107 = vadd.f32 %v5647, %v6106
      %v6108 = vpop.f32.mrb[0].mxu0
      %v6109 = vadd.f32 %v5643, %v6108
      %v6110 = vpop.f32.mrb[0].mxu0
      %v6111 = vadd.f32 %v5647, %v6110
      %6112 = vmatprep.mubr.bf16.mxu0 %v5629
      %6113 = vmatmul.mubr.bf16.gmra.mrb[0].mxu0 %v5628
      %v6114 = vpop.f32.mrb[0].mxu0
      %v6115 = vadd.f32 %v5643, %v6114
      %v6116 = vpop.f32.mrb[0].mxu0
      %v6117 = vadd.f32 %v5647, %v6116
      %v6118 = vpop.f32.mrb[0].mxu0
      %v6119 = vadd.f32 %v5643, %v6118
      %v6120 = vpop.f32.mrb[0].mxu0
      %v6121 = vadd.f32 %v5647, %v6120
      %6122 = vmatprep.mubr.bf16.mxu0 %v5631
      %6123 = vmatmul.mubr.bf16.gmra.mrb[0].mxu0 %v5630
      %v6124 = vpop.f32.mrb[0].mxu0
      %v6125 = vadd.f32 %v5643, %v6124
      %v6126 = vpop.f32.mrb[0].mxu0
      %v6127 = vadd.f32 %v5647, %v6126
      %v6128 = vpop.f32.mrb[0].mxu0
      %v6129 = vadd.f32 %v5643, %v6128
      %v6130 = vpop.f32.mrb[0].mxu0
      %v6131 = vadd.f32 %v5647, %v6130
      %6132 = vmatprep.mubr.bf16.mxu0 %v5633
      %6133 = vmatmul.mubr.bf16.gmra.mrb[0].mxu0 %v5632
      %v6134 = vpop.f32.mrb[0].mxu0
      %v6135 = vadd.f32 %v5643, %v6134
      %v6136 = vpop.f32.mrb[0].mxu0
      %v6137 = vadd.f32 %v5647, %v6136
      %v6138 = vpop.f32.mrb[0].mxu0
      %v6139 = vadd.f32 %v5643, %v6138
      %v6140 = vpop.f32.mrb[0].mxu0
      %v6141 = vadd.f32 %v5647, %v6140
      %6142 = vmatprep.mubr.bf16.mxu0 %v5635
      %6143 = vmatmul.mubr.bf16.gmra.mrb[0].mxu0 %v5634
      %v6144 = vpop.f32.mrb[0].mxu0
      %v6145 = vadd.f32 %v5643, %v6144
      %v6146 = vpop.f32.mrb[0].mxu0
      %v6147 = vadd.f32 %v5647, %v6146
      %v6148 = vpop.f32.mrb[0].mxu0
      %v6149 = vadd.f32 %v5643, %v6148
      %v6150 = vpop.f32.mrb[0].mxu0
      %v6151 = vadd.f32 %v5647, %v6150
      %6152 = vmatprep.mubr.bf16.mxu0 %v5637
      %6153 = vmatmul.mubr.bf16.gmra.mrb[0].mxu0 %v5636
      %v6154 = vpop.f32.mrb[0].mxu0
      %v6155 = vadd.f32 %v5643, %v6154
      %v6156 = vpop.f32.mrb[0].mxu0
      %v6157 = vadd.f32 %v5647, %v6156
      %v6158 = vpop.f32.mrb[0].mxu0
      %v6159 = vadd.f32 %v5643, %v6158
      %v6160 = vpop.f32.mrb[0].mxu0
      %v6161 = vadd.f32 %v5647, %v6160
      %6162 = vdwg.mxu0
      %v6163 = vmax.f32 %v5845, 0.0
      %v6164 = vmax.f32 %v5847, 0.0
      %v6165 = vmax.f32 %v5849, 0.0
      %v6166 = vmax.f32 %v5851, 0.0
      %v6167 = vmax.f32 %v5855, 0.0
      %v6168 = vmax.f32 %v5857, 0.0
      %v6169 = vmax.f32 %v5859, 0.0
      %v6170 = vmax.f32 %v5861, 0.0
      %v6171 = vmax.f32 %v5865, 0.0
      %v6172 = vmax.f32 %v5867, 0.0
      %v6173 = vmax.f32 %v5869, 0.0
      %v6174 = vmax.f32 %v5871, 0.0
      %v6175 = vmax.f32 %v5875, 0.0
      %v6176 = vmax.f32 %v5877, 0.0
      %v6177 = vmax.f32 %v5879, 0.0
      %v6178 = vmax.f32 %v5881, 0.0
      %v6179 = vmax.f32 %v5885, 0.0
      %v6180 = vmax.f32 %v5887, 0.0
      %v6181 = vmax.f32 %v5889, 0.0
      %v6182 = vmax.f32 %v5891, 0.0
      %v6183 = vmax.f32 %v5895, 0.0
      %v6184 = vmax.f32 %v5897, 0.0
      %v6185 = vmax.f32 %v5899, 0.0
      %v6186 = vmax.f32 %v5901, 0.0
      %v6187 = vmax.f32 %v5905, 0.0
      %v6188 = vmax.f32 %v5907, 0.0
      %v6189 = vmax.f32 %v5909, 0.0
      %v6190 = vmax.f32 %v5911, 0.0
      %v6191 = vmax.f32 %v5915, 0.0
      %v6192 = vmax.f32 %v5917, 0.0
      %v6193 = vmax.f32 %v5919, 0.0
      %v6194 = vmax.f32 %v5921, 0.0
      %v6195 = vmax.f32 %v5925, 0.0
      %v6196 = vmax.f32 %v5927, 0.0
      %v6197 = vmax.f32 %v5929, 0.0
      %v6198 = vmax.f32 %v5931, 0.0
      %v6199 = vmax.f32 %v5935, 0.0
      %v6200 = vmax.f32 %v5937, 0.0
      %v6201 = vmax.f32 %v5939, 0.0
      %v6202 = vmax.f32 %v5941, 0.0
      %v6203 = vmax.f32 %v5945, 0.0
      %v6204 = vmax.f32 %v5947, 0.0
      %v6205 = vmax.f32 %v5949, 0.0
      %v6206 = vmax.f32 %v5951, 0.0
      %v6207 = vmax.f32 %v5955, 0.0
      %v6208 = vmax.f32 %v5957, 0.0
      %v6209 = vmax.f32 %v5959, 0.0
      %v6210 = vmax.f32 %v5961, 0.0
      %v6211 = vmax.f32 %v5965, 0.0
      %v6212 = vmax.f32 %v5967, 0.0
      %v6213 = vmax.f32 %v5969, 0.0
      %v6214 = vmax.f32 %v5971, 0.0
      %v6215 = vmax.f32 %v5975, 0.0
      %v6216 = vmax.f32 %v5977, 0.0
      %v6217 = vmax.f32 %v5979, 0.0
      %v6218 = vmax.f32 %v5981, 0.0
      %v6219 = vmax.f32 %v5985, 0.0
      %v6220 = vmax.f32 %v5987, 0.0
      %v6221 = vmax.f32 %v5989, 0.0
      %v6222 = vmax.f32 %v5991, 0.0
      %v6223 = vmax.f32 %v5995, 0.0
      %v6224 = vmax.f32 %v5997, 0.0
      %v6225 = vmax.f32 %v5999, 0.0
      %v6226 = vmax.f32 %v6001, 0.0
      %v6227 = vmax.f32 %v6005, 0.0
      %v6228 = vmax.f32 %v6007, 0.0
      %v6229 = vmax.f32 %v6009, 0.0
      %v6230 = vmax.f32 %v6011, 0.0
      %v6231 = vmax.f32 %v6015, 0.0
      %v6232 = vmax.f32 %v6017, 0.0
      %v6233 = vmax.f32 %v6019, 0.0
      %v6234 = vmax.f32 %v6021, 0.0
      %v6235 = vmax.f32 %v6025, 0.0
      %v6236 = vmax.f32 %v6027, 0.0
      %v6237 = vmax.f32 %v6029, 0.0
      %v6238 = vmax.f32 %v6031, 0.0
      %v6239 = vmax.f32 %v6035, 0.0
      %v6240 = vmax.f32 %v6037, 0.0
      %v6241 = vmax.f32 %v6039, 0.0
      %v6242 = vmax.f32 %v6041, 0.0
      %v6243 = vmax.f32 %v6045, 0.0
      %v6244 = vmax.f32 %v6047, 0.0
      %v6245 = vmax.f32 %v6049, 0.0
      %v6246 = vmax.f32 %v6051, 0.0
      %v6247 = vmax.f32 %v6055, 0.0
      %v6248 = vmax.f32 %v6057, 0.0
      %v6249 = vmax.f32 %v6059, 0.0
      %v6250 = vmax.f32 %v6061, 0.0
      %v6251 = vmax.f32 %v6065, 0.0
      %v6252 = vmax.f32 %v6067, 0.0
      %v6253 = vmax.f32 %v6069, 0.0
      %v6254 = vmax.f32 %v6071, 0.0
      %v6255 = vmax.f32 %v6075, 0.0
      %v6256 = vmax.f32 %v6077, 0.0
      %v6257 = vmax.f32 %v6079, 0.0
      %v6258 = vmax.f32 %v6081, 0.0
      %v6259 = vmax.f32 %v6085, 0.0
      %v6260 = vmax.f32 %v6087, 0.0
      %v6261 = vmax.f32 %v6089, 0.0
      %v6262 = vmax.f32 %v6091, 0.0
      %v6263 = vmax.f32 %v6095, 0.0
      %v6264 = vmax.f32 %v6097, 0.0
      %v6265 = vmax.f32 %v6099, 0.0
      %v6266 = vmax.f32 %v6101, 0.0
      %v6267 = vmax.f32 %v6105, 0.0
      %v6268 = vmax.f32 %v6107, 0.0
      %v6269 = vmax.f32 %v6109, 0.0
      %v6270 = vmax.f32 %v6111, 0.0
      %v6271 = vmax.f32 %v6115, 0.0
      %v6272 = vmax.f32 %v6117, 0.0
      %v6273 = vmax.f32 %v6119, 0.0
      %v6274 = vmax.f32 %v6121, 0.0
      %v6275 = vmax.f32 %v6125, 0.0
      %v6276 = vmax.f32 %v6127, 0.0
      %v6277 = vmax.f32 %v6129, 0.0
      %v6278 = vmax.f32 %v6131, 0.0
      %v6279 = vmax.f32 %v6135, 0.0
      %v6280 = vmax.f32 %v6137, 0.0
      %v6281 = vmax.f32 %v6139, 0.0
      %v6282 = vmax.f32 %v6141, 0.0
      %v6283 = vmax.f32 %v6145, 0.0
      %v6284 = vmax.f32 %v6147, 0.0
      %v6285 = vmax.f32 %v6149, 0.0
      %v6286 = vmax.f32 %v6151, 0.0
      %v6287 = vmax.f32 %v6155, 0.0
      %v6288 = vmax.f32 %v6157, 0.0
      %v6289 = vmax.f32 %v6159, 0.0
      %v6290 = vmax.f32 %v6161, 0.0
      %s6291 = scalar_lea.vmem %s3, 1536
      %v6292 = vld [vmem:[%s6291] sm:$0xff]
      %v6293 = vld [vmem:[%s6291 + $0x8] sm:$0xff]
      %v6294 = vld [vmem:[%s6291 + $0x10] sm:$0xff]
      %v6295 = vld [vmem:[%s6291 + $0x18] sm:$0xff]
      %v6296 = vld [vmem:[%s6291 + $0x20] sm:$0xff]
      %v6297 = vld [vmem:[%s6291 + $0x28] sm:$0xff]
      %v6298 = vld [vmem:[%s6291 + $0x30] sm:$0xff]
      %v6299 = vld [vmem:[%s6291 + $0x38] sm:$0xff]
      %v6300 = vld [vmem:[%s6291 + $0x40] sm:$0xff]
      %v6301 = vld [vmem:[%s6291 + $0x48] sm:$0xff]
      %v6302 = vld [vmem:[%s6291 + $0x50] sm:$0xff]
      %v6303 = vld [vmem:[%s6291 + $0x58] sm:$0xff]
      %v6304 = vld [vmem:[%s6291 + $0x60] sm:$0xff]
      %v6305 = vld [vmem:[%s6291 + $0x68] sm:$0xff]
      %v6306 = vld [vmem:[%s6291 + $0x70] sm:$0xff]
      %v6307 = vld [vmem:[%s6291 + $0x78] sm:$0xff]
      %v6308 = vld [vmem:[%s6291 + $0x80] sm:$0xff]
      %v6309 = vld [vmem:[%s6291 + $0x88] sm:$0xff]
      %v6310 = vld [vmem:[%s6291 + $0x90] sm:$0xff]
      %v6311 = vld [vmem:[%s6291 + $0x98] sm:$0xff]
      %v6312 = vld [vmem:[%s6291 + $0xa0] sm:$0xff]
      %v6313 = vld [vmem:[%s6291 + $0xa8] sm:$0xff]
      %v6314 = vld [vmem:[%s6291 + $0xb0] sm:$0xff]
      %v6315 = vld [vmem:[%s6291 + $0xb8] sm:$0xff]
      %v6316 = vld [vmem:[%s6291 + $0xc0] sm:$0xff]
      %v6317 = vld [vmem:[%s6291 + $0xc8] sm:$0xff]
      %v6318 = vld [vmem:[%s6291 + $0xd0] sm:$0xff]
      %v6319 = vld [vmem:[%s6291 + $0xd8] sm:$0xff]
      %v6320 = vld [vmem:[%s6291 + $0xe0] sm:$0xff]
      %v6321 = vld [vmem:[%s6291 + $0xe8] sm:$0xff]
      %v6322 = vld [vmem:[%s6291 + $0xf0] sm:$0xff]
      %v6323 = vld [vmem:[%s6291 + $0xf8] sm:$0xff]
      %v6324 = vpack.c.bf16 %v6165, %v6163
      %v6325 = vpack.c.bf16 %v6166, %v6164
      %v6326 = vpack.c.bf16 %v6169, %v6167
      %v6327 = vpack.c.bf16 %v6170, %v6168
      %v6328 = vpack.c.bf16 %v6173, %v6171
      %v6329 = vpack.c.bf16 %v6174, %v6172
      %v6330 = vpack.c.bf16 %v6177, %v6175
      %v6331 = vpack.c.bf16 %v6178, %v6176
      %v6332 = vpack.c.bf16 %v6181, %v6179
      %v6333 = vpack.c.bf16 %v6182, %v6180
      %v6334 = vpack.c.bf16 %v6185, %v6183
      %v6335 = vpack.c.bf16 %v6186, %v6184
      %v6336 = vpack.c.bf16 %v6189, %v6187
      %v6337 = vpack.c.bf16 %v6190, %v6188
      %v6338 = vpack.c.bf16 %v6193, %v6191
      %v6339 = vpack.c.bf16 %v6194, %v6192
      %v6340 = vpack.c.bf16 %v6197, %v6195
      %v6341 = vpack.c.bf16 %v6198, %v6196
      %v6342 = vpack.c.bf16 %v6201, %v6199
      %v6343 = vpack.c.bf16 %v6202, %v6200
      %v6344 = vpack.c.bf16 %v6205, %v6203
      %v6345 = vpack.c.bf16 %v6206, %v6204
      %v6346 = vpack.c.bf16 %v6209, %v6207
      %v6347 = vpack.c.bf16 %v6210, %v6208
      %v6348 = vpack.c.bf16 %v6213, %v6211
      %v6349 = vpack.c.bf16 %v6214, %v6212
      %v6350 = vpack.c.bf16 %v6217, %v6215
      %v6351 = vpack.c.bf16 %v6218, %v6216
      %v6352 = vpack.c.bf16 %v6221, %v6219
      %v6353 = vpack.c.bf16 %v6222, %v6220
      %v6354 = vpack.c.bf16 %v6225, %v6223
      %v6355 = vpack.c.bf16 %v6226, %v6224
      %v6356 = vpack.c.bf16 %v6229, %v6227
      %v6357 = vpack.c.bf16 %v6230, %v6228
      %v6358 = vpack.c.bf16 %v6233, %v6231
      %v6359 = vpack.c.bf16 %v6234, %v6232
      %v6360 = vpack.c.bf16 %v6237, %v6235
      %v6361 = vpack.c.bf16 %v6238, %v6236
      %v6362 = vpack.c.bf16 %v6241, %v6239
      %v6363 = vpack.c.bf16 %v6242, %v6240
      %v6364 = vpack.c.bf16 %v6245, %v6243
      %v6365 = vpack.c.bf16 %v6246, %v6244
      %v6366 = vpack.c.bf16 %v6249, %v6247
      %v6367 = vpack.c.bf16 %v6250, %v6248
      %v6368 = vpack.c.bf16 %v6253, %v6251
      %v6369 = vpack.c.bf16 %v6254, %v6252
      %v6370 = vpack.c.bf16 %v6257, %v6255
      %v6371 = vpack.c.bf16 %v6258, %v6256
      %v6372 = vpack.c.bf16 %v6261, %v6259
      %v6373 = vpack.c.bf16 %v6262, %v6260
      %v6374 = vpack.c.bf16 %v6265, %v6263
      %v6375 = vpack.c.bf16 %v6266, %v6264
      %v6376 = vpack.c.bf16 %v6269, %v6267
      %v6377 = vpack.c.bf16 %v6270, %v6268
      %v6378 = vpack.c.bf16 %v6273, %v6271
      %v6379 = vpack.c.bf16 %v6274, %v6272
      %v6380 = vpack.c.bf16 %v6277, %v6275
      %v6381 = vpack.c.bf16 %v6278, %v6276
      %v6382 = vpack.c.bf16 %v6281, %v6279
      %v6383 = vpack.c.bf16 %v6282, %v6280
      %v6384 = vpack.c.bf16 %v6285, %v6283
      %v6385 = vpack.c.bf16 %v6286, %v6284
      %v6386 = vpack.c.bf16 %v6289, %v6287
      %v6387 = vpack.c.bf16 %v6290, %v6288
      %v6388 = vld [vmem:[%s6 + $0xe] sm:$0x3]
      %v6390 = vlaneseq
      %v6391 = vshrl.u32 %v6390, 7
      %v6392 = vsub.s32 0, %v6391
      %v6393 = vrot.slane %v6388, %v6392
      %v6394 = vlaneseq
      %v6395 = vshrl.u32 %v6394, 7
      %v6396 = vsub.s32 1, %v6395
      %v6397 = vrot.slane %v6388, %v6396
      %v6432 = vunpack.c.l.b16 %v6292
      %v6433 = vunpack.c.h.b16 %v6292
      %v6434 = vunpack.c.l.b16 %v6293
      %v6435 = vunpack.c.h.b16 %v6293
      %v6436 = vunpack.c.l.b16 %v6294
      %v6437 = vunpack.c.h.b16 %v6294
      %v6438 = vunpack.c.l.b16 %v6295
      %v6439 = vunpack.c.h.b16 %v6295
      %v6440 = vunpack.c.l.b16 %v6296
      %v6441 = vunpack.c.h.b16 %v6296
      %v6442 = vunpack.c.l.b16 %v6297
      %v6443 = vunpack.c.h.b16 %v6297
      %v6444 = vunpack.c.l.b16 %v6298
      %v6445 = vunpack.c.h.b16 %v6298
      %v6446 = vunpack.c.l.b16 %v6299
      %v6447 = vunpack.c.h.b16 %v6299
      %v6448 = vunpack.c.l.b16 %v6300
      %v6449 = vunpack.c.h.b16 %v6300
      %v6450 = vunpack.c.l.b16 %v6301
      %v6451 = vunpack.c.h.b16 %v6301
      %v6452 = vunpack.c.l.b16 %v6302
      %v6453 = vunpack.c.h.b16 %v6302
      %v6454 = vunpack.c.l.b16 %v6303
      %v6455 = vunpack.c.h.b16 %v6303
      %v6456 = vunpack.c.l.b16 %v6304
      %v6457 = vunpack.c.h.b16 %v6304
      %v6458 = vunpack.c.l.b16 %v6305
      %v6459 = vunpack.c.h.b16 %v6305
      %v6460 = vunpack.c.l.b16 %v6306
      %v6461 = vunpack.c.h.b16 %v6306
      %v6462 = vunpack.c.l.b16 %v6307
      %v6463 = vunpack.c.h.b16 %v6307
      %v6464 = vunpack.c.l.b16 %v6308
      %v6465 = vunpack.c.h.b16 %v6308
      %v6466 = vunpack.c.l.b16 %v6309
      %v6467 = vunpack.c.h.b16 %v6309
      %v6468 = vunpack.c.l.b16 %v6310
      %v6469 = vunpack.c.h.b16 %v6310
      %v6470 = vunpack.c.l.b16 %v6311
      %v6471 = vunpack.c.h.b16 %v6311
      %v6472 = vunpack.c.l.b16 %v6312
      %v6473 = vunpack.c.h.b16 %v6312
      %v6474 = vunpack.c.l.b16 %v6313
      %v6475 = vunpack.c.h.b16 %v6313
      %v6476 = vunpack.c.l.b16 %v6314
      %v6477 = vunpack.c.h.b16 %v6314
      %v6478 = vunpack.c.l.b16 %v6315
      %v6479 = vunpack.c.h.b16 %v6315
      %v6480 = vunpack.c.l.b16 %v6316
      %v6481 = vunpack.c.h.b16 %v6316
      %v6482 = vunpack.c.l.b16 %v6317
      %v6483 = vunpack.c.h.b16 %v6317
      %v6484 = vunpack.c.l.b16 %v6318
      %v6485 = vunpack.c.h.b16 %v6318
      %v6486 = vunpack.c.l.b16 %v6319
      %v6487 = vunpack.c.h.b16 %v6319
      %v6488 = vunpack.c.l.b16 %v6320
      %v6489 = vunpack.c.h.b16 %v6320
      %v6490 = vunpack.c.l.b16 %v6321
      %v6491 = vunpack.c.h.b16 %v6321
      %v6492 = vunpack.c.l.b16 %v6322
      %v6493 = vunpack.c.h.b16 %v6322
      %v6494 = vunpack.c.l.b16 %v6323
      %v6495 = vunpack.c.h.b16 %v6323
      %v6496 = vpack.c.b16 %v6434, %v6432
      %v6497 = vpack.c.b16 %v6435, %v6433
      %v6498 = vpack.c.b16 %v6438, %v6436
      %v6499 = vpack.c.b16 %v6439, %v6437
      %v6500 = vpack.c.b16 %v6442, %v6440
      %v6501 = vpack.c.b16 %v6443, %v6441
      %v6502 = vpack.c.b16 %v6446, %v6444
      %v6503 = vpack.c.b16 %v6447, %v6445
      %v6504 = vpack.c.b16 %v6450, %v6448
      %v6505 = vpack.c.b16 %v6451, %v6449
      %v6506 = vpack.c.b16 %v6454, %v6452
      %v6507 = vpack.c.b16 %v6455, %v6453
      %v6508 = vpack.c.b16 %v6458, %v6456
      %v6509 = vpack.c.b16 %v6459, %v6457
      %v6510 = vpack.c.b16 %v6462, %v6460
      %v6511 = vpack.c.b16 %v6463, %v6461
      %v6512 = vpack.c.b16 %v6466, %v6464
      %v6513 = vpack.c.b16 %v6467, %v6465
      %v6514 = vpack.c.b16 %v6470, %v6468
      %v6515 = vpack.c.b16 %v6471, %v6469
      %v6516 = vpack.c.b16 %v6474, %v6472
      %v6517 = vpack.c.b16 %v6475, %v6473
      %v6518 = vpack.c.b16 %v6478, %v6476
      %v6519 = vpack.c.b16 %v6479, %v6477
      %v6520 = vpack.c.b16 %v6482, %v6480
      %v6521 = vpack.c.b16 %v6483, %v6481
      %v6522 = vpack.c.b16 %v6486, %v6484
      %v6523 = vpack.c.b16 %v6487, %v6485
      %v6524 = vpack.c.b16 %v6490, %v6488
      %v6525 = vpack.c.b16 %v6491, %v6489
      %v6526 = vpack.c.b16 %v6494, %v6492
      %v6527 = vpack.c.b16 %v6495, %v6493
      %6560 = vmatprep.subr.bf16.mxu0 %v6497
      %6561 = vmatpush1.bf16.msra.mxu0 %v6496
      %6562 = vmatprep.subr.bf16.mxu0 %v6499
      %6563 = vmatpush1.bf16.msra.mxu0 %v6498
      %6564 = vmatprep.subr.bf16.mxu0 %v6501
      %6565 = vmatpush1.bf16.msra.mxu0 %v6500
      %6566 = vmatprep.subr.bf16.mxu0 %v6503
      %6567 = vmatpush1.bf16.msra.mxu0 %v6502
      %6568 = vmatprep.subr.bf16.mxu0 %v6505
      %6569 = vmatpush1.bf16.msra.mxu0 %v6504
      %6570 = vmatprep.subr.bf16.mxu0 %v6507
      %6571 = vmatpush1.bf16.msra.mxu0 %v6506
      %6572 = vmatprep.subr.bf16.mxu0 %v6509
      %6573 = vmatpush1.bf16.msra.mxu0 %v6508
      %6574 = vmatprep.subr.bf16.mxu0 %v6511
      %6575 = vmatpush1.bf16.msra.mxu0 %v6510
      %6576 = vmatprep.subr.bf16.mxu0 %v6513
      %6577 = vmatpush1.bf16.msra.mxu0 %v6512
      %6578 = vmatprep.subr.bf16.mxu0 %v6515
      %6579 = vmatpush1.bf16.msra.mxu0 %v6514
      %6580 = vmatprep.subr.bf16.mxu0 %v6517
      %6581 = vmatpush1.bf16.msra.mxu0 %v6516
      %6582 = vmatprep.subr.bf16.mxu0 %v6519
      %6583 = vmatpush1.bf16.msra.mxu0 %v6518
      %6584 = vmatprep.subr.bf16.mxu0 %v6521
      %6585 = vmatpush1.bf16.msra.mxu0 %v6520
      %6586 = vmatprep.subr.bf16.mxu0 %v6523
      %6587 = vmatpush1.bf16.msra.mxu0 %v6522
      %6588 = vmatprep.subr.bf16.mxu0 %v6525
      %6589 = vmatpush1.bf16.msra.mxu0 %v6524
      %6590 = vmatprep.subr.bf16.mxu0 %v6527
      %6591 = vmatpush1.bf16.msra.mxu0 %v6526
      %6592 = vmatprep.mubr.bf16.mxu0 %v6325
      %6593 = vmatmul.mubr.bf16.gmra.mrb[0].mxu0 %v6324
      %v6594 = vpop.f32.mrb[0].mxu0
      %v6595 = vadd.f32 %v6393, %v6594
      %v6596 = vpop.f32.mrb[0].mxu0
      %v6597 = vadd.f32 %v6397, %v6596
      %v6598 = vpop.f32.mrb[0].mxu0
      %v6599 = vadd.f32 %v6393, %v6598
      %v6600 = vpop.f32.mrb[0].mxu0
      %v6601 = vadd.f32 %v6397, %v6600
      %6602 = vmatprep.mubr.bf16.mxu0 %v6327
      %6603 = vmatmul.mubr.bf16.gmra.mrb[0].mxu0 %v6326
      %v6604 = vpop.f32.mrb[0].mxu0
      %v6605 = vadd.f32 %v6393, %v6604
      %v6606 = vpop.f32.mrb[0].mxu0
      %v6607 = vadd.f32 %v6397, %v6606
      %v6608 = vpop.f32.mrb[0].mxu0
      %v6609 = vadd.f32 %v6393, %v6608
      %v6610 = vpop.f32.mrb[0].mxu0
      %v6611 = vadd.f32 %v6397, %v6610
      %6612 = vmatprep.mubr.bf16.mxu0 %v6329
      %6613 = vmatmul.mubr.bf16.gmra.mrb[0].mxu0 %v6328
      %v6614 = vpop.f32.mrb[0].mxu0
      %v6615 = vadd.f32 %v6393, %v6614
      %v6616 = vpop.f32.mrb[0].mxu0
      %v6617 = vadd.f32 %v6397, %v6616
      %v6618 = vpop.f32.mrb[0].mxu0
      %v6619 = vadd.f32 %v6393, %v6618
      %v6620 = vpop.f32.mrb[0].mxu0
      %v6621 = vadd.f32 %v6397, %v6620
      %6622 = vmatprep.mubr.bf16.mxu0 %v6331
      %6623 = vmatmul.mubr.bf16.gmra.mrb[0].mxu0 %v6330
      %v6624 = vpop.f32.mrb[0].mxu0
      %v6625 = vadd.f32 %v6393, %v6624
      %v6626 = vpop.f32.mrb[0].mxu0
      %v6627 = vadd.f32 %v6397, %v6626
      %v6628 = vpop.f32.mrb[0].mxu0
      %v6629 = vadd.f32 %v6393, %v6628
      %v6630 = vpop.f32.mrb[0].mxu0
      %v6631 = vadd.f32 %v6397, %v6630
      %6632 = vmatprep.mubr.bf16.mxu0 %v6333
      %6633 = vmatmul.mubr.bf16.gmra.mrb[0].mxu0 %v6332
      %v6634 = vpop.f32.mrb[0].mxu0
      %v6635 = vadd.f32 %v6393, %v6634
      %v6636 = vpop.f32.mrb[0].mxu0
      %v6637 = vadd.f32 %v6397, %v6636
      %v6638 = vpop.f32.mrb[0].mxu0
      %v6639 = vadd.f32 %v6393, %v6638
      %v6640 = vpop.f32.mrb[0].mxu0
      %v6641 = vadd.f32 %v6397, %v6640
      %6642 = vmatprep.mubr.bf16.mxu0 %v6335
      %6643 = vmatmul.mubr.bf16.gmra.mrb[0].mxu0 %v6334
      %v6644 = vpop.f32.mrb[0].mxu0
      %v6645 = vadd.f32 %v6393, %v6644
      %v6646 = vpop.f32.mrb[0].mxu0
      %v6647 = vadd.f32 %v6397, %v6646
      %v6648 = vpop.f32.mrb[0].mxu0
      %v6649 = vadd.f32 %v6393, %v6648
      %v6650 = vpop.f32.mrb[0].mxu0
      %v6651 = vadd.f32 %v6397, %v6650
      %6652 = vmatprep.mubr.bf16.mxu0 %v6337
      %6653 = vmatmul.mubr.bf16.gmra.mrb[0].mxu0 %v6336
      %v6654 = vpop.f32.mrb[0].mxu0
      %v6655 = vadd.f32 %v6393, %v6654
      %v6656 = vpop.f32.mrb[0].mxu0
      %v6657 = vadd.f32 %v6397, %v6656
      %v6658 = vpop.f32.mrb[0].mxu0
      %v6659 = vadd.f32 %v6393, %v6658
      %v6660 = vpop.f32.mrb[0].mxu0
      %v6661 = vadd.f32 %v6397, %v6660
      %6662 = vmatprep.mubr.bf16.mxu0 %v6339
      %6663 = vmatmul.mubr.bf16.gmra.mrb[0].mxu0 %v6338
      %v6664 = vpop.f32.mrb[0].mxu0
      %v6665 = vadd.f32 %v6393, %v6664
      %v6666 = vpop.f32.mrb[0].mxu0
      %v6667 = vadd.f32 %v6397, %v6666
      %v6668 = vpop.f32.mrb[0].mxu0
      %v6669 = vadd.f32 %v6393, %v6668
      %v6670 = vpop.f32.mrb[0].mxu0
      %v6671 = vadd.f32 %v6397, %v6670
      %6672 = vmatprep.mubr.bf16.mxu0 %v6341
      %6673 = vmatmul.mubr.bf16.gmra.mrb[0].mxu0 %v6340
      %v6674 = vpop.f32.mrb[0].mxu0
      %v6675 = vadd.f32 %v6393, %v6674
      %v6676 = vpop.f32.mrb[0].mxu0
      %v6677 = vadd.f32 %v6397, %v6676
      %v6678 = vpop.f32.mrb[0].mxu0
      %v6679 = vadd.f32 %v6393, %v6678
      %v6680 = vpop.f32.mrb[0].mxu0
      %v6681 = vadd.f32 %v6397, %v6680
      %6682 = vmatprep.mubr.bf16.mxu0 %v6343
      %6683 = vmatmul.mubr.bf16.gmra.mrb[0].mxu0 %v6342
      %v6684 = vpop.f32.mrb[0].mxu0
      %v6685 = vadd.f32 %v6393, %v6684
      %v6686 = vpop.f32.mrb[0].mxu0
      %v6687 = vadd.f32 %v6397, %v6686
      %v6688 = vpop.f32.mrb[0].mxu0
      %v6689 = vadd.f32 %v6393, %v6688
      %v6690 = vpop.f32.mrb[0].mxu0
      %v6691 = vadd.f32 %v6397, %v6690
      %6692 = vmatprep.mubr.bf16.mxu0 %v6345
      %6693 = vmatmul.mubr.bf16.gmra.mrb[0].mxu0 %v6344
      %v6694 = vpop.f32.mrb[0].mxu0
      %v6695 = vadd.f32 %v6393, %v6694
      %v6696 = vpop.f32.mrb[0].mxu0
      %v6697 = vadd.f32 %v6397, %v6696
      %v6698 = vpop.f32.mrb[0].mxu0
      %v6699 = vadd.f32 %v6393, %v6698
      %v6700 = vpop.f32.mrb[0].mxu0
      %v6701 = vadd.f32 %v6397, %v6700
      %6702 = vmatprep.mubr.bf16.mxu0 %v6347
      %6703 = vmatmul.mubr.bf16.gmra.mrb[0].mxu0 %v6346
      %v6704 = vpop.f32.mrb[0].mxu0
      %v6705 = vadd.f32 %v6393, %v6704
      %v6706 = vpop.f32.mrb[0].mxu0
      %v6707 = vadd.f32 %v6397, %v6706
      %v6708 = vpop.f32.mrb[0].mxu0
      %v6709 = vadd.f32 %v6393, %v6708
      %v6710 = vpop.f32.mrb[0].mxu0
      %v6711 = vadd.f32 %v6397, %v6710
      %6712 = vmatprep.mubr.bf16.mxu0 %v6349
      %6713 = vmatmul.mubr.bf16.gmra.mrb[0].mxu0 %v6348
      %v6714 = vpop.f32.mrb[0].mxu0
      %v6715 = vadd.f32 %v6393, %v6714
      %v6716 = vpop.f32.mrb[0].mxu0
      %v6717 = vadd.f32 %v6397, %v6716
      %v6718 = vpop.f32.mrb[0].mxu0
      %v6719 = vadd.f32 %v6393, %v6718
      %v6720 = vpop.f32.mrb[0].mxu0
      %v6721 = vadd.f32 %v6397, %v6720
      %6722 = vmatprep.mubr.bf16.mxu0 %v6351
      %6723 = vmatmul.mubr.bf16.gmra.mrb[0].mxu0 %v6350
      %v6724 = vpop.f32.mrb[0].mxu0
      %v6725 = vadd.f32 %v6393, %v6724
      %v6726 = vpop.f32.mrb[0].mxu0
      %v6727 = vadd.f32 %v6397, %v6726
      %v6728 = vpop.f32.mrb[0].mxu0
      %v6729 = vadd.f32 %v6393, %v6728
      %v6730 = vpop.f32.mrb[0].mxu0
      %v6731 = vadd.f32 %v6397, %v6730
      %6732 = vmatprep.mubr.bf16.mxu0 %v6353
      %6733 = vmatmul.mubr.bf16.gmra.mrb[0].mxu0 %v6352
      %v6734 = vpop.f32.mrb[0].mxu0
      %v6735 = vadd.f32 %v6393, %v6734
      %v6736 = vpop.f32.mrb[0].mxu0
      %v6737 = vadd.f32 %v6397, %v6736
      %v6738 = vpop.f32.mrb[0].mxu0
      %v6739 = vadd.f32 %v6393, %v6738
      %v6740 = vpop.f32.mrb[0].mxu0
      %v6741 = vadd.f32 %v6397, %v6740
      %6742 = vmatprep.mubr.bf16.mxu0 %v6355
      %6743 = vmatmul.mubr.bf16.gmra.mrb[0].mxu0 %v6354
      %v6744 = vpop.f32.mrb[0].mxu0
      %v6745 = vadd.f32 %v6393, %v6744
      %v6746 = vpop.f32.mrb[0].mxu0
      %v6747 = vadd.f32 %v6397, %v6746
      %v6748 = vpop.f32.mrb[0].mxu0
      %v6749 = vadd.f32 %v6393, %v6748
      %v6750 = vpop.f32.mrb[0].mxu0
      %v6751 = vadd.f32 %v6397, %v6750
      %6752 = vmatprep.mubr.bf16.mxu0 %v6357
      %6753 = vmatmul.mubr.bf16.gmra.mrb[0].mxu0 %v6356
      %v6754 = vpop.f32.mrb[0].mxu0
      %v6755 = vadd.f32 %v6393, %v6754
      %v6756 = vpop.f32.mrb[0].mxu0
      %v6757 = vadd.f32 %v6397, %v6756
      %v6758 = vpop.f32.mrb[0].mxu0
      %v6759 = vadd.f32 %v6393, %v6758
      %v6760 = vpop.f32.mrb[0].mxu0
      %v6761 = vadd.f32 %v6397, %v6760
      %6762 = vmatprep.mubr.bf16.mxu0 %v6359
      %6763 = vmatmul.mubr.bf16.gmra.mrb[0].mxu0 %v6358
      %v6764 = vpop.f32.mrb[0].mxu0
      %v6765 = vadd.f32 %v6393, %v6764
      %v6766 = vpop.f32.mrb[0].mxu0
      %v6767 = vadd.f32 %v6397, %v6766
      %v6768 = vpop.f32.mrb[0].mxu0
      %v6769 = vadd.f32 %v6393, %v6768
      %v6770 = vpop.f32.mrb[0].mxu0
      %v6771 = vadd.f32 %v6397, %v6770
      %6772 = vmatprep.mubr.bf16.mxu0 %v6361
      %6773 = vmatmul.mubr.bf16.gmra.mrb[0].mxu0 %v6360
      %v6774 = vpop.f32.mrb[0].mxu0
      %v6775 = vadd.f32 %v6393, %v6774
      %v6776 = vpop.f32.mrb[0].mxu0
      %v6777 = vadd.f32 %v6397, %v6776
      %v6778 = vpop.f32.mrb[0].mxu0
      %v6779 = vadd.f32 %v6393, %v6778
      %v6780 = vpop.f32.mrb[0].mxu0
      %v6781 = vadd.f32 %v6397, %v6780
      %6782 = vmatprep.mubr.bf16.mxu0 %v6363
      %6783 = vmatmul.mubr.bf16.gmra.mrb[0].mxu0 %v6362
      %v6784 = vpop.f32.mrb[0].mxu0
      %v6785 = vadd.f32 %v6393, %v6784
      %v6786 = vpop.f32.mrb[0].mxu0
      %v6787 = vadd.f32 %v6397, %v6786
      %v6788 = vpop.f32.mrb[0].mxu0
      %v6789 = vadd.f32 %v6393, %v6788
      %v6790 = vpop.f32.mrb[0].mxu0
      %v6791 = vadd.f32 %v6397, %v6790
      %6792 = vmatprep.mubr.bf16.mxu0 %v6365
      %6793 = vmatmul.mubr.bf16.gmra.mrb[0].mxu0 %v6364
      %v6794 = vpop.f32.mrb[0].mxu0
      %v6795 = vadd.f32 %v6393, %v6794
      %v6796 = vpop.f32.mrb[0].mxu0
      %v6797 = vadd.f32 %v6397, %v6796
      %v6798 = vpop.f32.mrb[0].mxu0
      %v6799 = vadd.f32 %v6393, %v6798
      %v6800 = vpop.f32.mrb[0].mxu0
      %v6801 = vadd.f32 %v6397, %v6800
      %6802 = vmatprep.mubr.bf16.mxu0 %v6367
      %6803 = vmatmul.mubr.bf16.gmra.mrb[0].mxu0 %v6366
      %v6804 = vpop.f32.mrb[0].mxu0
      %v6805 = vadd.f32 %v6393, %v6804
      %v6806 = vpop.f32.mrb[0].mxu0
      %v6807 = vadd.f32 %v6397, %v6806
      %v6808 = vpop.f32.mrb[0].mxu0
      %v6809 = vadd.f32 %v6393, %v6808
      %v6810 = vpop.f32.mrb[0].mxu0
      %v6811 = vadd.f32 %v6397, %v6810
      %6812 = vmatprep.mubr.bf16.mxu0 %v6369
      %6813 = vmatmul.mubr.bf16.gmra.mrb[0].mxu0 %v6368
      %v6814 = vpop.f32.mrb[0].mxu0
      %v6815 = vadd.f32 %v6393, %v6814
      %v6816 = vpop.f32.mrb[0].mxu0
      %v6817 = vadd.f32 %v6397, %v6816
      %v6818 = vpop.f32.mrb[0].mxu0
      %v6819 = vadd.f32 %v6393, %v6818
      %v6820 = vpop.f32.mrb[0].mxu0
      %v6821 = vadd.f32 %v6397, %v6820
      %6822 = vmatprep.mubr.bf16.mxu0 %v6371
      %6823 = vmatmul.mubr.bf16.gmra.mrb[0].mxu0 %v6370
      %v6824 = vpop.f32.mrb[0].mxu0
      %v6825 = vadd.f32 %v6393, %v6824
      %v6826 = vpop.f32.mrb[0].mxu0
      %v6827 = vadd.f32 %v6397, %v6826
      %v6828 = vpop.f32.mrb[0].mxu0
      %v6829 = vadd.f32 %v6393, %v6828
      %v6830 = vpop.f32.mrb[0].mxu0
      %v6831 = vadd.f32 %v6397, %v6830
      %6832 = vmatprep.mubr.bf16.mxu0 %v6373
      %6833 = vmatmul.mubr.bf16.gmra.mrb[0].mxu0 %v6372
      %v6834 = vpop.f32.mrb[0].mxu0
      %v6835 = vadd.f32 %v6393, %v6834
      %v6836 = vpop.f32.mrb[0].mxu0
      %v6837 = vadd.f32 %v6397, %v6836
      %v6838 = vpop.f32.mrb[0].mxu0
      %v6839 = vadd.f32 %v6393, %v6838
      %v6840 = vpop.f32.mrb[0].mxu0
      %v6841 = vadd.f32 %v6397, %v6840
      %6842 = vmatprep.mubr.bf16.mxu0 %v6375
      %6843 = vmatmul.mubr.bf16.gmra.mrb[0].mxu0 %v6374
      %v6844 = vpop.f32.mrb[0].mxu0
      %v6845 = vadd.f32 %v6393, %v6844
      %v6846 = vpop.f32.mrb[0].mxu0
      %v6847 = vadd.f32 %v6397, %v6846
      %v6848 = vpop.f32.mrb[0].mxu0
      %v6849 = vadd.f32 %v6393, %v6848
      %v6850 = vpop.f32.mrb[0].mxu0
      %v6851 = vadd.f32 %v6397, %v6850
      %6852 = vmatprep.mubr.bf16.mxu0 %v6377
      %6853 = vmatmul.mubr.bf16.gmra.mrb[0].mxu0 %v6376
      %v6854 = vpop.f32.mrb[0].mxu0
      %v6855 = vadd.f32 %v6393, %v6854
      %v6856 = vpop.f32.mrb[0].mxu0
      %v6857 = vadd.f32 %v6397, %v6856
      %v6858 = vpop.f32.mrb[0].mxu0
      %v6859 = vadd.f32 %v6393, %v6858
      %v6860 = vpop.f32.mrb[0].mxu0
      %v6861 = vadd.f32 %v6397, %v6860
      %6862 = vmatprep.mubr.bf16.mxu0 %v6379
      %6863 = vmatmul.mubr.bf16.gmra.mrb[0].mxu0 %v6378
      %v6864 = vpop.f32.mrb[0].mxu0
      %v6865 = vadd.f32 %v6393, %v6864
      %v6866 = vpop.f32.mrb[0].mxu0
      %v6867 = vadd.f32 %v6397, %v6866
      %v6868 = vpop.f32.mrb[0].mxu0
      %v6869 = vadd.f32 %v6393, %v6868
      %v6870 = vpop.f32.mrb[0].mxu0
      %v6871 = vadd.f32 %v6397, %v6870
      %6872 = vmatprep.mubr.bf16.mxu0 %v6381
      %6873 = vmatmul.mubr.bf16.gmra.mrb[0].mxu0 %v6380
      %v6874 = vpop.f32.mrb[0].mxu0
      %v6875 = vadd.f32 %v6393, %v6874
      %v6876 = vpop.f32.mrb[0].mxu0
      %v6877 = vadd.f32 %v6397, %v6876
      %v6878 = vpop.f32.mrb[0].mxu0
      %v6879 = vadd.f32 %v6393, %v6878
      %v6880 = vpop.f32.mrb[0].mxu0
      %v6881 = vadd.f32 %v6397, %v6880
      %6882 = vmatprep.mubr.bf16.mxu0 %v6383
      %6883 = vmatmul.mubr.bf16.gmra.mrb[0].mxu0 %v6382
      %v6884 = vpop.f32.mrb[0].mxu0
      %v6885 = vadd.f32 %v6393, %v6884
      %v6886 = vpop.f32.mrb[0].mxu0
      %v6887 = vadd.f32 %v6397, %v6886
      %v6888 = vpop.f32.mrb[0].mxu0
      %v6889 = vadd.f32 %v6393, %v6888
      %v6890 = vpop.f32.mrb[0].mxu0
      %v6891 = vadd.f32 %v6397, %v6890
      %6892 = vmatprep.mubr.bf16.mxu0 %v6385
      %6893 = vmatmul.mubr.bf16.gmra.mrb[0].mxu0 %v6384
      %v6894 = vpop.f32.mrb[0].mxu0
      %v6895 = vadd.f32 %v6393, %v6894
      %v6896 = vpop.f32.mrb[0].mxu0
      %v6897 = vadd.f32 %v6397, %v6896
      %v6898 = vpop.f32.mrb[0].mxu0
      %v6899 = vadd.f32 %v6393, %v6898
      %v6900 = vpop.f32.mrb[0].mxu0
      %v6901 = vadd.f32 %v6397, %v6900
      %6902 = vmatprep.mubr.bf16.mxu0 %v6387
      %6903 = vmatmul.mubr.bf16.gmra.mrb[0].mxu0 %v6386
      %v6904 = vpop.f32.mrb[0].mxu0
      %v6905 = vadd.f32 %v6393, %v6904
      %v6906 = vpop.f32.mrb[0].mxu0
      %v6907 = vadd.f32 %v6397, %v6906
      %v6908 = vpop.f32.mrb[0].mxu0
      %v6909 = vadd.f32 %v6393, %v6908
      %v6910 = vpop.f32.mrb[0].mxu0
      %v6911 = vadd.f32 %v6397, %v6910
      %6912 = vdwg.mxu0
      %v6913 = vmax.f32 %v6595, 0.0
      %v6914 = vmax.f32 %v6597, 0.0
      %v6915 = vmax.f32 %v6599, 0.0
      %v6916 = vmax.f32 %v6601, 0.0
      %v6917 = vmax.f32 %v6605, 0.0
      %v6918 = vmax.f32 %v6607, 0.0
      %v6919 = vmax.f32 %v6609, 0.0
      %v6920 = vmax.f32 %v6611, 0.0
      %v6921 = vmax.f32 %v6615, 0.0
      %v6922 = vmax.f32 %v6617, 0.0
      %v6923 = vmax.f32 %v6619, 0.0
      %v6924 = vmax.f32 %v6621, 0.0
      %v6925 = vmax.f32 %v6625, 0.0
      %v6926 = vmax.f32 %v6627, 0.0
      %v6927 = vmax.f32 %v6629, 0.0
      %v6928 = vmax.f32 %v6631, 0.0
      %v6929 = vmax.f32 %v6635, 0.0
      %v6930 = vmax.f32 %v6637, 0.0
      %v6931 = vmax.f32 %v6639, 0.0
      %v6932 = vmax.f32 %v6641, 0.0
      %v6933 = vmax.f32 %v6645, 0.0
      %v6934 = vmax.f32 %v6647, 0.0
      %v6935 = vmax.f32 %v6649, 0.0
      %v6936 = vmax.f32 %v6651, 0.0
      %v6937 = vmax.f32 %v6655, 0.0
      %v6938 = vmax.f32 %v6657, 0.0
      %v6939 = vmax.f32 %v6659, 0.0
      %v6940 = vmax.f32 %v6661, 0.0
      %v6941 = vmax.f32 %v6665, 0.0
      %v6942 = vmax.f32 %v6667, 0.0
      %v6943 = vmax.f32 %v6669, 0.0
      %v6944 = vmax.f32 %v6671, 0.0
      %v6945 = vmax.f32 %v6675, 0.0
      %v6946 = vmax.f32 %v6677, 0.0
      %v6947 = vmax.f32 %v6679, 0.0
      %v6948 = vmax.f32 %v6681, 0.0
      %v6949 = vmax.f32 %v6685, 0.0
      %v6950 = vmax.f32 %v6687, 0.0
      %v6951 = vmax.f32 %v6689, 0.0
      %v6952 = vmax.f32 %v6691, 0.0
      %v6953 = vmax.f32 %v6695, 0.0
      %v6954 = vmax.f32 %v6697, 0.0
      %v6955 = vmax.f32 %v6699, 0.0
      %v6956 = vmax.f32 %v6701, 0.0
      %v6957 = vmax.f32 %v6705, 0.0
      %v6958 = vmax.f32 %v6707, 0.0
      %v6959 = vmax.f32 %v6709, 0.0
      %v6960 = vmax.f32 %v6711, 0.0
      %v6961 = vmax.f32 %v6715, 0.0
      %v6962 = vmax.f32 %v6717, 0.0
      %v6963 = vmax.f32 %v6719, 0.0
      %v6964 = vmax.f32 %v6721, 0.0
      %v6965 = vmax.f32 %v6725, 0.0
      %v6966 = vmax.f32 %v6727, 0.0
      %v6967 = vmax.f32 %v6729, 0.0
      %v6968 = vmax.f32 %v6731, 0.0
      %v6969 = vmax.f32 %v6735, 0.0
      %v6970 = vmax.f32 %v6737, 0.0
      %v6971 = vmax.f32 %v6739, 0.0
      %v6972 = vmax.f32 %v6741, 0.0
      %v6973 = vmax.f32 %v6745, 0.0
      %v6974 = vmax.f32 %v6747, 0.0
      %v6975 = vmax.f32 %v6749, 0.0
      %v6976 = vmax.f32 %v6751, 0.0
      %v6977 = vmax.f32 %v6755, 0.0
      %v6978 = vmax.f32 %v6757, 0.0
      %v6979 = vmax.f32 %v6759, 0.0
      %v6980 = vmax.f32 %v6761, 0.0
      %v6981 = vmax.f32 %v6765, 0.0
      %v6982 = vmax.f32 %v6767, 0.0
      %v6983 = vmax.f32 %v6769, 0.0
      %v6984 = vmax.f32 %v6771, 0.0
      %v6985 = vmax.f32 %v6775, 0.0
      %v6986 = vmax.f32 %v6777, 0.0
      %v6987 = vmax.f32 %v6779, 0.0
      %v6988 = vmax.f32 %v6781, 0.0
      %v6989 = vmax.f32 %v6785, 0.0
      %v6990 = vmax.f32 %v6787, 0.0
      %v6991 = vmax.f32 %v6789, 0.0
      %v6992 = vmax.f32 %v6791, 0.0
      %v6993 = vmax.f32 %v6795, 0.0
      %v6994 = vmax.f32 %v6797, 0.0
      %v6995 = vmax.f32 %v6799, 0.0
      %v6996 = vmax.f32 %v6801, 0.0
      %v6997 = vmax.f32 %v6805, 0.0
      %v6998 = vmax.f32 %v6807, 0.0
      %v6999 = vmax.f32 %v6809, 0.0
      %v7000 = vmax.f32 %v6811, 0.0
      %v7001 = vmax.f32 %v6815, 0.0
      %v7002 = vmax.f32 %v6817, 0.0
      %v7003 = vmax.f32 %v6819, 0.0
      %v7004 = vmax.f32 %v6821, 0.0
      %v7005 = vmax.f32 %v6825, 0.0
      %v7006 = vmax.f32 %v6827, 0.0
      %v7007 = vmax.f32 %v6829, 0.0
      %v7008 = vmax.f32 %v6831, 0.0
      %v7009 = vmax.f32 %v6835, 0.0
      %v7010 = vmax.f32 %v6837, 0.0
      %v7011 = vmax.f32 %v6839, 0.0
      %v7012 = vmax.f32 %v6841, 0.0
      %v7013 = vmax.f32 %v6845, 0.0
      %v7014 = vmax.f32 %v6847, 0.0
      %v7015 = vmax.f32 %v6849, 0.0
      %v7016 = vmax.f32 %v6851, 0.0
      %v7017 = vmax.f32 %v6855, 0.0
      %v7018 = vmax.f32 %v6857, 0.0
      %v7019 = vmax.f32 %v6859, 0.0
      %v7020 = vmax.f32 %v6861, 0.0
      %v7021 = vmax.f32 %v6865, 0.0
      %v7022 = vmax.f32 %v6867, 0.0
      %v7023 = vmax.f32 %v6869, 0.0
      %v7024 = vmax.f32 %v6871, 0.0
      %v7025 = vmax.f32 %v6875, 0.0
      %v7026 = vmax.f32 %v6877, 0.0
      %v7027 = vmax.f32 %v6879, 0.0
      %v7028 = vmax.f32 %v6881, 0.0
      %v7029 = vmax.f32 %v6885, 0.0
      %v7030 = vmax.f32 %v6887, 0.0
      %v7031 = vmax.f32 %v6889, 0.0
      %v7032 = vmax.f32 %v6891, 0.0
      %v7033 = vmax.f32 %v6895, 0.0
      %v7034 = vmax.f32 %v6897, 0.0
      %v7035 = vmax.f32 %v6899, 0.0
      %v7036 = vmax.f32 %v6901, 0.0
      %v7037 = vmax.f32 %v6905, 0.0
      %v7038 = vmax.f32 %v6907, 0.0
      %v7039 = vmax.f32 %v6909, 0.0
      %v7040 = vmax.f32 %v6911, 0.0
      %v7041 = vld [vmem:[%s4] sm:$0xff]
      %v7042 = vld [vmem:[%s4 + $0x8] sm:$0xf]
      %v7043 = vld [vmem:[%s4 + $0x10] sm:$0xff]
      %v7044 = vld [vmem:[%s4 + $0x18] sm:$0xf]
      %v7045 = vld [vmem:[%s4 + $0x20] sm:$0xff]
      %v7046 = vld [vmem:[%s4 + $0x28] sm:$0xf]
      %v7047 = vld [vmem:[%s4 + $0x30] sm:$0xff]
      %v7048 = vld [vmem:[%s4 + $0x38] sm:$0xf]
      %v7049 = vld [vmem:[%s4 + $0x40] sm:$0xff]
      %v7050 = vld [vmem:[%s4 + $0x48] sm:$0xf]
      %v7051 = vld [vmem:[%s4 + $0x50] sm:$0xff]
      %v7052 = vld [vmem:[%s4 + $0x58] sm:$0xf]
      %v7053 = vld [vmem:[%s4 + $0x60] sm:$0xff]
      %v7054 = vld [vmem:[%s4 + $0x68] sm:$0xf]
      %v7055 = vld [vmem:[%s4 + $0x70] sm:$0xff]
      %v7056 = vld [vmem:[%s4 + $0x78] sm:$0xf]
      %v7057 = vld [vmem:[%s4 + $0x80] sm:$0xff]
      %v7058 = vld [vmem:[%s4 + $0x88] sm:$0xf]
      %v7059 = vld [vmem:[%s4 + $0x90] sm:$0xff]
      %v7060 = vld [vmem:[%s4 + $0x98] sm:$0xf]
      %v7061 = vld [vmem:[%s4 + $0xa0] sm:$0xff]
      %v7062 = vld [vmem:[%s4 + $0xa8] sm:$0xf]
      %v7063 = vld [vmem:[%s4 + $0xb0] sm:$0xff]
      %v7064 = vld [vmem:[%s4 + $0xb8] sm:$0xf]
      %v7065 = vld [vmem:[%s4 + $0xc0] sm:$0xff]
      %v7066 = vld [vmem:[%s4 + $0xc8] sm:$0xf]
      %v7067 = vld [vmem:[%s4 + $0xd0] sm:$0xff]
      %v7068 = vld [vmem:[%s4 + $0xd8] sm:$0xf]
      %v7069 = vld [vmem:[%s4 + $0xe0] sm:$0xff]
      %v7070 = vld [vmem:[%s4 + $0xe8] sm:$0xf]
      %v7071 = vld [vmem:[%s4 + $0xf0] sm:$0xff]
      %v7072 = vld [vmem:[%s4 + $0xf8] sm:$0xf]
      %v7073 = vld [vmem:[%s4 + $0x100] sm:$0xff]
      %v7074 = vld [vmem:[%s4 + $0x108] sm:$0xf]
      %v7075 = vld [vmem:[%s4 + $0x110] sm:$0xff]
      %v7076 = vld [vmem:[%s4 + $0x118] sm:$0xf]
      %v7077 = vld [vmem:[%s4 + $0x120] sm:$0xff]
      %v7078 = vld [vmem:[%s4 + $0x128] sm:$0xf]
      %v7079 = vld [vmem:[%s4 + $0x130] sm:$0xff]
      %v7080 = vld [vmem:[%s4 + $0x138] sm:$0xf]
      %v7081 = vld [vmem:[%s4 + $0x140] sm:$0xff]
      %v7082 = vld [vmem:[%s4 + $0x148] sm:$0xf]
      %v7083 = vld [vmem:[%s4 + $0x150] sm:$0xff]
      %v7084 = vld [vmem:[%s4 + $0x158] sm:$0xf]
      %v7085 = vld [vmem:[%s4 + $0x160] sm:$0xff]
      %v7086 = vld [vmem:[%s4 + $0x168] sm:$0xf]
      %v7087 = vld [vmem:[%s4 + $0x170] sm:$0xff]
      %v7088 = vld [vmem:[%s4 + $0x178] sm:$0xf]
      %v7089 = vld [vmem:[%s4 + $0x180] sm:$0xff]
      %v7090 = vld [vmem:[%s4 + $0x188] sm:$0xf]
      %v7091 = vld [vmem:[%s4 + $0x190] sm:$0xff]
      %v7092 = vld [vmem:[%s4 + $0x198] sm:$0xf]
      %v7093 = vld [vmem:[%s4 + $0x1a0] sm:$0xff]
      %v7094 = vld [vmem:[%s4 + $0x1a8] sm:$0xf]
      %v7095 = vld [vmem:[%s4 + $0x1b0] sm:$0xff]
      %v7096 = vld [vmem:[%s4 + $0x1b8] sm:$0xf]
      %v7097 = vld [vmem:[%s4 + $0x1c0] sm:$0xff]
      %v7098 = vld [vmem:[%s4 + $0x1c8] sm:$0xf]
      %v7099 = vld [vmem:[%s4 + $0x1d0] sm:$0xff]
      %v7100 = vld [vmem:[%s4 + $0x1d8] sm:$0xf]
      %v7101 = vld [vmem:[%s4 + $0x1e0] sm:$0xff]
      %v7102 = vld [vmem:[%s4 + $0x1e8] sm:$0xf]
      %v7103 = vld [vmem:[%s4 + $0x1f0] sm:$0xff]
      %v7104 = vld [vmem:[%s4 + $0x1f8] sm:$0xf]
      %v7105 = vpack.c.bf16 %v6915, %v6913
      %v7106 = vpack.c.bf16 %v6916, %v6914
      %v7107 = vpack.c.bf16 %v6919, %v6917
      %v7108 = vpack.c.bf16 %v6920, %v6918
      %v7109 = vpack.c.bf16 %v6923, %v6921
      %v7110 = vpack.c.bf16 %v6924, %v6922
      %v7111 = vpack.c.bf16 %v6927, %v6925
      %v7112 = vpack.c.bf16 %v6928, %v6926
      %v7113 = vpack.c.bf16 %v6931, %v6929
      %v7114 = vpack.c.bf16 %v6932, %v6930
      %v7115 = vpack.c.bf16 %v6935, %v6933
      %v7116 = vpack.c.bf16 %v6936, %v6934
      %v7117 = vpack.c.bf16 %v6939, %v6937
      %v7118 = vpack.c.bf16 %v6940, %v6938
      %v7119 = vpack.c.bf16 %v6943, %v6941
      %v7120 = vpack.c.bf16 %v6944, %v6942
      %v7121 = vpack.c.bf16 %v6947, %v6945
      %v7122 = vpack.c.bf16 %v6948, %v6946
      %v7123 = vpack.c.bf16 %v6951, %v6949
      %v7124 = vpack.c.bf16 %v6952, %v6950
      %v7125 = vpack.c.bf16 %v6955, %v6953
      %v7126 = vpack.c.bf16 %v6956, %v6954
      %v7127 = vpack.c.bf16 %v6959, %v6957
      %v7128 = vpack.c.bf16 %v6960, %v6958
      %v7129 = vpack.c.bf16 %v6963, %v6961
      %v7130 = vpack.c.bf16 %v6964, %v6962
      %v7131 = vpack.c.bf16 %v6967, %v6965
      %v7132 = vpack.c.bf16 %v6968, %v6966
      %v7133 = vpack.c.bf16 %v6971, %v6969
      %v7134 = vpack.c.bf16 %v6972, %v6970
      %v7135 = vpack.c.bf16 %v6975, %v6973
      %v7136 = vpack.c.bf16 %v6976, %v6974
      %v7137 = vpack.c.bf16 %v6979, %v6977
      %v7138 = vpack.c.bf16 %v6980, %v6978
      %v7139 = vpack.c.bf16 %v6983, %v6981
      %v7140 = vpack.c.bf16 %v6984, %v6982
      %v7141 = vpack.c.bf16 %v6987, %v6985
      %v7142 = vpack.c.bf16 %v6988, %v6986
      %v7143 = vpack.c.bf16 %v6991, %v6989
      %v7144 = vpack.c.bf16 %v6992, %v6990
      %v7145 = vpack.c.bf16 %v6995, %v6993
      %v7146 = vpack.c.bf16 %v6996, %v6994
      %v7147 = vpack.c.bf16 %v6999, %v6997
      %v7148 = vpack.c.bf16 %v7000, %v6998
      %v7149 = vpack.c.bf16 %v7003, %v7001
      %v7150 = vpack.c.bf16 %v7004, %v7002
      %v7151 = vpack.c.bf16 %v7007, %v7005
      %v7152 = vpack.c.bf16 %v7008, %v7006
      %v7153 = vpack.c.bf16 %v7011, %v7009
      %v7154 = vpack.c.bf16 %v7012, %v7010
      %v7155 = vpack.c.bf16 %v7015, %v7013
      %v7156 = vpack.c.bf16 %v7016, %v7014
      %v7157 = vpack.c.bf16 %v7019, %v7017
      %v7158 = vpack.c.bf16 %v7020, %v7018
      %v7159 = vpack.c.bf16 %v7023, %v7021
      %v7160 = vpack.c.bf16 %v7024, %v7022
      %v7161 = vpack.c.bf16 %v7027, %v7025
      %v7162 = vpack.c.bf16 %v7028, %v7026
      %v7163 = vpack.c.bf16 %v7031, %v7029
      %v7164 = vpack.c.bf16 %v7032, %v7030
      %v7165 = vpack.c.bf16 %v7035, %v7033
      %v7166 = vpack.c.bf16 %v7036, %v7034
      %v7167 = vpack.c.bf16 %v7039, %v7037
      %v7168 = vpack.c.bf16 %v7040, %v7038
      %v7169 = vld [vmem:[%s6 + $0x10] sm:$0x7]
      %v7171 = vlaneseq
      %v7172 = vshrl.u32 %v7171, 7
      %v7173 = vsub.s32 0, %v7172
      %v7174 = vrot.slane %v7169, %v7173
      %v7175 = vlaneseq
      %v7176 = vshrl.u32 %v7175, 7
      %v7177 = vsub.s32 1, %v7176
      %v7178 = vrot.slane %v7169, %v7177
      %v7179 = vlaneseq
      %v7180 = vshrl.u32 %v7179, 7
      %v7181 = vsub.s32 2, %v7180
      %v7182 = vrot.slane %v7169, %v7181
      %v7250 = vunpack.c.l.b16 %v7041
      %v7251 = vunpack.c.h.b16 %v7041
      %v7252 = vunpack.c.l.b16 %v7042
      %v7253 = vunpack.c.l.b16 %v7043
      %v7254 = vunpack.c.h.b16 %v7043
      %v7255 = vunpack.c.l.b16 %v7044
      %v7256 = vunpack.c.l.b16 %v7045
      %v7257 = vunpack.c.h.b16 %v7045
      %v7258 = vunpack.c.l.b16 %v7046
      %v7259 = vunpack.c.l.b16 %v7047
      %v7260 = vunpack.c.h.b16 %v7047
      %v7261 = vunpack.c.l.b16 %v7048
      %v7262 = vunpack.c.l.b16 %v7049
      %v7263 = vunpack.c.h.b16 %v7049
      %v7264 = vunpack.c.l.b16 %v7050
      %v7265 = vunpack.c.l.b16 %v7051
      %v7266 = vunpack.c.h.b16 %v7051
      %v7267 = vunpack.c.l.b16 %v7052
      %v7268 = vunpack.c.l.b16 %v7053
      %v7269 = vunpack.c.h.b16 %v7053
      %v7270 = vunpack.c.l.b16 %v7054
      %v7271 = vunpack.c.l.b16 %v7055
      %v7272 = vunpack.c.h.b16 %v7055
      %v7273 = vunpack.c.l.b16 %v7056
      %v7274 = vunpack.c.l.b16 %v7057
      %v7275 = vunpack.c.h.b16 %v7057
      %v7276 = vunpack.c.l.b16 %v7058
      %v7277 = vunpack.c.l.b16 %v7059
      %v7278 = vunpack.c.h.b16 %v7059
      %v7279 = vunpack.c.l.b16 %v7060
      %v7280 = vunpack.c.l.b16 %v7061
      %v7281 = vunpack.c.h.b16 %v7061
      %v7282 = vunpack.c.l.b16 %v7062
      %v7283 = vunpack.c.l.b16 %v7063
      %v7284 = vunpack.c.h.b16 %v7063
      %v7285 = vunpack.c.l.b16 %v7064
      %v7286 = vunpack.c.l.b16 %v7065
      %v7287 = vunpack.c.h.b16 %v7065
      %v7288 = vunpack.c.l.b16 %v7066
      %v7289 = vunpack.c.l.b16 %v7067
      %v7290 = vunpack.c.h.b16 %v7067
      %v7291 = vunpack.c.l.b16 %v7068
      %v7292 = vunpack.c.l.b16 %v7069
      %v7293 = vunpack.c.h.b16 %v7069
      %v7294 = vunpack.c.l.b16 %v7070
      %v7295 = vunpack.c.l.b16 %v7071
      %v7296 = vunpack.c.h.b16 %v7071
      %v7297 = vunpack.c.l.b16 %v7072
      %v7298 = vunpack.c.l.b16 %v7073
      %v7299 = vunpack.c.h.b16 %v7073
      %v7300 = vunpack.c.l.b16 %v7074
      %v7301 = vunpack.c.l.b16 %v7075
      %v7302 = vunpack.c.h.b16 %v7075
      %v7303 = vunpack.c.l.b16 %v7076
      %v7304 = vunpack.c.l.b16 %v7077
      %v7305 = vunpack.c.h.b16 %v7077
      %v7306 = vunpack.c.l.b16 %v7078
      %v7307 = vunpack.c.l.b16 %v7079
      %v7308 = vunpack.c.h.b16 %v7079
      %v7309 = vunpack.c.l.b16 %v7080
      %v7310 = vunpack.c.l.b16 %v7081
      %v7311 = vunpack.c.h.b16 %v7081
      %v7312 = vunpack.c.l.b16 %v7082
      %v7313 = vunpack.c.l.b16 %v7083
      %v7314 = vunpack.c.h.b16 %v7083
      %v7315 = vunpack.c.l.b16 %v7084
      %v7316 = vunpack.c.l.b16 %v7085
      %v7317 = vunpack.c.h.b16 %v7085
      %v7318 = vunpack.c.l.b16 %v7086
      %v7319 = vunpack.c.l.b16 %v7087
      %v7320 = vunpack.c.h.b16 %v7087
      %v7321 = vunpack.c.l.b16 %v7088
      %v7322 = vunpack.c.l.b16 %v7089
      %v7323 = vunpack.c.h.b16 %v7089
      %v7324 = vunpack.c.l.b16 %v7090
      %v7325 = vunpack.c.l.b16 %v7091
      %v7326 = vunpack.c.h.b16 %v7091
      %v7327 = vunpack.c.l.b16 %v7092
      %v7328 = vunpack.c.l.b16 %v7093
      %v7329 = vunpack.c.h.b16 %v7093
      %v7330 = vunpack.c.l.b16 %v7094
      %v7331 = vunpack.c.l.b16 %v7095
      %v7332 = vunpack.c.h.b16 %v7095
      %v7333 = vunpack.c.l.b16 %v7096
      %v7334 = vunpack.c.l.b16 %v7097
      %v7335 = vunpack.c.h.b16 %v7097
      %v7336 = vunpack.c.l.b16 %v7098
      %v7337 = vunpack.c.l.b16 %v7099
      %v7338 = vunpack.c.h.b16 %v7099
      %v7339 = vunpack.c.l.b16 %v7100
      %v7340 = vunpack.c.l.b16 %v7101
      %v7341 = vunpack.c.h.b16 %v7101
      %v7342 = vunpack.c.l.b16 %v7102
      %v7343 = vunpack.c.l.b16 %v7103
      %v7344 = vunpack.c.h.b16 %v7103
      %v7345 = vunpack.c.l.b16 %v7104
      %v7346 = vpack.c.b16 %v7253, %v7250
      %v7347 = vpack.c.b16 %v7254, %v7251
      %v7348 = vpack.c.b16 %v7255, %v7252
      %v7349 = vpack.c.b16 %v7259, %v7256
      %v7350 = vpack.c.b16 %v7260, %v7257
      %v7351 = vpack.c.b16 %v7261, %v7258
      %v7352 = vpack.c.b16 %v7265, %v7262
      %v7353 = vpack.c.b16 %v7266, %v7263
      %v7354 = vpack.c.b16 %v7267, %v7264
      %v7355 = vpack.c.b16 %v7271, %v7268
      %v7356 = vpack.c.b16 %v7272, %v7269
      %v7357 = vpack.c.b16 %v7273, %v7270
      %v7358 = vpack.c.b16 %v7277, %v7274
      %v7359 = vpack.c.b16 %v7278, %v7275
      %v7360 = vpack.c.b16 %v7279, %v7276
      %v7361 = vpack.c.b16 %v7283, %v7280
      %v7362 = vpack.c.b16 %v7284, %v7281
      %v7363 = vpack.c.b16 %v7285, %v7282
      %v7364 = vpack.c.b16 %v7289, %v7286
      %v7365 = vpack.c.b16 %v7290, %v7287
      %v7366 = vpack.c.b16 %v7291, %v7288
      %v7367 = vpack.c.b16 %v7295, %v7292
      %v7368 = vpack.c.b16 %v7296, %v7293
      %v7369 = vpack.c.b16 %v7297, %v7294
      %v7370 = vpack.c.b16 %v7301, %v7298
      %v7371 = vpack.c.b16 %v7302, %v7299
      %v7372 = vpack.c.b16 %v7303, %v7300
      %v7373 = vpack.c.b16 %v7307, %v7304
      %v7374 = vpack.c.b16 %v7308, %v7305
      %v7375 = vpack.c.b16 %v7309, %v7306
      %v7376 = vpack.c.b16 %v7313, %v7310
      %v7377 = vpack.c.b16 %v7314, %v7311
      %v7378 = vpack.c.b16 %v7315, %v7312
      %v7379 = vpack.c.b16 %v7319, %v7316
      %v7380 = vpack.c.b16 %v7320, %v7317
      %v7381 = vpack.c.b16 %v7321, %v7318
      %v7382 = vpack.c.b16 %v7325, %v7322
      %v7383 = vpack.c.b16 %v7326, %v7323
      %v7384 = vpack.c.b16 %v7327, %v7324
      %v7385 = vpack.c.b16 %v7331, %v7328
      %v7386 = vpack.c.b16 %v7332, %v7329
      %v7387 = vpack.c.b16 %v7333, %v7330
      %v7388 = vpack.c.b16 %v7337, %v7334
      %v7389 = vpack.c.b16 %v7338, %v7335
      %v7390 = vpack.c.b16 %v7339, %v7336
      %v7391 = vpack.c.b16 %v7343, %v7340
      %v7392 = vpack.c.b16 %v7344, %v7341
      %v7393 = vpack.c.b16 %v7345, %v7342
      %7442 = vmatprep.subr.bf16.mxu0 %v7347
      %7443 = vmatpush1.bf16.msra.mxu0 %v7346
      %7444 = vmatprep.subr.bf16.mxu0 %v7350
      %7445 = vmatpush1.bf16.msra.mxu0 %v7349
      %7446 = vmatprep.subr.bf16.mxu0 %v7353
      %7447 = vmatpush1.bf16.msra.mxu0 %v7352
      %7448 = vmatprep.subr.bf16.mxu0 %v7356
      %7449 = vmatpush1.bf16.msra.mxu0 %v7355
      %7450 = vmatprep.subr.bf16.mxu0 %v7359
      %7451 = vmatpush1.bf16.msra.mxu0 %v7358
      %7452 = vmatprep.subr.bf16.mxu0 %v7362
      %7453 = vmatpush1.bf16.msra.mxu0 %v7361
      %7454 = vmatprep.subr.bf16.mxu0 %v7365
      %7455 = vmatpush1.bf16.msra.mxu0 %v7364
      %7456 = vmatprep.subr.bf16.mxu0 %v7368
      %7457 = vmatpush1.bf16.msra.mxu0 %v7367
      %7458 = vmatprep.subr.bf16.mxu0 %v7371
      %7459 = vmatpush1.bf16.msra.mxu0 %v7370
      %7460 = vmatprep.subr.bf16.mxu0 %v7374
      %7461 = vmatpush1.bf16.msra.mxu0 %v7373
      %7462 = vmatprep.subr.bf16.mxu0 %v7377
      %7463 = vmatpush1.bf16.msra.mxu0 %v7376
      %7464 = vmatprep.subr.bf16.mxu0 %v7380
      %7465 = vmatpush1.bf16.msra.mxu0 %v7379
      %7466 = vmatprep.subr.bf16.mxu0 %v7383
      %7467 = vmatpush1.bf16.msra.mxu0 %v7382
      %7468 = vmatprep.subr.bf16.mxu0 %v7386
      %7469 = vmatpush1.bf16.msra.mxu0 %v7385
      %7470 = vmatprep.subr.bf16.mxu0 %v7389
      %7471 = vmatpush1.bf16.msra.mxu0 %v7388
      %7472 = vmatprep.subr.bf16.mxu0 %v7392
      %7473 = vmatpush1.bf16.msra.mxu0 %v7391
      %7474 = vmatprep.mubr.bf16.mxu0 %v7106
      %7475 = vmatmul.mubr.bf16.gmra.mrb[0].mxu0 %v7105
      %v7476 = vpop.f32.mrb[0].mxu0
      %v7477 = vadd.f32 %v7174, %v7476
      %v7478 = vpop.f32.mrb[0].mxu0
      %v7479 = vadd.f32 %v7178, %v7478
      %v7480 = vpop.f32.mrb[0].mxu0
      %v7481 = vadd.f32 %v7174, %v7480
      %v7482 = vpop.f32.mrb[0].mxu0
      %v7483 = vadd.f32 %v7178, %v7482
      %7484 = vmatprep.mubr.bf16.mxu0 %v7108
      %7485 = vmatmul.mubr.bf16.gmra.mrb[0].mxu0 %v7107
      %v7486 = vpop.f32.mrb[0].mxu0
      %v7487 = vadd.f32 %v7174, %v7486
      %v7488 = vpop.f32.mrb[0].mxu0
      %v7489 = vadd.f32 %v7178, %v7488
      %v7490 = vpop.f32.mrb[0].mxu0
      %v7491 = vadd.f32 %v7174, %v7490
      %v7492 = vpop.f32.mrb[0].mxu0
      %v7493 = vadd.f32 %v7178, %v7492
      %7494 = vmatprep.mubr.bf16.mxu0 %v7110
      %7495 = vmatmul.mubr.bf16.gmra.mrb[0].mxu0 %v7109
      %v7496 = vpop.f32.mrb[0].mxu0
      %v7497 = vadd.f32 %v7174, %v7496
      %v7498 = vpop.f32.mrb[0].mxu0
      %v7499 = vadd.f32 %v7178, %v7498
      %v7500 = vpop.f32.mrb[0].mxu0
      %v7501 = vadd.f32 %v7174, %v7500
      %v7502 = vpop.f32.mrb[0].mxu0
      %v7503 = vadd.f32 %v7178, %v7502
      %7504 = vmatprep.mubr.bf16.mxu0 %v7112
      %7505 = vmatmul.mubr.bf16.gmra.mrb[0].mxu0 %v7111
      %v7506 = vpop.f32.mrb[0].mxu0
      %v7507 = vadd.f32 %v7174, %v7506
      %v7508 = vpop.f32.mrb[0].mxu0
      %v7509 = vadd.f32 %v7178, %v7508
      %v7510 = vpop.f32.mrb[0].mxu0
      %v7511 = vadd.f32 %v7174, %v7510
      %v7512 = vpop.f32.mrb[0].mxu0
      %v7513 = vadd.f32 %v7178, %v7512
      %7514 = vmatprep.mubr.bf16.mxu0 %v7114
      %7515 = vmatmul.mubr.bf16.gmra.mrb[0].mxu0 %v7113
      %v7516 = vpop.f32.mrb[0].mxu0
      %v7517 = vadd.f32 %v7174, %v7516
      %v7518 = vpop.f32.mrb[0].mxu0
      %v7519 = vadd.f32 %v7178, %v7518
      %v7520 = vpop.f32.mrb[0].mxu0
      %v7521 = vadd.f32 %v7174, %v7520
      %v7522 = vpop.f32.mrb[0].mxu0
      %v7523 = vadd.f32 %v7178, %v7522
      %7524 = vmatprep.mubr.bf16.mxu0 %v7116
      %7525 = vmatmul.mubr.bf16.gmra.mrb[0].mxu0 %v7115
      %v7526 = vpop.f32.mrb[0].mxu0
      %v7527 = vadd.f32 %v7174, %v7526
      %v7528 = vpop.f32.mrb[0].mxu0
      %v7529 = vadd.f32 %v7178, %v7528
      %v7530 = vpop.f32.mrb[0].mxu0
      %v7531 = vadd.f32 %v7174, %v7530
      %v7532 = vpop.f32.mrb[0].mxu0
      %v7533 = vadd.f32 %v7178, %v7532
      %7534 = vmatprep.mubr.bf16.mxu0 %v7118
      %7535 = vmatmul.mubr.bf16.gmra.mrb[0].mxu0 %v7117
      %v7536 = vpop.f32.mrb[0].mxu0
      %v7537 = vadd.f32 %v7174, %v7536
      %v7538 = vpop.f32.mrb[0].mxu0
      %v7539 = vadd.f32 %v7178, %v7538
      %v7540 = vpop.f32.mrb[0].mxu0
      %v7541 = vadd.f32 %v7174, %v7540
      %v7542 = vpop.f32.mrb[0].mxu0
      %v7543 = vadd.f32 %v7178, %v7542
      %7544 = vmatprep.mubr.bf16.mxu0 %v7120
      %7545 = vmatmul.mubr.bf16.gmra.mrb[0].mxu0 %v7119
      %v7546 = vpop.f32.mrb[0].mxu0
      %v7547 = vadd.f32 %v7174, %v7546
      %v7548 = vpop.f32.mrb[0].mxu0
      %v7549 = vadd.f32 %v7178, %v7548
      %v7550 = vpop.f32.mrb[0].mxu0
      %v7551 = vadd.f32 %v7174, %v7550
      %v7552 = vpop.f32.mrb[0].mxu0
      %v7553 = vadd.f32 %v7178, %v7552
      %7554 = vmatprep.mubr.bf16.mxu0 %v7122
      %7555 = vmatmul.mubr.bf16.gmra.mrb[0].mxu0 %v7121
      %v7556 = vpop.f32.mrb[0].mxu0
      %v7557 = vadd.f32 %v7174, %v7556
      %v7558 = vpop.f32.mrb[0].mxu0
      %v7559 = vadd.f32 %v7178, %v7558
      %v7560 = vpop.f32.mrb[0].mxu0
      %v7561 = vadd.f32 %v7174, %v7560
      %v7562 = vpop.f32.mrb[0].mxu0
      %v7563 = vadd.f32 %v7178, %v7562
      %7564 = vmatprep.mubr.bf16.mxu0 %v7124
      %7565 = vmatmul.mubr.bf16.gmra.mrb[0].mxu0 %v7123
      %v7566 = vpop.f32.mrb[0].mxu0
      %v7567 = vadd.f32 %v7174, %v7566
      %v7568 = vpop.f32.mrb[0].mxu0
      %v7569 = vadd.f32 %v7178, %v7568
      %v7570 = vpop.f32.mrb[0].mxu0
      %v7571 = vadd.f32 %v7174, %v7570
      %v7572 = vpop.f32.mrb[0].mxu0
      %v7573 = vadd.f32 %v7178, %v7572
      %7574 = vmatprep.mubr.bf16.mxu0 %v7126
      %7575 = vmatmul.mubr.bf16.gmra.mrb[0].mxu0 %v7125
      %v7576 = vpop.f32.mrb[0].mxu0
      %v7577 = vadd.f32 %v7174, %v7576
      %v7578 = vpop.f32.mrb[0].mxu0
      %v7579 = vadd.f32 %v7178, %v7578
      %v7580 = vpop.f32.mrb[0].mxu0
      %v7581 = vadd.f32 %v7174, %v7580
      %v7582 = vpop.f32.mrb[0].mxu0
      %v7583 = vadd.f32 %v7178, %v7582
      %7584 = vmatprep.mubr.bf16.mxu0 %v7128
      %7585 = vmatmul.mubr.bf16.gmra.mrb[0].mxu0 %v7127
      %v7586 = vpop.f32.mrb[0].mxu0
      %v7587 = vadd.f32 %v7174, %v7586
      %v7588 = vpop.f32.mrb[0].mxu0
      %v7589 = vadd.f32 %v7178, %v7588
      %v7590 = vpop.f32.mrb[0].mxu0
      %v7591 = vadd.f32 %v7174, %v7590
      %v7592 = vpop.f32.mrb[0].mxu0
      %v7593 = vadd.f32 %v7178, %v7592
      %7594 = vmatprep.mubr.bf16.mxu0 %v7130
      %7595 = vmatmul.mubr.bf16.gmra.mrb[0].mxu0 %v7129
      %v7596 = vpop.f32.mrb[0].mxu0
      %v7597 = vadd.f32 %v7174, %v7596
      %v7598 = vpop.f32.mrb[0].mxu0
      %v7599 = vadd.f32 %v7178, %v7598
      %v7600 = vpop.f32.mrb[0].mxu0
      %v7601 = vadd.f32 %v7174, %v7600
      %v7602 = vpop.f32.mrb[0].mxu0
      %v7603 = vadd.f32 %v7178, %v7602
      %7604 = vmatprep.mubr.bf16.mxu0 %v7132
      %7605 = vmatmul.mubr.bf16.gmra.mrb[0].mxu0 %v7131
      %v7606 = vpop.f32.mrb[0].mxu0
      %v7607 = vadd.f32 %v7174, %v7606
      %v7608 = vpop.f32.mrb[0].mxu0
      %v7609 = vadd.f32 %v7178, %v7608
      %v7610 = vpop.f32.mrb[0].mxu0
      %v7611 = vadd.f32 %v7174, %v7610
      %v7612 = vpop.f32.mrb[0].mxu0
      %v7613 = vadd.f32 %v7178, %v7612
      %7614 = vmatprep.mubr.bf16.mxu0 %v7134
      %7615 = vmatmul.mubr.bf16.gmra.mrb[0].mxu0 %v7133
      %v7616 = vpop.f32.mrb[0].mxu0
      %v7617 = vadd.f32 %v7174, %v7616
      %v7618 = vpop.f32.mrb[0].mxu0
      %v7619 = vadd.f32 %v7178, %v7618
      %v7620 = vpop.f32.mrb[0].mxu0
      %v7621 = vadd.f32 %v7174, %v7620
      %v7622 = vpop.f32.mrb[0].mxu0
      %v7623 = vadd.f32 %v7178, %v7622
      %7624 = vmatprep.mubr.bf16.mxu0 %v7136
      %7625 = vmatmul.mubr.bf16.gmra.mrb[0].mxu0 %v7135
      %v7626 = vpop.f32.mrb[0].mxu0
      %v7627 = vadd.f32 %v7174, %v7626
      %v7628 = vpop.f32.mrb[0].mxu0
      %v7629 = vadd.f32 %v7178, %v7628
      %v7630 = vpop.f32.mrb[0].mxu0
      %v7631 = vadd.f32 %v7174, %v7630
      %v7632 = vpop.f32.mrb[0].mxu0
      %v7633 = vadd.f32 %v7178, %v7632
      %7634 = vmatprep.mubr.bf16.mxu0 %v7138
      %7635 = vmatmul.mubr.bf16.gmra.mrb[0].mxu0 %v7137
      %v7636 = vpop.f32.mrb[0].mxu0
      %v7637 = vadd.f32 %v7174, %v7636
      %v7638 = vpop.f32.mrb[0].mxu0
      %v7639 = vadd.f32 %v7178, %v7638
      %v7640 = vpop.f32.mrb[0].mxu0
      %v7641 = vadd.f32 %v7174, %v7640
      %v7642 = vpop.f32.mrb[0].mxu0
      %v7643 = vadd.f32 %v7178, %v7642
      %7644 = vmatprep.mubr.bf16.mxu0 %v7140
      %7645 = vmatmul.mubr.bf16.gmra.mrb[0].mxu0 %v7139
      %v7646 = vpop.f32.mrb[0].mxu0
      %v7647 = vadd.f32 %v7174, %v7646
      %v7648 = vpop.f32.mrb[0].mxu0
      %v7649 = vadd.f32 %v7178, %v7648
      %v7650 = vpop.f32.mrb[0].mxu0
      %v7651 = vadd.f32 %v7174, %v7650
      %v7652 = vpop.f32.mrb[0].mxu0
      %v7653 = vadd.f32 %v7178, %v7652
      %7654 = vmatprep.mubr.bf16.mxu0 %v7142
      %7655 = vmatmul.mubr.bf16.gmra.mrb[0].mxu0 %v7141
      %v7656 = vpop.f32.mrb[0].mxu0
      %v7657 = vadd.f32 %v7174, %v7656
      %v7658 = vpop.f32.mrb[0].mxu0
      %v7659 = vadd.f32 %v7178, %v7658
      %v7660 = vpop.f32.mrb[0].mxu0
      %v7661 = vadd.f32 %v7174, %v7660
      %v7662 = vpop.f32.mrb[0].mxu0
      %v7663 = vadd.f32 %v7178, %v7662
      %7664 = vmatprep.mubr.bf16.mxu0 %v7144
      %7665 = vmatmul.mubr.bf16.gmra.mrb[0].mxu0 %v7143
      %v7666 = vpop.f32.mrb[0].mxu0
      %v7667 = vadd.f32 %v7174, %v7666
      %v7668 = vpop.f32.mrb[0].mxu0
      %v7669 = vadd.f32 %v7178, %v7668
      %v7670 = vpop.f32.mrb[0].mxu0
      %v7671 = vadd.f32 %v7174, %v7670
      %v7672 = vpop.f32.mrb[0].mxu0
      %v7673 = vadd.f32 %v7178, %v7672
      %7674 = vmatprep.mubr.bf16.mxu0 %v7146
      %7675 = vmatmul.mubr.bf16.gmra.mrb[0].mxu0 %v7145
      %v7676 = vpop.f32.mrb[0].mxu0
      %v7677 = vadd.f32 %v7174, %v7676
      %v7678 = vpop.f32.mrb[0].mxu0
      %v7679 = vadd.f32 %v7178, %v7678
      %v7680 = vpop.f32.mrb[0].mxu0
      %v7681 = vadd.f32 %v7174, %v7680
      %v7682 = vpop.f32.mrb[0].mxu0
      %v7683 = vadd.f32 %v7178, %v7682
      %7684 = vmatprep.mubr.bf16.mxu0 %v7148
      %7685 = vmatmul.mubr.bf16.gmra.mrb[0].mxu0 %v7147
      %v7686 = vpop.f32.mrb[0].mxu0
      %v7687 = vadd.f32 %v7174, %v7686
      %v7688 = vpop.f32.mrb[0].mxu0
      %v7689 = vadd.f32 %v7178, %v7688
      %v7690 = vpop.f32.mrb[0].mxu0
      %v7691 = vadd.f32 %v7174, %v7690
      %v7692 = vpop.f32.mrb[0].mxu0
      %v7693 = vadd.f32 %v7178, %v7692
      %7694 = vmatprep.mubr.bf16.mxu0 %v7150
      %7695 = vmatmul.mubr.bf16.gmra.mrb[0].mxu0 %v7149
      %v7696 = vpop.f32.mrb[0].mxu0
      %v7697 = vadd.f32 %v7174, %v7696
      %v7698 = vpop.f32.mrb[0].mxu0
      %v7699 = vadd.f32 %v7178, %v7698
      %v7700 = vpop.f32.mrb[0].mxu0
      %v7701 = vadd.f32 %v7174, %v7700
      %v7702 = vpop.f32.mrb[0].mxu0
      %v7703 = vadd.f32 %v7178, %v7702
      %7704 = vmatprep.mubr.bf16.mxu0 %v7152
      %7705 = vmatmul.mubr.bf16.gmra.mrb[0].mxu0 %v7151
      %v7706 = vpop.f32.mrb[0].mxu0
      %v7707 = vadd.f32 %v7174, %v7706
      %v7708 = vpop.f32.mrb[0].mxu0
      %v7709 = vadd.f32 %v7178, %v7708
      %v7710 = vpop.f32.mrb[0].mxu0
      %v7711 = vadd.f32 %v7174, %v7710
      %v7712 = vpop.f32.mrb[0].mxu0
      %v7713 = vadd.f32 %v7178, %v7712
      %7714 = vmatprep.mubr.bf16.mxu0 %v7154
      %7715 = vmatmul.mubr.bf16.gmra.mrb[0].mxu0 %v7153
      %v7716 = vpop.f32.mrb[0].mxu0
      %v7717 = vadd.f32 %v7174, %v7716
      %v7718 = vpop.f32.mrb[0].mxu0
      %v7719 = vadd.f32 %v7178, %v7718
      %v7720 = vpop.f32.mrb[0].mxu0
      %v7721 = vadd.f32 %v7174, %v7720
      %v7722 = vpop.f32.mrb[0].mxu0
      %v7723 = vadd.f32 %v7178, %v7722
      %7724 = vmatprep.mubr.bf16.mxu0 %v7156
      %7725 = vmatmul.mubr.bf16.gmra.mrb[0].mxu0 %v7155
      %v7726 = vpop.f32.mrb[0].mxu0
      %v7727 = vadd.f32 %v7174, %v7726
      %v7728 = vpop.f32.mrb[0].mxu0
      %v7729 = vadd.f32 %v7178, %v7728
      %v7730 = vpop.f32.mrb[0].mxu0
      %v7731 = vadd.f32 %v7174, %v7730
      %v7732 = vpop.f32.mrb[0].mxu0
      %v7733 = vadd.f32 %v7178, %v7732
      %7734 = vmatprep.mubr.bf16.mxu0 %v7158
      %7735 = vmatmul.mubr.bf16.gmra.mrb[0].mxu0 %v7157
      %v7736 = vpop.f32.mrb[0].mxu0
      %v7737 = vadd.f32 %v7174, %v7736
      %v7738 = vpop.f32.mrb[0].mxu0
      %v7739 = vadd.f32 %v7178, %v7738
      %v7740 = vpop.f32.mrb[0].mxu0
      %v7741 = vadd.f32 %v7174, %v7740
      %v7742 = vpop.f32.mrb[0].mxu0
      %v7743 = vadd.f32 %v7178, %v7742
      %7744 = vmatprep.mubr.bf16.mxu0 %v7160
      %7745 = vmatmul.mubr.bf16.gmra.mrb[0].mxu0 %v7159
      %v7746 = vpop.f32.mrb[0].mxu0
      %v7747 = vadd.f32 %v7174, %v7746
      %v7748 = vpop.f32.mrb[0].mxu0
      %v7749 = vadd.f32 %v7178, %v7748
      %v7750 = vpop.f32.mrb[0].mxu0
      %v7751 = vadd.f32 %v7174, %v7750
      %v7752 = vpop.f32.mrb[0].mxu0
      %v7753 = vadd.f32 %v7178, %v7752
      %7754 = vmatprep.mubr.bf16.mxu0 %v7162
      %7755 = vmatmul.mubr.bf16.gmra.mrb[0].mxu0 %v7161
      %v7756 = vpop.f32.mrb[0].mxu0
      %v7757 = vadd.f32 %v7174, %v7756
      %v7758 = vpop.f32.mrb[0].mxu0
      %v7759 = vadd.f32 %v7178, %v7758
      %v7760 = vpop.f32.mrb[0].mxu0
      %v7761 = vadd.f32 %v7174, %v7760
      %v7762 = vpop.f32.mrb[0].mxu0
      %v7763 = vadd.f32 %v7178, %v7762
      %7764 = vmatprep.mubr.bf16.mxu0 %v7164
      %7765 = vmatmul.mubr.bf16.gmra.mrb[0].mxu0 %v7163
      %v7766 = vpop.f32.mrb[0].mxu0
      %v7767 = vadd.f32 %v7174, %v7766
      %v7768 = vpop.f32.mrb[0].mxu0
      %v7769 = vadd.f32 %v7178, %v7768
      %v7770 = vpop.f32.mrb[0].mxu0
      %v7771 = vadd.f32 %v7174, %v7770
      %v7772 = vpop.f32.mrb[0].mxu0
      %v7773 = vadd.f32 %v7178, %v7772
      %7774 = vmatprep.mubr.bf16.mxu0 %v7166
      %7775 = vmatmul.mubr.bf16.gmra.mrb[0].mxu0 %v7165
      %v7776 = vpop.f32.mrb[0].mxu0
      %v7777 = vadd.f32 %v7174, %v7776
      %v7778 = vpop.f32.mrb[0].mxu0
      %v7779 = vadd.f32 %v7178, %v7778
      %v7780 = vpop.f32.mrb[0].mxu0
      %v7781 = vadd.f32 %v7174, %v7780
      %v7782 = vpop.f32.mrb[0].mxu0
      %v7783 = vadd.f32 %v7178, %v7782
      %7784 = vmatprep.mubr.bf16.mxu0 %v7168
      %7785 = vmatmul.mubr.bf16.gmra.mrb[0].mxu0 %v7167
      %v7786 = vpop.f32.mrb[0].mxu0
      %v7787 = vadd.f32 %v7174, %v7786
      %v7788 = vpop.f32.mrb[0].mxu0
      %v7789 = vadd.f32 %v7178, %v7788
      %v7790 = vpop.f32.mrb[0].mxu0
      %v7791 = vadd.f32 %v7174, %v7790
      %v7792 = vpop.f32.mrb[0].mxu0
      %v7793 = vadd.f32 %v7178, %v7792
      %7794 = vdwg.mxu0
      %7795 = vmatprep.subr.bf16.mxu0 0
      %7796 = vmatpush1.bf16.msra.mxu0 %v7348
      %7797 = vmatprep.subr.bf16.mxu0 0
      %7798 = vmatpush1.bf16.msra.mxu0 %v7351
      %7799 = vmatprep.subr.bf16.mxu0 0
      %7800 = vmatpush1.bf16.msra.mxu0 %v7354
      %7801 = vmatprep.subr.bf16.mxu0 0
      %7802 = vmatpush1.bf16.msra.mxu0 %v7357
      %7803 = vmatprep.subr.bf16.mxu0 0
      %7804 = vmatpush1.bf16.msra.mxu0 %v7360
      %7805 = vmatprep.subr.bf16.mxu0 0
      %7806 = vmatpush1.bf16.msra.mxu0 %v7363
      %7807 = vmatprep.subr.bf16.mxu0 0
      %7808 = vmatpush1.bf16.msra.mxu0 %v7366
      %7809 = vmatprep.subr.bf16.mxu0 0
      %7810 = vmatpush1.bf16.msra.mxu0 %v7369
      %7811 = vmatprep.subr.bf16.mxu0 0
      %7812 = vmatpush1.bf16.msra.mxu0 %v7372
      %7813 = vmatprep.subr.bf16.mxu0 0
      %7814 = vmatpush1.bf16.msra.mxu0 %v7375
      %7815 = vmatprep.subr.bf16.mxu0 0
      %7816 = vmatpush1.bf16.msra.mxu0 %v7378
      %7817 = vmatprep.subr.bf16.mxu0 0
      %7818 = vmatpush1.bf16.msra.mxu0 %v7381
      %7819 = vmatprep.subr.bf16.mxu0 0
      %7820 = vmatpush1.bf16.msra.mxu0 %v7384
      %7821 = vmatprep.subr.bf16.mxu0 0
      %7822 = vmatpush1.bf16.msra.mxu0 %v7387
      %7823 = vmatprep.subr.bf16.mxu0 0
      %7824 = vmatpush1.bf16.msra.mxu0 %v7390
      %7825 = vmatprep.subr.bf16.mxu0 0
      %7826 = vmatpush1.bf16.msra.mxu0 %v7393
      %7827 = vmatprep.mubr.bf16.mxu0 %v7106
      %7828 = vmatmul.mubr.bf16.gmra.mrb[0].mxu0 %v7105
      %v7829 = vpop.f32.mrb[0].mxu0
      %v7830 = vadd.f32 %v7182, %v7829
      %v7831 = vpop.f32.mrb[0].mxu0
      %v7832 = vpop.f32.mrb[0].mxu0
      %v7833 = vadd.f32 %v7182, %v7832
      %v7834 = vpop.f32.mrb[0].mxu0
      %7835 = vmatprep.mubr.bf16.mxu0 %v7108
      %7836 = vmatmul.mubr.bf16.gmra.mrb[0].mxu0 %v7107
      %v7837 = vpop.f32.mrb[0].mxu0
      %v7838 = vadd.f32 %v7182, %v7837
      %v7839 = vpop.f32.mrb[0].mxu0
      %v7840 = vpop.f32.mrb[0].mxu0
      %v7841 = vadd.f32 %v7182, %v7840
      %v7842 = vpop.f32.mrb[0].mxu0
      %7843 = vmatprep.mubr.bf16.mxu0 %v7110
      %7844 = vmatmul.mubr.bf16.gmra.mrb[0].mxu0 %v7109
      %v7845 = vpop.f32.mrb[0].mxu0
      %v7846 = vadd.f32 %v7182, %v7845
      %v7847 = vpop.f32.mrb[0].mxu0
      %v7848 = vpop.f32.mrb[0].mxu0
      %v7849 = vadd.f32 %v7182, %v7848
      %v7850 = vpop.f32.mrb[0].mxu0
      %7851 = vmatprep.mubr.bf16.mxu0 %v7112
      %7852 = vmatmul.mubr.bf16.gmra.mrb[0].mxu0 %v7111
      %v7853 = vpop.f32.mrb[0].mxu0
      %v7854 = vadd.f32 %v7182, %v7853
      %v7855 = vpop.f32.mrb[0].mxu0
      %v7856 = vpop.f32.mrb[0].mxu0
      %v7857 = vadd.f32 %v7182, %v7856
      %v7858 = vpop.f32.mrb[0].mxu0
      %7859 = vmatprep.mubr.bf16.mxu0 %v7114
      %7860 = vmatmul.mubr.bf16.gmra.mrb[0].mxu0 %v7113
      %v7861 = vpop.f32.mrb[0].mxu0
      %v7862 = vadd.f32 %v7182, %v7861
      %v7863 = vpop.f32.mrb[0].mxu0
      %v7864 = vpop.f32.mrb[0].mxu0
      %v7865 = vadd.f32 %v7182, %v7864
      %v7866 = vpop.f32.mrb[0].mxu0
      %7867 = vmatprep.mubr.bf16.mxu0 %v7116
      %7868 = vmatmul.mubr.bf16.gmra.mrb[0].mxu0 %v7115
      %v7869 = vpop.f32.mrb[0].mxu0
      %v7870 = vadd.f32 %v7182, %v7869
      %v7871 = vpop.f32.mrb[0].mxu0
      %v7872 = vpop.f32.mrb[0].mxu0
      %v7873 = vadd.f32 %v7182, %v7872
      %v7874 = vpop.f32.mrb[0].mxu0
      %7875 = vmatprep.mubr.bf16.mxu0 %v7118
      %7876 = vmatmul.mubr.bf16.gmra.mrb[0].mxu0 %v7117
      %v7877 = vpop.f32.mrb[0].mxu0
      %v7878 = vadd.f32 %v7182, %v7877
      %v7879 = vpop.f32.mrb[0].mxu0
      %v7880 = vpop.f32.mrb[0].mxu0
      %v7881 = vadd.f32 %v7182, %v7880
      %v7882 = vpop.f32.mrb[0].mxu0
      %7883 = vmatprep.mubr.bf16.mxu0 %v7120
      %7884 = vmatmul.mubr.bf16.gmra.mrb[0].mxu0 %v7119
      %v7885 = vpop.f32.mrb[0].mxu0
      %v7886 = vadd.f32 %v7182, %v7885
      %v7887 = vpop.f32.mrb[0].mxu0
      %v7888 = vpop.f32.mrb[0].mxu0
      %v7889 = vadd.f32 %v7182, %v7888
      %v7890 = vpop.f32.mrb[0].mxu0
      %7891 = vmatprep.mubr.bf16.mxu0 %v7122
      %7892 = vmatmul.mubr.bf16.gmra.mrb[0].mxu0 %v7121
      %v7893 = vpop.f32.mrb[0].mxu0
      %v7894 = vadd.f32 %v7182, %v7893
      %v7895 = vpop.f32.mrb[0].mxu0
      %v7896 = vpop.f32.mrb[0].mxu0
      %v7897 = vadd.f32 %v7182, %v7896
      %v7898 = vpop.f32.mrb[0].mxu0
      %7899 = vmatprep.mubr.bf16.mxu0 %v7124
      %7900 = vmatmul.mubr.bf16.gmra.mrb[0].mxu0 %v7123
      %v7901 = vpop.f32.mrb[0].mxu0
      %v7902 = vadd.f32 %v7182, %v7901
      %v7903 = vpop.f32.mrb[0].mxu0
      %v7904 = vpop.f32.mrb[0].mxu0
      %v7905 = vadd.f32 %v7182, %v7904
      %v7906 = vpop.f32.mrb[0].mxu0
      %7907 = vmatprep.mubr.bf16.mxu0 %v7126
      %7908 = vmatmul.mubr.bf16.gmra.mrb[0].mxu0 %v7125
      %v7909 = vpop.f32.mrb[0].mxu0
      %v7910 = vadd.f32 %v7182, %v7909
      %v7911 = vpop.f32.mrb[0].mxu0
      %v7912 = vpop.f32.mrb[0].mxu0
      %v7913 = vadd.f32 %v7182, %v7912
      %v7914 = vpop.f32.mrb[0].mxu0
      %7915 = vmatprep.mubr.bf16.mxu0 %v7128
      %7916 = vmatmul.mubr.bf16.gmra.mrb[0].mxu0 %v7127
      %v7917 = vpop.f32.mrb[0].mxu0
      %v7918 = vadd.f32 %v7182, %v7917
      %v7919 = vpop.f32.mrb[0].mxu0
      %v7920 = vpop.f32.mrb[0].mxu0
      %v7921 = vadd.f32 %v7182, %v7920
      %v7922 = vpop.f32.mrb[0].mxu0
      %7923 = vmatprep.mubr.bf16.mxu0 %v7130
      %7924 = vmatmul.mubr.bf16.gmra.mrb[0].mxu0 %v7129
      %v7925 = vpop.f32.mrb[0].mxu0
      %v7926 = vadd.f32 %v7182, %v7925
      %v7927 = vpop.f32.mrb[0].mxu0
      %v7928 = vpop.f32.mrb[0].mxu0
      %v7929 = vadd.f32 %v7182, %v7928
      %v7930 = vpop.f32.mrb[0].mxu0
      %7931 = vmatprep.mubr.bf16.mxu0 %v7132
      %7932 = vmatmul.mubr.bf16.gmra.mrb[0].mxu0 %v7131
      %v7933 = vpop.f32.mrb[0].mxu0
      %v7934 = vadd.f32 %v7182, %v7933
      %v7935 = vpop.f32.mrb[0].mxu0
      %v7936 = vpop.f32.mrb[0].mxu0
      %v7937 = vadd.f32 %v7182, %v7936
      %v7938 = vpop.f32.mrb[0].mxu0
      %7939 = vmatprep.mubr.bf16.mxu0 %v7134
      %7940 = vmatmul.mubr.bf16.gmra.mrb[0].mxu0 %v7133
      %v7941 = vpop.f32.mrb[0].mxu0
      %v7942 = vadd.f32 %v7182, %v7941
      %v7943 = vpop.f32.mrb[0].mxu0
      %v7944 = vpop.f32.mrb[0].mxu0
      %v7945 = vadd.f32 %v7182, %v7944
      %v7946 = vpop.f32.mrb[0].mxu0
      %7947 = vmatprep.mubr.bf16.mxu0 %v7136
      %7948 = vmatmul.mubr.bf16.gmra.mrb[0].mxu0 %v7135
      %v7949 = vpop.f32.mrb[0].mxu0
      %v7950 = vadd.f32 %v7182, %v7949
      %v7951 = vpop.f32.mrb[0].mxu0
      %v7952 = vpop.f32.mrb[0].mxu0
      %v7953 = vadd.f32 %v7182, %v7952
      %v7954 = vpop.f32.mrb[0].mxu0
      %7955 = vmatprep.mubr.bf16.mxu0 %v7138
      %7956 = vmatmul.mubr.bf16.gmra.mrb[0].mxu0 %v7137
      %v7957 = vpop.f32.mrb[0].mxu0
      %v7958 = vadd.f32 %v7182, %v7957
      %v7959 = vpop.f32.mrb[0].mxu0
      %v7960 = vpop.f32.mrb[0].mxu0
      %v7961 = vadd.f32 %v7182, %v7960
      %v7962 = vpop.f32.mrb[0].mxu0
      %7963 = vmatprep.mubr.bf16.mxu0 %v7140
      %7964 = vmatmul.mubr.bf16.gmra.mrb[0].mxu0 %v7139
      %v7965 = vpop.f32.mrb[0].mxu0
      %v7966 = vadd.f32 %v7182, %v7965
      %v7967 = vpop.f32.mrb[0].mxu0
      %v7968 = vpop.f32.mrb[0].mxu0
      %v7969 = vadd.f32 %v7182, %v7968
      %v7970 = vpop.f32.mrb[0].mxu0
      %7971 = vmatprep.mubr.bf16.mxu0 %v7142
      %7972 = vmatmul.mubr.bf16.gmra.mrb[0].mxu0 %v7141
      %v7973 = vpop.f32.mrb[0].mxu0
      %v7974 = vadd.f32 %v7182, %v7973
      %v7975 = vpop.f32.mrb[0].mxu0
      %v7976 = vpop.f32.mrb[0].mxu0
      %v7977 = vadd.f32 %v7182, %v7976
      %v7978 = vpop.f32.mrb[0].mxu0
      %7979 = vmatprep.mubr.bf16.mxu0 %v7144
      %7980 = vmatmul.mubr.bf16.gmra.mrb[0].mxu0 %v7143
      %v7981 = vpop.f32.mrb[0].mxu0
      %v7982 = vadd.f32 %v7182, %v7981
      %v7983 = vpop.f32.mrb[0].mxu0
      %v7984 = vpop.f32.mrb[0].mxu0
      %v7985 = vadd.f32 %v7182, %v7984
      %v7986 = vpop.f32.mrb[0].mxu0
      %7987 = vmatprep.mubr.bf16.mxu0 %v7146
      %7988 = vmatmul.mubr.bf16.gmra.mrb[0].mxu0 %v7145
      %v7989 = vpop.f32.mrb[0].mxu0
      %v7990 = vadd.f32 %v7182, %v7989
      %v7991 = vpop.f32.mrb[0].mxu0
      %v7992 = vpop.f32.mrb[0].mxu0
      %v7993 = vadd.f32 %v7182, %v7992
      %v7994 = vpop.f32.mrb[0].mxu0
      %7995 = vmatprep.mubr.bf16.mxu0 %v7148
      %7996 = vmatmul.mubr.bf16.gmra.mrb[0].mxu0 %v7147
      %v7997 = vpop.f32.mrb[0].mxu0
      %v7998 = vadd.f32 %v7182, %v7997
      %v7999 = vpop.f32.mrb[0].mxu0
      %v8000 = vpop.f32.mrb[0].mxu0
      %v8001 = vadd.f32 %v7182, %v8000
      %v8002 = vpop.f32.mrb[0].mxu0
      %8003 = vmatprep.mubr.bf16.mxu0 %v7150
      %8004 = vmatmul.mubr.bf16.gmra.mrb[0].mxu0 %v7149
      %v8005 = vpop.f32.mrb[0].mxu0
      %v8006 = vadd.f32 %v7182, %v8005
      %v8007 = vpop.f32.mrb[0].mxu0
      %v8008 = vpop.f32.mrb[0].mxu0
      %v8009 = vadd.f32 %v7182, %v8008
      %v8010 = vpop.f32.mrb[0].mxu0
      %8011 = vmatprep.mubr.bf16.mxu0 %v7152
      %8012 = vmatmul.mubr.bf16.gmra.mrb[0].mxu0 %v7151
      %v8013 = vpop.f32.mrb[0].mxu0
      %v8014 = vadd.f32 %v7182, %v8013
      %v8015 = vpop.f32.mrb[0].mxu0
      %v8016 = vpop.f32.mrb[0].mxu0
      %v8017 = vadd.f32 %v7182, %v8016
      %v8018 = vpop.f32.mrb[0].mxu0
      %8019 = vmatprep.mubr.bf16.mxu0 %v7154
      %8020 = vmatmul.mubr.bf16.gmra.mrb[0].mxu0 %v7153
      %v8021 = vpop.f32.mrb[0].mxu0
      %v8022 = vadd.f32 %v7182, %v8021
      %v8023 = vpop.f32.mrb[0].mxu0
      %v8024 = vpop.f32.mrb[0].mxu0
      %v8025 = vadd.f32 %v7182, %v8024
      %v8026 = vpop.f32.mrb[0].mxu0
      %8027 = vmatprep.mubr.bf16.mxu0 %v7156
      %8028 = vmatmul.mubr.bf16.gmra.mrb[0].mxu0 %v7155
      %v8029 = vpop.f32.mrb[0].mxu0
      %v8030 = vadd.f32 %v7182, %v8029
      %v8031 = vpop.f32.mrb[0].mxu0
      %v8032 = vpop.f32.mrb[0].mxu0
      %v8033 = vadd.f32 %v7182, %v8032
      %v8034 = vpop.f32.mrb[0].mxu0
      %8035 = vmatprep.mubr.bf16.mxu0 %v7158
      %8036 = vmatmul.mubr.bf16.gmra.mrb[0].mxu0 %v7157
      %v8037 = vpop.f32.mrb[0].mxu0
      %v8038 = vadd.f32 %v7182, %v8037
      %v8039 = vpop.f32.mrb[0].mxu0
      %v8040 = vpop.f32.mrb[0].mxu0
      %v8041 = vadd.f32 %v7182, %v8040
      %v8042 = vpop.f32.mrb[0].mxu0
      %8043 = vmatprep.mubr.bf16.mxu0 %v7160
      %8044 = vmatmul.mubr.bf16.gmra.mrb[0].mxu0 %v7159
      %v8045 = vpop.f32.mrb[0].mxu0
      %v8046 = vadd.f32 %v7182, %v8045
      %v8047 = vpop.f32.mrb[0].mxu0
      %v8048 = vpop.f32.mrb[0].mxu0
      %v8049 = vadd.f32 %v7182, %v8048
      %v8050 = vpop.f32.mrb[0].mxu0
      %8051 = vmatprep.mubr.bf16.mxu0 %v7162
      %8052 = vmatmul.mubr.bf16.gmra.mrb[0].mxu0 %v7161
      %v8053 = vpop.f32.mrb[0].mxu0
      %v8054 = vadd.f32 %v7182, %v8053
      %v8055 = vpop.f32.mrb[0].mxu0
      %v8056 = vpop.f32.mrb[0].mxu0
      %v8057 = vadd.f32 %v7182, %v8056
      %v8058 = vpop.f32.mrb[0].mxu0
      %8059 = vmatprep.mubr.bf16.mxu0 %v7164
      %8060 = vmatmul.mubr.bf16.gmra.mrb[0].mxu0 %v7163
      %v8061 = vpop.f32.mrb[0].mxu0
      %v8062 = vadd.f32 %v7182, %v8061
      %v8063 = vpop.f32.mrb[0].mxu0
      %v8064 = vpop.f32.mrb[0].mxu0
      %v8065 = vadd.f32 %v7182, %v8064
      %v8066 = vpop.f32.mrb[0].mxu0
      %8067 = vmatprep.mubr.bf16.mxu0 %v7166
      %8068 = vmatmul.mubr.bf16.gmra.mrb[0].mxu0 %v7165
      %v8069 = vpop.f32.mrb[0].mxu0
      %v8070 = vadd.f32 %v7182, %v8069
      %v8071 = vpop.f32.mrb[0].mxu0
      %v8072 = vpop.f32.mrb[0].mxu0
      %v8073 = vadd.f32 %v7182, %v8072
      %v8074 = vpop.f32.mrb[0].mxu0
      %8075 = vmatprep.mubr.bf16.mxu0 %v7168
      %8076 = vmatmul.mubr.bf16.gmra.mrb[0].mxu0 %v7167
      %v8077 = vpop.f32.mrb[0].mxu0
      %v8078 = vadd.f32 %v7182, %v8077
      %v8079 = vpop.f32.mrb[0].mxu0
      %v8080 = vpop.f32.mrb[0].mxu0
      %v8081 = vadd.f32 %v7182, %v8080
      %v8082 = vpop.f32.mrb[0].mxu0
      %8083 = vdwg.mxu0
      %v8084 = vmax.f32 %v7830, 0.0
      %v8085 = vmax.f32 %v7833, 0.0
      %v8086 = vmax.f32 %v7838, 0.0
      %v8087 = vmax.f32 %v7841, 0.0
      %v8088 = vmax.f32 %v7846, 0.0
      %v8089 = vmax.f32 %v7849, 0.0
      %v8090 = vmax.f32 %v7854, 0.0
      %v8091 = vmax.f32 %v7857, 0.0
      %v8092 = vmax.f32 %v7862, 0.0
      %v8093 = vmax.f32 %v7865, 0.0
      %v8094 = vmax.f32 %v7870, 0.0
      %v8095 = vmax.f32 %v7873, 0.0
      %v8096 = vmax.f32 %v7878, 0.0
      %v8097 = vmax.f32 %v7881, 0.0
      %v8098 = vmax.f32 %v7886, 0.0
      %v8099 = vmax.f32 %v7889, 0.0
      %v8100 = vmax.f32 %v7894, 0.0
      %v8101 = vmax.f32 %v7897, 0.0
      %v8102 = vmax.f32 %v7902, 0.0
      %v8103 = vmax.f32 %v7905, 0.0
      %v8104 = vmax.f32 %v7910, 0.0
      %v8105 = vmax.f32 %v7913, 0.0
      %v8106 = vmax.f32 %v7918, 0.0
      %v8107 = vmax.f32 %v7921, 0.0
      %v8108 = vmax.f32 %v7926, 0.0
      %v8109 = vmax.f32 %v7929, 0.0
      %v8110 = vmax.f32 %v7934, 0.0
      %v8111 = vmax.f32 %v7937, 0.0
      %v8112 = vmax.f32 %v7942, 0.0
      %v8113 = vmax.f32 %v7945, 0.0
      %v8114 = vmax.f32 %v7950, 0.0
      %v8115 = vmax.f32 %v7953, 0.0
      %v8116 = vmax.f32 %v7958, 0.0
      %v8117 = vmax.f32 %v7961, 0.0
      %v8118 = vmax.f32 %v7966, 0.0
      %v8119 = vmax.f32 %v7969, 0.0
      %v8120 = vmax.f32 %v7974, 0.0
      %v8121 = vmax.f32 %v7977, 0.0
      %v8122 = vmax.f32 %v7982, 0.0
      %v8123 = vmax.f32 %v7985, 0.0
      %v8124 = vmax.f32 %v7990, 0.0
      %v8125 = vmax.f32 %v7993, 0.0
      %v8126 = vmax.f32 %v7998, 0.0
      %v8127 = vmax.f32 %v8001, 0.0
      %v8128 = vmax.f32 %v8006, 0.0
      %v8129 = vmax.f32 %v8009, 0.0
      %v8130 = vmax.f32 %v8014, 0.0
      %v8131 = vmax.f32 %v8017, 0.0
      %v8132 = vmax.f32 %v8022, 0.0
      %v8133 = vmax.f32 %v8025, 0.0
      %v8134 = vmax.f32 %v8030, 0.0
      %v8135 = vmax.f32 %v8033, 0.0
      %v8136 = vmax.f32 %v8038, 0.0
      %v8137 = vmax.f32 %v8041, 0.0
      %v8138 = vmax.f32 %v8046, 0.0
      %v8139 = vmax.f32 %v8049, 0.0
      %v8140 = vmax.f32 %v8054, 0.0
      %v8141 = vmax.f32 %v8057, 0.0
      %v8142 = vmax.f32 %v8062, 0.0
      %v8143 = vmax.f32 %v8065, 0.0
      %v8144 = vmax.f32 %v8070, 0.0
      %v8145 = vmax.f32 %v8073, 0.0
      %v8146 = vmax.f32 %v8078, 0.0
      %v8147 = vmax.f32 %v8081, 0.0
      %v8148 = vld [vmem:[%s4 + $0xc] sm:$0xf]
      %v8149 = vld [vmem:[%s4 + $0x1c] sm:$0xf]
      %v8150 = vld [vmem:[%s4 + $0x2c] sm:$0xf]
      %v8151 = vld [vmem:[%s4 + $0x3c] sm:$0xf]
      %v8152 = vld [vmem:[%s4 + $0x4c] sm:$0xf]
      %v8153 = vld [vmem:[%s4 + $0x5c] sm:$0xf]
      %v8154 = vld [vmem:[%s4 + $0x6c] sm:$0xf]
      %v8155 = vld [vmem:[%s4 + $0x7c] sm:$0xf]
      %v8156 = vld [vmem:[%s4 + $0x8c] sm:$0xf]
      %v8157 = vld [vmem:[%s4 + $0x9c] sm:$0xf]
      %v8158 = vld [vmem:[%s4 + $0xac] sm:$0xf]
      %v8159 = vld [vmem:[%s4 + $0xbc] sm:$0xf]
      %v8160 = vld [vmem:[%s4 + $0xcc] sm:$0xf]
      %v8161 = vld [vmem:[%s4 + $0xdc] sm:$0xf]
      %v8162 = vld [vmem:[%s4 + $0xec] sm:$0xf]
      %v8163 = vld [vmem:[%s4 + $0xfc] sm:$0xf]
      %v8164 = vld [vmem:[%s4 + $0x10c] sm:$0xf]
      %v8165 = vld [vmem:[%s4 + $0x11c] sm:$0xf]
      %v8166 = vld [vmem:[%s4 + $0x12c] sm:$0xf]
      %v8167 = vld [vmem:[%s4 + $0x13c] sm:$0xf]
      %v8168 = vld [vmem:[%s4 + $0x14c] sm:$0xf]
      %v8169 = vld [vmem:[%s4 + $0x15c] sm:$0xf]
      %v8170 = vld [vmem:[%s4 + $0x16c] sm:$0xf]
      %v8171 = vld [vmem:[%s4 + $0x17c] sm:$0xf]
      %v8172 = vld [vmem:[%s4 + $0x18c] sm:$0xf]
      %v8173 = vld [vmem:[%s4 + $0x19c] sm:$0xf]
      %v8174 = vld [vmem:[%s4 + $0x1ac] sm:$0xf]
      %v8175 = vld [vmem:[%s4 + $0x1bc] sm:$0xf]
      %v8176 = vld [vmem:[%s4 + $0x1cc] sm:$0xf]
      %v8177 = vld [vmem:[%s4 + $0x1dc] sm:$0xf]
      %v8178 = vld [vmem:[%s4 + $0x1ec] sm:$0xf]
      %v8179 = vld [vmem:[%s4 + $0x1fc] sm:$0xf]
      %v8180 = vpack.c.bf16 %v7481, %v7477
      %v8181 = vpack.c.bf16 %v7483, %v7479
      %v8182 = vpack.c.bf16 %v7491, %v7487
      %v8183 = vpack.c.bf16 %v7493, %v7489
      %v8184 = vpack.c.bf16 %v7501, %v7497
      %v8185 = vpack.c.bf16 %v7503, %v7499
      %v8186 = vpack.c.bf16 %v7511, %v7507
      %v8187 = vpack.c.bf16 %v7513, %v7509
      %v8188 = vpack.c.bf16 %v7521, %v7517
      %v8189 = vpack.c.bf16 %v7523, %v7519
      %v8190 = vpack.c.bf16 %v7531, %v7527
      %v8191 = vpack.c.bf16 %v7533, %v7529
      %v8192 = vpack.c.bf16 %v7541, %v7537
      %v8193 = vpack.c.bf16 %v7543, %v7539
      %v8194 = vpack.c.bf16 %v7551, %v7547
      %v8195 = vpack.c.bf16 %v7553, %v7549
      %v8196 = vpack.c.bf16 %v7561, %v7557
      %v8197 = vpack.c.bf16 %v7563, %v7559
      %v8198 = vpack.c.bf16 %v7571, %v7567
      %v8199 = vpack.c.bf16 %v7573, %v7569
      %v8200 = vpack.c.bf16 %v7581, %v7577
      %v8201 = vpack.c.bf16 %v7583, %v7579
      %v8202 = vpack.c.bf16 %v7591, %v7587
      %v8203 = vpack.c.bf16 %v7593, %v7589
      %v8204 = vpack.c.bf16 %v7601, %v7597
      %v8205 = vpack.c.bf16 %v7603, %v7599
      %v8206 = vpack.c.bf16 %v7611, %v7607
      %v8207 = vpack.c.bf16 %v7613, %v7609
      %v8208 = vpack.c.bf16 %v7621, %v7617
      %v8209 = vpack.c.bf16 %v7623, %v7619
      %v8210 = vpack.c.bf16 %v7631, %v7627
      %v8211 = vpack.c.bf16 %v7633, %v7629
      %v8212 = vpack.c.bf16 %v7641, %v7637
      %v8213 = vpack.c.bf16 %v7643, %v7639
      %v8214 = vpack.c.bf16 %v7651, %v7647
      %v8215 = vpack.c.bf16 %v7653, %v7649
      %v8216 = vpack.c.bf16 %v7661, %v7657
      %v8217 = vpack.c.bf16 %v7663, %v7659
      %v8218 = vpack.c.bf16 %v7671, %v7667
      %v8219 = vpack.c.bf16 %v7673, %v7669
      %v8220 = vpack.c.bf16 %v7681, %v7677
      %v8221 = vpack.c.bf16 %v7683, %v7679
      %v8222 = vpack.c.bf16 %v7691, %v7687
      %v8223 = vpack.c.bf16 %v7693, %v7689
      %v8224 = vpack.c.bf16 %v7701, %v7697
      %v8225 = vpack.c.bf16 %v7703, %v7699
      %v8226 = vpack.c.bf16 %v7711, %v7707
      %v8227 = vpack.c.bf16 %v7713, %v7709
      %v8228 = vpack.c.bf16 %v7721, %v7717
      %v8229 = vpack.c.bf16 %v7723, %v7719
      %v8230 = vpack.c.bf16 %v7731, %v7727
      %v8231 = vpack.c.bf16 %v7733, %v7729
      %v8232 = vpack.c.bf16 %v7741, %v7737
      %v8233 = vpack.c.bf16 %v7743, %v7739
      %v8234 = vpack.c.bf16 %v7751, %v7747
      %v8235 = vpack.c.bf16 %v7753, %v7749
      %v8236 = vpack.c.bf16 %v7761, %v7757
      %v8237 = vpack.c.bf16 %v7763, %v7759
      %v8238 = vpack.c.bf16 %v7771, %v7767
      %v8239 = vpack.c.bf16 %v7773, %v7769
      %v8240 = vpack.c.bf16 %v7781, %v7777
      %v8241 = vpack.c.bf16 %v7783, %v7779
      %v8242 = vpack.c.bf16 %v7791, %v7787
      %v8243 = vpack.c.bf16 %v7793, %v7789
      %v8244 = vld [vmem:[%s5] sm:$0xf]
      %v8245 = vld [vmem:[%s5 + $0x8] sm:$0xf]
      %v8246 = vld [vmem:[%s5 + $0x10] sm:$0xf]
      %v8247 = vld [vmem:[%s5 + $0x18] sm:$0xf]
      %v8248 = vld [vmem:[%s5 + $0x20] sm:$0xf]
      %v8249 = vld [vmem:[%s5 + $0x28] sm:$0xf]
      %v8250 = vld [vmem:[%s5 + $0x30] sm:$0xf]
      %v8251 = vld [vmem:[%s5 + $0x38] sm:$0xf]
      %v8252 = vld [vmem:[%s5 + $0x40] sm:$0xf]
      %v8253 = vld [vmem:[%s5 + $0x48] sm:$0xf]
      %v8254 = vld [vmem:[%s5 + $0x50] sm:$0xf]
      %v8255 = vld [vmem:[%s5 + $0x58] sm:$0xf]
      %v8256 = vld [vmem:[%s5 + $0x60] sm:$0xf]
      %v8257 = vld [vmem:[%s5 + $0x68] sm:$0xf]
      %v8258 = vld [vmem:[%s5 + $0x70] sm:$0xf]
      %v8259 = vld [vmem:[%s5 + $0x78] sm:$0xf]
      %v8324 = vunpack.c.l.b16 %v369
      %v8325 = vunpack.c.l.b16 %v370
      %v8326 = vunpack.c.l.b16 %v371
      %v8327 = vunpack.c.l.b16 %v372
      %v8328 = vunpack.c.l.b16 %v373
      %v8329 = vunpack.c.l.b16 %v374
      %v8330 = vunpack.c.l.b16 %v375
      %v8331 = vunpack.c.l.b16 %v376
      %v8332 = vunpack.c.l.b16 %v377
      %v8333 = vunpack.c.l.b16 %v378
      %v8334 = vunpack.c.l.b16 %v379
      %v8335 = vunpack.c.l.b16 %v380
      %v8336 = vunpack.c.l.b16 %v381
      %v8337 = vunpack.c.l.b16 %v382
      %v8338 = vunpack.c.l.b16 %v383
      %v8339 = vunpack.c.l.b16 %v384
      %v8340 = vunpack.c.l.b16 %v385
      %v8341 = vunpack.c.l.b16 %v386
      %v8342 = vunpack.c.l.b16 %v387
      %v8343 = vunpack.c.l.b16 %v388
      %v8344 = vunpack.c.l.b16 %v389
      %v8345 = vunpack.c.l.b16 %v390
      %v8346 = vunpack.c.l.b16 %v391
      %v8347 = vunpack.c.l.b16 %v392
      %v8348 = vunpack.c.l.b16 %v393
      %v8349 = vunpack.c.l.b16 %v394
      %v8350 = vunpack.c.l.b16 %v395
      %v8351 = vunpack.c.l.b16 %v396
      %v8352 = vunpack.c.l.b16 %v397
      %v8353 = vunpack.c.l.b16 %v398
      %v8354 = vunpack.c.l.b16 %v399
      %v8355 = vunpack.c.l.b16 %v400
      %v8356 = vunpack.c.l.b16 %v401
      %v8357 = vunpack.c.l.b16 %v402
      %v8358 = vunpack.c.l.b16 %v403
      %v8359 = vunpack.c.l.b16 %v404
      %v8360 = vunpack.c.l.b16 %v405
      %v8361 = vunpack.c.l.b16 %v406
      %v8362 = vunpack.c.l.b16 %v407
      %v8363 = vunpack.c.l.b16 %v408
      %v8364 = vunpack.c.l.b16 %v409
      %v8365 = vunpack.c.l.b16 %v410
      %v8366 = vunpack.c.l.b16 %v411
      %v8367 = vunpack.c.l.b16 %v412
      %v8368 = vunpack.c.l.b16 %v413
      %v8369 = vunpack.c.l.b16 %v414
      %v8370 = vunpack.c.l.b16 %v415
      %v8371 = vunpack.c.l.b16 %v416
      %v8372 = vunpack.c.l.b16 %v417
      %v8373 = vunpack.c.l.b16 %v418
      %v8374 = vunpack.c.l.b16 %v419
      %v8375 = vunpack.c.l.b16 %v420
      %v8376 = vunpack.c.l.b16 %v421
      %v8377 = vunpack.c.l.b16 %v422
      %v8378 = vunpack.c.l.b16 %v423
      %v8379 = vunpack.c.l.b16 %v424
      %v8380 = vunpack.c.l.b16 %v425
      %v8381 = vunpack.c.l.b16 %v426
      %v8382 = vunpack.c.l.b16 %v427
      %v8383 = vunpack.c.l.b16 %v428
      %v8384 = vunpack.c.l.b16 %v429
      %v8385 = vunpack.c.l.b16 %v430
      %v8386 = vunpack.c.l.b16 %v431
      %v8387 = vunpack.c.l.b16 %v432
      %v8388 = vpack.c.b16 %v8325, %v8324
      %v8389 = vpack.c.b16 %v8327, %v8326
      %v8390 = vpack.c.b16 %v8329, %v8328
      %v8391 = vpack.c.b16 %v8331, %v8330
      %v8392 = vpack.c.b16 %v8333, %v8332
      %v8393 = vpack.c.b16 %v8335, %v8334
      %v8394 = vpack.c.b16 %v8337, %v8336
      %v8395 = vpack.c.b16 %v8339, %v8338
      %v8396 = vpack.c.b16 %v8341, %v8340
      %v8397 = vpack.c.b16 %v8343, %v8342
      %v8398 = vpack.c.b16 %v8345, %v8344
      %v8399 = vpack.c.b16 %v8347, %v8346
      %v8400 = vpack.c.b16 %v8349, %v8348
      %v8401 = vpack.c.b16 %v8351, %v8350
      %v8402 = vpack.c.b16 %v8353, %v8352
      %v8403 = vpack.c.b16 %v8355, %v8354
      %v8404 = vpack.c.b16 %v8357, %v8356
      %v8405 = vpack.c.b16 %v8359, %v8358
      %v8406 = vpack.c.b16 %v8361, %v8360
      %v8407 = vpack.c.b16 %v8363, %v8362
      %v8408 = vpack.c.b16 %v8365, %v8364
      %v8409 = vpack.c.b16 %v8367, %v8366
      %v8410 = vpack.c.b16 %v8369, %v8368
      %v8411 = vpack.c.b16 %v8371, %v8370
      %v8412 = vpack.c.b16 %v8373, %v8372
      %v8413 = vpack.c.b16 %v8375, %v8374
      %v8414 = vpack.c.b16 %v8377, %v8376
      %v8415 = vpack.c.b16 %v8379, %v8378
      %v8416 = vpack.c.b16 %v8381, %v8380
      %v8417 = vpack.c.b16 %v8383, %v8382
      %v8418 = vpack.c.b16 %v8385, %v8384
      %v8419 = vpack.c.b16 %v8387, %v8386
      %v8468 = vunpack.c.l.b16 %v8244
      %v8469 = vunpack.c.l.b16 %v8245
      %v8470 = vunpack.c.l.b16 %v8246
      %v8471 = vunpack.c.l.b16 %v8247
      %v8472 = vunpack.c.l.b16 %v8248
      %v8473 = vunpack.c.l.b16 %v8249
      %v8474 = vunpack.c.l.b16 %v8250
      %v8475 = vunpack.c.l.b16 %v8251
      %v8476 = vunpack.c.l.b16 %v8252
      %v8477 = vunpack.c.l.b16 %v8253
      %v8478 = vunpack.c.l.b16 %v8254
      %v8479 = vunpack.c.l.b16 %v8255
      %v8480 = vunpack.c.l.b16 %v8256
      %v8481 = vunpack.c.l.b16 %v8257
      %v8482 = vunpack.c.l.b16 %v8258
      %v8483 = vunpack.c.l.b16 %v8259
      %v8484 = vpack.c.b16 %v8469, %v8468
      %v8485 = vpack.c.b16 %v8471, %v8470
      %v8486 = vpack.c.b16 %v8473, %v8472
      %v8487 = vpack.c.b16 %v8475, %v8474
      %v8488 = vpack.c.b16 %v8477, %v8476
      %v8489 = vpack.c.b16 %v8479, %v8478
      %v8490 = vpack.c.b16 %v8481, %v8480
      %v8491 = vpack.c.b16 %v8483, %v8482
      %8500 = vmatprep.subr.bf16.mxu0 0
      %8501 = vmatpush1.bf16.msra.mxu0 %v8484
      %8502 = vmatprep.subr.bf16.mxu0 0
      %8503 = vmatpush1.bf16.msra.mxu0 %v8485
      %8504 = vmatprep.subr.bf16.mxu0 0
      %8505 = vmatpush1.bf16.msra.mxu0 %v8486
      %8506 = vmatprep.subr.bf16.mxu0 0
      %8507 = vmatpush1.bf16.msra.mxu0 %v8487
      %8508 = vmatprep.subr.bf16.mxu0 0
      %8509 = vmatpush1.bf16.msra.mxu0 %v8488
      %8510 = vmatprep.subr.bf16.mxu0 0
      %8511 = vmatpush1.bf16.msra.mxu0 %v8489
      %8512 = vmatprep.subr.bf16.mxu0 0
      %8513 = vmatpush1.bf16.msra.mxu0 %v8490
      %8514 = vmatprep.subr.bf16.mxu0 0
      %8515 = vmatpush1.bf16.msra.mxu0 %v8491
      %8516 = vmatprep.subr.bf16.mxu0 0
      %8517 = vmatpush1.bf16.msra.mxu0 0
      %8518 = vmatprep.subr.bf16.mxu0 0
      %8519 = vmatpush1.bf16.msra.mxu0 0
      %8520 = vmatprep.subr.bf16.mxu0 0
      %8521 = vmatpush1.bf16.msra.mxu0 0
      %8522 = vmatprep.subr.bf16.mxu0 0
      %8523 = vmatpush1.bf16.msra.mxu0 0
      %8524 = vmatprep.subr.bf16.mxu0 0
      %8525 = vmatpush1.bf16.msra.mxu0 0
      %8526 = vmatprep.subr.bf16.mxu0 0
      %8527 = vmatpush1.bf16.msra.mxu0 0
      %8528 = vmatprep.subr.bf16.mxu0 0
      %8529 = vmatpush1.bf16.msra.mxu0 0
      %8530 = vmatprep.subr.bf16.mxu0 0
      %8531 = vmatpush1.bf16.msra.mxu0 0
      %8532 = vmatprep.mubr.bf16.mxu0 0
      %8533 = vmatmul.mubr.bf16.gmra.mrb[0].mxu0 %v8388
      %v8534 = vpop.f32.mrb[0].mxu0
      %v8535 = vadd.f32 0.0, %v8534
      %v8536 = vpop.f32.mrb[0].mxu0
      %v8537 = vpop.f32.mrb[0].mxu0
      %v8538 = vadd.f32 0.0, %v8537
      %v8539 = vpop.f32.mrb[0].mxu0
      %8540 = vmatprep.mubr.bf16.mxu0 0
      %8541 = vmatmul.mubr.bf16.gmra.mrb[0].mxu0 %v8389
      %v8542 = vpop.f32.mrb[0].mxu0
      %v8543 = vadd.f32 0.0, %v8542
      %v8544 = vpop.f32.mrb[0].mxu0
      %v8545 = vpop.f32.mrb[0].mxu0
      %v8546 = vadd.f32 0.0, %v8545
      %v8547 = vpop.f32.mrb[0].mxu0
      %8548 = vmatprep.mubr.bf16.mxu0 0
      %8549 = vmatmul.mubr.bf16.gmra.mrb[0].mxu0 %v8390
      %v8550 = vpop.f32.mrb[0].mxu0
      %v8551 = vadd.f32 0.0, %v8550
      %v8552 = vpop.f32.mrb[0].mxu0
      %v8553 = vpop.f32.mrb[0].mxu0
      %v8554 = vadd.f32 0.0, %v8553
      %v8555 = vpop.f32.mrb[0].mxu0
      %8556 = vmatprep.mubr.bf16.mxu0 0
      %8557 = vmatmul.mubr.bf16.gmra.mrb[0].mxu0 %v8391
      %v8558 = vpop.f32.mrb[0].mxu0
      %v8559 = vadd.f32 0.0, %v8558
      %v8560 = vpop.f32.mrb[0].mxu0
      %v8561 = vpop.f32.mrb[0].mxu0
      %v8562 = vadd.f32 0.0, %v8561
      %v8563 = vpop.f32.mrb[0].mxu0
      %8564 = vmatprep.mubr.bf16.mxu0 0
      %8565 = vmatmul.mubr.bf16.gmra.mrb[0].mxu0 %v8392
      %v8566 = vpop.f32.mrb[0].mxu0
      %v8567 = vadd.f32 0.0, %v8566
      %v8568 = vpop.f32.mrb[0].mxu0
      %v8569 = vpop.f32.mrb[0].mxu0
      %v8570 = vadd.f32 0.0, %v8569
      %v8571 = vpop.f32.mrb[0].mxu0
      %8572 = vmatprep.mubr.bf16.mxu0 0
      %8573 = vmatmul.mubr.bf16.gmra.mrb[0].mxu0 %v8393
      %v8574 = vpop.f32.mrb[0].mxu0
      %v8575 = vadd.f32 0.0, %v8574
      %v8576 = vpop.f32.mrb[0].mxu0
      %v8577 = vpop.f32.mrb[0].mxu0
      %v8578 = vadd.f32 0.0, %v8577
      %v8579 = vpop.f32.mrb[0].mxu0
      %8580 = vmatprep.mubr.bf16.mxu0 0
      %8581 = vmatmul.mubr.bf16.gmra.mrb[0].mxu0 %v8394
      %v8582 = vpop.f32.mrb[0].mxu0
      %v8583 = vadd.f32 0.0, %v8582
      %v8584 = vpop.f32.mrb[0].mxu0
      %v8585 = vpop.f32.mrb[0].mxu0
      %v8586 = vadd.f32 0.0, %v8585
      %v8587 = vpop.f32.mrb[0].mxu0
      %8588 = vmatprep.mubr.bf16.mxu0 0
      %8589 = vmatmul.mubr.bf16.gmra.mrb[0].mxu0 %v8395
      %v8590 = vpop.f32.mrb[0].mxu0
      %v8591 = vadd.f32 0.0, %v8590
      %v8592 = vpop.f32.mrb[0].mxu0
      %v8593 = vpop.f32.mrb[0].mxu0
      %v8594 = vadd.f32 0.0, %v8593
      %v8595 = vpop.f32.mrb[0].mxu0
      %8596 = vmatprep.mubr.bf16.mxu0 0
      %8597 = vmatmul.mubr.bf16.gmra.mrb[0].mxu0 %v8396
      %v8598 = vpop.f32.mrb[0].mxu0
      %v8599 = vadd.f32 0.0, %v8598
      %v8600 = vpop.f32.mrb[0].mxu0
      %v8601 = vpop.f32.mrb[0].mxu0
      %v8602 = vadd.f32 0.0, %v8601
      %v8603 = vpop.f32.mrb[0].mxu0
      %8604 = vmatprep.mubr.bf16.mxu0 0
      %8605 = vmatmul.mubr.bf16.gmra.mrb[0].mxu0 %v8397
      %v8606 = vpop.f32.mrb[0].mxu0
      %v8607 = vadd.f32 0.0, %v8606
      %v8608 = vpop.f32.mrb[0].mxu0
      %v8609 = vpop.f32.mrb[0].mxu0
      %v8610 = vadd.f32 0.0, %v8609
      %v8611 = vpop.f32.mrb[0].mxu0
      %8612 = vmatprep.mubr.bf16.mxu0 0
      %8613 = vmatmul.mubr.bf16.gmra.mrb[0].mxu0 %v8398
      %v8614 = vpop.f32.mrb[0].mxu0
      %v8615 = vadd.f32 0.0, %v8614
      %v8616 = vpop.f32.mrb[0].mxu0
      %v8617 = vpop.f32.mrb[0].mxu0
      %v8618 = vadd.f32 0.0, %v8617
      %v8619 = vpop.f32.mrb[0].mxu0
      %8620 = vmatprep.mubr.bf16.mxu0 0
      %8621 = vmatmul.mubr.bf16.gmra.mrb[0].mxu0 %v8399
      %v8622 = vpop.f32.mrb[0].mxu0
      %v8623 = vadd.f32 0.0, %v8622
      %v8624 = vpop.f32.mrb[0].mxu0
      %v8625 = vpop.f32.mrb[0].mxu0
      %v8626 = vadd.f32 0.0, %v8625
      %v8627 = vpop.f32.mrb[0].mxu0
      %8628 = vmatprep.mubr.bf16.mxu0 0
      %8629 = vmatmul.mubr.bf16.gmra.mrb[0].mxu0 %v8400
      %v8630 = vpop.f32.mrb[0].mxu0
      %v8631 = vadd.f32 0.0, %v8630
      %v8632 = vpop.f32.mrb[0].mxu0
      %v8633 = vpop.f32.mrb[0].mxu0
      %v8634 = vadd.f32 0.0, %v8633
      %v8635 = vpop.f32.mrb[0].mxu0
      %8636 = vmatprep.mubr.bf16.mxu0 0
      %8637 = vmatmul.mubr.bf16.gmra.mrb[0].mxu0 %v8401
      %v8638 = vpop.f32.mrb[0].mxu0
      %v8639 = vadd.f32 0.0, %v8638
      %v8640 = vpop.f32.mrb[0].mxu0
      %v8641 = vpop.f32.mrb[0].mxu0
      %v8642 = vadd.f32 0.0, %v8641
      %v8643 = vpop.f32.mrb[0].mxu0
      %8644 = vmatprep.mubr.bf16.mxu0 0
      %8645 = vmatmul.mubr.bf16.gmra.mrb[0].mxu0 %v8402
      %v8646 = vpop.f32.mrb[0].mxu0
      %v8647 = vadd.f32 0.0, %v8646
      %v8648 = vpop.f32.mrb[0].mxu0
      %v8649 = vpop.f32.mrb[0].mxu0
      %v8650 = vadd.f32 0.0, %v8649
      %v8651 = vpop.f32.mrb[0].mxu0
      %8652 = vmatprep.mubr.bf16.mxu0 0
      %8653 = vmatmul.mubr.bf16.gmra.mrb[0].mxu0 %v8403
      %v8654 = vpop.f32.mrb[0].mxu0
      %v8655 = vadd.f32 0.0, %v8654
      %v8656 = vpop.f32.mrb[0].mxu0
      %v8657 = vpop.f32.mrb[0].mxu0
      %v8658 = vadd.f32 0.0, %v8657
      %v8659 = vpop.f32.mrb[0].mxu0
      %8660 = vmatprep.mubr.bf16.mxu0 0
      %8661 = vmatmul.mubr.bf16.gmra.mrb[0].mxu0 %v8404
      %v8662 = vpop.f32.mrb[0].mxu0
      %v8663 = vadd.f32 0.0, %v8662
      %v8664 = vpop.f32.mrb[0].mxu0
      %v8665 = vpop.f32.mrb[0].mxu0
      %v8666 = vadd.f32 0.0, %v8665
      %v8667 = vpop.f32.mrb[0].mxu0
      %8668 = vmatprep.mubr.bf16.mxu0 0
      %8669 = vmatmul.mubr.bf16.gmra.mrb[0].mxu0 %v8405
      %v8670 = vpop.f32.mrb[0].mxu0
      %v8671 = vadd.f32 0.0, %v8670
      %v8672 = vpop.f32.mrb[0].mxu0
      %v8673 = vpop.f32.mrb[0].mxu0
      %v8674 = vadd.f32 0.0, %v8673
      %v8675 = vpop.f32.mrb[0].mxu0
      %8676 = vmatprep.mubr.bf16.mxu0 0
      %8677 = vmatmul.mubr.bf16.gmra.mrb[0].mxu0 %v8406
      %v8678 = vpop.f32.mrb[0].mxu0
      %v8679 = vadd.f32 0.0, %v8678
      %v8680 = vpop.f32.mrb[0].mxu0
      %v8681 = vpop.f32.mrb[0].mxu0
      %v8682 = vadd.f32 0.0, %v8681
      %v8683 = vpop.f32.mrb[0].mxu0
      %8684 = vmatprep.mubr.bf16.mxu0 0
      %8685 = vmatmul.mubr.bf16.gmra.mrb[0].mxu0 %v8407
      %v8686 = vpop.f32.mrb[0].mxu0
      %v8687 = vadd.f32 0.0, %v8686
      %v8688 = vpop.f32.mrb[0].mxu0
      %v8689 = vpop.f32.mrb[0].mxu0
      %v8690 = vadd.f32 0.0, %v8689
      %v8691 = vpop.f32.mrb[0].mxu0
      %8692 = vmatprep.mubr.bf16.mxu0 0
      %8693 = vmatmul.mubr.bf16.gmra.mrb[0].mxu0 %v8408
      %v8694 = vpop.f32.mrb[0].mxu0
      %v8695 = vadd.f32 0.0, %v8694
      %v8696 = vpop.f32.mrb[0].mxu0
      %v8697 = vpop.f32.mrb[0].mxu0
      %v8698 = vadd.f32 0.0, %v8697
      %v8699 = vpop.f32.mrb[0].mxu0
      %8700 = vmatprep.mubr.bf16.mxu0 0
      %8701 = vmatmul.mubr.bf16.gmra.mrb[0].mxu0 %v8409
      %v8702 = vpop.f32.mrb[0].mxu0
      %v8703 = vadd.f32 0.0, %v8702
      %v8704 = vpop.f32.mrb[0].mxu0
      %v8705 = vpop.f32.mrb[0].mxu0
      %v8706 = vadd.f32 0.0, %v8705
      %v8707 = vpop.f32.mrb[0].mxu0
      %8708 = vmatprep.mubr.bf16.mxu0 0
      %8709 = vmatmul.mubr.bf16.gmra.mrb[0].mxu0 %v8410
      %v8710 = vpop.f32.mrb[0].mxu0
      %v8711 = vadd.f32 0.0, %v8710
      %v8712 = vpop.f32.mrb[0].mxu0
      %v8713 = vpop.f32.mrb[0].mxu0
      %v8714 = vadd.f32 0.0, %v8713
      %v8715 = vpop.f32.mrb[0].mxu0
      %8716 = vmatprep.mubr.bf16.mxu0 0
      %8717 = vmatmul.mubr.bf16.gmra.mrb[0].mxu0 %v8411
      %v8718 = vpop.f32.mrb[0].mxu0
      %v8719 = vadd.f32 0.0, %v8718
      %v8720 = vpop.f32.mrb[0].mxu0
      %v8721 = vpop.f32.mrb[0].mxu0
      %v8722 = vadd.f32 0.0, %v8721
      %v8723 = vpop.f32.mrb[0].mxu0
      %8724 = vmatprep.mubr.bf16.mxu0 0
      %8725 = vmatmul.mubr.bf16.gmra.mrb[0].mxu0 %v8412
      %v8726 = vpop.f32.mrb[0].mxu0
      %v8727 = vadd.f32 0.0, %v8726
      %v8728 = vpop.f32.mrb[0].mxu0
      %v8729 = vpop.f32.mrb[0].mxu0
      %v8730 = vadd.f32 0.0, %v8729
      %v8731 = vpop.f32.mrb[0].mxu0
      %8732 = vmatprep.mubr.bf16.mxu0 0
      %8733 = vmatmul.mubr.bf16.gmra.mrb[0].mxu0 %v8413
      %v8734 = vpop.f32.mrb[0].mxu0
      %v8735 = vadd.f32 0.0, %v8734
      %v8736 = vpop.f32.mrb[0].mxu0
      %v8737 = vpop.f32.mrb[0].mxu0
      %v8738 = vadd.f32 0.0, %v8737
      %v8739 = vpop.f32.mrb[0].mxu0
      %8740 = vmatprep.mubr.bf16.mxu0 0
      %8741 = vmatmul.mubr.bf16.gmra.mrb[0].mxu0 %v8414
      %v8742 = vpop.f32.mrb[0].mxu0
      %v8743 = vadd.f32 0.0, %v8742
      %v8744 = vpop.f32.mrb[0].mxu0
      %v8745 = vpop.f32.mrb[0].mxu0
      %v8746 = vadd.f32 0.0, %v8745
      %v8747 = vpop.f32.mrb[0].mxu0
      %8748 = vmatprep.mubr.bf16.mxu0 0
      %8749 = vmatmul.mubr.bf16.gmra.mrb[0].mxu0 %v8415
      %v8750 = vpop.f32.mrb[0].mxu0
      %v8751 = vadd.f32 0.0, %v8750
      %v8752 = vpop.f32.mrb[0].mxu0
      %v8753 = vpop.f32.mrb[0].mxu0
      %v8754 = vadd.f32 0.0, %v8753
      %v8755 = vpop.f32.mrb[0].mxu0
      %8756 = vmatprep.mubr.bf16.mxu0 0
      %8757 = vmatmul.mubr.bf16.gmra.mrb[0].mxu0 %v8416
      %v8758 = vpop.f32.mrb[0].mxu0
      %v8759 = vadd.f32 0.0, %v8758
      %v8760 = vpop.f32.mrb[0].mxu0
      %v8761 = vpop.f32.mrb[0].mxu0
      %v8762 = vadd.f32 0.0, %v8761
      %v8763 = vpop.f32.mrb[0].mxu0
      %8764 = vmatprep.mubr.bf16.mxu0 0
      %8765 = vmatmul.mubr.bf16.gmra.mrb[0].mxu0 %v8417
      %v8766 = vpop.f32.mrb[0].mxu0
      %v8767 = vadd.f32 0.0, %v8766
      %v8768 = vpop.f32.mrb[0].mxu0
      %v8769 = vpop.f32.mrb[0].mxu0
      %v8770 = vadd.f32 0.0, %v8769
      %v8771 = vpop.f32.mrb[0].mxu0
      %8772 = vmatprep.mubr.bf16.mxu0 0
      %8773 = vmatmul.mubr.bf16.gmra.mrb[0].mxu0 %v8418
      %v8774 = vpop.f32.mrb[0].mxu0
      %v8775 = vadd.f32 0.0, %v8774
      %v8776 = vpop.f32.mrb[0].mxu0
      %v8777 = vpop.f32.mrb[0].mxu0
      %v8778 = vadd.f32 0.0, %v8777
      %v8779 = vpop.f32.mrb[0].mxu0
      %8780 = vmatprep.mubr.bf16.mxu0 0
      %8781 = vmatmul.mubr.bf16.gmra.mrb[0].mxu0 %v8419
      %v8782 = vpop.f32.mrb[0].mxu0
      %v8783 = vadd.f32 0.0, %v8782
      %v8784 = vpop.f32.mrb[0].mxu0
      %v8785 = vpop.f32.mrb[0].mxu0
      %v8786 = vadd.f32 0.0, %v8785
      %v8787 = vpop.f32.mrb[0].mxu0
      %8788 = vdwg.mxu0
      %v8821 = vunpack.c.l.b16 %v8148
      %v8822 = vunpack.c.l.b16 %v8149
      %v8823 = vunpack.c.l.b16 %v8150
      %v8824 = vunpack.c.l.b16 %v8151
      %v8825 = vunpack.c.l.b16 %v8152
      %v8826 = vunpack.c.l.b16 %v8153
      %v8827 = vunpack.c.l.b16 %v8154
      %v8828 = vunpack.c.l.b16 %v8155
      %v8829 = vunpack.c.l.b16 %v8156
      %v8830 = vunpack.c.l.b16 %v8157
      %v8831 = vunpack.c.l.b16 %v8158
      %v8832 = vunpack.c.l.b16 %v8159
      %v8833 = vunpack.c.l.b16 %v8160
      %v8834 = vunpack.c.l.b16 %v8161
      %v8835 = vunpack.c.l.b16 %v8162
      %v8836 = vunpack.c.l.b16 %v8163
      %v8837 = vunpack.c.l.b16 %v8164
      %v8838 = vunpack.c.l.b16 %v8165
      %v8839 = vunpack.c.l.b16 %v8166
      %v8840 = vunpack.c.l.b16 %v8167
      %v8841 = vunpack.c.l.b16 %v8168
      %v8842 = vunpack.c.l.b16 %v8169
      %v8843 = vunpack.c.l.b16 %v8170
      %v8844 = vunpack.c.l.b16 %v8171
      %v8845 = vunpack.c.l.b16 %v8172
      %v8846 = vunpack.c.l.b16 %v8173
      %v8847 = vunpack.c.l.b16 %v8174
      %v8848 = vunpack.c.l.b16 %v8175
      %v8849 = vunpack.c.l.b16 %v8176
      %v8850 = vunpack.c.l.b16 %v8177
      %v8851 = vunpack.c.l.b16 %v8178
      %v8852 = vunpack.c.l.b16 %v8179
      %v8853 = vpack.c.b16 %v8822, %v8821
      %v8854 = vpack.c.b16 %v8824, %v8823
      %v8855 = vpack.c.b16 %v8826, %v8825
      %v8856 = vpack.c.b16 %v8828, %v8827
      %v8857 = vpack.c.b16 %v8830, %v8829
      %v8858 = vpack.c.b16 %v8832, %v8831
      %v8859 = vpack.c.b16 %v8834, %v8833
      %v8860 = vpack.c.b16 %v8836, %v8835
      %v8861 = vpack.c.b16 %v8838, %v8837
      %v8862 = vpack.c.b16 %v8840, %v8839
      %v8863 = vpack.c.b16 %v8842, %v8841
      %v8864 = vpack.c.b16 %v8844, %v8843
      %v8865 = vpack.c.b16 %v8846, %v8845
      %v8866 = vpack.c.b16 %v8848, %v8847
      %v8867 = vpack.c.b16 %v8850, %v8849
      %v8868 = vpack.c.b16 %v8852, %v8851
      %8885 = vmatprep.subr.bf16.mxu0 0
      %8886 = vmatpush1.bf16.msra.mxu0 %v8853
      %8887 = vmatprep.subr.bf16.mxu0 0
      %8888 = vmatpush1.bf16.msra.mxu0 %v8854
      %8889 = vmatprep.subr.bf16.mxu0 0
      %8890 = vmatpush1.bf16.msra.mxu0 %v8855
      %8891 = vmatprep.subr.bf16.mxu0 0
      %8892 = vmatpush1.bf16.msra.mxu0 %v8856
      %8893 = vmatprep.subr.bf16.mxu0 0
      %8894 = vmatpush1.bf16.msra.mxu0 %v8857
      %8895 = vmatprep.subr.bf16.mxu0 0
      %8896 = vmatpush1.bf16.msra.mxu0 %v8858
      %8897 = vmatprep.subr.bf16.mxu0 0
      %8898 = vmatpush1.bf16.msra.mxu0 %v8859
      %8899 = vmatprep.subr.bf16.mxu0 0
      %8900 = vmatpush1.bf16.msra.mxu0 %v8860
      %8901 = vmatprep.subr.bf16.mxu0 0
      %8902 = vmatpush1.bf16.msra.mxu0 %v8861
      %8903 = vmatprep.subr.bf16.mxu0 0
      %8904 = vmatpush1.bf16.msra.mxu0 %v8862
      %8905 = vmatprep.subr.bf16.mxu0 0
      %8906 = vmatpush1.bf16.msra.mxu0 %v8863
      %8907 = vmatprep.subr.bf16.mxu0 0
      %8908 = vmatpush1.bf16.msra.mxu0 %v8864
      %8909 = vmatprep.subr.bf16.mxu0 0
      %8910 = vmatpush1.bf16.msra.mxu0 %v8865
      %8911 = vmatprep.subr.bf16.mxu0 0
      %8912 = vmatpush1.bf16.msra.mxu0 %v8866
      %8913 = vmatprep.subr.bf16.mxu0 0
      %8914 = vmatpush1.bf16.msra.mxu0 %v8867
      %8915 = vmatprep.subr.bf16.mxu0 0
      %8916 = vmatpush1.bf16.msra.mxu0 %v8868
      %8917 = vmatprep.mubr.bf16.mxu0 %v8181
      %8918 = vmatmul.mubr.bf16.gmra.mrb[0].mxu0 %v8180
      %v8919 = vpop.f32.mrb[0].mxu0
      %v8920 = vadd.f32 %v8535, %v8919
      %v8921 = vpop.f32.mrb[0].mxu0
      %v8922 = vpop.f32.mrb[0].mxu0
      %v8923 = vadd.f32 %v8538, %v8922
      %v8924 = vpop.f32.mrb[0].mxu0
      %8925 = vmatprep.mubr.bf16.mxu0 %v8183
      %8926 = vmatmul.mubr.bf16.gmra.mrb[0].mxu0 %v8182
      %v8927 = vpop.f32.mrb[0].mxu0
      %v8928 = vadd.f32 %v8543, %v8927
      %v8929 = vpop.f32.mrb[0].mxu0
      %v8930 = vpop.f32.mrb[0].mxu0
      %v8931 = vadd.f32 %v8546, %v8930
      %v8932 = vpop.f32.mrb[0].mxu0
      %8933 = vmatprep.mubr.bf16.mxu0 %v8185
      %8934 = vmatmul.mubr.bf16.gmra.mrb[0].mxu0 %v8184
      %v8935 = vpop.f32.mrb[0].mxu0
      %v8936 = vadd.f32 %v8551, %v8935
      %v8937 = vpop.f32.mrb[0].mxu0
      %v8938 = vpop.f32.mrb[0].mxu0
      %v8939 = vadd.f32 %v8554, %v8938
      %v8940 = vpop.f32.mrb[0].mxu0
      %8941 = vmatprep.mubr.bf16.mxu0 %v8187
      %8942 = vmatmul.mubr.bf16.gmra.mrb[0].mxu0 %v8186
      %v8943 = vpop.f32.mrb[0].mxu0
      %v8944 = vadd.f32 %v8559, %v8943
      %v8945 = vpop.f32.mrb[0].mxu0
      %v8946 = vpop.f32.mrb[0].mxu0
      %v8947 = vadd.f32 %v8562, %v8946
      %v8948 = vpop.f32.mrb[0].mxu0
      %8949 = vmatprep.mubr.bf16.mxu0 %v8189
      %8950 = vmatmul.mubr.bf16.gmra.mrb[0].mxu0 %v8188
      %v8951 = vpop.f32.mrb[0].mxu0
      %v8952 = vadd.f32 %v8567, %v8951
      %v8953 = vpop.f32.mrb[0].mxu0
      %v8954 = vpop.f32.mrb[0].mxu0
      %v8955 = vadd.f32 %v8570, %v8954
      %v8956 = vpop.f32.mrb[0].mxu0
      %8957 = vmatprep.mubr.bf16.mxu0 %v8191
      %8958 = vmatmul.mubr.bf16.gmra.mrb[0].mxu0 %v8190
      %v8959 = vpop.f32.mrb[0].mxu0
      %v8960 = vadd.f32 %v8575, %v8959
      %v8961 = vpop.f32.mrb[0].mxu0
      %v8962 = vpop.f32.mrb[0].mxu0
      %v8963 = vadd.f32 %v8578, %v8962
      %v8964 = vpop.f32.mrb[0].mxu0
      %8965 = vmatprep.mubr.bf16.mxu0 %v8193
      %8966 = vmatmul.mubr.bf16.gmra.mrb[0].mxu0 %v8192
      %v8967 = vpop.f32.mrb[0].mxu0
      %v8968 = vadd.f32 %v8583, %v8967
      %v8969 = vpop.f32.mrb[0].mxu0
      %v8970 = vpop.f32.mrb[0].mxu0
      %v8971 = vadd.f32 %v8586, %v8970
      %v8972 = vpop.f32.mrb[0].mxu0
      %8973 = vmatprep.mubr.bf16.mxu0 %v8195
      %8974 = vmatmul.mubr.bf16.gmra.mrb[0].mxu0 %v8194
      %v8975 = vpop.f32.mrb[0].mxu0
      %v8976 = vadd.f32 %v8591, %v8975
      %v8977 = vpop.f32.mrb[0].mxu0
      %v8978 = vpop.f32.mrb[0].mxu0
      %v8979 = vadd.f32 %v8594, %v8978
      %v8980 = vpop.f32.mrb[0].mxu0
      %8981 = vmatprep.mubr.bf16.mxu0 %v8197
      %8982 = vmatmul.mubr.bf16.gmra.mrb[0].mxu0 %v8196
      %v8983 = vpop.f32.mrb[0].mxu0
      %v8984 = vadd.f32 %v8599, %v8983
      %v8985 = vpop.f32.mrb[0].mxu0
      %v8986 = vpop.f32.mrb[0].mxu0
      %v8987 = vadd.f32 %v8602, %v8986
      %v8988 = vpop.f32.mrb[0].mxu0
      %8989 = vmatprep.mubr.bf16.mxu0 %v8199
      %8990 = vmatmul.mubr.bf16.gmra.mrb[0].mxu0 %v8198
      %v8991 = vpop.f32.mrb[0].mxu0
      %v8992 = vadd.f32 %v8607, %v8991
      %v8993 = vpop.f32.mrb[0].mxu0
      %v8994 = vpop.f32.mrb[0].mxu0
      %v8995 = vadd.f32 %v8610, %v8994
      %v8996 = vpop.f32.mrb[0].mxu0
      %8997 = vmatprep.mubr.bf16.mxu0 %v8201
      %8998 = vmatmul.mubr.bf16.gmra.mrb[0].mxu0 %v8200
      %v8999 = vpop.f32.mrb[0].mxu0
      %v9000 = vadd.f32 %v8615, %v8999
      %v9001 = vpop.f32.mrb[0].mxu0
      %v9002 = vpop.f32.mrb[0].mxu0
      %v9003 = vadd.f32 %v8618, %v9002
      %v9004 = vpop.f32.mrb[0].mxu0
      %9005 = vmatprep.mubr.bf16.mxu0 %v8203
      %9006 = vmatmul.mubr.bf16.gmra.mrb[0].mxu0 %v8202
      %v9007 = vpop.f32.mrb[0].mxu0
      %v9008 = vadd.f32 %v8623, %v9007
      %v9009 = vpop.f32.mrb[0].mxu0
      %v9010 = vpop.f32.mrb[0].mxu0
      %v9011 = vadd.f32 %v8626, %v9010
      %v9012 = vpop.f32.mrb[0].mxu0
      %9013 = vmatprep.mubr.bf16.mxu0 %v8205
      %9014 = vmatmul.mubr.bf16.gmra.mrb[0].mxu0 %v8204
      %v9015 = vpop.f32.mrb[0].mxu0
      %v9016 = vadd.f32 %v8631, %v9015
      %v9017 = vpop.f32.mrb[0].mxu0
      %v9018 = vpop.f32.mrb[0].mxu0
      %v9019 = vadd.f32 %v8634, %v9018
      %v9020 = vpop.f32.mrb[0].mxu0
      %9021 = vmatprep.mubr.bf16.mxu0 %v8207
      %9022 = vmatmul.mubr.bf16.gmra.mrb[0].mxu0 %v8206
      %v9023 = vpop.f32.mrb[0].mxu0
      %v9024 = vadd.f32 %v8639, %v9023
      %v9025 = vpop.f32.mrb[0].mxu0
      %v9026 = vpop.f32.mrb[0].mxu0
      %v9027 = vadd.f32 %v8642, %v9026
      %v9028 = vpop.f32.mrb[0].mxu0
      %9029 = vmatprep.mubr.bf16.mxu0 %v8209
      %9030 = vmatmul.mubr.bf16.gmra.mrb[0].mxu0 %v8208
      %v9031 = vpop.f32.mrb[0].mxu0
      %v9032 = vadd.f32 %v8647, %v9031
      %v9033 = vpop.f32.mrb[0].mxu0
      %v9034 = vpop.f32.mrb[0].mxu0
      %v9035 = vadd.f32 %v8650, %v9034
      %v9036 = vpop.f32.mrb[0].mxu0
      %9037 = vmatprep.mubr.bf16.mxu0 %v8211
      %9038 = vmatmul.mubr.bf16.gmra.mrb[0].mxu0 %v8210
      %v9039 = vpop.f32.mrb[0].mxu0
      %v9040 = vadd.f32 %v8655, %v9039
      %v9041 = vpop.f32.mrb[0].mxu0
      %v9042 = vpop.f32.mrb[0].mxu0
      %v9043 = vadd.f32 %v8658, %v9042
      %v9044 = vpop.f32.mrb[0].mxu0
      %9045 = vmatprep.mubr.bf16.mxu0 %v8213
      %9046 = vmatmul.mubr.bf16.gmra.mrb[0].mxu0 %v8212
      %v9047 = vpop.f32.mrb[0].mxu0
      %v9048 = vadd.f32 %v8663, %v9047
      %v9049 = vpop.f32.mrb[0].mxu0
      %v9050 = vpop.f32.mrb[0].mxu0
      %v9051 = vadd.f32 %v8666, %v9050
      %v9052 = vpop.f32.mrb[0].mxu0
      %9053 = vmatprep.mubr.bf16.mxu0 %v8215
      %9054 = vmatmul.mubr.bf16.gmra.mrb[0].mxu0 %v8214
      %v9055 = vpop.f32.mrb[0].mxu0
      %v9056 = vadd.f32 %v8671, %v9055
      %v9057 = vpop.f32.mrb[0].mxu0
      %v9058 = vpop.f32.mrb[0].mxu0
      %v9059 = vadd.f32 %v8674, %v9058
      %v9060 = vpop.f32.mrb[0].mxu0
      %9061 = vmatprep.mubr.bf16.mxu0 %v8217
      %9062 = vmatmul.mubr.bf16.gmra.mrb[0].mxu0 %v8216
      %v9063 = vpop.f32.mrb[0].mxu0
      %v9064 = vadd.f32 %v8679, %v9063
      %v9065 = vpop.f32.mrb[0].mxu0
      %v9066 = vpop.f32.mrb[0].mxu0
      %v9067 = vadd.f32 %v8682, %v9066
      %v9068 = vpop.f32.mrb[0].mxu0
      %9069 = vmatprep.mubr.bf16.mxu0 %v8219
      %9070 = vmatmul.mubr.bf16.gmra.mrb[0].mxu0 %v8218
      %v9071 = vpop.f32.mrb[0].mxu0
      %v9072 = vadd.f32 %v8687, %v9071
      %v9073 = vpop.f32.mrb[0].mxu0
      %v9074 = vpop.f32.mrb[0].mxu0
      %v9075 = vadd.f32 %v8690, %v9074
      %v9076 = vpop.f32.mrb[0].mxu0
      %9077 = vmatprep.mubr.bf16.mxu0 %v8221
      %9078 = vmatmul.mubr.bf16.gmra.mrb[0].mxu0 %v8220
      %v9079 = vpop.f32.mrb[0].mxu0
      %v9080 = vadd.f32 %v8695, %v9079
      %v9081 = vpop.f32.mrb[0].mxu0
      %v9082 = vpop.f32.mrb[0].mxu0
      %v9083 = vadd.f32 %v8698, %v9082
      %v9084 = vpop.f32.mrb[0].mxu0
      %9085 = vmatprep.mubr.bf16.mxu0 %v8223
      %9086 = vmatmul.mubr.bf16.gmra.mrb[0].mxu0 %v8222
      %v9087 = vpop.f32.mrb[0].mxu0
      %v9088 = vadd.f32 %v8703, %v9087
      %v9089 = vpop.f32.mrb[0].mxu0
      %v9090 = vpop.f32.mrb[0].mxu0
      %v9091 = vadd.f32 %v8706, %v9090
      %v9092 = vpop.f32.mrb[0].mxu0
      %9093 = vmatprep.mubr.bf16.mxu0 %v8225
      %9094 = vmatmul.mubr.bf16.gmra.mrb[0].mxu0 %v8224
      %v9095 = vpop.f32.mrb[0].mxu0
      %v9096 = vadd.f32 %v8711, %v9095
      %v9097 = vpop.f32.mrb[0].mxu0
      %v9098 = vpop.f32.mrb[0].mxu0
      %v9099 = vadd.f32 %v8714, %v9098
      %v9100 = vpop.f32.mrb[0].mxu0
      %9101 = vmatprep.mubr.bf16.mxu0 %v8227
      %9102 = vmatmul.mubr.bf16.gmra.mrb[0].mxu0 %v8226
      %v9103 = vpop.f32.mrb[0].mxu0
      %v9104 = vadd.f32 %v8719, %v9103
      %v9105 = vpop.f32.mrb[0].mxu0
      %v9106 = vpop.f32.mrb[0].mxu0
      %v9107 = vadd.f32 %v8722, %v9106
      %v9108 = vpop.f32.mrb[0].mxu0
      %9109 = vmatprep.mubr.bf16.mxu0 %v8229
      %9110 = vmatmul.mubr.bf16.gmra.mrb[0].mxu0 %v8228
      %v9111 = vpop.f32.mrb[0].mxu0
      %v9112 = vadd.f32 %v8727, %v9111
      %v9113 = vpop.f32.mrb[0].mxu0
      %v9114 = vpop.f32.mrb[0].mxu0
      %v9115 = vadd.f32 %v8730, %v9114
      %v9116 = vpop.f32.mrb[0].mxu0
      %9117 = vmatprep.mubr.bf16.mxu0 %v8231
      %9118 = vmatmul.mubr.bf16.gmra.mrb[0].mxu0 %v8230
      %v9119 = vpop.f32.mrb[0].mxu0
      %v9120 = vadd.f32 %v8735, %v9119
      %v9121 = vpop.f32.mrb[0].mxu0
      %v9122 = vpop.f32.mrb[0].mxu0
      %v9123 = vadd.f32 %v8738, %v9122
      %v9124 = vpop.f32.mrb[0].mxu0
      %9125 = vmatprep.mubr.bf16.mxu0 %v8233
      %9126 = vmatmul.mubr.bf16.gmra.mrb[0].mxu0 %v8232
      %v9127 = vpop.f32.mrb[0].mxu0
      %v9128 = vadd.f32 %v8743, %v9127
      %v9129 = vpop.f32.mrb[0].mxu0
      %v9130 = vpop.f32.mrb[0].mxu0
      %v9131 = vadd.f32 %v8746, %v9130
      %v9132 = vpop.f32.mrb[0].mxu0
      %9133 = vmatprep.mubr.bf16.mxu0 %v8235
      %9134 = vmatmul.mubr.bf16.gmra.mrb[0].mxu0 %v8234
      %v9135 = vpop.f32.mrb[0].mxu0
      %v9136 = vadd.f32 %v8751, %v9135
      %v9137 = vpop.f32.mrb[0].mxu0
      %v9138 = vpop.f32.mrb[0].mxu0
      %v9139 = vadd.f32 %v8754, %v9138
      %v9140 = vpop.f32.mrb[0].mxu0
      %9141 = vmatprep.mubr.bf16.mxu0 %v8237
      %9142 = vmatmul.mubr.bf16.gmra.mrb[0].mxu0 %v8236
      %v9143 = vpop.f32.mrb[0].mxu0
      %v9144 = vadd.f32 %v8759, %v9143
      %v9145 = vpop.f32.mrb[0].mxu0
      %v9146 = vpop.f32.mrb[0].mxu0
      %v9147 = vadd.f32 %v8762, %v9146
      %v9148 = vpop.f32.mrb[0].mxu0
      %9149 = vmatprep.mubr.bf16.mxu0 %v8239
      %9150 = vmatmul.mubr.bf16.gmra.mrb[0].mxu0 %v8238
      %v9151 = vpop.f32.mrb[0].mxu0
      %v9152 = vadd.f32 %v8767, %v9151
      %v9153 = vpop.f32.mrb[0].mxu0
      %v9154 = vpop.f32.mrb[0].mxu0
      %v9155 = vadd.f32 %v8770, %v9154
      %v9156 = vpop.f32.mrb[0].mxu0
      %9157 = vmatprep.mubr.bf16.mxu0 %v8241
      %9158 = vmatmul.mubr.bf16.gmra.mrb[0].mxu0 %v8240
      %v9159 = vpop.f32.mrb[0].mxu0
      %v9160 = vadd.f32 %v8775, %v9159
      %v9161 = vpop.f32.mrb[0].mxu0
      %v9162 = vpop.f32.mrb[0].mxu0
      %v9163 = vadd.f32 %v8778, %v9162
      %v9164 = vpop.f32.mrb[0].mxu0
      %9165 = vmatprep.mubr.bf16.mxu0 %v8243
      %9166 = vmatmul.mubr.bf16.gmra.mrb[0].mxu0 %v8242
      %v9167 = vpop.f32.mrb[0].mxu0
      %v9168 = vadd.f32 %v8783, %v9167
      %v9169 = vpop.f32.mrb[0].mxu0
      %v9170 = vpop.f32.mrb[0].mxu0
      %v9171 = vadd.f32 %v8786, %v9170
      %v9172 = vpop.f32.mrb[0].mxu0
      %9173 = vdwg.mxu0
      %v9174 = vld [vmem:[%s6 + $0x13] sm:$0x1]
      %v9176 = vlaneseq
      %v9177 = vshrl.u32 %v9176, 7
      %v9178 = vsub.s32 0, %v9177
      %v9179 = vrot.slane %v9174, %v9178
      %v9181 = vadd.f32 %v8920, %v9179
      %v9182 = vadd.f32 %v8923, %v9179
      %v9183 = vadd.f32 %v8928, %v9179
      %v9184 = vadd.f32 %v8931, %v9179
      %v9185 = vadd.f32 %v8936, %v9179
      %v9186 = vadd.f32 %v8939, %v9179
      %v9187 = vadd.f32 %v8944, %v9179
      %v9188 = vadd.f32 %v8947, %v9179
      %v9189 = vadd.f32 %v8952, %v9179
      %v9190 = vadd.f32 %v8955, %v9179
      %v9191 = vadd.f32 %v8960, %v9179
      %v9192 = vadd.f32 %v8963, %v9179
      %v9193 = vadd.f32 %v8968, %v9179
      %v9194 = vadd.f32 %v8971, %v9179
      %v9195 = vadd.f32 %v8976, %v9179
      %v9196 = vadd.f32 %v8979, %v9179
      %v9197 = vadd.f32 %v8984, %v9179
      %v9198 = vadd.f32 %v8987, %v9179
      %v9199 = vadd.f32 %v8992, %v9179
      %v9200 = vadd.f32 %v8995, %v9179
      %v9201 = vadd.f32 %v9000, %v9179
      %v9202 = vadd.f32 %v9003, %v9179
      %v9203 = vadd.f32 %v9008, %v9179
      %v9204 = vadd.f32 %v9011, %v9179
      %v9205 = vadd.f32 %v9016, %v9179
      %v9206 = vadd.f32 %v9019, %v9179
      %v9207 = vadd.f32 %v9024, %v9179
      %v9208 = vadd.f32 %v9027, %v9179
      %v9209 = vadd.f32 %v9032, %v9179
      %v9210 = vadd.f32 %v9035, %v9179
      %v9211 = vadd.f32 %v9040, %v9179
      %v9212 = vadd.f32 %v9043, %v9179
      %v9213 = vadd.f32 %v9048, %v9179
      %v9214 = vadd.f32 %v9051, %v9179
      %v9215 = vadd.f32 %v9056, %v9179
      %v9216 = vadd.f32 %v9059, %v9179
      %v9217 = vadd.f32 %v9064, %v9179
      %v9218 = vadd.f32 %v9067, %v9179
      %v9219 = vadd.f32 %v9072, %v9179
      %v9220 = vadd.f32 %v9075, %v9179
      %v9221 = vadd.f32 %v9080, %v9179
      %v9222 = vadd.f32 %v9083, %v9179
      %v9223 = vadd.f32 %v9088, %v9179
      %v9224 = vadd.f32 %v9091, %v9179
      %v9225 = vadd.f32 %v9096, %v9179
      %v9226 = vadd.f32 %v9099, %v9179
      %v9227 = vadd.f32 %v9104, %v9179
      %v9228 = vadd.f32 %v9107, %v9179
      %v9229 = vadd.f32 %v9112, %v9179
      %v9230 = vadd.f32 %v9115, %v9179
      %v9231 = vadd.f32 %v9120, %v9179
      %v9232 = vadd.f32 %v9123, %v9179
      %v9233 = vadd.f32 %v9128, %v9179
      %v9234 = vadd.f32 %v9131, %v9179
      %v9235 = vadd.f32 %v9136, %v9179
      %v9236 = vadd.f32 %v9139, %v9179
      %v9237 = vadd.f32 %v9144, %v9179
      %v9238 = vadd.f32 %v9147, %v9179
      %v9239 = vadd.f32 %v9152, %v9179
      %v9240 = vadd.f32 %v9155, %v9179
      %v9241 = vadd.f32 %v9160, %v9179
      %v9242 = vadd.f32 %v9163, %v9179
      %v9243 = vadd.f32 %v9168, %v9179
      %v9244 = vadd.f32 %v9171, %v9179
      %v9245 = vmax.f32 %v9181, 0.0
      %v9246 = vmax.f32 %v9182, 0.0
      %v9247 = vmax.f32 %v9183, 0.0
      %v9248 = vmax.f32 %v9184, 0.0
      %v9249 = vmax.f32 %v9185, 0.0
      %v9250 = vmax.f32 %v9186, 0.0
      %v9251 = vmax.f32 %v9187, 0.0
      %v9252 = vmax.f32 %v9188, 0.0
      %v9253 = vmax.f32 %v9189, 0.0
      %v9254 = vmax.f32 %v9190, 0.0
      %v9255 = vmax.f32 %v9191, 0.0
      %v9256 = vmax.f32 %v9192, 0.0
      %v9257 = vmax.f32 %v9193, 0.0
      %v9258 = vmax.f32 %v9194, 0.0
      %v9259 = vmax.f32 %v9195, 0.0
      %v9260 = vmax.f32 %v9196, 0.0
      %v9261 = vmax.f32 %v9197, 0.0
      %v9262 = vmax.f32 %v9198, 0.0
      %v9263 = vmax.f32 %v9199, 0.0
      %v9264 = vmax.f32 %v9200, 0.0
      %v9265 = vmax.f32 %v9201, 0.0
      %v9266 = vmax.f32 %v9202, 0.0
      %v9267 = vmax.f32 %v9203, 0.0
      %v9268 = vmax.f32 %v9204, 0.0
      %v9269 = vmax.f32 %v9205, 0.0
      %v9270 = vmax.f32 %v9206, 0.0
      %v9271 = vmax.f32 %v9207, 0.0
      %v9272 = vmax.f32 %v9208, 0.0
      %v9273 = vmax.f32 %v9209, 0.0
      %v9274 = vmax.f32 %v9210, 0.0
      %v9275 = vmax.f32 %v9211, 0.0
      %v9276 = vmax.f32 %v9212, 0.0
      %v9277 = vmax.f32 %v9213, 0.0
      %v9278 = vmax.f32 %v9214, 0.0
      %v9279 = vmax.f32 %v9215, 0.0
      %v9280 = vmax.f32 %v9216, 0.0
      %v9281 = vmax.f32 %v9217, 0.0
      %v9282 = vmax.f32 %v9218, 0.0
      %v9283 = vmax.f32 %v9219, 0.0
      %v9284 = vmax.f32 %v9220, 0.0
      %v9285 = vmax.f32 %v9221, 0.0
      %v9286 = vmax.f32 %v9222, 0.0
      %v9287 = vmax.f32 %v9223, 0.0
      %v9288 = vmax.f32 %v9224, 0.0
      %v9289 = vmax.f32 %v9225, 0.0
      %v9290 = vmax.f32 %v9226, 0.0
      %v9291 = vmax.f32 %v9227, 0.0
      %v9292 = vmax.f32 %v9228, 0.0
      %v9293 = vmax.f32 %v9229, 0.0
      %v9294 = vmax.f32 %v9230, 0.0
      %v9295 = vmax.f32 %v9231, 0.0
      %v9296 = vmax.f32 %v9232, 0.0
      %v9297 = vmax.f32 %v9233, 0.0
      %v9298 = vmax.f32 %v9234, 0.0
      %v9299 = vmax.f32 %v9235, 0.0
      %v9300 = vmax.f32 %v9236, 0.0
      %v9301 = vmax.f32 %v9237, 0.0
      %v9302 = vmax.f32 %v9238, 0.0
      %v9303 = vmax.f32 %v9239, 0.0
      %v9304 = vmax.f32 %v9240, 0.0
      %v9305 = vmax.f32 %v9241, 0.0
      %v9306 = vmax.f32 %v9242, 0.0
      %v9307 = vmax.f32 %v9243, 0.0
      %v9308 = vmax.f32 %v9244, 0.0
      %v9309 = vld [vmem:[%s5 + $0x4] sm:$0xf]
      %v9310 = vld [vmem:[%s5 + $0xc] sm:$0xf]
      %v9311 = vld [vmem:[%s5 + $0x14] sm:$0xf]
      %v9312 = vld [vmem:[%s5 + $0x1c] sm:$0xf]
      %v9313 = vld [vmem:[%s5 + $0x24] sm:$0xf]
      %v9314 = vld [vmem:[%s5 + $0x2c] sm:$0xf]
      %v9315 = vld [vmem:[%s5 + $0x34] sm:$0xf]
      %v9316 = vld [vmem:[%s5 + $0x3c] sm:$0xf]
      %v9317 = vld [vmem:[%s5 + $0x44] sm:$0xf]
      %v9318 = vld [vmem:[%s5 + $0x4c] sm:$0xf]
      %v9319 = vld [vmem:[%s5 + $0x54] sm:$0xf]
      %v9320 = vld [vmem:[%s5 + $0x5c] sm:$0xf]
      %v9321 = vld [vmem:[%s5 + $0x64] sm:$0xf]
      %v9322 = vld [vmem:[%s5 + $0x6c] sm:$0xf]
      %v9323 = vld [vmem:[%s5 + $0x74] sm:$0xf]
      %v9324 = vld [vmem:[%s5 + $0x7c] sm:$0xf]
      %v9325 = vpack.c.bf16 %v9246, %v9245
      %v9326 = vpack.c.bf16 %v9248, %v9247
      %v9327 = vpack.c.bf16 %v9250, %v9249
      %v9328 = vpack.c.bf16 %v9252, %v9251
      %v9329 = vpack.c.bf16 %v9254, %v9253
      %v9330 = vpack.c.bf16 %v9256, %v9255
      %v9331 = vpack.c.bf16 %v9258, %v9257
      %v9332 = vpack.c.bf16 %v9260, %v9259
      %v9333 = vpack.c.bf16 %v9262, %v9261
      %v9334 = vpack.c.bf16 %v9264, %v9263
      %v9335 = vpack.c.bf16 %v9266, %v9265
      %v9336 = vpack.c.bf16 %v9268, %v9267
      %v9337 = vpack.c.bf16 %v9270, %v9269
      %v9338 = vpack.c.bf16 %v9272, %v9271
      %v9339 = vpack.c.bf16 %v9274, %v9273
      %v9340 = vpack.c.bf16 %v9276, %v9275
      %v9341 = vpack.c.bf16 %v9278, %v9277
      %v9342 = vpack.c.bf16 %v9280, %v9279
      %v9343 = vpack.c.bf16 %v9282, %v9281
      %v9344 = vpack.c.bf16 %v9284, %v9283
      %v9345 = vpack.c.bf16 %v9286, %v9285
      %v9346 = vpack.c.bf16 %v9288, %v9287
      %v9347 = vpack.c.bf16 %v9290, %v9289
      %v9348 = vpack.c.bf16 %v9292, %v9291
      %v9349 = vpack.c.bf16 %v9294, %v9293
      %v9350 = vpack.c.bf16 %v9296, %v9295
      %v9351 = vpack.c.bf16 %v9298, %v9297
      %v9352 = vpack.c.bf16 %v9300, %v9299
      %v9353 = vpack.c.bf16 %v9302, %v9301
      %v9354 = vpack.c.bf16 %v9304, %v9303
      %v9355 = vpack.c.bf16 %v9306, %v9305
      %v9356 = vpack.c.bf16 %v9308, %v9307
      %v9357 = vld [vmem:[%s6 + $0x14] sm:$0x1]
      %v9359 = vlaneseq
      %v9360 = vshrl.u32 %v9359, 7
      %v9361 = vsub.s32 0, %v9360
      %v9362 = vrot.slane %v9357, %v9361
      %v9380 = vunpack.c.l.b16 %v9309
      %v9381 = vunpack.c.l.b16 %v9310
      %v9382 = vunpack.c.l.b16 %v9311
      %v9383 = vunpack.c.l.b16 %v9312
      %v9384 = vunpack.c.l.b16 %v9313
      %v9385 = vunpack.c.l.b16 %v9314
      %v9386 = vunpack.c.l.b16 %v9315
      %v9387 = vunpack.c.l.b16 %v9316
      %v9388 = vunpack.c.l.b16 %v9317
      %v9389 = vunpack.c.l.b16 %v9318
      %v9390 = vunpack.c.l.b16 %v9319
      %v9391 = vunpack.c.l.b16 %v9320
      %v9392 = vunpack.c.l.b16 %v9321
      %v9393 = vunpack.c.l.b16 %v9322
      %v9394 = vunpack.c.l.b16 %v9323
      %v9395 = vunpack.c.l.b16 %v9324
      %v9396 = vpack.c.b16 %v9381, %v9380
      %v9397 = vpack.c.b16 %v9383, %v9382
      %v9398 = vpack.c.b16 %v9385, %v9384
      %v9399 = vpack.c.b16 %v9387, %v9386
      %v9400 = vpack.c.b16 %v9389, %v9388
      %v9401 = vpack.c.b16 %v9391, %v9390
      %v9402 = vpack.c.b16 %v9393, %v9392
      %v9403 = vpack.c.b16 %v9395, %v9394
      %9412 = vmatprep.subr.bf16.mxu0 0
      %9413 = vmatpush1.bf16.msra.mxu0 %v9396
      %9414 = vmatprep.subr.bf16.mxu0 0
      %9415 = vmatpush1.bf16.msra.mxu0 %v9397
      %9416 = vmatprep.subr.bf16.mxu0 0
      %9417 = vmatpush1.bf16.msra.mxu0 %v9398
      %9418 = vmatprep.subr.bf16.mxu0 0
      %9419 = vmatpush1.bf16.msra.mxu0 %v9399
      %9420 = vmatprep.subr.bf16.mxu0 0
      %9421 = vmatpush1.bf16.msra.mxu0 %v9400
      %9422 = vmatprep.subr.bf16.mxu0 0
      %9423 = vmatpush1.bf16.msra.mxu0 %v9401
      %9424 = vmatprep.subr.bf16.mxu0 0
      %9425 = vmatpush1.bf16.msra.mxu0 %v9402
      %9426 = vmatprep.subr.bf16.mxu0 0
      %9427 = vmatpush1.bf16.msra.mxu0 %v9403
      %9428 = vmatprep.subr.bf16.mxu0 0
      %9429 = vmatpush1.bf16.msra.mxu0 0
      %9430 = vmatprep.subr.bf16.mxu0 0
      %9431 = vmatpush1.bf16.msra.mxu0 0
      %9432 = vmatprep.subr.bf16.mxu0 0
      %9433 = vmatpush1.bf16.msra.mxu0 0
      %9434 = vmatprep.subr.bf16.mxu0 0
      %9435 = vmatpush1.bf16.msra.mxu0 0
      %9436 = vmatprep.subr.bf16.mxu0 0
      %9437 = vmatpush1.bf16.msra.mxu0 0
      %9438 = vmatprep.subr.bf16.mxu0 0
      %9439 = vmatpush1.bf16.msra.mxu0 0
      %9440 = vmatprep.subr.bf16.mxu0 0
      %9441 = vmatpush1.bf16.msra.mxu0 0
      %9442 = vmatprep.subr.bf16.mxu0 0
      %9443 = vmatpush1.bf16.msra.mxu0 0
      %9444 = vmatprep.mubr.bf16.mxu0 0
      %9445 = vmatmul.mubr.bf16.gmra.mrb[0].mxu0 %v9325
      %v9446 = vpop.f32.mrb[0].mxu0
      %v9447 = vadd.f32 %v9362, %v9446
      %v9448 = vpop.f32.mrb[0].mxu0
      %v9449 = vpop.f32.mrb[0].mxu0
      %v9450 = vadd.f32 %v9362, %v9449
      %v9451 = vpop.f32.mrb[0].mxu0
      %9452 = vmatprep.mubr.bf16.mxu0 0
      %9453 = vmatmul.mubr.bf16.gmra.mrb[0].mxu0 %v9326
      %v9454 = vpop.f32.mrb[0].mxu0
      %v9455 = vadd.f32 %v9362, %v9454
      %v9456 = vpop.f32.mrb[0].mxu0
      %v9457 = vpop.f32.mrb[0].mxu0
      %v9458 = vadd.f32 %v9362, %v9457
      %v9459 = vpop.f32.mrb[0].mxu0
      %9460 = vmatprep.mubr.bf16.mxu0 0
      %9461 = vmatmul.mubr.bf16.gmra.mrb[0].mxu0 %v9327
      %v9462 = vpop.f32.mrb[0].mxu0
      %v9463 = vadd.f32 %v9362, %v9462
      %v9464 = vpop.f32.mrb[0].mxu0
      %v9465 = vpop.f32.mrb[0].mxu0
      %v9466 = vadd.f32 %v9362, %v9465
      %v9467 = vpop.f32.mrb[0].mxu0
      %9468 = vmatprep.mubr.bf16.mxu0 0
      %9469 = vmatmul.mubr.bf16.gmra.mrb[0].mxu0 %v9328
      %v9470 = vpop.f32.mrb[0].mxu0
      %v9471 = vadd.f32 %v9362, %v9470
      %v9472 = vpop.f32.mrb[0].mxu0
      %v9473 = vpop.f32.mrb[0].mxu0
      %v9474 = vadd.f32 %v9362, %v9473
      %v9475 = vpop.f32.mrb[0].mxu0
      %9476 = vmatprep.mubr.bf16.mxu0 0
      %9477 = vmatmul.mubr.bf16.gmra.mrb[0].mxu0 %v9329
      %v9478 = vpop.f32.mrb[0].mxu0
      %v9479 = vadd.f32 %v9362, %v9478
      %v9480 = vpop.f32.mrb[0].mxu0
      %v9481 = vpop.f32.mrb[0].mxu0
      %v9482 = vadd.f32 %v9362, %v9481
      %v9483 = vpop.f32.mrb[0].mxu0
      %9484 = vmatprep.mubr.bf16.mxu0 0
      %9485 = vmatmul.mubr.bf16.gmra.mrb[0].mxu0 %v9330
      %v9486 = vpop.f32.mrb[0].mxu0
      %v9487 = vadd.f32 %v9362, %v9486
      %v9488 = vpop.f32.mrb[0].mxu0
      %v9489 = vpop.f32.mrb[0].mxu0
      %v9490 = vadd.f32 %v9362, %v9489
      %v9491 = vpop.f32.mrb[0].mxu0
      %9492 = vmatprep.mubr.bf16.mxu0 0
      %9493 = vmatmul.mubr.bf16.gmra.mrb[0].mxu0 %v9331
      %v9494 = vpop.f32.mrb[0].mxu0
      %v9495 = vadd.f32 %v9362, %v9494
      %v9496 = vpop.f32.mrb[0].mxu0
      %v9497 = vpop.f32.mrb[0].mxu0
      %v9498 = vadd.f32 %v9362, %v9497
      %v9499 = vpop.f32.mrb[0].mxu0
      %9500 = vmatprep.mubr.bf16.mxu0 0
      %9501 = vmatmul.mubr.bf16.gmra.mrb[0].mxu0 %v9332
      %v9502 = vpop.f32.mrb[0].mxu0
      %v9503 = vadd.f32 %v9362, %v9502
      %v9504 = vpop.f32.mrb[0].mxu0
      %v9505 = vpop.f32.mrb[0].mxu0
      %v9506 = vadd.f32 %v9362, %v9505
      %v9507 = vpop.f32.mrb[0].mxu0
      %9508 = vmatprep.mubr.bf16.mxu0 0
      %9509 = vmatmul.mubr.bf16.gmra.mrb[0].mxu0 %v9333
      %v9510 = vpop.f32.mrb[0].mxu0
      %v9511 = vadd.f32 %v9362, %v9510
      %v9512 = vpop.f32.mrb[0].mxu0
      %v9513 = vpop.f32.mrb[0].mxu0
      %v9514 = vadd.f32 %v9362, %v9513
      %v9515 = vpop.f32.mrb[0].mxu0
      %9516 = vmatprep.mubr.bf16.mxu0 0
      %9517 = vmatmul.mubr.bf16.gmra.mrb[0].mxu0 %v9334
      %v9518 = vpop.f32.mrb[0].mxu0
      %v9519 = vadd.f32 %v9362, %v9518
      %v9520 = vpop.f32.mrb[0].mxu0
      %v9521 = vpop.f32.mrb[0].mxu0
      %v9522 = vadd.f32 %v9362, %v9521
      %v9523 = vpop.f32.mrb[0].mxu0
      %9524 = vmatprep.mubr.bf16.mxu0 0
      %9525 = vmatmul.mubr.bf16.gmra.mrb[0].mxu0 %v9335
      %v9526 = vpop.f32.mrb[0].mxu0
      %v9527 = vadd.f32 %v9362, %v9526
      %v9528 = vpop.f32.mrb[0].mxu0
      %v9529 = vpop.f32.mrb[0].mxu0
      %v9530 = vadd.f32 %v9362, %v9529
      %v9531 = vpop.f32.mrb[0].mxu0
      %9532 = vmatprep.mubr.bf16.mxu0 0
      %9533 = vmatmul.mubr.bf16.gmra.mrb[0].mxu0 %v9336
      %v9534 = vpop.f32.mrb[0].mxu0
      %v9535 = vadd.f32 %v9362, %v9534
      %v9536 = vpop.f32.mrb[0].mxu0
      %v9537 = vpop.f32.mrb[0].mxu0
      %v9538 = vadd.f32 %v9362, %v9537
      %v9539 = vpop.f32.mrb[0].mxu0
      %9540 = vmatprep.mubr.bf16.mxu0 0
      %9541 = vmatmul.mubr.bf16.gmra.mrb[0].mxu0 %v9337
      %v9542 = vpop.f32.mrb[0].mxu0
      %v9543 = vadd.f32 %v9362, %v9542
      %v9544 = vpop.f32.mrb[0].mxu0
      %v9545 = vpop.f32.mrb[0].mxu0
      %v9546 = vadd.f32 %v9362, %v9545
      %v9547 = vpop.f32.mrb[0].mxu0
      %9548 = vmatprep.mubr.bf16.mxu0 0
      %9549 = vmatmul.mubr.bf16.gmra.mrb[0].mxu0 %v9338
      %v9550 = vpop.f32.mrb[0].mxu0
      %v9551 = vadd.f32 %v9362, %v9550
      %v9552 = vpop.f32.mrb[0].mxu0
      %v9553 = vpop.f32.mrb[0].mxu0
      %v9554 = vadd.f32 %v9362, %v9553
      %v9555 = vpop.f32.mrb[0].mxu0
      %9556 = vmatprep.mubr.bf16.mxu0 0
      %9557 = vmatmul.mubr.bf16.gmra.mrb[0].mxu0 %v9339
      %v9558 = vpop.f32.mrb[0].mxu0
      %v9559 = vadd.f32 %v9362, %v9558
      %v9560 = vpop.f32.mrb[0].mxu0
      %v9561 = vpop.f32.mrb[0].mxu0
      %v9562 = vadd.f32 %v9362, %v9561
      %v9563 = vpop.f32.mrb[0].mxu0
      %9564 = vmatprep.mubr.bf16.mxu0 0
      %9565 = vmatmul.mubr.bf16.gmra.mrb[0].mxu0 %v9340
      %v9566 = vpop.f32.mrb[0].mxu0
      %v9567 = vadd.f32 %v9362, %v9566
      %v9568 = vpop.f32.mrb[0].mxu0
      %v9569 = vpop.f32.mrb[0].mxu0
      %v9570 = vadd.f32 %v9362, %v9569
      %v9571 = vpop.f32.mrb[0].mxu0
      %9572 = vmatprep.mubr.bf16.mxu0 0
      %9573 = vmatmul.mubr.bf16.gmra.mrb[0].mxu0 %v9341
      %v9574 = vpop.f32.mrb[0].mxu0
      %v9575 = vadd.f32 %v9362, %v9574
      %v9576 = vpop.f32.mrb[0].mxu0
      %v9577 = vpop.f32.mrb[0].mxu0
      %v9578 = vadd.f32 %v9362, %v9577
      %v9579 = vpop.f32.mrb[0].mxu0
      %9580 = vmatprep.mubr.bf16.mxu0 0
      %9581 = vmatmul.mubr.bf16.gmra.mrb[0].mxu0 %v9342
      %v9582 = vpop.f32.mrb[0].mxu0
      %v9583 = vadd.f32 %v9362, %v9582
      %v9584 = vpop.f32.mrb[0].mxu0
      %v9585 = vpop.f32.mrb[0].mxu0
      %v9586 = vadd.f32 %v9362, %v9585
      %v9587 = vpop.f32.mrb[0].mxu0
      %9588 = vmatprep.mubr.bf16.mxu0 0
      %9589 = vmatmul.mubr.bf16.gmra.mrb[0].mxu0 %v9343
      %v9590 = vpop.f32.mrb[0].mxu0
      %v9591 = vadd.f32 %v9362, %v9590
      %v9592 = vpop.f32.mrb[0].mxu0
      %v9593 = vpop.f32.mrb[0].mxu0
      %v9594 = vadd.f32 %v9362, %v9593
      %v9595 = vpop.f32.mrb[0].mxu0
      %9596 = vmatprep.mubr.bf16.mxu0 0
      %9597 = vmatmul.mubr.bf16.gmra.mrb[0].mxu0 %v9344
      %v9598 = vpop.f32.mrb[0].mxu0
      %v9599 = vadd.f32 %v9362, %v9598
      %v9600 = vpop.f32.mrb[0].mxu0
      %v9601 = vpop.f32.mrb[0].mxu0
      %v9602 = vadd.f32 %v9362, %v9601
      %v9603 = vpop.f32.mrb[0].mxu0
      %9604 = vmatprep.mubr.bf16.mxu0 0
      %9605 = vmatmul.mubr.bf16.gmra.mrb[0].mxu0 %v9345
      %v9606 = vpop.f32.mrb[0].mxu0
      %v9607 = vadd.f32 %v9362, %v9606
      %v9608 = vpop.f32.mrb[0].mxu0
      %v9609 = vpop.f32.mrb[0].mxu0
      %v9610 = vadd.f32 %v9362, %v9609
      %v9611 = vpop.f32.mrb[0].mxu0
      %9612 = vmatprep.mubr.bf16.mxu0 0
      %9613 = vmatmul.mubr.bf16.gmra.mrb[0].mxu0 %v9346
      %v9614 = vpop.f32.mrb[0].mxu0
      %v9615 = vadd.f32 %v9362, %v9614
      %v9616 = vpop.f32.mrb[0].mxu0
      %v9617 = vpop.f32.mrb[0].mxu0
      %v9618 = vadd.f32 %v9362, %v9617
      %v9619 = vpop.f32.mrb[0].mxu0
      %9620 = vmatprep.mubr.bf16.mxu0 0
      %9621 = vmatmul.mubr.bf16.gmra.mrb[0].mxu0 %v9347
      %v9622 = vpop.f32.mrb[0].mxu0
      %v9623 = vadd.f32 %v9362, %v9622
      %v9624 = vpop.f32.mrb[0].mxu0
      %v9625 = vpop.f32.mrb[0].mxu0
      %v9626 = vadd.f32 %v9362, %v9625
      %v9627 = vpop.f32.mrb[0].mxu0
      %9628 = vmatprep.mubr.bf16.mxu0 0
      %9629 = vmatmul.mubr.bf16.gmra.mrb[0].mxu0 %v9348
      %v9630 = vpop.f32.mrb[0].mxu0
      %v9631 = vadd.f32 %v9362, %v9630
      %v9632 = vpop.f32.mrb[0].mxu0
      %v9633 = vpop.f32.mrb[0].mxu0
      %v9634 = vadd.f32 %v9362, %v9633
      %v9635 = vpop.f32.mrb[0].mxu0
      %9636 = vmatprep.mubr.bf16.mxu0 0
      %9637 = vmatmul.mubr.bf16.gmra.mrb[0].mxu0 %v9349
      %v9638 = vpop.f32.mrb[0].mxu0
      %v9639 = vadd.f32 %v9362, %v9638
      %v9640 = vpop.f32.mrb[0].mxu0
      %v9641 = vpop.f32.mrb[0].mxu0
      %v9642 = vadd.f32 %v9362, %v9641
      %v9643 = vpop.f32.mrb[0].mxu0
      %9644 = vmatprep.mubr.bf16.mxu0 0
      %9645 = vmatmul.mubr.bf16.gmra.mrb[0].mxu0 %v9350
      %v9646 = vpop.f32.mrb[0].mxu0
      %v9647 = vadd.f32 %v9362, %v9646
      %v9648 = vpop.f32.mrb[0].mxu0
      %v9649 = vpop.f32.mrb[0].mxu0
      %v9650 = vadd.f32 %v9362, %v9649
      %v9651 = vpop.f32.mrb[0].mxu0
      %9652 = vmatprep.mubr.bf16.mxu0 0
      %9653 = vmatmul.mubr.bf16.gmra.mrb[0].mxu0 %v9351
      %v9654 = vpop.f32.mrb[0].mxu0
      %v9655 = vadd.f32 %v9362, %v9654
      %v9656 = vpop.f32.mrb[0].mxu0
      %v9657 = vpop.f32.mrb[0].mxu0
      %v9658 = vadd.f32 %v9362, %v9657
      %v9659 = vpop.f32.mrb[0].mxu0
      %9660 = vmatprep.mubr.bf16.mxu0 0
      %9661 = vmatmul.mubr.bf16.gmra.mrb[0].mxu0 %v9352
      %v9662 = vpop.f32.mrb[0].mxu0
      %v9663 = vadd.f32 %v9362, %v9662
      %v9664 = vpop.f32.mrb[0].mxu0
      %v9665 = vpop.f32.mrb[0].mxu0
      %v9666 = vadd.f32 %v9362, %v9665
      %v9667 = vpop.f32.mrb[0].mxu0
      %9668 = vmatprep.mubr.bf16.mxu0 0
      %9669 = vmatmul.mubr.bf16.gmra.mrb[0].mxu0 %v9353
      %v9670 = vpop.f32.mrb[0].mxu0
      %v9671 = vadd.f32 %v9362, %v9670
      %v9672 = vpop.f32.mrb[0].mxu0
      %v9673 = vpop.f32.mrb[0].mxu0
      %v9674 = vadd.f32 %v9362, %v9673
      %v9675 = vpop.f32.mrb[0].mxu0
      %9676 = vmatprep.mubr.bf16.mxu0 0
      %9677 = vmatmul.mubr.bf16.gmra.mrb[0].mxu0 %v9354
      %v9678 = vpop.f32.mrb[0].mxu0
      %v9679 = vadd.f32 %v9362, %v9678
      %v9680 = vpop.f32.mrb[0].mxu0
      %v9681 = vpop.f32.mrb[0].mxu0
      %v9682 = vadd.f32 %v9362, %v9681
      %v9683 = vpop.f32.mrb[0].mxu0
      %9684 = vmatprep.mubr.bf16.mxu0 0
      %9685 = vmatmul.mubr.bf16.gmra.mrb[0].mxu0 %v9355
      %v9686 = vpop.f32.mrb[0].mxu0
      %v9687 = vadd.f32 %v9362, %v9686
      %v9688 = vpop.f32.mrb[0].mxu0
      %v9689 = vpop.f32.mrb[0].mxu0
      %v9690 = vadd.f32 %v9362, %v9689
      %v9691 = vpop.f32.mrb[0].mxu0
      %9692 = vmatprep.mubr.bf16.mxu0 0
      %9693 = vmatmul.mubr.bf16.gmra.mrb[0].mxu0 %v9356
      %v9694 = vpop.f32.mrb[0].mxu0
      %v9695 = vadd.f32 %v9362, %v9694
      %v9696 = vpop.f32.mrb[0].mxu0
      %v9697 = vpop.f32.mrb[0].mxu0
      %v9698 = vadd.f32 %v9362, %v9697
      %v9699 = vpop.f32.mrb[0].mxu0
      %9700 = vdwg.mxu0
      %v9701 = vxor.u32 %v9447, 2147483648
      %v9702 = vxor.u32 %v9450, 2147483648
      %v9703 = vxor.u32 %v9455, 2147483648
      %v9704 = vxor.u32 %v9458, 2147483648
      %v9705 = vxor.u32 %v9463, 2147483648
      %v9706 = vxor.u32 %v9466, 2147483648
      %v9707 = vxor.u32 %v9471, 2147483648
      %v9708 = vxor.u32 %v9474, 2147483648
      %v9709 = vxor.u32 %v9479, 2147483648
      %v9710 = vxor.u32 %v9482, 2147483648
      %v9711 = vxor.u32 %v9487, 2147483648
      %v9712 = vxor.u32 %v9490, 2147483648
      %v9713 = vxor.u32 %v9495, 2147483648
      %v9714 = vxor.u32 %v9498, 2147483648
      %v9715 = vxor.u32 %v9503, 2147483648
      %v9716 = vxor.u32 %v9506, 2147483648
      %v9717 = vxor.u32 %v9511, 2147483648
      %v9718 = vxor.u32 %v9514, 2147483648
      %v9719 = vxor.u32 %v9519, 2147483648
      %v9720 = vxor.u32 %v9522, 2147483648
      %v9721 = vxor.u32 %v9527, 2147483648
      %v9722 = vxor.u32 %v9530, 2147483648
      %v9723 = vxor.u32 %v9535, 2147483648
      %v9724 = vxor.u32 %v9538, 2147483648
      %v9725 = vxor.u32 %v9543, 2147483648
      %v9726 = vxor.u32 %v9546, 2147483648
      %v9727 = vxor.u32 %v9551, 2147483648
      %v9728 = vxor.u32 %v9554, 2147483648
      %v9729 = vxor.u32 %v9559, 2147483648
      %v9730 = vxor.u32 %v9562, 2147483648
      %v9731 = vxor.u32 %v9567, 2147483648
      %v9732 = vxor.u32 %v9570, 2147483648
      %v9733 = vxor.u32 %v9575, 2147483648
      %v9734 = vxor.u32 %v9578, 2147483648
      %v9735 = vxor.u32 %v9583, 2147483648
      %v9736 = vxor.u32 %v9586, 2147483648
      %v9737 = vxor.u32 %v9591, 2147483648
      %v9738 = vxor.u32 %v9594, 2147483648
      %v9739 = vxor.u32 %v9599, 2147483648
      %v9740 = vxor.u32 %v9602, 2147483648
      %v9741 = vxor.u32 %v9607, 2147483648
      %v9742 = vxor.u32 %v9610, 2147483648
      %v9743 = vxor.u32 %v9615, 2147483648
      %v9744 = vxor.u32 %v9618, 2147483648
      %v9745 = vxor.u32 %v9623, 2147483648
      %v9746 = vxor.u32 %v9626, 2147483648
      %v9747 = vxor.u32 %v9631, 2147483648
      %v9748 = vxor.u32 %v9634, 2147483648
      %v9749 = vxor.u32 %v9639, 2147483648
      %v9750 = vxor.u32 %v9642, 2147483648
      %v9751 = vxor.u32 %v9647, 2147483648
      %v9752 = vxor.u32 %v9650, 2147483648
      %v9753 = vxor.u32 %v9655, 2147483648
      %v9754 = vxor.u32 %v9658, 2147483648
      %v9755 = vxor.u32 %v9663, 2147483648
      %v9756 = vxor.u32 %v9666, 2147483648
      %v9757 = vxor.u32 %v9671, 2147483648
      %v9758 = vxor.u32 %v9674, 2147483648
      %v9759 = vxor.u32 %v9679, 2147483648
      %v9760 = vxor.u32 %v9682, 2147483648
      %v9761 = vxor.u32 %v9687, 2147483648
      %v9762 = vxor.u32 %v9690, 2147483648
      %v9763 = vxor.u32 %v9695, 2147483648
      %v9764 = vxor.u32 %v9698, 2147483648
      %v9765 = vmul.f32 %v9701, 1.442695
      %v9766 = vpow.pop %v9765
      %v9767 = vmul.f32 %v9702, 1.442695
      %v9768 = vpow.pop %v9767
      %v9769 = vmul.f32 %v9703, 1.442695
      %v9770 = vpow.pop %v9769
      %v9771 = vmul.f32 %v9704, 1.442695
      %v9772 = vpow.pop %v9771
      %v9773 = vmul.f32 %v9705, 1.442695
      %v9774 = vpow.pop %v9773
      %v9775 = vmul.f32 %v9706, 1.442695
      %v9776 = vpow.pop %v9775
      %v9777 = vmul.f32 %v9707, 1.442695
      %v9778 = vpow.pop %v9777
      %v9779 = vmul.f32 %v9708, 1.442695
      %v9780 = vpow.pop %v9779
      %v9781 = vmul.f32 %v9709, 1.442695
      %v9782 = vpow.pop %v9781
      %v9783 = vmul.f32 %v9710, 1.442695
      %v9784 = vpow.pop %v9783
      %v9785 = vmul.f32 %v9711, 1.442695
      %v9786 = vpow.pop %v9785
      %v9787 = vmul.f32 %v9712, 1.442695
      %v9788 = vpow.pop %v9787
      %v9789 = vmul.f32 %v9713, 1.442695
      %v9790 = vpow.pop %v9789
      %v9791 = vmul.f32 %v9714, 1.442695
      %v9792 = vpow.pop %v9791
      %v9793 = vmul.f32 %v9715, 1.442695
      %v9794 = vpow.pop %v9793
      %v9795 = vmul.f32 %v9716, 1.442695
      %v9796 = vpow.pop %v9795
      %v9797 = vmul.f32 %v9717, 1.442695
      %v9798 = vpow.pop %v9797
      %v9799 = vmul.f32 %v9718, 1.442695
      %v9800 = vpow.pop %v9799
      %v9801 = vmul.f32 %v9719, 1.442695
      %v9802 = vpow.pop %v9801
      %v9803 = vmul.f32 %v9720, 1.442695
      %v9804 = vpow.pop %v9803
      %v9805 = vmul.f32 %v9721, 1.442695
      %v9806 = vpow.pop %v9805
      %v9807 = vmul.f32 %v9722, 1.442695
      %v9808 = vpow.pop %v9807
      %v9809 = vmul.f32 %v9723, 1.442695
      %v9810 = vpow.pop %v9809
      %v9811 = vmul.f32 %v9724, 1.442695
      %v9812 = vpow.pop %v9811
      %v9813 = vmul.f32 %v9725, 1.442695
      %v9814 = vpow.pop %v9813
      %v9815 = vmul.f32 %v9726, 1.442695
      %v9816 = vpow.pop %v9815
      %v9817 = vmul.f32 %v9727, 1.442695
      %v9818 = vpow.pop %v9817
      %v9819 = vmul.f32 %v9728, 1.442695
      %v9820 = vpow.pop %v9819
      %v9821 = vmul.f32 %v9729, 1.442695
      %v9822 = vpow.pop %v9821
      %v9823 = vmul.f32 %v9730, 1.442695
      %v9824 = vpow.pop %v9823
      %v9825 = vmul.f32 %v9731, 1.442695
      %v9826 = vpow.pop %v9825
      %v9827 = vmul.f32 %v9732, 1.442695
      %v9828 = vpow.pop %v9827
      %v9829 = vmul.f32 %v9733, 1.442695
      %v9830 = vpow.pop %v9829
      %v9831 = vmul.f32 %v9734, 1.442695
      %v9832 = vpow.pop %v9831
      %v9833 = vmul.f32 %v9735, 1.442695
      %v9834 = vpow.pop %v9833
      %v9835 = vmul.f32 %v9736, 1.442695
      %v9836 = vpow.pop %v9835
      %v9837 = vmul.f32 %v9737, 1.442695
      %v9838 = vpow.pop %v9837
      %v9839 = vmul.f32 %v9738, 1.442695
      %v9840 = vpow.pop %v9839
      %v9841 = vmul.f32 %v9739, 1.442695
      %v9842 = vpow.pop %v9841
      %v9843 = vmul.f32 %v9740, 1.442695
      %v9844 = vpow.pop %v9843
      %v9845 = vmul.f32 %v9741, 1.442695
      %v9846 = vpow.pop %v9845
      %v9847 = vmul.f32 %v9742, 1.442695
      %v9848 = vpow.pop %v9847
      %v9849 = vmul.f32 %v9743, 1.442695
      %v9850 = vpow.pop %v9849
      %v9851 = vmul.f32 %v9744, 1.442695
      %v9852 = vpow.pop %v9851
      %v9853 = vmul.f32 %v9745, 1.442695
      %v9854 = vpow.pop %v9853
      %v9855 = vmul.f32 %v9746, 1.442695
      %v9856 = vpow.pop %v9855
      %v9857 = vmul.f32 %v9747, 1.442695
      %v9858 = vpow.pop %v9857
      %v9859 = vmul.f32 %v9748, 1.442695
      %v9860 = vpow.pop %v9859
      %v9861 = vmul.f32 %v9749, 1.442695
      %v9862 = vpow.pop %v9861
      %v9863 = vmul.f32 %v9750, 1.442695
      %v9864 = vpow.pop %v9863
      %v9865 = vmul.f32 %v9751, 1.442695
      %v9866 = vpow.pop %v9865
      %v9867 = vmul.f32 %v9752, 1.442695
      %v9868 = vpow.pop %v9867
      %v9869 = vmul.f32 %v9753, 1.442695
      %v9870 = vpow.pop %v9869
      %v9871 = vmul.f32 %v9754, 1.442695
      %v9872 = vpow.pop %v9871
      %v9873 = vmul.f32 %v9755, 1.442695
      %v9874 = vpow.pop %v9873
      %v9875 = vmul.f32 %v9756, 1.442695
      %v9876 = vpow.pop %v9875
      %v9877 = vmul.f32 %v9757, 1.442695
      %v9878 = vpow.pop %v9877
      %v9879 = vmul.f32 %v9758, 1.442695
      %v9880 = vpow.pop %v9879
      %v9881 = vmul.f32 %v9759, 1.442695
      %v9882 = vpow.pop %v9881
      %v9883 = vmul.f32 %v9760, 1.442695
      %v9884 = vpow.pop %v9883
      %v9885 = vmul.f32 %v9761, 1.442695
      %v9886 = vpow.pop %v9885
      %v9887 = vmul.f32 %v9762, 1.442695
      %v9888 = vpow.pop %v9887
      %v9889 = vmul.f32 %v9763, 1.442695
      %v9890 = vpow.pop %v9889
      %v9891 = vmul.f32 %v9764, 1.442695
      %v9892 = vpow.pop %v9891
      %v9893 = vadd.f32 %v9766, 1.0
      %v9894 = vadd.f32 %v9768, 1.0
      %v9895 = vadd.f32 %v9770, 1.0
      %v9896 = vadd.f32 %v9772, 1.0
      %v9897 = vadd.f32 %v9774, 1.0
      %v9898 = vadd.f32 %v9776, 1.0
      %v9899 = vadd.f32 %v9778, 1.0
      %v9900 = vadd.f32 %v9780, 1.0
      %v9901 = vadd.f32 %v9782, 1.0
      %v9902 = vadd.f32 %v9784, 1.0
      %v9903 = vadd.f32 %v9786, 1.0
      %v9904 = vadd.f32 %v9788, 1.0
      %v9905 = vadd.f32 %v9790, 1.0
      %v9906 = vadd.f32 %v9792, 1.0
      %v9907 = vadd.f32 %v9794, 1.0
      %v9908 = vadd.f32 %v9796, 1.0
      %v9909 = vadd.f32 %v9798, 1.0
      %v9910 = vadd.f32 %v9800, 1.0
      %v9911 = vadd.f32 %v9802, 1.0
      %v9912 = vadd.f32 %v9804, 1.0
      %v9913 = vadd.f32 %v9806, 1.0
      %v9914 = vadd.f32 %v9808, 1.0
      %v9915 = vadd.f32 %v9810, 1.0
      %v9916 = vadd.f32 %v9812, 1.0
      %v9917 = vadd.f32 %v9814, 1.0
      %v9918 = vadd.f32 %v9816, 1.0
      %v9919 = vadd.f32 %v9818, 1.0
      %v9920 = vadd.f32 %v9820, 1.0
      %v9921 = vadd.f32 %v9822, 1.0
      %v9922 = vadd.f32 %v9824, 1.0
      %v9923 = vadd.f32 %v9826, 1.0
      %v9924 = vadd.f32 %v9828, 1.0
      %v9925 = vadd.f32 %v9830, 1.0
      %v9926 = vadd.f32 %v9832, 1.0
      %v9927 = vadd.f32 %v9834, 1.0
      %v9928 = vadd.f32 %v9836, 1.0
      %v9929 = vadd.f32 %v9838, 1.0
      %v9930 = vadd.f32 %v9840, 1.0
      %v9931 = vadd.f32 %v9842, 1.0
      %v9932 = vadd.f32 %v9844, 1.0
      %v9933 = vadd.f32 %v9846, 1.0
      %v9934 = vadd.f32 %v9848, 1.0
      %v9935 = vadd.f32 %v9850, 1.0
      %v9936 = vadd.f32 %v9852, 1.0
      %v9937 = vadd.f32 %v9854, 1.0
      %v9938 = vadd.f32 %v9856, 1.0
      %v9939 = vadd.f32 %v9858, 1.0
      %v9940 = vadd.f32 %v9860, 1.0
      %v9941 = vadd.f32 %v9862, 1.0
      %v9942 = vadd.f32 %v9864, 1.0
      %v9943 = vadd.f32 %v9866, 1.0
      %v9944 = vadd.f32 %v9868, 1.0
      %v9945 = vadd.f32 %v9870, 1.0
      %v9946 = vadd.f32 %v9872, 1.0
      %v9947 = vadd.f32 %v9874, 1.0
      %v9948 = vadd.f32 %v9876, 1.0
      %v9949 = vadd.f32 %v9878, 1.0
      %v9950 = vadd.f32 %v9880, 1.0
      %v9951 = vadd.f32 %v9882, 1.0
      %v9952 = vadd.f32 %v9884, 1.0
      %v9953 = vadd.f32 %v9886, 1.0
      %v9954 = vadd.f32 %v9888, 1.0
      %v9955 = vadd.f32 %v9890, 1.0
      %v9956 = vadd.f32 %v9892, 1.0
      %v9957 = vrcp.pop %v9893
      %v9958 = vmul.f32 1.0, %v9957
      %v9959 = vrcp.pop %v9894
      %v9960 = vmul.f32 1.0, %v9959
      %v9961 = vrcp.pop %v9895
      %v9962 = vmul.f32 1.0, %v9961
      %v9963 = vrcp.pop %v9896
      %v9964 = vmul.f32 1.0, %v9963
      %v9965 = vrcp.pop %v9897
      %v9966 = vmul.f32 1.0, %v9965
      %v9967 = vrcp.pop %v9898
      %v9968 = vmul.f32 1.0, %v9967
      %v9969 = vrcp.pop %v9899
      %v9970 = vmul.f32 1.0, %v9969
      %v9971 = vrcp.pop %v9900
      %v9972 = vmul.f32 1.0, %v9971
      %v9973 = vrcp.pop %v9901
      %v9974 = vmul.f32 1.0, %v9973
      %v9975 = vrcp.pop %v9902
      %v9976 = vmul.f32 1.0, %v9975
      %v9977 = vrcp.pop %v9903
      %v9978 = vmul.f32 1.0, %v9977
      %v9979 = vrcp.pop %v9904
      %v9980 = vmul.f32 1.0, %v9979
      %v9981 = vrcp.pop %v9905
      %v9982 = vmul.f32 1.0, %v9981
      %v9983 = vrcp.pop %v9906
      %v9984 = vmul.f32 1.0, %v9983
      %v9985 = vrcp.pop %v9907
      %v9986 = vmul.f32 1.0, %v9985
      %v9987 = vrcp.pop %v9908
      %v9988 = vmul.f32 1.0, %v9987
      %v9989 = vrcp.pop %v9909
      %v9990 = vmul.f32 1.0, %v9989
      %v9991 = vrcp.pop %v9910
      %v9992 = vmul.f32 1.0, %v9991
      %v9993 = vrcp.pop %v9911
      %v9994 = vmul.f32 1.0, %v9993
      %v9995 = vrcp.pop %v9912
      %v9996 = vmul.f32 1.0, %v9995
      %v9997 = vrcp.pop %v9913
      %v9998 = vmul.f32 1.0, %v9997
      %v9999 = vrcp.pop %v9914
      %v10000 = vmul.f32 1.0, %v9999
      %v10001 = vrcp.pop %v9915
      %v10002 = vmul.f32 1.0, %v10001
      %v10003 = vrcp.pop %v9916
      %v10004 = vmul.f32 1.0, %v10003
      %v10005 = vrcp.pop %v9917
      %v10006 = vmul.f32 1.0, %v10005
      %v10007 = vrcp.pop %v9918
      %v10008 = vmul.f32 1.0, %v10007
      %v10009 = vrcp.pop %v9919
      %v10010 = vmul.f32 1.0, %v10009
      %v10011 = vrcp.pop %v9920
      %v10012 = vmul.f32 1.0, %v10011
      %v10013 = vrcp.pop %v9921
      %v10014 = vmul.f32 1.0, %v10013
      %v10015 = vrcp.pop %v9922
      %v10016 = vmul.f32 1.0, %v10015
      %v10017 = vrcp.pop %v9923
      %v10018 = vmul.f32 1.0, %v10017
      %v10019 = vrcp.pop %v9924
      %v10020 = vmul.f32 1.0, %v10019
      %v10021 = vrcp.pop %v9925
      %v10022 = vmul.f32 1.0, %v10021
      %v10023 = vrcp.pop %v9926
      %v10024 = vmul.f32 1.0, %v10023
      %v10025 = vrcp.pop %v9927
      %v10026 = vmul.f32 1.0, %v10025
      %v10027 = vrcp.pop %v9928
      %v10028 = vmul.f32 1.0, %v10027
      %v10029 = vrcp.pop %v9929
      %v10030 = vmul.f32 1.0, %v10029
      %v10031 = vrcp.pop %v9930
      %v10032 = vmul.f32 1.0, %v10031
      %v10033 = vrcp.pop %v9931
      %v10034 = vmul.f32 1.0, %v10033
      %v10035 = vrcp.pop %v9932
      %v10036 = vmul.f32 1.0, %v10035
      %v10037 = vrcp.pop %v9933
      %v10038 = vmul.f32 1.0, %v10037
      %v10039 = vrcp.pop %v9934
      %v10040 = vmul.f32 1.0, %v10039
      %v10041 = vrcp.pop %v9935
      %v10042 = vmul.f32 1.0, %v10041
      %v10043 = vrcp.pop %v9936
      %v10044 = vmul.f32 1.0, %v10043
      %v10045 = vrcp.pop %v9937
      %v10046 = vmul.f32 1.0, %v10045
      %v10047 = vrcp.pop %v9938
      %v10048 = vmul.f32 1.0, %v10047
      %v10049 = vrcp.pop %v9939
      %v10050 = vmul.f32 1.0, %v10049
      %v10051 = vrcp.pop %v9940
      %v10052 = vmul.f32 1.0, %v10051
      %v10053 = vrcp.pop %v9941
      %v10054 = vmul.f32 1.0, %v10053
      %v10055 = vrcp.pop %v9942
      %v10056 = vmul.f32 1.0, %v10055
      %v10057 = vrcp.pop %v9943
      %v10058 = vmul.f32 1.0, %v10057
      %v10059 = vrcp.pop %v9944
      %v10060 = vmul.f32 1.0, %v10059
      %v10061 = vrcp.pop %v9945
      %v10062 = vmul.f32 1.0, %v10061
      %v10063 = vrcp.pop %v9946
      %v10064 = vmul.f32 1.0, %v10063
      %v10065 = vrcp.pop %v9947
      %v10066 = vmul.f32 1.0, %v10065
      %v10067 = vrcp.pop %v9948
      %v10068 = vmul.f32 1.0, %v10067
      %v10069 = vrcp.pop %v9949
      %v10070 = vmul.f32 1.0, %v10069
      %v10071 = vrcp.pop %v9950
      %v10072 = vmul.f32 1.0, %v10071
      %v10073 = vrcp.pop %v9951
      %v10074 = vmul.f32 1.0, %v10073
      %v10075 = vrcp.pop %v9952
      %v10076 = vmul.f32 1.0, %v10075
      %v10077 = vrcp.pop %v9953
      %v10078 = vmul.f32 1.0, %v10077
      %v10079 = vrcp.pop %v9954
      %v10080 = vmul.f32 1.0, %v10079
      %v10081 = vrcp.pop %v9955
      %v10082 = vmul.f32 1.0, %v10081
      %v10083 = vrcp.pop %v9956
      %v10084 = vmul.f32 1.0, %v10083
      %v10085 = vlaneseq
      %v10086 = vand.u32 %v10085, 127
      %vm10087 = vcmp.eq.s32.totalorder %v10086, 0
      %v10088 = vsel %vm10087, %v8084, %v9958
      %v10089 = vsel %vm10087, %v8085, %v9960
      %v10090 = vsel %vm10087, %v8086, %v9962
      %v10091 = vsel %vm10087, %v8087, %v9964
      %v10092 = vsel %vm10087, %v8088, %v9966
      %v10093 = vsel %vm10087, %v8089, %v9968
      %v10094 = vsel %vm10087, %v8090, %v9970
      %v10095 = vsel %vm10087, %v8091, %v9972
      %v10096 = vsel %vm10087, %v8092, %v9974
      %v10097 = vsel %vm10087, %v8093, %v9976
      %v10098 = vsel %vm10087, %v8094, %v9978
      %v10099 = vsel %vm10087, %v8095, %v9980
      %v10100 = vsel %vm10087, %v8096, %v9982
      %v10101 = vsel %vm10087, %v8097, %v9984
      %v10102 = vsel %vm10087, %v8098, %v9986
      %v10103 = vsel %vm10087, %v8099, %v9988
      %v10104 = vsel %vm10087, %v8100, %v9990
      %v10105 = vsel %vm10087, %v8101, %v9992
      %v10106 = vsel %vm10087, %v8102, %v9994
      %v10107 = vsel %vm10087, %v8103, %v9996
      %v10108 = vsel %vm10087, %v8104, %v9998
      %v10109 = vsel %vm10087, %v8105, %v10000
      %v10110 = vsel %vm10087, %v8106, %v10002
      %v10111 = vsel %vm10087, %v8107, %v10004
      %v10112 = vsel %vm10087, %v8108, %v10006
      %v10113 = vsel %vm10087, %v8109, %v10008
      %v10114 = vsel %vm10087, %v8110, %v10010
      %v10115 = vsel %vm10087, %v8111, %v10012
      %v10116 = vsel %vm10087, %v8112, %v10014
      %v10117 = vsel %vm10087, %v8113, %v10016
      %v10118 = vsel %vm10087, %v8114, %v10018
      %v10119 = vsel %vm10087, %v8115, %v10020
      %v10120 = vsel %vm10087, %v8116, %v10022
      %v10121 = vsel %vm10087, %v8117, %v10024
      %v10122 = vsel %vm10087, %v8118, %v10026
      %v10123 = vsel %vm10087, %v8119, %v10028
      %v10124 = vsel %vm10087, %v8120, %v10030
      %v10125 = vsel %vm10087, %v8121, %v10032
      %v10126 = vsel %vm10087, %v8122, %v10034
      %v10127 = vsel %vm10087, %v8123, %v10036
      %v10128 = vsel %vm10087, %v8124, %v10038
      %v10129 = vsel %vm10087, %v8125, %v10040
      %v10130 = vsel %vm10087, %v8126, %v10042
      %v10131 = vsel %vm10087, %v8127, %v10044
      %v10132 = vsel %vm10087, %v8128, %v10046
      %v10133 = vsel %vm10087, %v8129, %v10048
      %v10134 = vsel %vm10087, %v8130, %v10050
      %v10135 = vsel %vm10087, %v8131, %v10052
      %v10136 = vsel %vm10087, %v8132, %v10054
      %v10137 = vsel %vm10087, %v8133, %v10056
      %v10138 = vsel %vm10087, %v8134, %v10058
      %v10139 = vsel %vm10087, %v8135, %v10060
      %v10140 = vsel %vm10087, %v8136, %v10062
      %v10141 = vsel %vm10087, %v8137, %v10064
      %v10142 = vsel %vm10087, %v8138, %v10066
      %v10143 = vsel %vm10087, %v8139, %v10068
      %v10144 = vsel %vm10087, %v8140, %v10070
      %v10145 = vsel %vm10087, %v8141, %v10072
      %v10146 = vsel %vm10087, %v8142, %v10074
      %v10147 = vsel %vm10087, %v8143, %v10076
      %v10148 = vsel %vm10087, %v8144, %v10078
      %v10149 = vsel %vm10087, %v8145, %v10080
      %v10150 = vsel %vm10087, %v8146, %v10082
      %v10151 = vsel %vm10087, %v8147, %v10084
      %10152 = vst [vmem:[%s302] sm:$0xff] %v10088
      %10153 = vst [vmem:[%s302 + $0x8] sm:$0xff] %v10089
      %10154 = vst [vmem:[%s302 + $0x10] sm:$0xff] %v10090
      %10155 = vst [vmem:[%s302 + $0x18] sm:$0xff] %v10091
      %10156 = vst [vmem:[%s302 + $0x20] sm:$0xff] %v10092
      %10157 = vst [vmem:[%s302 + $0x28] sm:$0xff] %v10093
      %10158 = vst [vmem:[%s302 + $0x30] sm:$0xff] %v10094
      %10159 = vst [vmem:[%s302 + $0x38] sm:$0xff] %v10095
      %10160 = vst [vmem:[%s302 + $0x40] sm:$0xff] %v10096
      %10161 = vst [vmem:[%s302 + $0x48] sm:$0xff] %v10097
      %10162 = vst [vmem:[%s302 + $0x50] sm:$0xff] %v10098
      %10163 = vst [vmem:[%s302 + $0x58] sm:$0xff] %v10099
      %10164 = vst [vmem:[%s302 + $0x60] sm:$0xff] %v10100
      %10165 = vst [vmem:[%s302 + $0x68] sm:$0xff] %v10101
      %10166 = vst [vmem:[%s302 + $0x70] sm:$0xff] %v10102
      %10167 = vst [vmem:[%s302 + $0x78] sm:$0xff] %v10103
      %10168 = vst [vmem:[%s302 + $0x80] sm:$0xff] %v10104
      %10169 = vst [vmem:[%s302 + $0x88] sm:$0xff] %v10105
      %10170 = vst [vmem:[%s302 + $0x90] sm:$0xff] %v10106
      %10171 = vst [vmem:[%s302 + $0x98] sm:$0xff] %v10107
      %10172 = vst [vmem:[%s302 + $0xa0] sm:$0xff] %v10108
      %10173 = vst [vmem:[%s302 + $0xa8] sm:$0xff] %v10109
      %10174 = vst [vmem:[%s302 + $0xb0] sm:$0xff] %v10110
      %10175 = vst [vmem:[%s302 + $0xb8] sm:$0xff] %v10111
      %10176 = vst [vmem:[%s302 + $0xc0] sm:$0xff] %v10112
      %10177 = vst [vmem:[%s302 + $0xc8] sm:$0xff] %v10113
      %10178 = vst [vmem:[%s302 + $0xd0] sm:$0xff] %v10114
      %10179 = vst [vmem:[%s302 + $0xd8] sm:$0xff] %v10115
      %10180 = vst [vmem:[%s302 + $0xe0] sm:$0xff] %v10116
      %10181 = vst [vmem:[%s302 + $0xe8] sm:$0xff] %v10117
      %10182 = vst [vmem:[%s302 + $0xf0] sm:$0xff] %v10118
      %10183 = vst [vmem:[%s302 + $0xf8] sm:$0xff] %v10119
      %10184 = vst [vmem:[%s302 + $0x100] sm:$0xff] %v10120
      %10185 = vst [vmem:[%s302 + $0x108] sm:$0xff] %v10121
      %10186 = vst [vmem:[%s302 + $0x110] sm:$0xff] %v10122
      %10187 = vst [vmem:[%s302 + $0x118] sm:$0xff] %v10123
      %10188 = vst [vmem:[%s302 + $0x120] sm:$0xff] %v10124
      %10189 = vst [vmem:[%s302 + $0x128] sm:$0xff] %v10125
      %10190 = vst [vmem:[%s302 + $0x130] sm:$0xff] %v10126
      %10191 = vst [vmem:[%s302 + $0x138] sm:$0xff] %v10127
      %10192 = vst [vmem:[%s302 + $0x140] sm:$0xff] %v10128
      %10193 = vst [vmem:[%s302 + $0x148] sm:$0xff] %v10129
      %10194 = vst [vmem:[%s302 + $0x150] sm:$0xff] %v10130
      %10195 = vst [vmem:[%s302 + $0x158] sm:$0xff] %v10131
      %10196 = vst [vmem:[%s302 + $0x160] sm:$0xff] %v10132
      %10197 = vst [vmem:[%s302 + $0x168] sm:$0xff] %v10133
      %10198 = vst [vmem:[%s302 + $0x170] sm:$0xff] %v10134
      %10199 = vst [vmem:[%s302 + $0x178] sm:$0xff] %v10135
      %10200 = vst [vmem:[%s302 + $0x180] sm:$0xff] %v10136
      %10201 = vst [vmem:[%s302 + $0x188] sm:$0xff] %v10137
      %10202 = vst [vmem:[%s302 + $0x190] sm:$0xff] %v10138
      %10203 = vst [vmem:[%s302 + $0x198] sm:$0xff] %v10139
      %10204 = vst [vmem:[%s302 + $0x1a0] sm:$0xff] %v10140
      %10205 = vst [vmem:[%s302 + $0x1a8] sm:$0xff] %v10141
      %10206 = vst [vmem:[%s302 + $0x1b0] sm:$0xff] %v10142
      %10207 = vst [vmem:[%s302 + $0x1b8] sm:$0xff] %v10143
      %10208 = vst [vmem:[%s302 + $0x1c0] sm:$0xff] %v10144
      %10209 = vst [vmem:[%s302 + $0x1c8] sm:$0xff] %v10145
      %10210 = vst [vmem:[%s302 + $0x1d0] sm:$0xff] %v10146
      %10211 = vst [vmem:[%s302 + $0x1d8] sm:$0xff] %v10147
      %10212 = vst [vmem:[%s302 + $0x1e0] sm:$0xff] %v10148
      %10213 = vst [vmem:[%s302 + $0x1e8] sm:$0xff] %v10149
      %10214 = vst [vmem:[%s302 + $0x1f0] sm:$0xff] %v10150
      %10215 = vst [vmem:[%s302 + $0x1f8] sm:$0xff] %v10151
      %s10216 = smul.u32 64, %s18
      %p10217 = scmp.lt.s32.totalorder %s10216, 127
      %s10218 = scalar_select %p10217, %s10216, 127
      %s10219 = smul.addr %s10218, 8
      %s10220 = scalar_lea.vmem %s7, %s10219
      // Predicated region
      $region49: #{_nerf_forward.1} parent=47 // pred_check
        %p10221 = pneg %p193
      $region50: #{_nerf_forward.1} parent=47 // pred_check_branch
        %10223 = sbr.rel (%p10221) target = $region52
      $region51: #{_nerf_forward.1} parent=47 // pred_region
        %s10224 = smul.u32 64, %s18
      $region52: #{_nerf_forward.1} parent=47 // pred_fallthru
        _
    $region48: #{_nerf_forward.1} parent=5 // pred_fallthru
      _
    %p10225 = scmp.le.s32.totalorder 2, %s13
    // Predicated region
    $region53: #{_nerf_forward.1} parent=5 // pred_check
      %p10226 = pneg %p10225
    $region54: #{_nerf_forward.1} parent=5 // pred_check_branch
      %10228 = sbr.rel (%p10226) target = $region56
    $region55: #{_nerf_forward.1} parent=5 // pred_region
      %s10229 = ssub.s32 %s13, 2
      // Predicated region
      $region57: #{_nerf_forward.1} parent=55 // pred_check
        %p10230 = pneg %p199
      $region58: #{_nerf_forward.1} parent=55 // pred_check_branch
        %10232 = sbr.rel (%p10230) target = $region60
      $region59: #{_nerf_forward.1} parent=55 // pred_region
        %s10233 = smul.u32 64, %s19
        %p10234 = scmp.lt.s32.totalorder %s10233, 127
        %s10235 = scalar_select %p10234, %s10233, 127
        %s10236 = smul.addr %s10235, 8
        %s10237 = scalar_lea.vmem %s7, %s10236
      $region60: #{_nerf_forward.1} parent=55 // pred_fallthru
        _
    $region56: #{_nerf_forward.1} parent=5 // pred_fallthru
      _
  $region6: #{_nerf_forward.1} parent=0 // loop_footer
    %s17 = sadd.s32 1, %s13
  $region7: #{_nerf_forward.1} parent=0 // loop_footer_branch
    %12 = sbr.rel target = $region3
  $region8: #{_nerf_forward.1} parent=0 // loop_exit
    _

</llo_original>
